<compile_context>
chip_gen: v7x
topology: tpu7x:2x2x1
jax: 0.10.0
libtpu: 0.0.40
codegen_flags: <defaults>
</compile_context>

<pallas_src>
import functools

import jax
import jax.numpy as jnp
from jax.experimental import pallas as pl
from jax.experimental.pallas import tpu as pltpu

EPS = 1e-5  # nn.InstanceNorm2d default eps


def _residual_block_kernel(xpf_ref, w1_ref, b1_ref, g1_ref, be1_ref,
                           w2_ref, b2_ref, g2_ref, be2_ref,
                           o_ref, hp_ref, *, H, W, Wp):
    """One batch element.

    xpf_ref : (Npad, C) f32   flattened reflection-padded input, row pitch Wp
    w*_ref  : (9, C, C) bf16  conv taps, tap t = dy*3+dx, layout (Cin, Cout)
    b*/g*/be*: (1, C)   f32   conv bias / InstanceNorm gamma / beta
    o_ref   : (L, C)          flattened output, pitch Wp (cols >= W are junk)
    hp_ref  : (Npad, C) f32   scratch holding the reflection-padded mid tensor
    """
    C = o_ref.shape[-1]
    L = H * Wp                      # covers every valid output position y*Wp+x
    inv_n = 1.0 / (H * W)

    # valid-column mask: columns >= W of each pitch-Wp row are junk positions.
    col = jax.lax.broadcasted_iota(jnp.int32, (L, 1), 0) % Wp
    valid = col < W

    def conv3x3(read_tap, w_ref, b_ref):
        # 9 shifted contiguous reads, each a (L, C) @ (C, C) bf16 MXU matmul
        # accumulated in f32.  (On v6e/v7x these could be fused into one
        # K=9C im2col matmul; kept as 9 accumulating K=C matmuls for clarity.)
        acc = jnp.zeros((L, C), jnp.float32)
        for t in range(9):
            dy, dx = divmod(t, 3)
            acc = acc + jnp.dot(read_tap(dy * Wp + dx), w_ref[t],
                                preferred_element_type=jnp.float32)
        # the conv bias cancels inside InstanceNorm; kept for fidelity (cheap).
        return acc + b_ref[...].astype(jnp.float32)

    def instance_norm(a, g_ref, be_ref):
        # single-pass masked statistics: var = E[x^2] - mean^2, all in f32.
        a_m = jnp.where(valid, a, 0.0)
        s1 = jnp.sum(a_m, axis=0, keepdims=True)
        s2 = jnp.sum(a_m * a_m, axis=0, keepdims=True)
        mean = s1 * inv_n
        var = jnp.maximum(s2 * inv_n - mean * mean, 0.0)
        scale = jax.lax.rsqrt(var + EPS) * g_ref[...].astype(jnp.float32)
        return (a - mean) * scale + be_ref[...].astype(jnp.float32)

    # ---- conv1 -> IN1 -> ReLU (taps read straight from the input ref) -------
    read_x = lambda s: xpf_ref[pl.ds(s, L), :].astype(jnp.bfloat16)
    h = conv3x3(read_x, w1_ref, b1_ref)
    h = jnp.maximum(instance_norm(h, g1_ref, be1_ref), 0.0)

    # ---- build reflection-padded h in the scratch (flat, pitch Wp) ----------
    # interior hp[u, v] = h[u-1, v-1]: one contiguous store shifted by Wp+1.
    hp_ref[pl.ds(Wp + 1, L), :] = h
    # mirrored left/right columns: hp[u,0]=hp[u,2], hp[u,W+1]=hp[u,W-1].
    def _fix_cols(u, carry):
        base = u * Wp
        hp_ref[pl.ds(base, 1), :] = hp_ref[pl.ds(base + 2, 1), :]
        hp_ref[pl.ds(base + W + 1, 1), :] = hp_ref[pl.ds(base + W - 1, 1), :]
        return carry
    jax.lax.fori_loop(1, H + 1, _fix_cols, 0)
    # mirrored top/bottom rows (contiguous pitch-wide copies, already col-padded)
    hp_ref[pl.ds(0, Wp), :] = hp_ref[pl.ds(2 * Wp, Wp), :]
    hp_ref[pl.ds((H + 1) * Wp, Wp), :] = hp_ref[pl.ds((H - 1) * Wp, Wp), :]
    # zero the slack tail so over-reads at junk output positions stay finite.
    tail = hp_ref.shape[0] - (H + 2) * Wp
    hp_ref[pl.ds((H + 2) * Wp, tail), :] = jnp.zeros((tail, C), jnp.float32)

    # ---- conv2 -> IN2 -> + residual ------------------------------------------
    read_h = lambda s: hp_ref[pl.ds(s, L), :].astype(jnp.bfloat16)
    h2 = conv3x3(read_h, w2_ref, b2_ref)
    h2 = instance_norm(h2, g2_ref, be2_ref)

    # residual = x itself = interior of the reflection-padded input (re-read
    # from the ref here so it is never held live across the convs/norms).
    residual = xpf_ref[pl.ds(Wp + 1, L), :]
    o_ref[...] = (h2 + residual).astype(o_ref.dtype)


def residual_block_nhwc(x_nhwc, params):
    """Fused ResidualBlock on NHWC input, NHWC output.

    Chains of residual blocks should call this directly so the NCHW<->NHWC
    transposes are paid once at the network boundary only.
    """
    w1, b1, g1, be1, w2, b2, g2, be2 = params          # w*: (3,3,Cin,Cout)
    B, H, W, C = x_nhwc.shape
    assert H >= 2 and W >= 2, "ReflectionPad2d(1) needs H, W >= 2"
    Wp = W + 2                      # row pitch of the flattened padded image
    L = H * Wp                      # flat length covering all valid outputs
    Npad = (H + 3) * Wp             # + slack so every tap slice is in bounds

    # reflect-pad, flatten spatial dims, zero-pad the flat tail (wrapper-side
    # layout plumbing; the kernel itself never reshapes).
    xp = jnp.pad(x_nhwc, ((0, 0), (1, 1), (1, 1), (0, 0)), mode="reflect")
    xpf = xp.reshape(B, (H + 2) * Wp, C)
    xpf = jnp.pad(xpf, ((0, 0), (0, Npad - (H + 2) * Wp), (0, 0)))

    tap = lambda w: w.reshape(9, C, C).astype(jnp.bfloat16)   # (9, Cin, Cout)
    vec = lambda v: v.reshape(1, C).astype(jnp.float32)

    kernel = functools.partial(_residual_block_kernel, H=H, W=W, Wp=Wp)
    full = lambda shape: pl.BlockSpec(shape, lambda b, _s=shape: (0,) * len(_s))

    out_flat = pl.pallas_call(
        kernel,
        out_shape=jax.ShapeDtypeStruct((B, L, C), x_nhwc.dtype),
        grid=(B,),
        in_specs=[
            pl.BlockSpec((None, Npad, C), lambda b: (b, 0, 0)),
            full((9, C, C)), full((1, C)), full((1, C)), full((1, C)),
            full((9, C, C)), full((1, C)), full((1, C)), full((1, C)),
        ],
        out_specs=pl.BlockSpec((None, L, C), lambda b: (b, 0, 0)),
        scratch_shapes=[pltpu.VMEM((Npad, C), jnp.float32)],
        compiler_params=pltpu.CompilerParams(
            dimension_semantics=("parallel",),
            # explicit budget; fits v7x's 64 MiB physical VMEM.  For very large
            # H*W, switch to row tiles + two-pass InstanceNorm instead.
            vmem_limit_bytes=64 * 1024 * 1024),
    )(xpf, tap(w1), vec(b1), vec(g1), vec(be1),
      tap(w2), vec(b2), vec(g2), vec(be2))

    # un-flatten and drop the pitch-padding columns (outside the kernel).
    return out_flat.reshape(B, H, Wp, C)[:, :, :W, :]


def residual_block(x_nchw, params):
    """NCHW wrapper matching the PyTorch module interface."""
    x = jnp.transpose(x_nchw, (0, 2, 3, 1))
    out = residual_block_nhwc(x, params)
    return jnp.transpose(out, (0, 3, 1, 2))


def _reference(x_nchw, params):
    """Pure-JAX f32 reference (mirrors the PyTorch forward), NCHW in/out."""
    w1, b1, g1, be1, w2, b2, g2, be2 = params
    x = jnp.transpose(x_nchw, (0, 2, 3, 1))

    def conv(a, w, b):
        ap = jnp.pad(a, ((0, 0), (1, 1), (1, 1), (0, 0)), mode="reflect")
        y = jax.lax.conv_general_dilated(
            ap, w, window_strides=(1, 1), padding="VALID",
            dimension_numbers=("NHWC", "HWIO", "NHWC"))
        return y + b

    def inorm(a, g, be):
        m = a.mean(axis=(1, 2), keepdims=True)
        v = ((a - m) ** 2).mean(axis=(1, 2), keepdims=True)
        return (a - m) * jax.lax.rsqrt(v + EPS) * g + be

    h = jnp.maximum(inorm(conv(x, w1, b1), g1, be1), 0.0)
    h = inorm(conv(h, w2, b2), g2, be2)
    return jnp.transpose(h + x, (0, 3, 1, 2))


def _init_params(key, channels):
    ks = jax.random.split(key, 8)
    C = channels
    w1 = 0.1 * jax.random.normal(ks[0], (3, 3, C, C), jnp.float32)
    b1 = 0.1 * jax.random.normal(ks[1], (C,), jnp.float32)
    g1 = 1.0 + 0.1 * jax.random.normal(ks[2], (C,), jnp.float32)
    be1 = 0.1 * jax.random.normal(ks[3], (C,), jnp.float32)
    w2 = 0.1 * jax.random.normal(ks[4], (3, 3, C, C), jnp.float32)
    b2 = 0.1 * jax.random.normal(ks[5], (C,), jnp.float32)
    g2 = 1.0 + 0.1 * jax.random.normal(ks[6], (C,), jnp.float32)
    be2 = 0.1 * jax.random.normal(ks[7], (C,), jnp.float32)
    return (w1, b1, g1, be1, w2, b2, g2, be2)


if __name__ == "__main__":
    key = jax.random.PRNGKey(0)
    k_x, k_p = jax.random.split(key)
    # channels=128 keeps the channel/lane dim dense (the real fast-neural-style
    # ResidualBlock uses 128 channels); spatial stays small.
    B, C, H, W = 2, 128, 16, 16
    x = jax.random.normal(k_x, (B, C, H, W), jnp.float32)
    params = _init_params(k_p, C)

    out = jax.block_until_ready(residual_block(x, params))
    ref = jax.block_until_ready(_reference(x, params))

    assert out.shape == (B, C, H, W), out.shape
    # tolerance accounts for bf16 MXU operands (f32 accumulation) in the
    # kernel vs the all-f32 reference.
    err = float(jnp.max(jnp.abs(out - ref)))
    assert jnp.allclose(out, ref, atol=2e-2, rtol=2e-2), err
    print("KERNEL_OK")
</pallas_src>

<mosaic_0001>
module attributes {stable_mosaic.version = 11 : i64} {
  func.func @_residual_block_kernel(%arg0: i32, %arg1: memref<1x342x128xf32, #tpu.memory_space<vmem>>, %arg2: memref<9x128x128xbf16, #tpu.memory_space<vmem>>, %arg3: memref<1x128xf32, #tpu.memory_space<vmem>>, %arg4: memref<1x128xf32, #tpu.memory_space<vmem>>, %arg5: memref<1x128xf32, #tpu.memory_space<vmem>>, %arg6: memref<9x128x128xbf16, #tpu.memory_space<vmem>>, %arg7: memref<1x128xf32, #tpu.memory_space<vmem>>, %arg8: memref<1x128xf32, #tpu.memory_space<vmem>>, %arg9: memref<1x128xf32, #tpu.memory_space<vmem>>, %arg10: memref<1x288x128xf32, #tpu.memory_space<vmem>>, %arg11: memref<342x128xf32, #tpu.memory_space<vmem>>) attributes {dimension_semantics = [#tpu.dimension_semantics<parallel>], iteration_bounds = array<i64: 2>, scalar_prefetch = 0 : i64, scratch_operands = 1 : i64, tpu.core_type = #tpu.core_type<tc>, window_params = [{transform_indices = @transform_0, window_bounds = array<i64: 1, 342, 128>}, {pipeline_mode = #tpu.pipeline_mode<synchronous>, transform_indices = @transform_1, window_bounds = array<i64: 9, 128, 128>}, {pipeline_mode = #tpu.pipeline_mode<synchronous>, transform_indices = @transform_2, window_bounds = array<i64: 1, 128>}, {pipeline_mode = #tpu.pipeline_mode<synchronous>, transform_indices = @transform_3, window_bounds = array<i64: 1, 128>}, {pipeline_mode = #tpu.pipeline_mode<synchronous>, transform_indices = @transform_4, window_bounds = array<i64: 1, 128>}, {pipeline_mode = #tpu.pipeline_mode<synchronous>, transform_indices = @transform_5, window_bounds = array<i64: 9, 128, 128>}, {pipeline_mode = #tpu.pipeline_mode<synchronous>, transform_indices = @transform_6, window_bounds = array<i64: 1, 128>}, {pipeline_mode = #tpu.pipeline_mode<synchronous>, transform_indices = @transform_7, window_bounds = array<i64: 1, 128>}, {pipeline_mode = #tpu.pipeline_mode<synchronous>, transform_indices = @transform_8, window_bounds = array<i64: 1, 128>}, {transform_indices = @transform_9, window_bounds = array<i64: 1, 288, 128>}]} {
    %0 = tpu.iota {dimensions = array<i32: 0>} : vector<288x1xi32>
    %c18_i32 = arith.constant 18 : i32
    %c0_i32 = arith.constant 0 : i32
    %1 = arith.cmpi eq, %c18_i32, %c0_i32 : i32
    %c1_i32 = arith.constant 1 : i32
    %2 = arith.select %1, %c1_i32, %c18_i32 : i32
    %3 = vector.broadcast %2 : i32 to vector<288x1xi32>
    %4 = arith.remsi %0, %3 : vector<288x1xi32>
    %c0_i32_0 = arith.constant 0 : i32
    %5 = vector.broadcast %c0_i32_0 : i32 to vector<288x1xi32>
    %6 = arith.cmpi ne, %4, %5 : vector<288x1xi32>
    %c0_i32_1 = arith.constant 0 : i32
    %7 = vector.broadcast %c0_i32_1 : i32 to vector<288x1xi32>
    %8 = arith.cmpi slt, %4, %7 : vector<288x1xi32>
    %c0_i32_2 = arith.constant 0 : i32
    %9 = arith.cmpi slt, %2, %c0_i32_2 : i32
    %10 = vector.broadcast %9 : i1 to vector<288x1xi1>
    %11 = vector.broadcast %10 : vector<288x1xi1> to vector<288x1xi1>
    %12 = arith.xori %8, %11 : vector<288x1xi1>
    %13 = arith.andi %12, %6 : vector<288x1xi1>
    %14 = vector.broadcast %2 : i32 to vector<288x1xi32>
    %15 = arith.addi %4, %14 : vector<288x1xi32>
    %16 = arith.select %13, %15, %4 : vector<288x1xi1>, vector<288x1xi32>
    %c16_i32 = arith.constant 16 : i32
    %17 = vector.broadcast %c16_i32 : i32 to vector<288x1xi32>
    %18 = arith.cmpi slt, %16, %17 : vector<288x1xi32>
    %cst = arith.constant 0.000000e+00 : f32
    %19 = vector.broadcast %cst : f32 to vector<288x128xf32>
    %c0 = arith.constant 0 : index
    %c0_3 = arith.constant 0 : index
    %c0_4 = arith.constant 0 : index
    %20 = vector.load %arg1[%c0, %c0_3, %c0_4] : memref<1x342x128xf32, #tpu.memory_space<vmem>>, vector<1x288x128xf32>
    %21 = vector.shape_cast %20 : vector<1x288x128xf32> to vector<288x128xf32>
    %22 = arith.truncf %21 : vector<288x128xf32> to vector<288x128xbf16>
    %c0_5 = arith.constant 0 : index
    %c0_6 = arith.constant 0 : index
    %c0_7 = arith.constant 0 : index
    %23 = vector.load %arg2[%c0_5, %c0_6, %c0_7] : memref<9x128x128xbf16, #tpu.memory_space<vmem>>, vector<1x128x128xbf16>
    %24 = vector.shape_cast %23 : vector<1x128x128xbf16> to vector<128x128xbf16>
    %cst_8 = arith.constant dense<0.000000e+00> : vector<288x128xf32>
    %25 = tpu.matmul %22, %24, %cst_8 {dimension_numbers = #tpu.dot_dimension_numbers<[1], [0], [0], [1], [0, 0, 1, 1], [], []>} : vector<288x128xbf16>, vector<128x128xbf16>, vector<288x128xf32> -> vector<288x128xf32>
    %26 = arith.addf %19, %25 : vector<288x128xf32>
    %c0_9 = arith.constant 0 : index
    %c1 = arith.constant 1 : index
    %c0_10 = arith.constant 0 : index
    %27 = vector.load %arg1[%c0_9, %c1, %c0_10] : memref<1x342x128xf32, #tpu.memory_space<vmem>>, vector<1x288x128xf32>
    %28 = vector.shape_cast %27 : vector<1x288x128xf32> to vector<288x128xf32>
    %29 = arith.truncf %28 : vector<288x128xf32> to vector<288x128xbf16>
    %c1_11 = arith.constant 1 : index
    %c0_12 = arith.constant 0 : index
    %c0_13 = arith.constant 0 : index
    %30 = vector.load %arg2[%c1_11, %c0_12, %c0_13] : memref<9x128x128xbf16, #tpu.memory_space<vmem>>, vector<1x128x128xbf16>
    %31 = vector.shape_cast %30 : vector<1x128x128xbf16> to vector<128x128xbf16>
    %cst_14 = arith.constant dense<0.000000e+00> : vector<288x128xf32>
    %32 = tpu.matmul %29, %31, %cst_14 {dimension_numbers = #tpu.dot_dimension_numbers<[1], [0], [0], [1], [0, 0, 1, 1], [], []>} : vector<288x128xbf16>, vector<128x128xbf16>, vector<288x128xf32> -> vector<288x128xf32>
    %33 = arith.addf %26, %32 : vector<288x128xf32>
    %c0_15 = arith.constant 0 : index
    %c2 = arith.constant 2 : index
    %c0_16 = arith.constant 0 : index
    %34 = vector.load %arg1[%c0_15, %c2, %c0_16] : memref<1x342x128xf32, #tpu.memory_space<vmem>>, vector<1x288x128xf32>
    %35 = vector.shape_cast %34 : vector<1x288x128xf32> to vector<288x128xf32>
    %36 = arith.truncf %35 : vector<288x128xf32> to vector<288x128xbf16>
    %c2_17 = arith.constant 2 : index
    %c0_18 = arith.constant 0 : index
    %c0_19 = arith.constant 0 : index
    %37 = vector.load %arg2[%c2_17, %c0_18, %c0_19] : memref<9x128x128xbf16, #tpu.memory_space<vmem>>, vector<1x128x128xbf16>
    %38 = vector.shape_cast %37 : vector<1x128x128xbf16> to vector<128x128xbf16>
    %cst_20 = arith.constant dense<0.000000e+00> : vector<288x128xf32>
    %39 = tpu.matmul %36, %38, %cst_20 {dimension_numbers = #tpu.dot_dimension_numbers<[1], [0], [0], [1], [0, 0, 1, 1], [], []>} : vector<288x128xbf16>, vector<128x128xbf16>, vector<288x128xf32> -> vector<288x128xf32>
    %40 = arith.addf %33, %39 : vector<288x128xf32>
    %c0_21 = arith.constant 0 : index
    %c18 = arith.constant 18 : index
    %c0_22 = arith.constant 0 : index
    %41 = vector.load %arg1[%c0_21, %c18, %c0_22] : memref<1x342x128xf32, #tpu.memory_space<vmem>>, vector<1x288x128xf32>
    %42 = vector.shape_cast %41 : vector<1x288x128xf32> to vector<288x128xf32>
    %43 = arith.truncf %42 : vector<288x128xf32> to vector<288x128xbf16>
    %c3 = arith.constant 3 : index
    %c0_23 = arith.constant 0 : index
    %c0_24 = arith.constant 0 : index
    %44 = vector.load %arg2[%c3, %c0_23, %c0_24] : memref<9x128x128xbf16, #tpu.memory_space<vmem>>, vector<1x128x128xbf16>
    %45 = vector.shape_cast %44 : vector<1x128x128xbf16> to vector<128x128xbf16>
    %cst_25 = arith.constant dense<0.000000e+00> : vector<288x128xf32>
    %46 = tpu.matmul %43, %45, %cst_25 {dimension_numbers = #tpu.dot_dimension_numbers<[1], [0], [0], [1], [0, 0, 1, 1], [], []>} : vector<288x128xbf16>, vector<128x128xbf16>, vector<288x128xf32> -> vector<288x128xf32>
    %47 = arith.addf %40, %46 : vector<288x128xf32>
    %c0_26 = arith.constant 0 : index
    %c19 = arith.constant 19 : index
    %c0_27 = arith.constant 0 : index
    %48 = vector.load %arg1[%c0_26, %c19, %c0_27] : memref<1x342x128xf32, #tpu.memory_space<vmem>>, vector<1x288x128xf32>
    %49 = vector.shape_cast %48 : vector<1x288x128xf32> to vector<288x128xf32>
    %50 = arith.truncf %49 : vector<288x128xf32> to vector<288x128xbf16>
    %c4 = arith.constant 4 : index
    %c0_28 = arith.constant 0 : index
    %c0_29 = arith.constant 0 : index
    %51 = vector.load %arg2[%c4, %c0_28, %c0_29] : memref<9x128x128xbf16, #tpu.memory_space<vmem>>, vector<1x128x128xbf16>
    %52 = vector.shape_cast %51 : vector<1x128x128xbf16> to vector<128x128xbf16>
    %cst_30 = arith.constant dense<0.000000e+00> : vector<288x128xf32>
    %53 = tpu.matmul %50, %52, %cst_30 {dimension_numbers = #tpu.dot_dimension_numbers<[1], [0], [0], [1], [0, 0, 1, 1], [], []>} : vector<288x128xbf16>, vector<128x128xbf16>, vector<288x128xf32> -> vector<288x128xf32>
    %54 = arith.addf %47, %53 : vector<288x128xf32>
    %c0_31 = arith.constant 0 : index
    %c20 = arith.constant 20 : index
    %c0_32 = arith.constant 0 : index
    %55 = vector.load %arg1[%c0_31, %c20, %c0_32] : memref<1x342x128xf32, #tpu.memory_space<vmem>>, vector<1x288x128xf32>
    %56 = vector.shape_cast %55 : vector<1x288x128xf32> to vector<288x128xf32>
    %57 = arith.truncf %56 : vector<288x128xf32> to vector<288x128xbf16>
    %c5 = arith.constant 5 : index
    %c0_33 = arith.constant 0 : index
    %c0_34 = arith.constant 0 : index
    %58 = vector.load %arg2[%c5, %c0_33, %c0_34] : memref<9x128x128xbf16, #tpu.memory_space<vmem>>, vector<1x128x128xbf16>
    %59 = vector.shape_cast %58 : vector<1x128x128xbf16> to vector<128x128xbf16>
    %cst_35 = arith.constant dense<0.000000e+00> : vector<288x128xf32>
    %60 = tpu.matmul %57, %59, %cst_35 {dimension_numbers = #tpu.dot_dimension_numbers<[1], [0], [0], [1], [0, 0, 1, 1], [], []>} : vector<288x128xbf16>, vector<128x128xbf16>, vector<288x128xf32> -> vector<288x128xf32>
    %61 = arith.addf %54, %60 : vector<288x128xf32>
    %c0_36 = arith.constant 0 : index
    %c36 = arith.constant 36 : index
    %c0_37 = arith.constant 0 : index
    %62 = vector.load %arg1[%c0_36, %c36, %c0_37] : memref<1x342x128xf32, #tpu.memory_space<vmem>>, vector<1x288x128xf32>
    %63 = vector.shape_cast %62 : vector<1x288x128xf32> to vector<288x128xf32>
    %64 = arith.truncf %63 : vector<288x128xf32> to vector<288x128xbf16>
    %c6 = arith.constant 6 : index
    %c0_38 = arith.constant 0 : index
    %c0_39 = arith.constant 0 : index
    %65 = vector.load %arg2[%c6, %c0_38, %c0_39] : memref<9x128x128xbf16, #tpu.memory_space<vmem>>, vector<1x128x128xbf16>
    %66 = vector.shape_cast %65 : vector<1x128x128xbf16> to vector<128x128xbf16>
    %cst_40 = arith.constant dense<0.000000e+00> : vector<288x128xf32>
    %67 = tpu.matmul %64, %66, %cst_40 {dimension_numbers = #tpu.dot_dimension_numbers<[1], [0], [0], [1], [0, 0, 1, 1], [], []>} : vector<288x128xbf16>, vector<128x128xbf16>, vector<288x128xf32> -> vector<288x128xf32>
    %68 = arith.addf %61, %67 : vector<288x128xf32>
    %c0_41 = arith.constant 0 : index
    %c37 = arith.constant 37 : index
    %c0_42 = arith.constant 0 : index
    %69 = vector.load %arg1[%c0_41, %c37, %c0_42] : memref<1x342x128xf32, #tpu.memory_space<vmem>>, vector<1x288x128xf32>
    %70 = vector.shape_cast %69 : vector<1x288x128xf32> to vector<288x128xf32>
    %71 = arith.truncf %70 : vector<288x128xf32> to vector<288x128xbf16>
    %c7 = arith.constant 7 : index
    %c0_43 = arith.constant 0 : index
    %c0_44 = arith.constant 0 : index
    %72 = vector.load %arg2[%c7, %c0_43, %c0_44] : memref<9x128x128xbf16, #tpu.memory_space<vmem>>, vector<1x128x128xbf16>
    %73 = vector.shape_cast %72 : vector<1x128x128xbf16> to vector<128x128xbf16>
    %cst_45 = arith.constant dense<0.000000e+00> : vector<288x128xf32>
    %74 = tpu.matmul %71, %73, %cst_45 {dimension_numbers = #tpu.dot_dimension_numbers<[1], [0], [0], [1], [0, 0, 1, 1], [], []>} : vector<288x128xbf16>, vector<128x128xbf16>, vector<288x128xf32> -> vector<288x128xf32>
    %75 = arith.addf %68, %74 : vector<288x128xf32>
    %c0_46 = arith.constant 0 : index
    %c38 = arith.constant 38 : index
    %c0_47 = arith.constant 0 : index
    %76 = vector.load %arg1[%c0_46, %c38, %c0_47] : memref<1x342x128xf32, #tpu.memory_space<vmem>>, vector<1x288x128xf32>
    %77 = vector.shape_cast %76 : vector<1x288x128xf32> to vector<288x128xf32>
    %78 = arith.truncf %77 : vector<288x128xf32> to vector<288x128xbf16>
    %c8 = arith.constant 8 : index
    %c0_48 = arith.constant 0 : index
    %c0_49 = arith.constant 0 : index
    %79 = vector.load %arg2[%c8, %c0_48, %c0_49] : memref<9x128x128xbf16, #tpu.memory_space<vmem>>, vector<1x128x128xbf16>
    %80 = vector.shape_cast %79 : vector<1x128x128xbf16> to vector<128x128xbf16>
    %cst_50 = arith.constant dense<0.000000e+00> : vector<288x128xf32>
    %81 = tpu.matmul %78, %80, %cst_50 {dimension_numbers = #tpu.dot_dimension_numbers<[1], [0], [0], [1], [0, 0, 1, 1], [], []>} : vector<288x128xbf16>, vector<128x128xbf16>, vector<288x128xf32> -> vector<288x128xf32>
    %82 = arith.addf %75, %81 : vector<288x128xf32>
    %c0_51 = arith.constant 0 : index
    %c0_52 = arith.constant 0 : index
    %83 = vector.load %arg3[%c0_51, %c0_52] : memref<1x128xf32, #tpu.memory_space<vmem>>, vector<1x128xf32>
    %84 = vector.broadcast %83 : vector<1x128xf32> to vector<288x128xf32>
    %85 = arith.addf %82, %84 : vector<288x128xf32>
    %cst_53 = arith.constant 0.000000e+00 : f32
    %86 = vector.shape_cast %18 : vector<288x1xi1> to vector<288x1xi1>
    %87 = vector.broadcast %86 : vector<288x1xi1> to vector<288x128xi1>
    %88 = vector.broadcast %cst_53 : f32 to vector<288x128xf32>
    %89 = arith.select %87, %85, %88 : vector<288x128xi1>, vector<288x128xf32>
    %cst_54 = arith.constant dense<0.000000e+00> : vector<128xf32>
    %90 = vector.multi_reduction <add>, %89, %cst_54 [0] : vector<288x128xf32> to vector<128xf32>
    %91 = vector.shape_cast %90 : vector<128xf32> to vector<1x128xf32>
    %92 = arith.mulf %89, %89 : vector<288x128xf32>
    %cst_55 = arith.constant dense<0.000000e+00> : vector<128xf32>
    %93 = vector.multi_reduction <add>, %92, %cst_55 [0] : vector<288x128xf32> to vector<128xf32>
    %94 = vector.shape_cast %93 : vector<128xf32> to vector<1x128xf32>
    %cst_56 = arith.constant 3.906250e-03 : f32
    %95 = vector.broadcast %cst_56 : f32 to vector<1x128xf32>
    %96 = arith.mulf %91, %95 : vector<1x128xf32>
    %cst_57 = arith.constant 3.906250e-03 : f32
    %97 = vector.broadcast %cst_57 : f32 to vector<1x128xf32>
    %98 = arith.mulf %94, %97 : vector<1x128xf32>
    %99 = arith.mulf %96, %96 : vector<1x128xf32>
    %100 = arith.subf %98, %99 : vector<1x128xf32>
    %cst_58 = arith.constant 0.000000e+00 : f32
    %101 = vector.broadcast %cst_58 : f32 to vector<1x128xf32>
    %102 = arith.maximumf %100, %101 : vector<1x128xf32>
    %cst_59 = arith.constant 9.99999974E-6 : f32
    %103 = vector.broadcast %cst_59 : f32 to vector<1x128xf32>
    %104 = arith.addf %102, %103 : vector<1x128xf32>
    %105 = math.rsqrt %104 : vector<1x128xf32>
    %c0_60 = arith.constant 0 : index
    %c0_61 = arith.constant 0 : index
    %106 = vector.load %arg4[%c0_60, %c0_61] : memref<1x128xf32, #tpu.memory_space<vmem>>, vector<1x128xf32>
    %107 = arith.mulf %105, %106 : vector<1x128xf32>
    %108 = vector.broadcast %96 : vector<1x128xf32> to vector<288x128xf32>
    %109 = arith.subf %85, %108 : vector<288x128xf32>
    %110 = vector.broadcast %107 : vector<1x128xf32> to vector<288x128xf32>
    %111 = arith.mulf %109, %110 : vector<288x128xf32>
    %c0_62 = arith.constant 0 : index
    %c0_63 = arith.constant 0 : index
    %112 = vector.load %arg5[%c0_62, %c0_63] : memref<1x128xf32, #tpu.memory_space<vmem>>, vector<1x128xf32>
    %113 = vector.broadcast %112 : vector<1x128xf32> to vector<288x128xf32>
    %114 = arith.addf %111, %113 : vector<288x128xf32>
    %cst_64 = arith.constant 0.000000e+00 : f32
    %115 = vector.broadcast %cst_64 : f32 to vector<288x128xf32>
    %116 = arith.maximumf %114, %115 : vector<288x128xf32>
    %c19_65 = arith.constant 19 : index
    %c0_66 = arith.constant 0 : index
    %117 = vector.load %arg11[%c19_65, %c0_66] : memref<342x128xf32, #tpu.memory_space<vmem>>, vector<288x128xf32>
    tpu.vector_store %arg11[%c19_65, %c0_66], %116 {strides = array<i32>} : memref<342x128xf32, #tpu.memory_space<vmem>>, vector<288x128xf32>,
    %c1_i32_67 = arith.constant 1 : i32
    %c16_i32_68 = arith.constant 16 : i32
    %118 = arith.addi %c1_i32_67, %c16_i32_68 : i32
    %c1_i32_69 = arith.constant 1 : i32
    scf.for %arg12 = %c1_i32_67 to %118 step %c1_i32_69  : i32 {
      %c18_i32_153 = arith.constant 18 : i32
      %218 = arith.muli %arg12, %c18_i32_153 : i32
      %c2_i32 = arith.constant 2 : i32
      %219 = arith.addi %218, %c2_i32 : i32
      %220 = arith.index_cast %219 : i32 to index
      %c0_154 = arith.constant 0 : index
      %221 = vector.load %arg11[%220, %c0_154] : memref<342x128xf32, #tpu.memory_space<vmem>>, vector<1x128xf32>
      %222 = arith.index_cast %218 : i32 to index
      %c0_155 = arith.constant 0 : index
      %223 = vector.load %arg11[%222, %c0_155] : memref<342x128xf32, #tpu.memory_space<vmem>>, vector<1x128xf32>
      tpu.vector_store %arg11[%222, %c0_155], %221 {strides = array<i32>} : memref<342x128xf32, #tpu.memory_space<vmem>>, vector<1x128xf32>,
      %c16_i32_156 = arith.constant 16 : i32
      %224 = arith.addi %218, %c16_i32_156 : i32
      %c1_i32_157 = arith.constant 1 : i32
      %225 = arith.subi %224, %c1_i32_157 : i32
      %226 = arith.index_cast %225 : i32 to index
      %c0_158 = arith.constant 0 : index
      %227 = vector.load %arg11[%226, %c0_158] : memref<342x128xf32, #tpu.memory_space<vmem>>, vector<1x128xf32>
      %c16_i32_159 = arith.constant 16 : i32
      %228 = arith.addi %218, %c16_i32_159 : i32
      %c1_i32_160 = arith.constant 1 : i32
      %229 = arith.addi %228, %c1_i32_160 : i32
      %230 = arith.index_cast %229 : i32 to index
      %c0_161 = arith.constant 0 : index
      %231 = vector.load %arg11[%230, %c0_161] : memref<342x128xf32, #tpu.memory_space<vmem>>, vector<1x128xf32>
      tpu.vector_store %arg11[%230, %c0_161], %227 {strides = array<i32>} : memref<342x128xf32, #tpu.memory_space<vmem>>, vector<1x128xf32>,
    }
    %c16_i32_70 = arith.constant 16 : i32
    %c36_71 = arith.constant 36 : index
    %c0_72 = arith.constant 0 : index
    %119 = vector.load %arg11[%c36_71, %c0_72] : memref<342x128xf32, #tpu.memory_space<vmem>>, vector<18x128xf32>
    %c0_73 = arith.constant 0 : index
    %c0_74 = arith.constant 0 : index
    %120 = vector.load %arg11[%c0_73, %c0_74] : memref<342x128xf32, #tpu.memory_space<vmem>>, vector<18x128xf32>
    tpu.vector_store %arg11[%c0_73, %c0_74], %119 {strides = array<i32>} : memref<342x128xf32, #tpu.memory_space<vmem>>, vector<18x128xf32>,
    %c270 = arith.constant 270 : index
    %c0_75 = arith.constant 0 : index
    %121 = vector.load %arg11[%c270, %c0_75] : memref<342x128xf32, #tpu.memory_space<vmem>>, vector<18x128xf32>
    %c306 = arith.constant 306 : index
    %c0_76 = arith.constant 0 : index
    %122 = vector.load %arg11[%c306, %c0_76] : memref<342x128xf32, #tpu.memory_space<vmem>>, vector<18x128xf32>
    tpu.vector_store %arg11[%c306, %c0_76], %121 {strides = array<i32>} : memref<342x128xf32, #tpu.memory_space<vmem>>, vector<18x128xf32>,
    %cst_77 = arith.constant 0.000000e+00 : f32
    %123 = vector.broadcast %cst_77 : f32 to vector<18x128xf32>
    %c324 = arith.constant 324 : index
    %c0_78 = arith.constant 0 : index
    %124 = vector.load %arg11[%c324, %c0_78] : memref<342x128xf32, #tpu.memory_space<vmem>>, vector<18x128xf32>
    tpu.vector_store %arg11[%c324, %c0_78], %123 {strides = array<i32>} : memref<342x128xf32, #tpu.memory_space<vmem>>, vector<18x128xf32>,
    %cst_79 = arith.constant 0.000000e+00 : f32
    %125 = vector.broadcast %cst_79 : f32 to vector<288x128xf32>
    %c0_80 = arith.constant 0 : index
    %c0_81 = arith.constant 0 : index
    %126 = vector.load %arg11[%c0_80, %c0_81] : memref<342x128xf32, #tpu.memory_space<vmem>>, vector<288x128xf32>
    %127 = arith.truncf %126 : vector<288x128xf32> to vector<288x128xbf16>
    %c0_82 = arith.constant 0 : index
    %c0_83 = arith.constant 0 : index
    %c0_84 = arith.constant 0 : index
    %128 = vector.load %arg6[%c0_82, %c0_83, %c0_84] : memref<9x128x128xbf16, #tpu.memory_space<vmem>>, vector<1x128x128xbf16>
    %129 = vector.shape_cast %128 : vector<1x128x128xbf16> to vector<128x128xbf16>
    %cst_85 = arith.constant dense<0.000000e+00> : vector<288x128xf32>
    %130 = tpu.matmul %127, %129, %cst_85 {dimension_numbers = #tpu.dot_dimension_numbers<[1], [0], [0], [1], [0, 0, 1, 1], [], []>} : vector<288x128xbf16>, vector<128x128xbf16>, vector<288x128xf32> -> vector<288x128xf32>
    %131 = arith.addf %125, %130 : vector<288x128xf32>
    %c1_86 = arith.constant 1 : index
    %c0_87 = arith.constant 0 : index
    %132 = vector.load %arg11[%c1_86, %c0_87] : memref<342x128xf32, #tpu.memory_space<vmem>>, vector<288x128xf32>
    %133 = arith.truncf %132 : vector<288x128xf32> to vector<288x128xbf16>
    %c1_88 = arith.constant 1 : index
    %c0_89 = arith.constant 0 : index
    %c0_90 = arith.constant 0 : index
    %134 = vector.load %arg6[%c1_88, %c0_89, %c0_90] : memref<9x128x128xbf16, #tpu.memory_space<vmem>>, vector<1x128x128xbf16>
    %135 = vector.shape_cast %134 : vector<1x128x128xbf16> to vector<128x128xbf16>
    %cst_91 = arith.constant dense<0.000000e+00> : vector<288x128xf32>
    %136 = tpu.matmul %133, %135, %cst_91 {dimension_numbers = #tpu.dot_dimension_numbers<[1], [0], [0], [1], [0, 0, 1, 1], [], []>} : vector<288x128xbf16>, vector<128x128xbf16>, vector<288x128xf32> -> vector<288x128xf32>
    %137 = arith.addf %131, %136 : vector<288x128xf32>
    %c2_92 = arith.constant 2 : index
    %c0_93 = arith.constant 0 : index
    %138 = vector.load %arg11[%c2_92, %c0_93] : memref<342x128xf32, #tpu.memory_space<vmem>>, vector<288x128xf32>
    %139 = arith.truncf %138 : vector<288x128xf32> to vector<288x128xbf16>
    %c2_94 = arith.constant 2 : index
    %c0_95 = arith.constant 0 : index
    %c0_96 = arith.constant 0 : index
    %140 = vector.load %arg6[%c2_94, %c0_95, %c0_96] : memref<9x128x128xbf16, #tpu.memory_space<vmem>>, vector<1x128x128xbf16>
    %141 = vector.shape_cast %140 : vector<1x128x128xbf16> to vector<128x128xbf16>
    %cst_97 = arith.constant dense<0.000000e+00> : vector<288x128xf32>
    %142 = tpu.matmul %139, %141, %cst_97 {dimension_numbers = #tpu.dot_dimension_numbers<[1], [0], [0], [1], [0, 0, 1, 1], [], []>} : vector<288x128xbf16>, vector<128x128xbf16>, vector<288x128xf32> -> vector<288x128xf32>
    %143 = arith.addf %137, %142 : vector<288x128xf32>
    %c18_98 = arith.constant 18 : index
    %c0_99 = arith.constant 0 : index
    %144 = vector.load %arg11[%c18_98, %c0_99] : memref<342x128xf32, #tpu.memory_space<vmem>>, vector<288x128xf32>
    %145 = arith.truncf %144 : vector<288x128xf32> to vector<288x128xbf16>
    %c3_100 = arith.constant 3 : index
    %c0_101 = arith.constant 0 : index
    %c0_102 = arith.constant 0 : index
    %146 = vector.load %arg6[%c3_100, %c0_101, %c0_102] : memref<9x128x128xbf16, #tpu.memory_space<vmem>>, vector<1x128x128xbf16>
    %147 = vector.shape_cast %146 : vector<1x128x128xbf16> to vector<128x128xbf16>
    %cst_103 = arith.constant dense<0.000000e+00> : vector<288x128xf32>
    %148 = tpu.matmul %145, %147, %cst_103 {dimension_numbers = #tpu.dot_dimension_numbers<[1], [0], [0], [1], [0, 0, 1, 1], [], []>} : vector<288x128xbf16>, vector<128x128xbf16>, vector<288x128xf32> -> vector<288x128xf32>
    %149 = arith.addf %143, %148 : vector<288x128xf32>
    %c19_104 = arith.constant 19 : index
    %c0_105 = arith.constant 0 : index
    %150 = vector.load %arg11[%c19_104, %c0_105] : memref<342x128xf32, #tpu.memory_space<vmem>>, vector<288x128xf32>
    %151 = arith.truncf %150 : vector<288x128xf32> to vector<288x128xbf16>
    %c4_106 = arith.constant 4 : index
    %c0_107 = arith.constant 0 : index
    %c0_108 = arith.constant 0 : index
    %152 = vector.load %arg6[%c4_106, %c0_107, %c0_108] : memref<9x128x128xbf16, #tpu.memory_space<vmem>>, vector<1x128x128xbf16>
    %153 = vector.shape_cast %152 : vector<1x128x128xbf16> to vector<128x128xbf16>
    %cst_109 = arith.constant dense<0.000000e+00> : vector<288x128xf32>
    %154 = tpu.matmul %151, %153, %cst_109 {dimension_numbers = #tpu.dot_dimension_numbers<[1], [0], [0], [1], [0, 0, 1, 1], [], []>} : vector<288x128xbf16>, vector<128x128xbf16>, vector<288x128xf32> -> vector<288x128xf32>
    %155 = arith.addf %149, %154 : vector<288x128xf32>
    %c20_110 = arith.constant 20 : index
    %c0_111 = arith.constant 0 : index
    %156 = vector.load %arg11[%c20_110, %c0_111] : memref<342x128xf32, #tpu.memory_space<vmem>>, vector<288x128xf32>
    %157 = arith.truncf %156 : vector<288x128xf32> to vector<288x128xbf16>
    %c5_112 = arith.constant 5 : index
    %c0_113 = arith.constant 0 : index
    %c0_114 = arith.constant 0 : index
    %158 = vector.load %arg6[%c5_112, %c0_113, %c0_114] : memref<9x128x128xbf16, #tpu.memory_space<vmem>>, vector<1x128x128xbf16>
    %159 = vector.shape_cast %158 : vector<1x128x128xbf16> to vector<128x128xbf16>
    %cst_115 = arith.constant dense<0.000000e+00> : vector<288x128xf32>
    %160 = tpu.matmul %157, %159, %cst_115 {dimension_numbers = #tpu.dot_dimension_numbers<[1], [0], [0], [1], [0, 0, 1, 1], [], []>} : vector<288x128xbf16>, vector<128x128xbf16>, vector<288x128xf32> -> vector<288x128xf32>
    %161 = arith.addf %155, %160 : vector<288x128xf32>
    %c36_116 = arith.constant 36 : index
    %c0_117 = arith.constant 0 : index
    %162 = vector.load %arg11[%c36_116, %c0_117] : memref<342x128xf32, #tpu.memory_space<vmem>>, vector<288x128xf32>
    %163 = arith.truncf %162 : vector<288x128xf32> to vector<288x128xbf16>
    %c6_118 = arith.constant 6 : index
    %c0_119 = arith.constant 0 : index
    %c0_120 = arith.constant 0 : index
    %164 = vector.load %arg6[%c6_118, %c0_119, %c0_120] : memref<9x128x128xbf16, #tpu.memory_space<vmem>>, vector<1x128x128xbf16>
    %165 = vector.shape_cast %164 : vector<1x128x128xbf16> to vector<128x128xbf16>
    %cst_121 = arith.constant dense<0.000000e+00> : vector<288x128xf32>
    %166 = tpu.matmul %163, %165, %cst_121 {dimension_numbers = #tpu.dot_dimension_numbers<[1], [0], [0], [1], [0, 0, 1, 1], [], []>} : vector<288x128xbf16>, vector<128x128xbf16>, vector<288x128xf32> -> vector<288x128xf32>
    %167 = arith.addf %161, %166 : vector<288x128xf32>
    %c37_122 = arith.constant 37 : index
    %c0_123 = arith.constant 0 : index
    %168 = vector.load %arg11[%c37_122, %c0_123] : memref<342x128xf32, #tpu.memory_space<vmem>>, vector<288x128xf32>
    %169 = arith.truncf %168 : vector<288x128xf32> to vector<288x128xbf16>
    %c7_124 = arith.constant 7 : index
    %c0_125 = arith.constant 0 : index
    %c0_126 = arith.constant 0 : index
    %170 = vector.load %arg6[%c7_124, %c0_125, %c0_126] : memref<9x128x128xbf16, #tpu.memory_space<vmem>>, vector<1x128x128xbf16>
    %171 = vector.shape_cast %170 : vector<1x128x128xbf16> to vector<128x128xbf16>
    %cst_127 = arith.constant dense<0.000000e+00> : vector<288x128xf32>
    %172 = tpu.matmul %169, %171, %cst_127 {dimension_numbers = #tpu.dot_dimension_numbers<[1], [0], [0], [1], [0, 0, 1, 1], [], []>} : vector<288x128xbf16>, vector<128x128xbf16>, vector<288x128xf32> -> vector<288x128xf32>
    %173 = arith.addf %167, %172 : vector<288x128xf32>
    %c38_128 = arith.constant 38 : index
    %c0_129 = arith.constant 0 : index
    %174 = vector.load %arg11[%c38_128, %c0_129] : memref<342x128xf32, #tpu.memory_space<vmem>>, vector<288x128xf32>
    %175 = arith.truncf %174 : vector<288x128xf32> to vector<288x128xbf16>
    %c8_130 = arith.constant 8 : index
    %c0_131 = arith.constant 0 : index
    %c0_132 = arith.constant 0 : index
    %176 = vector.load %arg6[%c8_130, %c0_131, %c0_132] : memref<9x128x128xbf16, #tpu.memory_space<vmem>>, vector<1x128x128xbf16>
    %177 = vector.shape_cast %176 : vector<1x128x128xbf16> to vector<128x128xbf16>
    %cst_133 = arith.constant dense<0.000000e+00> : vector<288x128xf32>
    %178 = tpu.matmul %175, %177, %cst_133 {dimension_numbers = #tpu.dot_dimension_numbers<[1], [0], [0], [1], [0, 0, 1, 1], [], []>} : vector<288x128xbf16>, vector<128x128xbf16>, vector<288x128xf32> -> vector<288x128xf32>
    %179 = arith.addf %173, %178 : vector<288x128xf32>
    %c0_134 = arith.constant 0 : index
    %c0_135 = arith.constant 0 : index
    %180 = vector.load %arg7[%c0_134, %c0_135] : memref<1x128xf32, #tpu.memory_space<vmem>>, vector<1x128xf32>
    %181 = vector.broadcast %180 : vector<1x128xf32> to vector<288x128xf32>
    %182 = arith.addf %179, %181 : vector<288x128xf32>
    %cst_136 = arith.constant 0.000000e+00 : f32
    %183 = vector.shape_cast %18 : vector<288x1xi1> to vector<288x1xi1>
    %184 = vector.broadcast %183 : vector<288x1xi1> to vector<288x128xi1>
    %185 = vector.broadcast %cst_136 : f32 to vector<288x128xf32>
    %186 = arith.select %184, %182, %185 : vector<288x128xi1>, vector<288x128xf32>
    %cst_137 = arith.constant dense<0.000000e+00> : vector<128xf32>
    %187 = vector.multi_reduction <add>, %186, %cst_137 [0] : vector<288x128xf32> to vector<128xf32>
    %188 = vector.shape_cast %187 : vector<128xf32> to vector<1x128xf32>
    %189 = arith.mulf %186, %186 : vector<288x128xf32>
    %cst_138 = arith.constant dense<0.000000e+00> : vector<128xf32>
    %190 = vector.multi_reduction <add>, %189, %cst_138 [0] : vector<288x128xf32> to vector<128xf32>
    %191 = vector.shape_cast %190 : vector<128xf32> to vector<1x128xf32>
    %cst_139 = arith.constant 3.906250e-03 : f32
    %192 = vector.broadcast %cst_139 : f32 to vector<1x128xf32>
    %193 = arith.mulf %188, %192 : vector<1x128xf32>
    %cst_140 = arith.constant 3.906250e-03 : f32
    %194 = vector.broadcast %cst_140 : f32 to vector<1x128xf32>
    %195 = arith.mulf %191, %194 : vector<1x128xf32>
    %196 = arith.mulf %193, %193 : vector<1x128xf32>
    %197 = arith.subf %195, %196 : vector<1x128xf32>
    %cst_141 = arith.constant 0.000000e+00 : f32
    %198 = vector.broadcast %cst_141 : f32 to vector<1x128xf32>
    %199 = arith.maximumf %197, %198 : vector<1x128xf32>
    %cst_142 = arith.constant 9.99999974E-6 : f32
    %200 = vector.broadcast %cst_142 : f32 to vector<1x128xf32>
    %201 = arith.addf %199, %200 : vector<1x128xf32>
    %202 = math.rsqrt %201 : vector<1x128xf32>
    %c0_143 = arith.constant 0 : index
    %c0_144 = arith.constant 0 : index
    %203 = vector.load %arg8[%c0_143, %c0_144] : memref<1x128xf32, #tpu.memory_space<vmem>>, vector<1x128xf32>
    %204 = arith.mulf %202, %203 : vector<1x128xf32>
    %205 = vector.broadcast %193 : vector<1x128xf32> to vector<288x128xf32>
    %206 = arith.subf %182, %205 : vector<288x128xf32>
    %207 = vector.broadcast %204 : vector<1x128xf32> to vector<288x128xf32>
    %208 = arith.mulf %206, %207 : vector<288x128xf32>
    %c0_145 = arith.constant 0 : index
    %c0_146 = arith.constant 0 : index
    %209 = vector.load %arg9[%c0_145, %c0_146] : memref<1x128xf32, #tpu.memory_space<vmem>>, vector<1x128xf32>
    %210 = vector.broadcast %209 : vector<1x128xf32> to vector<288x128xf32>
    %211 = arith.addf %208, %210 : vector<288x128xf32>
    %c0_147 = arith.constant 0 : index
    %c19_148 = arith.constant 19 : index
    %c0_149 = arith.constant 0 : index
    %212 = vector.load %arg1[%c0_147, %c19_148, %c0_149] : memref<1x342x128xf32, #tpu.memory_space<vmem>>, vector<1x288x128xf32>
    %213 = vector.shape_cast %212 : vector<1x288x128xf32> to vector<288x128xf32>
    %214 = arith.addf %211, %213 : vector<288x128xf32>
    %c0_150 = arith.constant 0 : index
    %c0_151 = arith.constant 0 : index
    %c0_152 = arith.constant 0 : index
    %215 = vector.load %arg10[%c0_150, %c0_151, %c0_152] : memref<1x288x128xf32, #tpu.memory_space<vmem>>, vector<1x288x128xf32>
    %216 = vector.shape_cast %215 : vector<1x288x128xf32> to vector<288x128xf32>
    %217 = vector.shape_cast %214 : vector<288x128xf32> to vector<1x288x128xf32>
    tpu.vector_store %arg10[%c0_150, %c0_151, %c0_152], %217 {strides = array<i32>} : memref<1x288x128xf32, #tpu.memory_space<vmem>>, vector<1x288x128xf32>,
    return
  }
  func.func @transform_0(%arg0: i32) -> (i32, i32, i32) {
    %c0_i32 = arith.constant 0 : i32
    %c0_i32_0 = arith.constant 0 : i32
    %c0_i32_1 = arith.constant 0 : i32
    return %arg0, %c0_i32, %c0_i32_0 : i32, i32, i32
  }
  func.func @transform_1(%arg0: i32) -> (i32, i32, i32) {
    %c0_i32 = arith.constant 0 : i32
    %c0_i32_0 = arith.constant 0 : i32
    %c0_i32_1 = arith.constant 0 : i32
    %c0_i32_2 = arith.constant 0 : i32
    return %c0_i32, %c0_i32_0, %c0_i32_1 : i32, i32, i32
  }
  func.func @transform_2(%arg0: i32) -> (i32, i32) {
    %c0_i32 = arith.constant 0 : i32
    %c0_i32_0 = arith.constant 0 : i32
    %c0_i32_1 = arith.constant 0 : i32
    return %c0_i32, %c0_i32_0 : i32, i32
  }
  func.func @transform_3(%arg0: i32) -> (i32, i32) {
    %c0_i32 = arith.constant 0 : i32
    %c0_i32_0 = arith.constant 0 : i32
    %c0_i32_1 = arith.constant 0 : i32
    return %c0_i32, %c0_i32_0 : i32, i32
  }
  func.func @transform_4(%arg0: i32) -> (i32, i32) {
    %c0_i32 = arith.constant 0 : i32
    %c0_i32_0 = arith.constant 0 : i32
    %c0_i32_1 = arith.constant 0 : i32
    return %c0_i32, %c0_i32_0 : i32, i32
  }
  func.func @transform_5(%arg0: i32) -> (i32, i32, i32) {
    %c0_i32 = arith.constant 0 : i32
    %c0_i32_0 = arith.constant 0 : i32
    %c0_i32_1 = arith.constant 0 : i32
    %c0_i32_2 = arith.constant 0 : i32
    return %c0_i32, %c0_i32_0, %c0_i32_1 : i32, i32, i32
  }
  func.func @transform_6(%arg0: i32) -> (i32, i32) {
    %c0_i32 = arith.constant 0 : i32
    %c0_i32_0 = arith.constant 0 : i32
    %c0_i32_1 = arith.constant 0 : i32
    return %c0_i32, %c0_i32_0 : i32, i32
  }
  func.func @transform_7(%arg0: i32) -> (i32, i32) {
    %c0_i32 = arith.constant 0 : i32
    %c0_i32_0 = arith.constant 0 : i32
    %c0_i32_1 = arith.constant 0 : i32
    return %c0_i32, %c0_i32_0 : i32, i32
  }
  func.func @transform_8(%arg0: i32) -> (i32, i32) {
    %c0_i32 = arith.constant 0 : i32
    %c0_i32_0 = arith.constant 0 : i32
    %c0_i32_1 = arith.constant 0 : i32
    return %c0_i32, %c0_i32_0 : i32, i32
  }
  func.func @transform_9(%arg0: i32) -> (i32, i32, i32) {
    %c0_i32 = arith.constant 0 : i32
    %c0_i32_0 = arith.constant 0 : i32
    %c0_i32_1 = arith.constant 0 : i32
    return %arg0, %c0_i32, %c0_i32_0 : i32, i32, i32
  }
}

</mosaic_0001>

<llo_original>
// kernel: tpu_custom_call.1
$region0: #{tpu_custom_call.1}
  #allocation0 [shape = 'u32[]', space=smem, size = 0x4, offset = 0x4, fixed_abs, tag = 'smem constant byte address 0x4 - core index']
  #allocation1 [shape = 'u32[144,128]{1,0:T(1,128)}', space=vmem, size = 0x12000, scoped, tag = 'internal scratch']
  #allocation2 [shape = 'f32[342,128]{1,0:T(8,128)}', space=vmem, size = 0x2b000, scoped, tag = 'scratch operand']
  %s0 = inlined_call_operand.hbm [shape: f32[2,342,128], index: 0, kind: input, shape index: {}]
  %s1 = inlined_call_operand.hbm [shape: bf16[9,128,128], index: 1, kind: input, shape index: {}]
  %s2 = inlined_call_operand.hbm [shape: f32[1,128], index: 2, kind: input, shape index: {}]
  %s3 = inlined_call_operand.hbm [shape: f32[1,128], index: 3, kind: input, shape index: {}]
  %s4 = inlined_call_operand.hbm [shape: f32[1,128], index: 4, kind: input, shape index: {}]
  %s5 = inlined_call_operand.hbm [shape: bf16[9,128,128], index: 5, kind: input, shape index: {}]
  %s6 = inlined_call_operand.hbm [shape: f32[1,128], index: 6, kind: input, shape index: {}]
  %s7 = inlined_call_operand.hbm [shape: f32[1,128], index: 7, kind: input, shape index: {}]
  %s8 = inlined_call_operand.hbm [shape: f32[1,128], index: 8, kind: input, shape index: {}]
  %s9 = inlined_call_operand.hbm [shape: f32[2,288,128], index: 9, kind: output, shape index: {}]
  %s10 = sld [smem:[#allocation0]]
  $region112: #{tpu_custom_call.1} parent=0
    _
  %s12 = ssub.s32 1, %s10
  %s13 = scalar_select 0, %s12, %s10
  $region1: #{tpu_custom_call.1} parent=0
    #allocation3 [shape = 'u8[352256]{0}', space=vmem, size = 0x56000, scoped, tag = 'input window, operand 0']
    #allocation4 [shape = 's32[2]{0}', space=sflag, size = 0x8, scoped, tag = 'scoped memory for tpu_custom_call.1']
    #allocation5 [shape = 's32[2]{0}', space=sflag, size = 0x8, scoped, tag = 'scoped memory for tpu_custom_call.1']
    #allocation6 [shape = 'u8[294912]{0}', space=vmem, size = 0x48000, scoped, tag = 'input window, operand 1, single buffered']
    #allocation7 [shape = 's32[1]{0}', space=sflag, size = 0x4, scoped, tag = 'scoped memory for tpu_custom_call.1']
    #allocation8 [shape = 'u8[512]{0}', space=vmem, size = 0x400, scoped, tag = 'input window, operand 2, single buffered']
    #allocation9 [shape = 'u8[512]{0}', space=vmem, size = 0x400, scoped, tag = 'input window, operand 3, single buffered']
    #allocation10 [shape = 's32[1]{0}', space=sflag, size = 0x4, scoped, tag = 'scoped memory for tpu_custom_call.1']
    #allocation11 [shape = 'u8[512]{0}', space=vmem, size = 0x400, scoped, tag = 'input window, operand 4, single buffered']
    #allocation12 [shape = 'u8[294912]{0}', space=vmem, size = 0x48000, scoped, tag = 'input window, operand 5, single buffered']
    #allocation13 [shape = 's32[1]{0}', space=sflag, size = 0x4, scoped, tag = 'scoped memory for tpu_custom_call.1']
    #allocation14 [shape = 'u8[512]{0}', space=vmem, size = 0x400, scoped, tag = 'input window, operand 6, single buffered']
    #allocation15 [shape = 'u8[512]{0}', space=vmem, size = 0x400, scoped, tag = 'input window, operand 7, single buffered']
    #allocation16 [shape = 's32[1]{0}', space=sflag, size = 0x4, scoped, tag = 'scoped memory for tpu_custom_call.1']
    #allocation17 [shape = 'u8[512]{0}', space=vmem, size = 0x400, scoped, tag = 'input window, operand 8, single buffered']
    #allocation18 [shape = 'u8[294912]{0}', space=vmem, size = 0x48000, scoped, tag = 'output window, operand 0']
    %14 = vsyncpa [#allocation4], 0
    %s15 = scalar_lea.sflag [#allocation4], 1
    %16 = vsyncpa %s15, 0
    %17 = vsyncpa [#allocation7], 0
    %18 = vsyncpa [#allocation10], 0
    %19 = vsyncpa [#allocation13], 0
    %20 = vsyncpa [#allocation16], 0
    %21 = vsyncpa [#allocation5], 0
    %s22 = scalar_lea.sflag [#allocation5], 1
    %23 = vsyncpa %s22, 0
    loop: start=0, step=1, limit=4
    $region2: #{tpu_custom_call.1} parent=1 // loop_pre_header
      _
    $region3: #{tpu_custom_call.1} parent=1 // loop_header
      %s25 = sphi 0, %s29
      %p26 = scmp.ge.s32.totalorder %s25, 4
      %s35 = sphi 0, %s37
      %s38 = sphi 0, %s35
      %s39 = sphi 0, %s38
      %s55 = sphi 0, %s39
      %s59 = sphi 0, %s59
      %s61 = sphi 0, %s59
      %s62 = sphi 0, %s61
      %s76 = sphi 0, %s62
      %s80 = sphi 0, %s80
      %s82 = sphi 0, %s80
      %s83 = sphi 0, %s82
      %s97 = sphi 0, %s83
      %s101 = sphi 0, %s101
      %s103 = sphi 0, %s101
      %s104 = sphi 0, %s103
      %s118 = sphi 0, %s104
      %s122 = sphi 0, %s122
      %s124 = sphi 0, %s122
      %s125 = sphi 0, %s124
      %s139 = sphi 0, %s125
      %s143 = sphi 0, %s143
      %s145 = sphi 0, %s143
      %s146 = sphi 0, %s145
      %s160 = sphi 0, %s146
      %s164 = sphi 0, %s164
      %s166 = sphi 0, %s164
      %s167 = sphi 0, %s166
      %s181 = sphi 0, %s167
      %s185 = sphi 0, %s185
      %s187 = sphi 0, %s185
      %s188 = sphi 0, %s187
      %s202 = sphi 0, %s188
      %s206 = sphi 0, %s206
      %s208 = sphi 0, %s206
      %s209 = sphi 0, %s208
      %s223 = sphi 0, %s209
      %s229 = sphi 0, %s231
      %s232 = sphi 0, %s229
      %s233 = sphi 0, %s232
      %s249 = sphi 0, %s233
    $region4: #{tpu_custom_call.1} parent=1 // loop_header_branch
      %28 = sbr.rel (%p26) target = $region8
    $region5: #{tpu_custom_call.1} parent=1 // loop_body
      %s30 = ssub.s32 %s25, 1
      %s31 = ssub.s32 %s25, 2
      %s32 = sadd.s32 %s25, 1
      %s33 = ssub.s32 %s25, %s32
      %p34 = scmp.eq.s32.totalorder %s33, 0
      %s36 = sadd.s32 %s35, 1
      %s37 = scalar_select %p34, %s35, %s36
      %p40 = pneg %p34
      %p41 = scmp.eq.s32.totalorder %s25, 1
      %p42 = por %p40, %p41
      %p43 = scmp.ne.s32.totalorder %s35, %s38
      %p44 = scmp.eq.s32.totalorder %s25, 0
      %p45 = por %p43, %p44
      %p46 = scmp.ne.s32.totalorder %s35, %s38
      %p47 = scmp.eq.s32.totalorder %s30, 1
      %p48 = por %p46, %p47
      %p49 = scmp.ne.s32.totalorder %s38, %s39
      %p50 = scmp.eq.s32.totalorder %s30, 0
      %p51 = por %p49, %p50
      %p52 = scmp.ne.s32.totalorder %s38, %s39
      %p53 = scmp.eq.s32.totalorder %s31, 1
      %p54 = por %p52, %p53
      %p56 = scmp.ne.s32.totalorder %s39, %s55
      %p57 = scmp.eq.s32.totalorder %s31, 0
      %p58 = por %p56, %p57
      %s60 = sadd.s32 %s59, 1
      %p63 = scmp.eq.s32.totalorder %s25, 1
      %p64 = scmp.ne.s32.totalorder %s59, %s61
      %p65 = scmp.eq.s32.totalorder %s25, 0
      %p66 = por %p64, %p65
      %p67 = scmp.ne.s32.totalorder %s59, %s61
      %p68 = scmp.eq.s32.totalorder %s30, 1
      %p69 = por %p67, %p68
      %p70 = scmp.ne.s32.totalorder %s61, %s62
      %p71 = scmp.eq.s32.totalorder %s30, 0
      %p72 = por %p70, %p71
      %p73 = scmp.ne.s32.totalorder %s61, %s62
      %p74 = scmp.eq.s32.totalorder %s31, 1
      %p75 = por %p73, %p74
      %p77 = scmp.ne.s32.totalorder %s62, %s76
      %p78 = scmp.eq.s32.totalorder %s31, 0
      %p79 = por %p77, %p78
      %s81 = sadd.s32 %s80, 1
      %p84 = scmp.eq.s32.totalorder %s25, 1
      %p85 = scmp.ne.s32.totalorder %s80, %s82
      %p86 = scmp.eq.s32.totalorder %s25, 0
      %p87 = por %p85, %p86
      %p88 = scmp.ne.s32.totalorder %s80, %s82
      %p89 = scmp.eq.s32.totalorder %s30, 1
      %p90 = por %p88, %p89
      %p91 = scmp.ne.s32.totalorder %s82, %s83
      %p92 = scmp.eq.s32.totalorder %s30, 0
      %p93 = por %p91, %p92
      %p94 = scmp.ne.s32.totalorder %s82, %s83
      %p95 = scmp.eq.s32.totalorder %s31, 1
      %p96 = por %p94, %p95
      %p98 = scmp.ne.s32.totalorder %s83, %s97
      %p99 = scmp.eq.s32.totalorder %s31, 0
      %p100 = por %p98, %p99
      %s102 = sadd.s32 %s101, 1
      %p105 = scmp.eq.s32.totalorder %s25, 1
      %p106 = scmp.ne.s32.totalorder %s101, %s103
      %p107 = scmp.eq.s32.totalorder %s25, 0
      %p108 = por %p106, %p107
      %p109 = scmp.ne.s32.totalorder %s101, %s103
      %p110 = scmp.eq.s32.totalorder %s30, 1
      %p111 = por %p109, %p110
      %p112 = scmp.ne.s32.totalorder %s103, %s104
      %p113 = scmp.eq.s32.totalorder %s30, 0
      %p114 = por %p112, %p113
      %p115 = scmp.ne.s32.totalorder %s103, %s104
      %p116 = scmp.eq.s32.totalorder %s31, 1
      %p117 = por %p115, %p116
      %p119 = scmp.ne.s32.totalorder %s104, %s118
      %p120 = scmp.eq.s32.totalorder %s31, 0
      %p121 = por %p119, %p120
      %s123 = sadd.s32 %s122, 1
      %p126 = scmp.eq.s32.totalorder %s25, 1
      %p127 = scmp.ne.s32.totalorder %s122, %s124
      %p128 = scmp.eq.s32.totalorder %s25, 0
      %p129 = por %p127, %p128
      %p130 = scmp.ne.s32.totalorder %s122, %s124
      %p131 = scmp.eq.s32.totalorder %s30, 1
      %p132 = por %p130, %p131
      %p133 = scmp.ne.s32.totalorder %s124, %s125
      %p134 = scmp.eq.s32.totalorder %s30, 0
      %p135 = por %p133, %p134
      %p136 = scmp.ne.s32.totalorder %s124, %s125
      %p137 = scmp.eq.s32.totalorder %s31, 1
      %p138 = por %p136, %p137
      %p140 = scmp.ne.s32.totalorder %s125, %s139
      %p141 = scmp.eq.s32.totalorder %s31, 0
      %p142 = por %p140, %p141
      %s144 = sadd.s32 %s143, 1
      %p147 = scmp.eq.s32.totalorder %s25, 1
      %p148 = scmp.ne.s32.totalorder %s143, %s145
      %p149 = scmp.eq.s32.totalorder %s25, 0
      %p150 = por %p148, %p149
      %p151 = scmp.ne.s32.totalorder %s143, %s145
      %p152 = scmp.eq.s32.totalorder %s30, 1
      %p153 = por %p151, %p152
      %p154 = scmp.ne.s32.totalorder %s145, %s146
      %p155 = scmp.eq.s32.totalorder %s30, 0
      %p156 = por %p154, %p155
      %p157 = scmp.ne.s32.totalorder %s145, %s146
      %p158 = scmp.eq.s32.totalorder %s31, 1
      %p159 = por %p157, %p158
      %p161 = scmp.ne.s32.totalorder %s146, %s160
      %p162 = scmp.eq.s32.totalorder %s31, 0
      %p163 = por %p161, %p162
      %s165 = sadd.s32 %s164, 1
      %p168 = scmp.eq.s32.totalorder %s25, 1
      %p169 = scmp.ne.s32.totalorder %s164, %s166
      %p170 = scmp.eq.s32.totalorder %s25, 0
      %p171 = por %p169, %p170
      %p172 = scmp.ne.s32.totalorder %s164, %s166
      %p173 = scmp.eq.s32.totalorder %s30, 1
      %p174 = por %p172, %p173
      %p175 = scmp.ne.s32.totalorder %s166, %s167
      %p176 = scmp.eq.s32.totalorder %s30, 0
      %p177 = por %p175, %p176
      %p178 = scmp.ne.s32.totalorder %s166, %s167
      %p179 = scmp.eq.s32.totalorder %s31, 1
      %p180 = por %p178, %p179
      %p182 = scmp.ne.s32.totalorder %s167, %s181
      %p183 = scmp.eq.s32.totalorder %s31, 0
      %p184 = por %p182, %p183
      %s186 = sadd.s32 %s185, 1
      %p189 = scmp.eq.s32.totalorder %s25, 1
      %p190 = scmp.ne.s32.totalorder %s185, %s187
      %p191 = scmp.eq.s32.totalorder %s25, 0
      %p192 = por %p190, %p191
      %p193 = scmp.ne.s32.totalorder %s185, %s187
      %p194 = scmp.eq.s32.totalorder %s30, 1
      %p195 = por %p193, %p194
      %p196 = scmp.ne.s32.totalorder %s187, %s188
      %p197 = scmp.eq.s32.totalorder %s30, 0
      %p198 = por %p196, %p197
      %p199 = scmp.ne.s32.totalorder %s187, %s188
      %p200 = scmp.eq.s32.totalorder %s31, 1
      %p201 = por %p199, %p200
      %p203 = scmp.ne.s32.totalorder %s188, %s202
      %p204 = scmp.eq.s32.totalorder %s31, 0
      %p205 = por %p203, %p204
      %s207 = sadd.s32 %s206, 1
      %p210 = scmp.eq.s32.totalorder %s25, 1
      %p211 = scmp.ne.s32.totalorder %s206, %s208
      %p212 = scmp.eq.s32.totalorder %s25, 0
      %p213 = por %p211, %p212
      %p214 = scmp.ne.s32.totalorder %s206, %s208
      %p215 = scmp.eq.s32.totalorder %s30, 1
      %p216 = por %p214, %p215
      %p217 = scmp.ne.s32.totalorder %s208, %s209
      %p218 = scmp.eq.s32.totalorder %s30, 0
      %p219 = por %p217, %p218
      %p220 = scmp.ne.s32.totalorder %s208, %s209
      %p221 = scmp.eq.s32.totalorder %s31, 1
      %p222 = por %p220, %p221
      %p224 = scmp.ne.s32.totalorder %s209, %s223
      %p225 = scmp.eq.s32.totalorder %s31, 0
      %p226 = por %p224, %p225
      %s227 = ssub.s32 %s25, %s32
      %p228 = scmp.eq.s32.totalorder %s227, 0
      %s230 = sadd.s32 %s229, 1
      %s231 = scalar_select %p228, %s229, %s230
      %p234 = pneg %p228
      %p235 = scmp.eq.s32.totalorder %s25, 1
      %p236 = por %p234, %p235
      %p237 = scmp.ne.s32.totalorder %s229, %s232
      %p238 = scmp.eq.s32.totalorder %s25, 0
      %p239 = por %p237, %p238
      %p240 = scmp.ne.s32.totalorder %s229, %s232
      %p241 = scmp.eq.s32.totalorder %s30, 1
      %p242 = por %p240, %p241
      %p243 = scmp.ne.s32.totalorder %s232, %s233
      %p244 = scmp.eq.s32.totalorder %s30, 0
      %p245 = por %p243, %p244
      %p246 = scmp.ne.s32.totalorder %s232, %s233
      %p247 = scmp.eq.s32.totalorder %s31, 1
      %p248 = por %p246, %p247
      %p250 = scmp.ne.s32.totalorder %s233, %s249
      %p251 = scmp.eq.s32.totalorder %s31, 0
      %p252 = por %p250, %p251
      %p253 = scmp.le.s32.totalorder 1, %s25
      %p254 = scmp.lt.s32.totalorder %s25, 3
      %p255 = pnand %p253, %p254
      %p256 = pneg %p255
      // Predicated region
      $region9: #{tpu_custom_call.1} parent=5 // pred_check
        _
      $region10: #{tpu_custom_call.1} parent=5 // pred_check_branch
        %258 = sbr.rel (%p255) target = $region12
      $region11: #{tpu_custom_call.1} parent=5 // pred_region
        %s259 = ssub.s32 %s25, 1
        // Predicated region
        $region13: #{tpu_custom_call.1} parent=11 // pred_check
          %p260 = pneg %p72
        $region14: #{tpu_custom_call.1} parent=11 // pred_check_branch
          %262 = sbr.rel (%p260) target = $region16
        $region15: #{tpu_custom_call.1} parent=11 // pred_region
          %s264 = ssub.s32 9216, 9216
          %265 = vsyncadd [#allocation7], %s264
          %s266 = sshll.u32 [#allocation6], 4
          %s267 = int_to_ptr.vmem [resolvable:$true] %s266
          %272 = dma.hbm_to_vmem [thread:$0]  %s1, 9216, %s267, [#allocation7], 64, 64, 4
        $region16: #{tpu_custom_call.1} parent=11 // pred_fallthru
          _
        // Predicated region
        $region17: #{tpu_custom_call.1} parent=11 // pred_check
          %p273 = pneg %p93
        $region18: #{tpu_custom_call.1} parent=11 // pred_check_branch
          %275 = sbr.rel (%p273) target = $region20
        $region19: #{tpu_custom_call.1} parent=11 // pred_region
          %s277 = ssub.s32 16, 16
          %278 = vsyncadd [#allocation7], %s277
          %s280 = sshll.u32 [#allocation8], 4
          %s281 = int_to_ptr.vmem [resolvable:$true] %s280
          %283 = dma.hbm_to_vmem [thread:$0]  %s2, 16, %s281, [#allocation7]
        $region20: #{tpu_custom_call.1} parent=11 // pred_fallthru
          _
        // Predicated region
        $region21: #{tpu_custom_call.1} parent=11 // pred_check
          %p284 = pneg %p114
        $region22: #{tpu_custom_call.1} parent=11 // pred_check_branch
          %286 = sbr.rel (%p284) target = $region24
        $region23: #{tpu_custom_call.1} parent=11 // pred_region
          %s288 = ssub.s32 16, 16
          %289 = vsyncadd [#allocation10], %s288
          %s291 = sshll.u32 [#allocation9], 4
          %s292 = int_to_ptr.vmem [resolvable:$true] %s291
          %294 = dma.hbm_to_vmem [thread:$0]  %s3, 16, %s292, [#allocation10]
        $region24: #{tpu_custom_call.1} parent=11 // pred_fallthru
          _
        // Predicated region
        $region25: #{tpu_custom_call.1} parent=11 // pred_check
          %p295 = pneg %p135
        $region26: #{tpu_custom_call.1} parent=11 // pred_check_branch
          %297 = sbr.rel (%p295) target = $region28
        $region27: #{tpu_custom_call.1} parent=11 // pred_region
          %s299 = ssub.s32 16, 16
          %300 = vsyncadd [#allocation10], %s299
          %s302 = sshll.u32 [#allocation11], 4
          %s303 = int_to_ptr.vmem [resolvable:$true] %s302
          %305 = dma.hbm_to_vmem [thread:$0]  %s4, 16, %s303, [#allocation10]
        $region28: #{tpu_custom_call.1} parent=11 // pred_fallthru
          _
        // Predicated region
        $region29: #{tpu_custom_call.1} parent=11 // pred_check
          %p306 = pneg %p156
        $region30: #{tpu_custom_call.1} parent=11 // pred_check_branch
          %308 = sbr.rel (%p306) target = $region32
        $region31: #{tpu_custom_call.1} parent=11 // pred_region
          %s310 = ssub.s32 9216, 9216
          %311 = vsyncadd [#allocation13], %s310
          %s312 = sshll.u32 [#allocation12], 4
          %s313 = int_to_ptr.vmem [resolvable:$true] %s312
          %318 = dma.hbm_to_vmem [thread:$0]  %s5, 9216, %s313, [#allocation13], 64, 64, 4
        $region32: #{tpu_custom_call.1} parent=11 // pred_fallthru
          _
        // Predicated region
        $region33: #{tpu_custom_call.1} parent=11 // pred_check
          %p319 = pneg %p177
        $region34: #{tpu_custom_call.1} parent=11 // pred_check_branch
          %321 = sbr.rel (%p319) target = $region36
        $region35: #{tpu_custom_call.1} parent=11 // pred_region
          %s323 = ssub.s32 16, 16
          %324 = vsyncadd [#allocation13], %s323
          %s326 = sshll.u32 [#allocation14], 4
          %s327 = int_to_ptr.vmem [resolvable:$true] %s326
          %329 = dma.hbm_to_vmem [thread:$0]  %s6, 16, %s327, [#allocation13]
        $region36: #{tpu_custom_call.1} parent=11 // pred_fallthru
          _
        // Predicated region
        $region37: #{tpu_custom_call.1} parent=11 // pred_check
          %p330 = pneg %p198
        $region38: #{tpu_custom_call.1} parent=11 // pred_check_branch
          %332 = sbr.rel (%p330) target = $region40
        $region39: #{tpu_custom_call.1} parent=11 // pred_region
          %s334 = ssub.s32 16, 16
          %335 = vsyncadd [#allocation16], %s334
          %s337 = sshll.u32 [#allocation15], 4
          %s338 = int_to_ptr.vmem [resolvable:$true] %s337
          %340 = dma.hbm_to_vmem [thread:$0]  %s7, 16, %s338, [#allocation16]
        $region40: #{tpu_custom_call.1} parent=11 // pred_fallthru
          _
        // Predicated region
        $region41: #{tpu_custom_call.1} parent=11 // pred_check
          %p341 = pneg %p219
        $region42: #{tpu_custom_call.1} parent=11 // pred_check_branch
          %343 = sbr.rel (%p341) target = $region44
        $region43: #{tpu_custom_call.1} parent=11 // pred_region
          %s345 = ssub.s32 16, 16
          %346 = vsyncadd [#allocation16], %s345
          %s348 = sshll.u32 [#allocation17], 4
          %s349 = int_to_ptr.vmem [resolvable:$true] %s348
          %351 = dma.hbm_to_vmem [thread:$0]  %s8, 16, %s349, [#allocation16]
        $region44: #{tpu_custom_call.1} parent=11 // pred_fallthru
          _
      $region12: #{tpu_custom_call.1} parent=5 // pred_fallthru
        _
      %p352 = scmp.lt.s32.totalorder %s25, 2
      // Predicated region
      $region45: #{tpu_custom_call.1} parent=5 // pred_check
        %p353 = pneg %p352
      $region46: #{tpu_custom_call.1} parent=5 // pred_check_branch
        %355 = sbr.rel (%p353) target = $region48
      $region47: #{tpu_custom_call.1} parent=5 // pred_region
        // Predicated region
        $region49: #{tpu_custom_call.1} parent=47 // pred_check
          %p356 = pneg %p45
        $region50: #{tpu_custom_call.1} parent=47 // pred_check_branch
          %358 = sbr.rel (%p356) target = $region52
        $region51: #{tpu_custom_call.1} parent=47 // pred_region
          %s359 = sand.u32 %s35, 1
          %s360 = scalar_lea.sflag [#allocation4], %s359
          %s361 = sand.u32 %s35, 1
          %s362 = smul.addr %s361, 344
          %s363 = scalar_lea.vmem [#allocation3], %s362
          %s365 = ssub.s32 5504, 5504
          %366 = vsyncadd %s360, %s365
          %s367 = smul.addr %s25, 43
          %s368 = smul.addr %s367, 128
          %s369 = scalar_lea.hbm %s0, %s368
          %s370 = sshll.u32 %s363, 4
          %s371 = int_to_ptr.vmem [resolvable:$true] %s370
          %376 = dma.hbm_to_vmem [thread:$0]  %s369, 5504, %s371, %s360, 128, 128, 8
        $region52: #{tpu_custom_call.1} parent=47 // pred_fallthru
          _
      $region48: #{tpu_custom_call.1} parent=5 // pred_fallthru
        _
      %p377 = scmp.le.s32.totalorder 1, %s25
      %p378 = scmp.lt.s32.totalorder %s25, 3
      %p379 = pnand %p377, %p378
      %p380 = pneg %p379
      // Predicated region
      $region53: #{tpu_custom_call.1} parent=5 // pred_check
        _
      $region54: #{tpu_custom_call.1} parent=5 // pred_check_branch
        %382 = sbr.rel (%p379) target = $region56
      $region55: #{tpu_custom_call.1} parent=5 // pred_region
        %s383 = ssub.s32 %s25, 1
        %s384 = sand.u32 %s38, 1
        %s385 = scalar_lea.sflag [#allocation4], %s384
        %s386 = sand.u32 %s38, 1
        %s387 = smul.addr %s386, 344
        %s388 = scalar_lea.vmem [#allocation3], %s387
        // Predicated region
        $region57: #{tpu_custom_call.1} parent=55 // pred_check
          %p389 = pneg %p51
        $region58: #{tpu_custom_call.1} parent=55 // pred_check_branch
          %391 = sbr.rel (%p389) target = $region60
        $region59: #{tpu_custom_call.1} parent=55 // pred_region
          %392 = dma.done %s385, 5504
        $region60: #{tpu_custom_call.1} parent=55 // pred_fallthru
          _
        // Predicated region
        $region61: #{tpu_custom_call.1} parent=55 // pred_check
          %p393 = pneg %p72
        $region62: #{tpu_custom_call.1} parent=55 // pred_check_branch
          %395 = sbr.rel (%p393) target = $region64
        $region63: #{tpu_custom_call.1} parent=55 // pred_region
          %396 = dma.done [#allocation7], 9216
        $region64: #{tpu_custom_call.1} parent=55 // pred_fallthru
          _
        // Predicated region
        $region65: #{tpu_custom_call.1} parent=55 // pred_check
          %p397 = pneg %p93
        $region66: #{tpu_custom_call.1} parent=55 // pred_check_branch
          %399 = sbr.rel (%p397) target = $region68
        $region67: #{tpu_custom_call.1} parent=55 // pred_region
          %400 = dma.done [#allocation7], 16
        $region68: #{tpu_custom_call.1} parent=55 // pred_fallthru
          _
        // Predicated region
        $region69: #{tpu_custom_call.1} parent=55 // pred_check
          %p401 = pneg %p114
        $region70: #{tpu_custom_call.1} parent=55 // pred_check_branch
          %403 = sbr.rel (%p401) target = $region72
        $region71: #{tpu_custom_call.1} parent=55 // pred_region
          %404 = dma.done [#allocation10], 16
        $region72: #{tpu_custom_call.1} parent=55 // pred_fallthru
          _
        // Predicated region
        $region73: #{tpu_custom_call.1} parent=55 // pred_check
          %p405 = pneg %p135
        $region74: #{tpu_custom_call.1} parent=55 // pred_check_branch
          %407 = sbr.rel (%p405) target = $region76
        $region75: #{tpu_custom_call.1} parent=55 // pred_region
          %408 = dma.done [#allocation10], 16
        $region76: #{tpu_custom_call.1} parent=55 // pred_fallthru
          _
        // Predicated region
        $region77: #{tpu_custom_call.1} parent=55 // pred_check
          %p409 = pneg %p156
        $region78: #{tpu_custom_call.1} parent=55 // pred_check_branch
          %411 = sbr.rel (%p409) target = $region80
        $region79: #{tpu_custom_call.1} parent=55 // pred_region
          %412 = dma.done [#allocation13], 9216
        $region80: #{tpu_custom_call.1} parent=55 // pred_fallthru
          _
        // Predicated region
        $region81: #{tpu_custom_call.1} parent=55 // pred_check
          %p413 = pneg %p177
        $region82: #{tpu_custom_call.1} parent=55 // pred_check_branch
          %415 = sbr.rel (%p413) target = $region84
        $region83: #{tpu_custom_call.1} parent=55 // pred_region
          %416 = dma.done [#allocation13], 16
        $region84: #{tpu_custom_call.1} parent=55 // pred_fallthru
          _
        // Predicated region
        $region85: #{tpu_custom_call.1} parent=55 // pred_check
          %p417 = pneg %p198
        $region86: #{tpu_custom_call.1} parent=55 // pred_check_branch
          %419 = sbr.rel (%p417) target = $region88
        $region87: #{tpu_custom_call.1} parent=55 // pred_region
          %420 = dma.done [#allocation16], 16
        $region88: #{tpu_custom_call.1} parent=55 // pred_fallthru
          _
        // Predicated region
        $region89: #{tpu_custom_call.1} parent=55 // pred_check
          %p421 = pneg %p219
        $region90: #{tpu_custom_call.1} parent=55 // pred_check_branch
          %423 = sbr.rel (%p421) target = $region92
        $region91: #{tpu_custom_call.1} parent=55 // pred_region
          %424 = dma.done [#allocation16], 16
        $region92: #{tpu_custom_call.1} parent=55 // pred_fallthru
          _
        %s425 = sand.u32 %s38, 1
        %s426 = scalar_lea.sflag [#allocation4], %s425
        %s427 = sand.u32 %s38, 1
        %s428 = smul.addr %s427, 344
        %s429 = scalar_lea.vmem [#allocation3], %s428
        %p430 = pneg %p51
        %p431 = pneg %p48
        %p432 = pneg %p72
        %p433 = pneg %p69
        %p434 = pneg %p93
        %p435 = pneg %p90
        %p436 = pneg %p114
        %p437 = pneg %p111
        %p438 = pneg %p135
        %p439 = pneg %p132
        %p440 = pneg %p156
        %p441 = pneg %p153
        %p442 = pneg %p177
        %p443 = pneg %p174
        %p444 = pneg %p198
        %p445 = pneg %p195
        %p446 = pneg %p219
        %p447 = pneg %p216
        %p448 = pneg %p245
        %p449 = pneg %p242
        %s450 = sand.u32 %s232, 1
        %s451 = scalar_lea.sflag [#allocation5], %s450
        %s452 = sand.u32 %s232, 1
        %s453 = smul.addr %s452, 288
        %s454 = scalar_lea.vmem [#allocation18], %s453
        %v456 = vlaneseq
        %v457 = vshrl.u32 %v456, 7
        %v458 = vadd.s32 %v457, 8
        %v459 = vadd.s32 %v457, 16
        %v460 = vadd.s32 %v457, 24
        %v461 = vadd.s32 %v457, 32
        %v462 = vadd.s32 %v457, 40
        %v463 = vadd.s32 %v457, 48
        %v464 = vadd.s32 %v457, 56
        %v465 = vadd.s32 %v457, 64
        %v466 = vadd.s32 %v457, 72
        %v467 = vadd.s32 %v457, 80
        %v468 = vadd.s32 %v457, 88
        %v469 = vadd.s32 %v457, 96
        %v470 = vadd.s32 %v457, 104
        %v471 = vadd.s32 %v457, 112
        %v472 = vadd.s32 %v457, 120
        %v473 = vadd.s32 %v457, 128
        %v474 = vadd.s32 %v457, 136
        %v475 = vadd.s32 %v457, 144
        %v476 = vadd.s32 %v457, 152
        %v477 = vadd.s32 %v457, 160
        %v478 = vadd.s32 %v457, 168
        %v479 = vadd.s32 %v457, 176
        %v480 = vadd.s32 %v457, 184
        %v481 = vadd.s32 %v457, 192
        %v482 = vadd.s32 %v457, 200
        %v483 = vadd.s32 %v457, 208
        %v484 = vadd.s32 %v457, 216
        %v485 = vadd.s32 %v457, 224
        %v486 = vadd.s32 %v457, 232
        %v487 = vadd.s32 %v457, 240
        %v488 = vadd.s32 %v457, 248
        %v489 = vadd.s32 %v457, 256
        %v490 = vadd.s32 %v457, 264
        %v491 = vadd.s32 %v457, 272
        %v492 = vadd.s32 %v457, 280
        %vm493 = vcmp.lt.s32.totalorder %v457, 0
        %v494 = vsub.s32 0, %v457
        %v495 = vsel %vm493, %v494, %v457
        %v496 = vmul.u32.u64.compose %v495, 3817748708
        %v497 = vextract.low.u32 %v496
        %v498 = vextract.high.u32 %v496
        %v499 = vshrl.u32 %v498, 4
        %v500 = vmul.u32 %v499, 18
        %v501 = vsub.s32 %v495, %v500
        %v502 = vsub.s32 0, %v501
        %v503 = vsel %vm493, %v502, %v501
        %vm504 = vcmp.lt.s32.totalorder %v458, 0
        %v505 = vsub.s32 0, %v458
        %v506 = vsel %vm504, %v505, %v458
        %v507 = vmul.u32.u64.compose %v506, 3817748708
        %v508 = vextract.low.u32 %v507
        %v509 = vextract.high.u32 %v507
        %v510 = vshrl.u32 %v509, 4
        %v511 = vmul.u32 %v510, 18
        %v512 = vsub.s32 %v506, %v511
        %v513 = vsub.s32 0, %v512
        %v514 = vsel %vm504, %v513, %v512
        %vm515 = vcmp.lt.s32.totalorder %v459, 0
        %v516 = vsub.s32 0, %v459
        %v517 = vsel %vm515, %v516, %v459
        %v518 = vmul.u32.u64.compose %v517, 3817748708
        %v519 = vextract.low.u32 %v518
        %v520 = vextract.high.u32 %v518
        %v521 = vshrl.u32 %v520, 4
        %v522 = vmul.u32 %v521, 18
        %v523 = vsub.s32 %v517, %v522
        %v524 = vsub.s32 0, %v523
        %v525 = vsel %vm515, %v524, %v523
        %vm526 = vcmp.lt.s32.totalorder %v460, 0
        %v527 = vsub.s32 0, %v460
        %v528 = vsel %vm526, %v527, %v460
        %v529 = vmul.u32.u64.compose %v528, 3817748708
        %v530 = vextract.low.u32 %v529
        %v531 = vextract.high.u32 %v529
        %v532 = vshrl.u32 %v531, 4
        %v533 = vmul.u32 %v532, 18
        %v534 = vsub.s32 %v528, %v533
        %v535 = vsub.s32 0, %v534
        %v536 = vsel %vm526, %v535, %v534
        %vm537 = vcmp.lt.s32.totalorder %v461, 0
        %v538 = vsub.s32 0, %v461
        %v539 = vsel %vm537, %v538, %v461
        %v540 = vmul.u32.u64.compose %v539, 3817748708
        %v541 = vextract.low.u32 %v540
        %v542 = vextract.high.u32 %v540
        %v543 = vshrl.u32 %v542, 4
        %v544 = vmul.u32 %v543, 18
        %v545 = vsub.s32 %v539, %v544
        %v546 = vsub.s32 0, %v545
        %v547 = vsel %vm537, %v546, %v545
        %vm548 = vcmp.lt.s32.totalorder %v462, 0
        %v549 = vsub.s32 0, %v462
        %v550 = vsel %vm548, %v549, %v462
        %v551 = vmul.u32.u64.compose %v550, 3817748708
        %v552 = vextract.low.u32 %v551
        %v553 = vextract.high.u32 %v551
        %v554 = vshrl.u32 %v553, 4
        %v555 = vmul.u32 %v554, 18
        %v556 = vsub.s32 %v550, %v555
        %v557 = vsub.s32 0, %v556
        %v558 = vsel %vm548, %v557, %v556
        %vm559 = vcmp.lt.s32.totalorder %v463, 0
        %v560 = vsub.s32 0, %v463
        %v561 = vsel %vm559, %v560, %v463
        %v562 = vmul.u32.u64.compose %v561, 3817748708
        %v563 = vextract.low.u32 %v562
        %v564 = vextract.high.u32 %v562
        %v565 = vshrl.u32 %v564, 4
        %v566 = vmul.u32 %v565, 18
        %v567 = vsub.s32 %v561, %v566
        %v568 = vsub.s32 0, %v567
        %v569 = vsel %vm559, %v568, %v567
        %vm570 = vcmp.lt.s32.totalorder %v464, 0
        %v571 = vsub.s32 0, %v464
        %v572 = vsel %vm570, %v571, %v464
        %v573 = vmul.u32.u64.compose %v572, 3817748708
        %v574 = vextract.low.u32 %v573
        %v575 = vextract.high.u32 %v573
        %v576 = vshrl.u32 %v575, 4
        %v577 = vmul.u32 %v576, 18
        %v578 = vsub.s32 %v572, %v577
        %v579 = vsub.s32 0, %v578
        %v580 = vsel %vm570, %v579, %v578
        %vm581 = vcmp.lt.s32.totalorder %v465, 0
        %v582 = vsub.s32 0, %v465
        %v583 = vsel %vm581, %v582, %v465
        %v584 = vmul.u32.u64.compose %v583, 3817748708
        %v585 = vextract.low.u32 %v584
        %v586 = vextract.high.u32 %v584
        %v587 = vshrl.u32 %v586, 4
        %v588 = vmul.u32 %v587, 18
        %v589 = vsub.s32 %v583, %v588
        %v590 = vsub.s32 0, %v589
        %v591 = vsel %vm581, %v590, %v589
        %vm592 = vcmp.lt.s32.totalorder %v466, 0
        %v593 = vsub.s32 0, %v466
        %v594 = vsel %vm592, %v593, %v466
        %v595 = vmul.u32.u64.compose %v594, 3817748708
        %v596 = vextract.low.u32 %v595
        %v597 = vextract.high.u32 %v595
        %v598 = vshrl.u32 %v597, 4
        %v599 = vmul.u32 %v598, 18
        %v600 = vsub.s32 %v594, %v599
        %v601 = vsub.s32 0, %v600
        %v602 = vsel %vm592, %v601, %v600
        %vm603 = vcmp.lt.s32.totalorder %v467, 0
        %v604 = vsub.s32 0, %v467
        %v605 = vsel %vm603, %v604, %v467
        %v606 = vmul.u32.u64.compose %v605, 3817748708
        %v607 = vextract.low.u32 %v606
        %v608 = vextract.high.u32 %v606
        %v609 = vshrl.u32 %v608, 4
        %v610 = vmul.u32 %v609, 18
        %v611 = vsub.s32 %v605, %v610
        %v612 = vsub.s32 0, %v611
        %v613 = vsel %vm603, %v612, %v611
        %vm614 = vcmp.lt.s32.totalorder %v468, 0
        %v615 = vsub.s32 0, %v468
        %v616 = vsel %vm614, %v615, %v468
        %v617 = vmul.u32.u64.compose %v616, 3817748708
        %v618 = vextract.low.u32 %v617
        %v619 = vextract.high.u32 %v617
        %v620 = vshrl.u32 %v619, 4
        %v621 = vmul.u32 %v620, 18
        %v622 = vsub.s32 %v616, %v621
        %v623 = vsub.s32 0, %v622
        %v624 = vsel %vm614, %v623, %v622
        %vm625 = vcmp.lt.s32.totalorder %v469, 0
        %v626 = vsub.s32 0, %v469
        %v627 = vsel %vm625, %v626, %v469
        %v628 = vmul.u32.u64.compose %v627, 3817748708
        %v629 = vextract.low.u32 %v628
        %v630 = vextract.high.u32 %v628
        %v631 = vshrl.u32 %v630, 4
        %v632 = vmul.u32 %v631, 18
        %v633 = vsub.s32 %v627, %v632
        %v634 = vsub.s32 0, %v633
        %v635 = vsel %vm625, %v634, %v633
        %vm636 = vcmp.lt.s32.totalorder %v470, 0
        %v637 = vsub.s32 0, %v470
        %v638 = vsel %vm636, %v637, %v470
        %v639 = vmul.u32.u64.compose %v638, 3817748708
        %v640 = vextract.low.u32 %v639
        %v641 = vextract.high.u32 %v639
        %v642 = vshrl.u32 %v641, 4
        %v643 = vmul.u32 %v642, 18
        %v644 = vsub.s32 %v638, %v643
        %v645 = vsub.s32 0, %v644
        %v646 = vsel %vm636, %v645, %v644
        %vm647 = vcmp.lt.s32.totalorder %v471, 0
        %v648 = vsub.s32 0, %v471
        %v649 = vsel %vm647, %v648, %v471
        %v650 = vmul.u32.u64.compose %v649, 3817748708
        %v651 = vextract.low.u32 %v650
        %v652 = vextract.high.u32 %v650
        %v653 = vshrl.u32 %v652, 4
        %v654 = vmul.u32 %v653, 18
        %v655 = vsub.s32 %v649, %v654
        %v656 = vsub.s32 0, %v655
        %v657 = vsel %vm647, %v656, %v655
        %vm658 = vcmp.lt.s32.totalorder %v472, 0
        %v659 = vsub.s32 0, %v472
        %v660 = vsel %vm658, %v659, %v472
        %v661 = vmul.u32.u64.compose %v660, 3817748708
        %v662 = vextract.low.u32 %v661
        %v663 = vextract.high.u32 %v661
        %v664 = vshrl.u32 %v663, 4
        %v665 = vmul.u32 %v664, 18
        %v666 = vsub.s32 %v660, %v665
        %v667 = vsub.s32 0, %v666
        %v668 = vsel %vm658, %v667, %v666
        %vm669 = vcmp.lt.s32.totalorder %v473, 0
        %v670 = vsub.s32 0, %v473
        %v671 = vsel %vm669, %v670, %v473
        %v672 = vmul.u32.u64.compose %v671, 3817748708
        %v673 = vextract.low.u32 %v672
        %v674 = vextract.high.u32 %v672
        %v675 = vshrl.u32 %v674, 4
        %v676 = vmul.u32 %v675, 18
        %v677 = vsub.s32 %v671, %v676
        %v678 = vsub.s32 0, %v677
        %v679 = vsel %vm669, %v678, %v677
        %vm680 = vcmp.lt.s32.totalorder %v474, 0
        %v681 = vsub.s32 0, %v474
        %v682 = vsel %vm680, %v681, %v474
        %v683 = vmul.u32.u64.compose %v682, 3817748708
        %v684 = vextract.low.u32 %v683
        %v685 = vextract.high.u32 %v683
        %v686 = vshrl.u32 %v685, 4
        %v687 = vmul.u32 %v686, 18
        %v688 = vsub.s32 %v682, %v687
        %v689 = vsub.s32 0, %v688
        %v690 = vsel %vm680, %v689, %v688
        %vm691 = vcmp.lt.s32.totalorder %v475, 0
        %v692 = vsub.s32 0, %v475
        %v693 = vsel %vm691, %v692, %v475
        %v694 = vmul.u32.u64.compose %v693, 3817748708
        %v695 = vextract.low.u32 %v694
        %v696 = vextract.high.u32 %v694
        %v697 = vshrl.u32 %v696, 4
        %v698 = vmul.u32 %v697, 18
        %v699 = vsub.s32 %v693, %v698
        %v700 = vsub.s32 0, %v699
        %v701 = vsel %vm691, %v700, %v699
        %vm702 = vcmp.lt.s32.totalorder %v476, 0
        %v703 = vsub.s32 0, %v476
        %v704 = vsel %vm702, %v703, %v476
        %v705 = vmul.u32.u64.compose %v704, 3817748708
        %v706 = vextract.low.u32 %v705
        %v707 = vextract.high.u32 %v705
        %v708 = vshrl.u32 %v707, 4
        %v709 = vmul.u32 %v708, 18
        %v710 = vsub.s32 %v704, %v709
        %v711 = vsub.s32 0, %v710
        %v712 = vsel %vm702, %v711, %v710
        %vm713 = vcmp.lt.s32.totalorder %v477, 0
        %v714 = vsub.s32 0, %v477
        %v715 = vsel %vm713, %v714, %v477
        %v716 = vmul.u32.u64.compose %v715, 3817748708
        %v717 = vextract.low.u32 %v716
        %v718 = vextract.high.u32 %v716
        %v719 = vshrl.u32 %v718, 4
        %v720 = vmul.u32 %v719, 18
        %v721 = vsub.s32 %v715, %v720
        %v722 = vsub.s32 0, %v721
        %v723 = vsel %vm713, %v722, %v721
        %vm724 = vcmp.lt.s32.totalorder %v478, 0
        %v725 = vsub.s32 0, %v478
        %v726 = vsel %vm724, %v725, %v478
        %v727 = vmul.u32.u64.compose %v726, 3817748708
        %v728 = vextract.low.u32 %v727
        %v729 = vextract.high.u32 %v727
        %v730 = vshrl.u32 %v729, 4
        %v731 = vmul.u32 %v730, 18
        %v732 = vsub.s32 %v726, %v731
        %v733 = vsub.s32 0, %v732
        %v734 = vsel %vm724, %v733, %v732
        %vm735 = vcmp.lt.s32.totalorder %v479, 0
        %v736 = vsub.s32 0, %v479
        %v737 = vsel %vm735, %v736, %v479
        %v738 = vmul.u32.u64.compose %v737, 3817748708
        %v739 = vextract.low.u32 %v738
        %v740 = vextract.high.u32 %v738
        %v741 = vshrl.u32 %v740, 4
        %v742 = vmul.u32 %v741, 18
        %v743 = vsub.s32 %v737, %v742
        %v744 = vsub.s32 0, %v743
        %v745 = vsel %vm735, %v744, %v743
        %vm746 = vcmp.lt.s32.totalorder %v480, 0
        %v747 = vsub.s32 0, %v480
        %v748 = vsel %vm746, %v747, %v480
        %v749 = vmul.u32.u64.compose %v748, 3817748708
        %v750 = vextract.low.u32 %v749
        %v751 = vextract.high.u32 %v749
        %v752 = vshrl.u32 %v751, 4
        %v753 = vmul.u32 %v752, 18
        %v754 = vsub.s32 %v748, %v753
        %v755 = vsub.s32 0, %v754
        %v756 = vsel %vm746, %v755, %v754
        %vm757 = vcmp.lt.s32.totalorder %v481, 0
        %v758 = vsub.s32 0, %v481
        %v759 = vsel %vm757, %v758, %v481
        %v760 = vmul.u32.u64.compose %v759, 3817748708
        %v761 = vextract.low.u32 %v760
        %v762 = vextract.high.u32 %v760
        %v763 = vshrl.u32 %v762, 4
        %v764 = vmul.u32 %v763, 18
        %v765 = vsub.s32 %v759, %v764
        %v766 = vsub.s32 0, %v765
        %v767 = vsel %vm757, %v766, %v765
        %vm768 = vcmp.lt.s32.totalorder %v482, 0
        %v769 = vsub.s32 0, %v482
        %v770 = vsel %vm768, %v769, %v482
        %v771 = vmul.u32.u64.compose %v770, 3817748708
        %v772 = vextract.low.u32 %v771
        %v773 = vextract.high.u32 %v771
        %v774 = vshrl.u32 %v773, 4
        %v775 = vmul.u32 %v774, 18
        %v776 = vsub.s32 %v770, %v775
        %v777 = vsub.s32 0, %v776
        %v778 = vsel %vm768, %v777, %v776
        %vm779 = vcmp.lt.s32.totalorder %v483, 0
        %v780 = vsub.s32 0, %v483
        %v781 = vsel %vm779, %v780, %v483
        %v782 = vmul.u32.u64.compose %v781, 3817748708
        %v783 = vextract.low.u32 %v782
        %v784 = vextract.high.u32 %v782
        %v785 = vshrl.u32 %v784, 4
        %v786 = vmul.u32 %v785, 18
        %v787 = vsub.s32 %v781, %v786
        %v788 = vsub.s32 0, %v787
        %v789 = vsel %vm779, %v788, %v787
        %vm790 = vcmp.lt.s32.totalorder %v484, 0
        %v791 = vsub.s32 0, %v484
        %v792 = vsel %vm790, %v791, %v484
        %v793 = vmul.u32.u64.compose %v792, 3817748708
        %v794 = vextract.low.u32 %v793
        %v795 = vextract.high.u32 %v793
        %v796 = vshrl.u32 %v795, 4
        %v797 = vmul.u32 %v796, 18
        %v798 = vsub.s32 %v792, %v797
        %v799 = vsub.s32 0, %v798
        %v800 = vsel %vm790, %v799, %v798
        %vm801 = vcmp.lt.s32.totalorder %v485, 0
        %v802 = vsub.s32 0, %v485
        %v803 = vsel %vm801, %v802, %v485
        %v804 = vmul.u32.u64.compose %v803, 3817748708
        %v805 = vextract.low.u32 %v804
        %v806 = vextract.high.u32 %v804
        %v807 = vshrl.u32 %v806, 4
        %v808 = vmul.u32 %v807, 18
        %v809 = vsub.s32 %v803, %v808
        %v810 = vsub.s32 0, %v809
        %v811 = vsel %vm801, %v810, %v809
        %vm812 = vcmp.lt.s32.totalorder %v486, 0
        %v813 = vsub.s32 0, %v486
        %v814 = vsel %vm812, %v813, %v486
        %v815 = vmul.u32.u64.compose %v814, 3817748708
        %v816 = vextract.low.u32 %v815
        %v817 = vextract.high.u32 %v815
        %v818 = vshrl.u32 %v817, 4
        %v819 = vmul.u32 %v818, 18
        %v820 = vsub.s32 %v814, %v819
        %v821 = vsub.s32 0, %v820
        %v822 = vsel %vm812, %v821, %v820
        %vm823 = vcmp.lt.s32.totalorder %v487, 0
        %v824 = vsub.s32 0, %v487
        %v825 = vsel %vm823, %v824, %v487
        %v826 = vmul.u32.u64.compose %v825, 3817748708
        %v827 = vextract.low.u32 %v826
        %v828 = vextract.high.u32 %v826
        %v829 = vshrl.u32 %v828, 4
        %v830 = vmul.u32 %v829, 18
        %v831 = vsub.s32 %v825, %v830
        %v832 = vsub.s32 0, %v831
        %v833 = vsel %vm823, %v832, %v831
        %vm834 = vcmp.lt.s32.totalorder %v488, 0
        %v835 = vsub.s32 0, %v488
        %v836 = vsel %vm834, %v835, %v488
        %v837 = vmul.u32.u64.compose %v836, 3817748708
        %v838 = vextract.low.u32 %v837
        %v839 = vextract.high.u32 %v837
        %v840 = vshrl.u32 %v839, 4
        %v841 = vmul.u32 %v840, 18
        %v842 = vsub.s32 %v836, %v841
        %v843 = vsub.s32 0, %v842
        %v844 = vsel %vm834, %v843, %v842
        %vm845 = vcmp.lt.s32.totalorder %v489, 0
        %v846 = vsub.s32 0, %v489
        %v847 = vsel %vm845, %v846, %v489
        %v848 = vmul.u32.u64.compose %v847, 3817748708
        %v849 = vextract.low.u32 %v848
        %v850 = vextract.high.u32 %v848
        %v851 = vshrl.u32 %v850, 4
        %v852 = vmul.u32 %v851, 18
        %v853 = vsub.s32 %v847, %v852
        %v854 = vsub.s32 0, %v853
        %v855 = vsel %vm845, %v854, %v853
        %vm856 = vcmp.lt.s32.totalorder %v490, 0
        %v857 = vsub.s32 0, %v490
        %v858 = vsel %vm856, %v857, %v490
        %v859 = vmul.u32.u64.compose %v858, 3817748708
        %v860 = vextract.low.u32 %v859
        %v861 = vextract.high.u32 %v859
        %v862 = vshrl.u32 %v861, 4
        %v863 = vmul.u32 %v862, 18
        %v864 = vsub.s32 %v858, %v863
        %v865 = vsub.s32 0, %v864
        %v866 = vsel %vm856, %v865, %v864
        %vm867 = vcmp.lt.s32.totalorder %v491, 0
        %v868 = vsub.s32 0, %v491
        %v869 = vsel %vm867, %v868, %v491
        %v870 = vmul.u32.u64.compose %v869, 3817748708
        %v871 = vextract.low.u32 %v870
        %v872 = vextract.high.u32 %v870
        %v873 = vshrl.u32 %v872, 4
        %v874 = vmul.u32 %v873, 18
        %v875 = vsub.s32 %v869, %v874
        %v876 = vsub.s32 0, %v875
        %v877 = vsel %vm867, %v876, %v875
        %vm878 = vcmp.lt.s32.totalorder %v492, 0
        %v879 = vsub.s32 0, %v492
        %v880 = vsel %vm878, %v879, %v492
        %v881 = vmul.u32.u64.compose %v880, 3817748708
        %v882 = vextract.low.u32 %v881
        %v883 = vextract.high.u32 %v881
        %v884 = vshrl.u32 %v883, 4
        %v885 = vmul.u32 %v884, 18
        %v886 = vsub.s32 %v880, %v885
        %v887 = vsub.s32 0, %v886
        %v888 = vsel %vm878, %v887, %v886
        %vm889 = vcmp.ne.s32.totalorder %v503, 0
        %vm890 = vcmp.ne.s32.totalorder %v514, 0
        %vm891 = vcmp.ne.s32.totalorder %v525, 0
        %vm892 = vcmp.ne.s32.totalorder %v536, 0
        %vm893 = vcmp.ne.s32.totalorder %v547, 0
        %vm894 = vcmp.ne.s32.totalorder %v558, 0
        %vm895 = vcmp.ne.s32.totalorder %v569, 0
        %vm896 = vcmp.ne.s32.totalorder %v580, 0
        %vm897 = vcmp.ne.s32.totalorder %v591, 0
        %vm898 = vcmp.ne.s32.totalorder %v602, 0
        %vm899 = vcmp.ne.s32.totalorder %v613, 0
        %vm900 = vcmp.ne.s32.totalorder %v624, 0
        %vm901 = vcmp.ne.s32.totalorder %v635, 0
        %vm902 = vcmp.ne.s32.totalorder %v646, 0
        %vm903 = vcmp.ne.s32.totalorder %v657, 0
        %vm904 = vcmp.ne.s32.totalorder %v668, 0
        %vm905 = vcmp.ne.s32.totalorder %v679, 0
        %vm906 = vcmp.ne.s32.totalorder %v690, 0
        %vm907 = vcmp.ne.s32.totalorder %v701, 0
        %vm908 = vcmp.ne.s32.totalorder %v712, 0
        %vm909 = vcmp.ne.s32.totalorder %v723, 0
        %vm910 = vcmp.ne.s32.totalorder %v734, 0
        %vm911 = vcmp.ne.s32.totalorder %v745, 0
        %vm912 = vcmp.ne.s32.totalorder %v756, 0
        %vm913 = vcmp.ne.s32.totalorder %v767, 0
        %vm914 = vcmp.ne.s32.totalorder %v778, 0
        %vm915 = vcmp.ne.s32.totalorder %v789, 0
        %vm916 = vcmp.ne.s32.totalorder %v800, 0
        %vm917 = vcmp.ne.s32.totalorder %v811, 0
        %vm918 = vcmp.ne.s32.totalorder %v822, 0
        %vm919 = vcmp.ne.s32.totalorder %v833, 0
        %vm920 = vcmp.ne.s32.totalorder %v844, 0
        %vm921 = vcmp.ne.s32.totalorder %v855, 0
        %vm922 = vcmp.ne.s32.totalorder %v866, 0
        %vm923 = vcmp.ne.s32.totalorder %v877, 0
        %vm924 = vcmp.ne.s32.totalorder %v888, 0
        %vm925 = vcmp.lt.s32.totalorder %v503, 0
        %vm926 = vcmp.lt.s32.totalorder %v514, 0
        %vm927 = vcmp.lt.s32.totalorder %v525, 0
        %vm928 = vcmp.lt.s32.totalorder %v536, 0
        %vm929 = vcmp.lt.s32.totalorder %v547, 0
        %vm930 = vcmp.lt.s32.totalorder %v558, 0
        %vm931 = vcmp.lt.s32.totalorder %v569, 0
        %vm932 = vcmp.lt.s32.totalorder %v580, 0
        %vm933 = vcmp.lt.s32.totalorder %v591, 0
        %vm934 = vcmp.lt.s32.totalorder %v602, 0
        %vm935 = vcmp.lt.s32.totalorder %v613, 0
        %vm936 = vcmp.lt.s32.totalorder %v624, 0
        %vm937 = vcmp.lt.s32.totalorder %v635, 0
        %vm938 = vcmp.lt.s32.totalorder %v646, 0
        %vm939 = vcmp.lt.s32.totalorder %v657, 0
        %vm940 = vcmp.lt.s32.totalorder %v668, 0
        %vm941 = vcmp.lt.s32.totalorder %v679, 0
        %vm942 = vcmp.lt.s32.totalorder %v690, 0
        %vm943 = vcmp.lt.s32.totalorder %v701, 0
        %vm944 = vcmp.lt.s32.totalorder %v712, 0
        %vm945 = vcmp.lt.s32.totalorder %v723, 0
        %vm946 = vcmp.lt.s32.totalorder %v734, 0
        %vm947 = vcmp.lt.s32.totalorder %v745, 0
        %vm948 = vcmp.lt.s32.totalorder %v756, 0
        %vm949 = vcmp.lt.s32.totalorder %v767, 0
        %vm950 = vcmp.lt.s32.totalorder %v778, 0
        %vm951 = vcmp.lt.s32.totalorder %v789, 0
        %vm952 = vcmp.lt.s32.totalorder %v800, 0
        %vm953 = vcmp.lt.s32.totalorder %v811, 0
        %vm954 = vcmp.lt.s32.totalorder %v822, 0
        %vm955 = vcmp.lt.s32.totalorder %v833, 0
        %vm956 = vcmp.lt.s32.totalorder %v844, 0
        %vm957 = vcmp.lt.s32.totalorder %v855, 0
        %vm958 = vcmp.lt.s32.totalorder %v866, 0
        %vm959 = vcmp.lt.s32.totalorder %v877, 0
        %vm960 = vcmp.lt.s32.totalorder %v888, 0
        %vm961 = vmand %vm925, %vm889
        %vm962 = vmand %vm926, %vm890
        %vm963 = vmand %vm927, %vm891
        %vm964 = vmand %vm928, %vm892
        %vm965 = vmand %vm929, %vm893
        %vm966 = vmand %vm930, %vm894
        %vm967 = vmand %vm931, %vm895
        %vm968 = vmand %vm932, %vm896
        %vm969 = vmand %vm933, %vm897
        %vm970 = vmand %vm934, %vm898
        %vm971 = vmand %vm935, %vm899
        %vm972 = vmand %vm936, %vm900
        %vm973 = vmand %vm937, %vm901
        %vm974 = vmand %vm938, %vm902
        %vm975 = vmand %vm939, %vm903
        %vm976 = vmand %vm940, %vm904
        %vm977 = vmand %vm941, %vm905
        %vm978 = vmand %vm942, %vm906
        %vm979 = vmand %vm943, %vm907
        %vm980 = vmand %vm944, %vm908
        %vm981 = vmand %vm945, %vm909
        %vm982 = vmand %vm946, %vm910
        %vm983 = vmand %vm947, %vm911
        %vm984 = vmand %vm948, %vm912
        %vm985 = vmand %vm949, %vm913
        %vm986 = vmand %vm950, %vm914
        %vm987 = vmand %vm951, %vm915
        %vm988 = vmand %vm952, %vm916
        %vm989 = vmand %vm953, %vm917
        %vm990 = vmand %vm954, %vm918
        %vm991 = vmand %vm955, %vm919
        %vm992 = vmand %vm956, %vm920
        %vm993 = vmand %vm957, %vm921
        %vm994 = vmand %vm958, %vm922
        %vm995 = vmand %vm959, %vm923
        %vm996 = vmand %vm960, %vm924
        %v997 = vadd.s32 %v503, 18
        %v998 = vadd.s32 %v514, 18
        %v999 = vadd.s32 %v525, 18
        %v1000 = vadd.s32 %v536, 18
        %v1001 = vadd.s32 %v547, 18
        %v1002 = vadd.s32 %v558, 18
        %v1003 = vadd.s32 %v569, 18
        %v1004 = vadd.s32 %v580, 18
        %v1005 = vadd.s32 %v591, 18
        %v1006 = vadd.s32 %v602, 18
        %v1007 = vadd.s32 %v613, 18
        %v1008 = vadd.s32 %v624, 18
        %v1009 = vadd.s32 %v635, 18
        %v1010 = vadd.s32 %v646, 18
        %v1011 = vadd.s32 %v657, 18
        %v1012 = vadd.s32 %v668, 18
        %v1013 = vadd.s32 %v679, 18
        %v1014 = vadd.s32 %v690, 18
        %v1015 = vadd.s32 %v701, 18
        %v1016 = vadd.s32 %v712, 18
        %v1017 = vadd.s32 %v723, 18
        %v1018 = vadd.s32 %v734, 18
        %v1019 = vadd.s32 %v745, 18
        %v1020 = vadd.s32 %v756, 18
        %v1021 = vadd.s32 %v767, 18
        %v1022 = vadd.s32 %v778, 18
        %v1023 = vadd.s32 %v789, 18
        %v1024 = vadd.s32 %v800, 18
        %v1025 = vadd.s32 %v811, 18
        %v1026 = vadd.s32 %v822, 18
        %v1027 = vadd.s32 %v833, 18
        %v1028 = vadd.s32 %v844, 18
        %v1029 = vadd.s32 %v855, 18
        %v1030 = vadd.s32 %v866, 18
        %v1031 = vadd.s32 %v877, 18
        %v1032 = vadd.s32 %v888, 18
        %v1033 = vsel %vm961, %v997, %v503
        %v1034 = vsel %vm962, %v998, %v514
        %v1035 = vsel %vm963, %v999, %v525
        %v1036 = vsel %vm964, %v1000, %v536
        %v1037 = vsel %vm965, %v1001, %v547
        %v1038 = vsel %vm966, %v1002, %v558
        %v1039 = vsel %vm967, %v1003, %v569
        %v1040 = vsel %vm968, %v1004, %v580
        %v1041 = vsel %vm969, %v1005, %v591
        %v1042 = vsel %vm970, %v1006, %v602
        %v1043 = vsel %vm971, %v1007, %v613
        %v1044 = vsel %vm972, %v1008, %v624
        %v1045 = vsel %vm973, %v1009, %v635
        %v1046 = vsel %vm974, %v1010, %v646
        %v1047 = vsel %vm975, %v1011, %v657
        %v1048 = vsel %vm976, %v1012, %v668
        %v1049 = vsel %vm977, %v1013, %v679
        %v1050 = vsel %vm978, %v1014, %v690
        %v1051 = vsel %vm979, %v1015, %v701
        %v1052 = vsel %vm980, %v1016, %v712
        %v1053 = vsel %vm981, %v1017, %v723
        %v1054 = vsel %vm982, %v1018, %v734
        %v1055 = vsel %vm983, %v1019, %v745
        %v1056 = vsel %vm984, %v1020, %v756
        %v1057 = vsel %vm985, %v1021, %v767
        %v1058 = vsel %vm986, %v1022, %v778
        %v1059 = vsel %vm987, %v1023, %v789
        %v1060 = vsel %vm988, %v1024, %v800
        %v1061 = vsel %vm989, %v1025, %v811
        %v1062 = vsel %vm990, %v1026, %v822
        %v1063 = vsel %vm991, %v1027, %v833
        %v1064 = vsel %vm992, %v1028, %v844
        %v1065 = vsel %vm993, %v1029, %v855
        %v1066 = vsel %vm994, %v1030, %v866
        %v1067 = vsel %vm995, %v1031, %v877
        %v1068 = vsel %vm996, %v1032, %v888
        %vm1069 = vcmp.lt.s32.totalorder %v1033, 16
        %vm1070 = vcmp.lt.s32.totalorder %v1034, 16
        %vm1071 = vcmp.lt.s32.totalorder %v1035, 16
        %vm1072 = vcmp.lt.s32.totalorder %v1036, 16
        %vm1073 = vcmp.lt.s32.totalorder %v1037, 16
        %vm1074 = vcmp.lt.s32.totalorder %v1038, 16
        %vm1075 = vcmp.lt.s32.totalorder %v1039, 16
        %vm1076 = vcmp.lt.s32.totalorder %v1040, 16
        %vm1077 = vcmp.lt.s32.totalorder %v1041, 16
        %vm1078 = vcmp.lt.s32.totalorder %v1042, 16
        %vm1079 = vcmp.lt.s32.totalorder %v1043, 16
        %vm1080 = vcmp.lt.s32.totalorder %v1044, 16
        %vm1081 = vcmp.lt.s32.totalorder %v1045, 16
        %vm1082 = vcmp.lt.s32.totalorder %v1046, 16
        %vm1083 = vcmp.lt.s32.totalorder %v1047, 16
        %vm1084 = vcmp.lt.s32.totalorder %v1048, 16
        %vm1085 = vcmp.lt.s32.totalorder %v1049, 16
        %vm1086 = vcmp.lt.s32.totalorder %v1050, 16
        %vm1087 = vcmp.lt.s32.totalorder %v1051, 16
        %vm1088 = vcmp.lt.s32.totalorder %v1052, 16
        %vm1089 = vcmp.lt.s32.totalorder %v1053, 16
        %vm1090 = vcmp.lt.s32.totalorder %v1054, 16
        %vm1091 = vcmp.lt.s32.totalorder %v1055, 16
        %vm1092 = vcmp.lt.s32.totalorder %v1056, 16
        %vm1093 = vcmp.lt.s32.totalorder %v1057, 16
        %vm1094 = vcmp.lt.s32.totalorder %v1058, 16
        %vm1095 = vcmp.lt.s32.totalorder %v1059, 16
        %vm1096 = vcmp.lt.s32.totalorder %v1060, 16
        %vm1097 = vcmp.lt.s32.totalorder %v1061, 16
        %vm1098 = vcmp.lt.s32.totalorder %v1062, 16
        %vm1099 = vcmp.lt.s32.totalorder %v1063, 16
        %vm1100 = vcmp.lt.s32.totalorder %v1064, 16
        %vm1101 = vcmp.lt.s32.totalorder %v1065, 16
        %vm1102 = vcmp.lt.s32.totalorder %v1066, 16
        %vm1103 = vcmp.lt.s32.totalorder %v1067, 16
        %vm1104 = vcmp.lt.s32.totalorder %v1068, 16
        %v1105 = vld [vmem:[%s388] sm:$0xff]
        %v1106 = vld [vmem:[%s388 + $0x8] sm:$0xff]
        %v1107 = vld [vmem:[%s388 + $0x10] sm:$0xff]
        %v1108 = vld [vmem:[%s388 + $0x18] sm:$0xff]
        %v1109 = vld [vmem:[%s388 + $0x20] sm:$0xff]
        %v1110 = vld [vmem:[%s388 + $0x28] sm:$0xff]
        %v1111 = vld [vmem:[%s388 + $0x30] sm:$0xff]
        %v1112 = vld [vmem:[%s388 + $0x38] sm:$0xff]
        %v1113 = vld [vmem:[%s388 + $0x40] sm:$0xff]
        %v1114 = vld [vmem:[%s388 + $0x48] sm:$0xff]
        %v1115 = vld [vmem:[%s388 + $0x50] sm:$0xff]
        %v1116 = vld [vmem:[%s388 + $0x58] sm:$0xff]
        %v1117 = vld [vmem:[%s388 + $0x60] sm:$0xff]
        %v1118 = vld [vmem:[%s388 + $0x68] sm:$0xff]
        %v1119 = vld [vmem:[%s388 + $0x70] sm:$0xff]
        %v1120 = vld [vmem:[%s388 + $0x78] sm:$0xff]
        %v1121 = vld [vmem:[%s388 + $0x80] sm:$0xff]
        %v1122 = vld [vmem:[%s388 + $0x88] sm:$0xff]
        %v1123 = vld [vmem:[%s388 + $0x90] sm:$0xff]
        %v1124 = vld [vmem:[%s388 + $0x98] sm:$0xff]
        %v1125 = vld [vmem:[%s388 + $0xa0] sm:$0xff]
        %v1126 = vld [vmem:[%s388 + $0xa8] sm:$0xff]
        %v1127 = vld [vmem:[%s388 + $0xb0] sm:$0xff]
        %v1128 = vld [vmem:[%s388 + $0xb8] sm:$0xff]
        %v1129 = vld [vmem:[%s388 + $0xc0] sm:$0xff]
        %v1130 = vld [vmem:[%s388 + $0xc8] sm:$0xff]
        %v1131 = vld [vmem:[%s388 + $0xd0] sm:$0xff]
        %v1132 = vld [vmem:[%s388 + $0xd8] sm:$0xff]
        %v1133 = vld [vmem:[%s388 + $0xe0] sm:$0xff]
        %v1134 = vld [vmem:[%s388 + $0xe8] sm:$0xff]
        %v1135 = vld [vmem:[%s388 + $0xf0] sm:$0xff]
        %v1136 = vld [vmem:[%s388 + $0xf8] sm:$0xff]
        %v1137 = vld [vmem:[%s388 + $0x100] sm:$0xff]
        %v1138 = vld [vmem:[%s388 + $0x108] sm:$0xff]
        %v1139 = vld [vmem:[%s388 + $0x110] sm:$0xff]
        %v1140 = vld [vmem:[%s388 + $0x118] sm:$0xff]
        %v1141 = vpack.c.bf16 %v1106, %v1105
        %v1142 = vpack.c.bf16 %v1108, %v1107
        %v1143 = vpack.c.bf16 %v1110, %v1109
        %v1144 = vpack.c.bf16 %v1112, %v1111
        %v1145 = vpack.c.bf16 %v1114, %v1113
        %v1146 = vpack.c.bf16 %v1116, %v1115
        %v1147 = vpack.c.bf16 %v1118, %v1117
        %v1148 = vpack.c.bf16 %v1120, %v1119
        %v1149 = vpack.c.bf16 %v1122, %v1121
        %v1150 = vpack.c.bf16 %v1124, %v1123
        %v1151 = vpack.c.bf16 %v1126, %v1125
        %v1152 = vpack.c.bf16 %v1128, %v1127
        %v1153 = vpack.c.bf16 %v1130, %v1129
        %v1154 = vpack.c.bf16 %v1132, %v1131
        %v1155 = vpack.c.bf16 %v1134, %v1133
        %v1156 = vpack.c.bf16 %v1136, %v1135
        %v1157 = vpack.c.bf16 %v1138, %v1137
        %v1158 = vpack.c.bf16 %v1140, %v1139
        %v1159 = vld [vmem:[#allocation6] sm:$0xf]
        %v1160 = vld [vmem:[#allocation6 + $0x4] sm:$0xf]
        %v1161 = vld [vmem:[#allocation6 + $0x8] sm:$0xf]
        %v1162 = vld [vmem:[#allocation6 + $0xc] sm:$0xf]
        %v1163 = vld [vmem:[#allocation6 + $0x10] sm:$0xf]
        %v1164 = vld [vmem:[#allocation6 + $0x14] sm:$0xf]
        %v1165 = vld [vmem:[#allocation6 + $0x18] sm:$0xf]
        %v1166 = vld [vmem:[#allocation6 + $0x1c] sm:$0xf]
        %v1167 = vld [vmem:[#allocation6 + $0x20] sm:$0xf]
        %v1168 = vld [vmem:[#allocation6 + $0x24] sm:$0xf]
        %v1169 = vld [vmem:[#allocation6 + $0x28] sm:$0xf]
        %v1170 = vld [vmem:[#allocation6 + $0x2c] sm:$0xf]
        %v1171 = vld [vmem:[#allocation6 + $0x30] sm:$0xf]
        %v1172 = vld [vmem:[#allocation6 + $0x34] sm:$0xf]
        %v1173 = vld [vmem:[#allocation6 + $0x38] sm:$0xf]
        %v1174 = vld [vmem:[#allocation6 + $0x3c] sm:$0xf]
        %v1175 = vld [vmem:[%s388 + $0x1] sm:$0xff]
        %v1176 = vld [vmem:[%s388 + $0x9] sm:$0xff]
        %v1177 = vld [vmem:[%s388 + $0x11] sm:$0xff]
        %v1178 = vld [vmem:[%s388 + $0x19] sm:$0xff]
        %v1179 = vld [vmem:[%s388 + $0x21] sm:$0xff]
        %v1180 = vld [vmem:[%s388 + $0x29] sm:$0xff]
        %v1181 = vld [vmem:[%s388 + $0x31] sm:$0xff]
        %v1182 = vld [vmem:[%s388 + $0x39] sm:$0xff]
        %v1183 = vld [vmem:[%s388 + $0x41] sm:$0xff]
        %v1184 = vld [vmem:[%s388 + $0x49] sm:$0xff]
        %v1185 = vld [vmem:[%s388 + $0x51] sm:$0xff]
        %v1186 = vld [vmem:[%s388 + $0x59] sm:$0xff]
        %v1187 = vld [vmem:[%s388 + $0x61] sm:$0xff]
        %v1188 = vld [vmem:[%s388 + $0x69] sm:$0xff]
        %v1189 = vld [vmem:[%s388 + $0x71] sm:$0xff]
        %v1190 = vld [vmem:[%s388 + $0x79] sm:$0xff]
        %v1191 = vld [vmem:[%s388 + $0x81] sm:$0xff]
        %v1192 = vld [vmem:[%s388 + $0x89] sm:$0xff]
        %v1193 = vld [vmem:[%s388 + $0x91] sm:$0xff]
        %v1194 = vld [vmem:[%s388 + $0x99] sm:$0xff]
        %v1195 = vld [vmem:[%s388 + $0xa1] sm:$0xff]
        %v1196 = vld [vmem:[%s388 + $0xa9] sm:$0xff]
        %v1197 = vld [vmem:[%s388 + $0xb1] sm:$0xff]
        %v1198 = vld [vmem:[%s388 + $0xb9] sm:$0xff]
        %v1199 = vld [vmem:[%s388 + $0xc1] sm:$0xff]
        %v1200 = vld [vmem:[%s388 + $0xc9] sm:$0xff]
        %v1201 = vld [vmem:[%s388 + $0xd1] sm:$0xff]
        %v1202 = vld [vmem:[%s388 + $0xd9] sm:$0xff]
        %v1203 = vld [vmem:[%s388 + $0xe1] sm:$0xff]
        %v1204 = vld [vmem:[%s388 + $0xe9] sm:$0xff]
        %v1205 = vld [vmem:[%s388 + $0xf1] sm:$0xff]
        %v1206 = vld [vmem:[%s388 + $0xf9] sm:$0xff]
        %v1207 = vld [vmem:[%s388 + $0x101] sm:$0xff]
        %v1208 = vld [vmem:[%s388 + $0x109] sm:$0xff]
        %v1209 = vld [vmem:[%s388 + $0x111] sm:$0xff]
        %v1210 = vld [vmem:[%s388 + $0x119] sm:$0xff]
        %v1211 = vpack.c.bf16 %v1176, %v1175
        %v1212 = vpack.c.bf16 %v1178, %v1177
        %v1213 = vpack.c.bf16 %v1180, %v1179
        %v1214 = vpack.c.bf16 %v1182, %v1181
        %v1215 = vpack.c.bf16 %v1184, %v1183
        %v1216 = vpack.c.bf16 %v1186, %v1185
        %v1217 = vpack.c.bf16 %v1188, %v1187
        %v1218 = vpack.c.bf16 %v1190, %v1189
        %v1219 = vpack.c.bf16 %v1192, %v1191
        %v1220 = vpack.c.bf16 %v1194, %v1193
        %v1221 = vpack.c.bf16 %v1196, %v1195
        %v1222 = vpack.c.bf16 %v1198, %v1197
        %v1223 = vpack.c.bf16 %v1200, %v1199
        %v1224 = vpack.c.bf16 %v1202, %v1201
        %v1225 = vpack.c.bf16 %v1204, %v1203
        %v1226 = vpack.c.bf16 %v1206, %v1205
        %v1227 = vpack.c.bf16 %v1208, %v1207
        %v1228 = vpack.c.bf16 %v1210, %v1209
        %s1229 = scalar_lea.vmem [#allocation6], 64
        %v1230 = vld [vmem:[%s1229] sm:$0xf]
        %v1231 = vld [vmem:[%s1229 + $0x4] sm:$0xf]
        %v1232 = vld [vmem:[%s1229 + $0x8] sm:$0xf]
        %v1233 = vld [vmem:[%s1229 + $0xc] sm:$0xf]
        %v1234 = vld [vmem:[%s1229 + $0x10] sm:$0xf]
        %v1235 = vld [vmem:[%s1229 + $0x14] sm:$0xf]
        %v1236 = vld [vmem:[%s1229 + $0x18] sm:$0xf]
        %v1237 = vld [vmem:[%s1229 + $0x1c] sm:$0xf]
        %v1238 = vld [vmem:[%s1229 + $0x20] sm:$0xf]
        %v1239 = vld [vmem:[%s1229 + $0x24] sm:$0xf]
        %v1240 = vld [vmem:[%s1229 + $0x28] sm:$0xf]
        %v1241 = vld [vmem:[%s1229 + $0x2c] sm:$0xf]
        %v1242 = vld [vmem:[%s1229 + $0x30] sm:$0xf]
        %v1243 = vld [vmem:[%s1229 + $0x34] sm:$0xf]
        %v1244 = vld [vmem:[%s1229 + $0x38] sm:$0xf]
        %v1245 = vld [vmem:[%s1229 + $0x3c] sm:$0xf]
        %v1262 = vunpack.c.l.b16 %v1230
        %v1263 = vunpack.c.l.b16 %v1231
        %v1264 = vunpack.c.l.b16 %v1232
        %v1265 = vunpack.c.l.b16 %v1233
        %v1266 = vunpack.c.l.b16 %v1234
        %v1267 = vunpack.c.l.b16 %v1235
        %v1268 = vunpack.c.l.b16 %v1236
        %v1269 = vunpack.c.l.b16 %v1237
        %v1270 = vunpack.c.l.b16 %v1238
        %v1271 = vunpack.c.l.b16 %v1239
        %v1272 = vunpack.c.l.b16 %v1240
        %v1273 = vunpack.c.l.b16 %v1241
        %v1274 = vunpack.c.l.b16 %v1242
        %v1275 = vunpack.c.l.b16 %v1243
        %v1276 = vunpack.c.l.b16 %v1244
        %v1277 = vunpack.c.l.b16 %v1245
        %v1278 = vpack.c.b16 %v1263, %v1262
        %v1279 = vpack.c.b16 %v1265, %v1264
        %v1280 = vpack.c.b16 %v1267, %v1266
        %v1281 = vpack.c.b16 %v1269, %v1268
        %v1282 = vpack.c.b16 %v1271, %v1270
        %v1283 = vpack.c.b16 %v1273, %v1272
        %v1284 = vpack.c.b16 %v1275, %v1274
        %v1285 = vpack.c.b16 %v1277, %v1276
        %1294 = vmatprep.subr.bf16.mxu0 0
        %1295 = vmatpush1.bf16.msra.mxu0 %v1278
        %1296 = vmatprep.subr.bf16.mxu0 0
        %1297 = vmatpush1.bf16.msra.mxu0 %v1279
        %1298 = vmatprep.subr.bf16.mxu0 0
        %1299 = vmatpush1.bf16.msra.mxu0 %v1280
        %1300 = vmatprep.subr.bf16.mxu0 0
        %1301 = vmatpush1.bf16.msra.mxu0 %v1281
        %1302 = vmatprep.subr.bf16.mxu0 0
        %1303 = vmatpush1.bf16.msra.mxu0 %v1282
        %1304 = vmatprep.subr.bf16.mxu0 0
        %1305 = vmatpush1.bf16.msra.mxu0 %v1283
        %1306 = vmatprep.subr.bf16.mxu0 0
        %1307 = vmatpush1.bf16.msra.mxu0 %v1284
        %1308 = vmatprep.subr.bf16.mxu0 0
        %1309 = vmatpush1.bf16.msra.mxu0 %v1285
        %1310 = vmatprep.subr.bf16.mxu0 0
        %1311 = vmatpush1.bf16.msra.mxu0 0
        %1312 = vmatprep.subr.bf16.mxu0 0
        %1313 = vmatpush1.bf16.msra.mxu0 0
        %1314 = vmatprep.subr.bf16.mxu0 0
        %1315 = vmatpush1.bf16.msra.mxu0 0
        %1316 = vmatprep.subr.bf16.mxu0 0
        %1317 = vmatpush1.bf16.msra.mxu0 0
        %1318 = vmatprep.subr.bf16.mxu0 0
        %1319 = vmatpush1.bf16.msra.mxu0 0
        %1320 = vmatprep.subr.bf16.mxu0 0
        %1321 = vmatpush1.bf16.msra.mxu0 0
        %1322 = vmatprep.subr.bf16.mxu0 0
        %1323 = vmatpush1.bf16.msra.mxu0 0
        %1324 = vmatprep.subr.bf16.mxu0 0
        %1325 = vmatpush1.bf16.msra.mxu0 0
        %1326 = vmatprep.mubr.bf16.mxu0 0
        %1327 = vmatmul.mubr.bf16.gmra.mrb[0].mxu0 %v1211
        %v1328 = vpop.f32.mrb[0].mxu0
        %v1329 = vadd.f32 0.0, %v1328
        %v1330 = vpop.f32.mrb[0].mxu0
        %v1331 = vpop.f32.mrb[0].mxu0
        %v1332 = vadd.f32 0.0, %v1331
        %v1333 = vpop.f32.mrb[0].mxu0
        %1334 = vmatprep.mubr.bf16.mxu0 0
        %1335 = vmatmul.mubr.bf16.gmra.mrb[0].mxu0 %v1212
        %v1336 = vpop.f32.mrb[0].mxu0
        %v1337 = vadd.f32 0.0, %v1336
        %v1338 = vpop.f32.mrb[0].mxu0
        %v1339 = vpop.f32.mrb[0].mxu0
        %v1340 = vadd.f32 0.0, %v1339
        %v1341 = vpop.f32.mrb[0].mxu0
        %1342 = vmatprep.mubr.bf16.mxu0 0
        %1343 = vmatmul.mubr.bf16.gmra.mrb[0].mxu0 %v1213
        %v1344 = vpop.f32.mrb[0].mxu0
        %v1345 = vadd.f32 0.0, %v1344
        %v1346 = vpop.f32.mrb[0].mxu0
        %v1347 = vpop.f32.mrb[0].mxu0
        %v1348 = vadd.f32 0.0, %v1347
        %v1349 = vpop.f32.mrb[0].mxu0
        %1350 = vmatprep.mubr.bf16.mxu0 0
        %1351 = vmatmul.mubr.bf16.gmra.mrb[0].mxu0 %v1214
        %v1352 = vpop.f32.mrb[0].mxu0
        %v1353 = vadd.f32 0.0, %v1352
        %v1354 = vpop.f32.mrb[0].mxu0
        %v1355 = vpop.f32.mrb[0].mxu0
        %v1356 = vadd.f32 0.0, %v1355
        %v1357 = vpop.f32.mrb[0].mxu0
        %1358 = vmatprep.mubr.bf16.mxu0 0
        %1359 = vmatmul.mubr.bf16.gmra.mrb[0].mxu0 %v1215
        %v1360 = vpop.f32.mrb[0].mxu0
        %v1361 = vadd.f32 0.0, %v1360
        %v1362 = vpop.f32.mrb[0].mxu0
        %v1363 = vpop.f32.mrb[0].mxu0
        %v1364 = vadd.f32 0.0, %v1363
        %v1365 = vpop.f32.mrb[0].mxu0
        %1366 = vmatprep.mubr.bf16.mxu0 0
        %1367 = vmatmul.mubr.bf16.gmra.mrb[0].mxu0 %v1216
        %v1368 = vpop.f32.mrb[0].mxu0
        %v1369 = vadd.f32 0.0, %v1368
        %v1370 = vpop.f32.mrb[0].mxu0
        %v1371 = vpop.f32.mrb[0].mxu0
        %v1372 = vadd.f32 0.0, %v1371
        %v1373 = vpop.f32.mrb[0].mxu0
        %1374 = vmatprep.mubr.bf16.mxu0 0
        %1375 = vmatmul.mubr.bf16.gmra.mrb[0].mxu0 %v1217
        %v1376 = vpop.f32.mrb[0].mxu0
        %v1377 = vadd.f32 0.0, %v1376
        %v1378 = vpop.f32.mrb[0].mxu0
        %v1379 = vpop.f32.mrb[0].mxu0
        %v1380 = vadd.f32 0.0, %v1379
        %v1381 = vpop.f32.mrb[0].mxu0
        %1382 = vmatprep.mubr.bf16.mxu0 0
        %1383 = vmatmul.mubr.bf16.gmra.mrb[0].mxu0 %v1218
        %v1384 = vpop.f32.mrb[0].mxu0
        %v1385 = vadd.f32 0.0, %v1384
        %v1386 = vpop.f32.mrb[0].mxu0
        %v1387 = vpop.f32.mrb[0].mxu0
        %v1388 = vadd.f32 0.0, %v1387
        %v1389 = vpop.f32.mrb[0].mxu0
        %1390 = vmatprep.mubr.bf16.mxu0 0
        %1391 = vmatmul.mubr.bf16.gmra.mrb[0].mxu0 %v1219
        %v1392 = vpop.f32.mrb[0].mxu0
        %v1393 = vadd.f32 0.0, %v1392
        %v1394 = vpop.f32.mrb[0].mxu0
        %v1395 = vpop.f32.mrb[0].mxu0
        %v1396 = vadd.f32 0.0, %v1395
        %v1397 = vpop.f32.mrb[0].mxu0
        %1398 = vmatprep.mubr.bf16.mxu0 0
        %1399 = vmatmul.mubr.bf16.gmra.mrb[0].mxu0 %v1220
        %v1400 = vpop.f32.mrb[0].mxu0
        %v1401 = vadd.f32 0.0, %v1400
        %v1402 = vpop.f32.mrb[0].mxu0
        %v1403 = vpop.f32.mrb[0].mxu0
        %v1404 = vadd.f32 0.0, %v1403
        %v1405 = vpop.f32.mrb[0].mxu0
        %1406 = vmatprep.mubr.bf16.mxu0 0
        %1407 = vmatmul.mubr.bf16.gmra.mrb[0].mxu0 %v1221
        %v1408 = vpop.f32.mrb[0].mxu0
        %v1409 = vadd.f32 0.0, %v1408
        %v1410 = vpop.f32.mrb[0].mxu0
        %v1411 = vpop.f32.mrb[0].mxu0
        %v1412 = vadd.f32 0.0, %v1411
        %v1413 = vpop.f32.mrb[0].mxu0
        %1414 = vmatprep.mubr.bf16.mxu0 0
        %1415 = vmatmul.mubr.bf16.gmra.mrb[0].mxu0 %v1222
        %v1416 = vpop.f32.mrb[0].mxu0
        %v1417 = vadd.f32 0.0, %v1416
        %v1418 = vpop.f32.mrb[0].mxu0
        %v1419 = vpop.f32.mrb[0].mxu0
        %v1420 = vadd.f32 0.0, %v1419
        %v1421 = vpop.f32.mrb[0].mxu0
        %1422 = vmatprep.mubr.bf16.mxu0 0
        %1423 = vmatmul.mubr.bf16.gmra.mrb[0].mxu0 %v1223
        %v1424 = vpop.f32.mrb[0].mxu0
        %v1425 = vadd.f32 0.0, %v1424
        %v1426 = vpop.f32.mrb[0].mxu0
        %v1427 = vpop.f32.mrb[0].mxu0
        %v1428 = vadd.f32 0.0, %v1427
        %v1429 = vpop.f32.mrb[0].mxu0
        %1430 = vmatprep.mubr.bf16.mxu0 0
        %1431 = vmatmul.mubr.bf16.gmra.mrb[0].mxu0 %v1224
        %v1432 = vpop.f32.mrb[0].mxu0
        %v1433 = vadd.f32 0.0, %v1432
        %v1434 = vpop.f32.mrb[0].mxu0
        %v1435 = vpop.f32.mrb[0].mxu0
        %v1436 = vadd.f32 0.0, %v1435
        %v1437 = vpop.f32.mrb[0].mxu0
        %1438 = vmatprep.mubr.bf16.mxu0 0
        %1439 = vmatmul.mubr.bf16.gmra.mrb[0].mxu0 %v1225
        %v1440 = vpop.f32.mrb[0].mxu0
        %v1441 = vadd.f32 0.0, %v1440
        %v1442 = vpop.f32.mrb[0].mxu0
        %v1443 = vpop.f32.mrb[0].mxu0
        %v1444 = vadd.f32 0.0, %v1443
        %v1445 = vpop.f32.mrb[0].mxu0
        %1446 = vmatprep.mubr.bf16.mxu0 0
        %1447 = vmatmul.mubr.bf16.gmra.mrb[0].mxu0 %v1226
        %v1448 = vpop.f32.mrb[0].mxu0
        %v1449 = vadd.f32 0.0, %v1448
        %v1450 = vpop.f32.mrb[0].mxu0
        %v1451 = vpop.f32.mrb[0].mxu0
        %v1452 = vadd.f32 0.0, %v1451
        %v1453 = vpop.f32.mrb[0].mxu0
        %1454 = vmatprep.mubr.bf16.mxu0 0
        %1455 = vmatmul.mubr.bf16.gmra.mrb[0].mxu0 %v1227
        %v1456 = vpop.f32.mrb[0].mxu0
        %v1457 = vadd.f32 0.0, %v1456
        %v1458 = vpop.f32.mrb[0].mxu0
        %v1459 = vpop.f32.mrb[0].mxu0
        %v1460 = vadd.f32 0.0, %v1459
        %v1461 = vpop.f32.mrb[0].mxu0
        %1462 = vmatprep.mubr.bf16.mxu0 0
        %1463 = vmatmul.mubr.bf16.gmra.mrb[0].mxu0 %v1228
        %v1464 = vpop.f32.mrb[0].mxu0
        %v1465 = vadd.f32 0.0, %v1464
        %v1466 = vpop.f32.mrb[0].mxu0
        %v1467 = vpop.f32.mrb[0].mxu0
        %v1468 = vadd.f32 0.0, %v1467
        %v1469 = vpop.f32.mrb[0].mxu0
        %1470 = vdwg.mxu0
        %v1487 = vunpack.c.l.b16 %v1159
        %v1488 = vunpack.c.l.b16 %v1160
        %v1489 = vunpack.c.l.b16 %v1161
        %v1490 = vunpack.c.l.b16 %v1162
        %v1491 = vunpack.c.l.b16 %v1163
        %v1492 = vunpack.c.l.b16 %v1164
        %v1493 = vunpack.c.l.b16 %v1165
        %v1494 = vunpack.c.l.b16 %v1166
        %v1495 = vunpack.c.l.b16 %v1167
        %v1496 = vunpack.c.l.b16 %v1168
        %v1497 = vunpack.c.l.b16 %v1169
        %v1498 = vunpack.c.l.b16 %v1170
        %v1499 = vunpack.c.l.b16 %v1171
        %v1500 = vunpack.c.l.b16 %v1172
        %v1501 = vunpack.c.l.b16 %v1173
        %v1502 = vunpack.c.l.b16 %v1174
        %v1503 = vpack.c.b16 %v1488, %v1487
        %v1504 = vpack.c.b16 %v1490, %v1489
        %v1505 = vpack.c.b16 %v1492, %v1491
        %v1506 = vpack.c.b16 %v1494, %v1493
        %v1507 = vpack.c.b16 %v1496, %v1495
        %v1508 = vpack.c.b16 %v1498, %v1497
        %v1509 = vpack.c.b16 %v1500, %v1499
        %v1510 = vpack.c.b16 %v1502, %v1501
        %1519 = vmatprep.subr.bf16.mxu0 0
        %1520 = vmatpush1.bf16.msra.mxu0 %v1503
        %1521 = vmatprep.subr.bf16.mxu0 0
        %1522 = vmatpush1.bf16.msra.mxu0 %v1504
        %1523 = vmatprep.subr.bf16.mxu0 0
        %1524 = vmatpush1.bf16.msra.mxu0 %v1505
        %1525 = vmatprep.subr.bf16.mxu0 0
        %1526 = vmatpush1.bf16.msra.mxu0 %v1506
        %1527 = vmatprep.subr.bf16.mxu0 0
        %1528 = vmatpush1.bf16.msra.mxu0 %v1507
        %1529 = vmatprep.subr.bf16.mxu0 0
        %1530 = vmatpush1.bf16.msra.mxu0 %v1508
        %1531 = vmatprep.subr.bf16.mxu0 0
        %1532 = vmatpush1.bf16.msra.mxu0 %v1509
        %1533 = vmatprep.subr.bf16.mxu0 0
        %1534 = vmatpush1.bf16.msra.mxu0 %v1510
        %1535 = vmatprep.subr.bf16.mxu0 0
        %1536 = vmatpush1.bf16.msra.mxu0 0
        %1537 = vmatprep.subr.bf16.mxu0 0
        %1538 = vmatpush1.bf16.msra.mxu0 0
        %1539 = vmatprep.subr.bf16.mxu0 0
        %1540 = vmatpush1.bf16.msra.mxu0 0
        %1541 = vmatprep.subr.bf16.mxu0 0
        %1542 = vmatpush1.bf16.msra.mxu0 0
        %1543 = vmatprep.subr.bf16.mxu0 0
        %1544 = vmatpush1.bf16.msra.mxu0 0
        %1545 = vmatprep.subr.bf16.mxu0 0
        %1546 = vmatpush1.bf16.msra.mxu0 0
        %1547 = vmatprep.subr.bf16.mxu0 0
        %1548 = vmatpush1.bf16.msra.mxu0 0
        %1549 = vmatprep.subr.bf16.mxu0 0
        %1550 = vmatpush1.bf16.msra.mxu0 0
        %1551 = vmatprep.mubr.bf16.mxu0 0
        %1552 = vmatmul.mubr.bf16.gmra.mrb[0].mxu0 %v1141
        %v1553 = vpop.f32.mrb[0].mxu0
        %v1554 = vadd.f32 %v1329, %v1553
        %v1555 = vpop.f32.mrb[0].mxu0
        %v1556 = vpop.f32.mrb[0].mxu0
        %v1557 = vadd.f32 %v1332, %v1556
        %v1558 = vpop.f32.mrb[0].mxu0
        %1559 = vmatprep.mubr.bf16.mxu0 0
        %1560 = vmatmul.mubr.bf16.gmra.mrb[0].mxu0 %v1142
        %v1561 = vpop.f32.mrb[0].mxu0
        %v1562 = vadd.f32 %v1337, %v1561
        %v1563 = vpop.f32.mrb[0].mxu0
        %v1564 = vpop.f32.mrb[0].mxu0
        %v1565 = vadd.f32 %v1340, %v1564
        %v1566 = vpop.f32.mrb[0].mxu0
        %1567 = vmatprep.mubr.bf16.mxu0 0
        %1568 = vmatmul.mubr.bf16.gmra.mrb[0].mxu0 %v1143
        %v1569 = vpop.f32.mrb[0].mxu0
        %v1570 = vadd.f32 %v1345, %v1569
        %v1571 = vpop.f32.mrb[0].mxu0
        %v1572 = vpop.f32.mrb[0].mxu0
        %v1573 = vadd.f32 %v1348, %v1572
        %v1574 = vpop.f32.mrb[0].mxu0
        %1575 = vmatprep.mubr.bf16.mxu0 0
        %1576 = vmatmul.mubr.bf16.gmra.mrb[0].mxu0 %v1144
        %v1577 = vpop.f32.mrb[0].mxu0
        %v1578 = vadd.f32 %v1353, %v1577
        %v1579 = vpop.f32.mrb[0].mxu0
        %v1580 = vpop.f32.mrb[0].mxu0
        %v1581 = vadd.f32 %v1356, %v1580
        %v1582 = vpop.f32.mrb[0].mxu0
        %1583 = vmatprep.mubr.bf16.mxu0 0
        %1584 = vmatmul.mubr.bf16.gmra.mrb[0].mxu0 %v1145
        %v1585 = vpop.f32.mrb[0].mxu0
        %v1586 = vadd.f32 %v1361, %v1585
        %v1587 = vpop.f32.mrb[0].mxu0
        %v1588 = vpop.f32.mrb[0].mxu0
        %v1589 = vadd.f32 %v1364, %v1588
        %v1590 = vpop.f32.mrb[0].mxu0
        %1591 = vmatprep.mubr.bf16.mxu0 0
        %1592 = vmatmul.mubr.bf16.gmra.mrb[0].mxu0 %v1146
        %v1593 = vpop.f32.mrb[0].mxu0
        %v1594 = vadd.f32 %v1369, %v1593
        %v1595 = vpop.f32.mrb[0].mxu0
        %v1596 = vpop.f32.mrb[0].mxu0
        %v1597 = vadd.f32 %v1372, %v1596
        %v1598 = vpop.f32.mrb[0].mxu0
        %1599 = vmatprep.mubr.bf16.mxu0 0
        %1600 = vmatmul.mubr.bf16.gmra.mrb[0].mxu0 %v1147
        %v1601 = vpop.f32.mrb[0].mxu0
        %v1602 = vadd.f32 %v1377, %v1601
        %v1603 = vpop.f32.mrb[0].mxu0
        %v1604 = vpop.f32.mrb[0].mxu0
        %v1605 = vadd.f32 %v1380, %v1604
        %v1606 = vpop.f32.mrb[0].mxu0
        %1607 = vmatprep.mubr.bf16.mxu0 0
        %1608 = vmatmul.mubr.bf16.gmra.mrb[0].mxu0 %v1148
        %v1609 = vpop.f32.mrb[0].mxu0
        %v1610 = vadd.f32 %v1385, %v1609
        %v1611 = vpop.f32.mrb[0].mxu0
        %v1612 = vpop.f32.mrb[0].mxu0
        %v1613 = vadd.f32 %v1388, %v1612
        %v1614 = vpop.f32.mrb[0].mxu0
        %1615 = vmatprep.mubr.bf16.mxu0 0
        %1616 = vmatmul.mubr.bf16.gmra.mrb[0].mxu0 %v1149
        %v1617 = vpop.f32.mrb[0].mxu0
        %v1618 = vadd.f32 %v1393, %v1617
        %v1619 = vpop.f32.mrb[0].mxu0
        %v1620 = vpop.f32.mrb[0].mxu0
        %v1621 = vadd.f32 %v1396, %v1620
        %v1622 = vpop.f32.mrb[0].mxu0
        %1623 = vmatprep.mubr.bf16.mxu0 0
        %1624 = vmatmul.mubr.bf16.gmra.mrb[0].mxu0 %v1150
        %v1625 = vpop.f32.mrb[0].mxu0
        %v1626 = vadd.f32 %v1401, %v1625
        %v1627 = vpop.f32.mrb[0].mxu0
        %v1628 = vpop.f32.mrb[0].mxu0
        %v1629 = vadd.f32 %v1404, %v1628
        %v1630 = vpop.f32.mrb[0].mxu0
        %1631 = vmatprep.mubr.bf16.mxu0 0
        %1632 = vmatmul.mubr.bf16.gmra.mrb[0].mxu0 %v1151
        %v1633 = vpop.f32.mrb[0].mxu0
        %v1634 = vadd.f32 %v1409, %v1633
        %v1635 = vpop.f32.mrb[0].mxu0
        %v1636 = vpop.f32.mrb[0].mxu0
        %v1637 = vadd.f32 %v1412, %v1636
        %v1638 = vpop.f32.mrb[0].mxu0
        %1639 = vmatprep.mubr.bf16.mxu0 0
        %1640 = vmatmul.mubr.bf16.gmra.mrb[0].mxu0 %v1152
        %v1641 = vpop.f32.mrb[0].mxu0
        %v1642 = vadd.f32 %v1417, %v1641
        %v1643 = vpop.f32.mrb[0].mxu0
        %v1644 = vpop.f32.mrb[0].mxu0
        %v1645 = vadd.f32 %v1420, %v1644
        %v1646 = vpop.f32.mrb[0].mxu0
        %1647 = vmatprep.mubr.bf16.mxu0 0
        %1648 = vmatmul.mubr.bf16.gmra.mrb[0].mxu0 %v1153
        %v1649 = vpop.f32.mrb[0].mxu0
        %v1650 = vadd.f32 %v1425, %v1649
        %v1651 = vpop.f32.mrb[0].mxu0
        %v1652 = vpop.f32.mrb[0].mxu0
        %v1653 = vadd.f32 %v1428, %v1652
        %v1654 = vpop.f32.mrb[0].mxu0
        %1655 = vmatprep.mubr.bf16.mxu0 0
        %1656 = vmatmul.mubr.bf16.gmra.mrb[0].mxu0 %v1154
        %v1657 = vpop.f32.mrb[0].mxu0
        %v1658 = vadd.f32 %v1433, %v1657
        %v1659 = vpop.f32.mrb[0].mxu0
        %v1660 = vpop.f32.mrb[0].mxu0
        %v1661 = vadd.f32 %v1436, %v1660
        %v1662 = vpop.f32.mrb[0].mxu0
        %1663 = vmatprep.mubr.bf16.mxu0 0
        %1664 = vmatmul.mubr.bf16.gmra.mrb[0].mxu0 %v1155
        %v1665 = vpop.f32.mrb[0].mxu0
        %v1666 = vadd.f32 %v1441, %v1665
        %v1667 = vpop.f32.mrb[0].mxu0
        %v1668 = vpop.f32.mrb[0].mxu0
        %v1669 = vadd.f32 %v1444, %v1668
        %v1670 = vpop.f32.mrb[0].mxu0
        %1671 = vmatprep.mubr.bf16.mxu0 0
        %1672 = vmatmul.mubr.bf16.gmra.mrb[0].mxu0 %v1156
        %v1673 = vpop.f32.mrb[0].mxu0
        %v1674 = vadd.f32 %v1449, %v1673
        %v1675 = vpop.f32.mrb[0].mxu0
        %v1676 = vpop.f32.mrb[0].mxu0
        %v1677 = vadd.f32 %v1452, %v1676
        %v1678 = vpop.f32.mrb[0].mxu0
        %1679 = vmatprep.mubr.bf16.mxu0 0
        %1680 = vmatmul.mubr.bf16.gmra.mrb[0].mxu0 %v1157
        %v1681 = vpop.f32.mrb[0].mxu0
        %v1682 = vadd.f32 %v1457, %v1681
        %v1683 = vpop.f32.mrb[0].mxu0
        %v1684 = vpop.f32.mrb[0].mxu0
        %v1685 = vadd.f32 %v1460, %v1684
        %v1686 = vpop.f32.mrb[0].mxu0
        %1687 = vmatprep.mubr.bf16.mxu0 0
        %1688 = vmatmul.mubr.bf16.gmra.mrb[0].mxu0 %v1158
        %v1689 = vpop.f32.mrb[0].mxu0
        %v1690 = vadd.f32 %v1465, %v1689
        %v1691 = vpop.f32.mrb[0].mxu0
        %v1692 = vpop.f32.mrb[0].mxu0
        %v1693 = vadd.f32 %v1468, %v1692
        %v1694 = vpop.f32.mrb[0].mxu0
        %1695 = vdwg.mxu0
        %v1696 = vld [vmem:[%s388 + $0x2] sm:$0xff]
        %v1697 = vld [vmem:[%s388 + $0xa] sm:$0xff]
        %v1698 = vld [vmem:[%s388 + $0x12] sm:$0xff]
        %v1699 = vld [vmem:[%s388 + $0x1a] sm:$0xff]
        %v1700 = vld [vmem:[%s388 + $0x22] sm:$0xff]
        %v1701 = vld [vmem:[%s388 + $0x2a] sm:$0xff]
        %v1702 = vld [vmem:[%s388 + $0x32] sm:$0xff]
        %v1703 = vld [vmem:[%s388 + $0x3a] sm:$0xff]
        %v1704 = vld [vmem:[%s388 + $0x42] sm:$0xff]
        %v1705 = vld [vmem:[%s388 + $0x4a] sm:$0xff]
        %v1706 = vld [vmem:[%s388 + $0x52] sm:$0xff]
        %v1707 = vld [vmem:[%s388 + $0x5a] sm:$0xff]
        %v1708 = vld [vmem:[%s388 + $0x62] sm:$0xff]
        %v1709 = vld [vmem:[%s388 + $0x6a] sm:$0xff]
        %v1710 = vld [vmem:[%s388 + $0x72] sm:$0xff]
        %v1711 = vld [vmem:[%s388 + $0x7a] sm:$0xff]
        %v1712 = vld [vmem:[%s388 + $0x82] sm:$0xff]
        %v1713 = vld [vmem:[%s388 + $0x8a] sm:$0xff]
        %v1714 = vld [vmem:[%s388 + $0x92] sm:$0xff]
        %v1715 = vld [vmem:[%s388 + $0x9a] sm:$0xff]
        %v1716 = vld [vmem:[%s388 + $0xa2] sm:$0xff]
        %v1717 = vld [vmem:[%s388 + $0xaa] sm:$0xff]
        %v1718 = vld [vmem:[%s388 + $0xb2] sm:$0xff]
        %v1719 = vld [vmem:[%s388 + $0xba] sm:$0xff]
        %v1720 = vld [vmem:[%s388 + $0xc2] sm:$0xff]
        %v1721 = vld [vmem:[%s388 + $0xca] sm:$0xff]
        %v1722 = vld [vmem:[%s388 + $0xd2] sm:$0xff]
        %v1723 = vld [vmem:[%s388 + $0xda] sm:$0xff]
        %v1724 = vld [vmem:[%s388 + $0xe2] sm:$0xff]
        %v1725 = vld [vmem:[%s388 + $0xea] sm:$0xff]
        %v1726 = vld [vmem:[%s388 + $0xf2] sm:$0xff]
        %v1727 = vld [vmem:[%s388 + $0xfa] sm:$0xff]
        %v1728 = vld [vmem:[%s388 + $0x102] sm:$0xff]
        %v1729 = vld [vmem:[%s388 + $0x10a] sm:$0xff]
        %v1730 = vld [vmem:[%s388 + $0x112] sm:$0xff]
        %v1731 = vld [vmem:[%s388 + $0x11a] sm:$0xff]
        %v1732 = vpack.c.bf16 %v1697, %v1696
        %v1733 = vpack.c.bf16 %v1699, %v1698
        %v1734 = vpack.c.bf16 %v1701, %v1700
        %v1735 = vpack.c.bf16 %v1703, %v1702
        %v1736 = vpack.c.bf16 %v1705, %v1704
        %v1737 = vpack.c.bf16 %v1707, %v1706
        %v1738 = vpack.c.bf16 %v1709, %v1708
        %v1739 = vpack.c.bf16 %v1711, %v1710
        %v1740 = vpack.c.bf16 %v1713, %v1712
        %v1741 = vpack.c.bf16 %v1715, %v1714
        %v1742 = vpack.c.bf16 %v1717, %v1716
        %v1743 = vpack.c.bf16 %v1719, %v1718
        %v1744 = vpack.c.bf16 %v1721, %v1720
        %v1745 = vpack.c.bf16 %v1723, %v1722
        %v1746 = vpack.c.bf16 %v1725, %v1724
        %v1747 = vpack.c.bf16 %v1727, %v1726
        %v1748 = vpack.c.bf16 %v1729, %v1728
        %v1749 = vpack.c.bf16 %v1731, %v1730
        %s1750 = scalar_lea.vmem [#allocation6], 128
        %v1751 = vld [vmem:[%s1750] sm:$0xf]
        %v1752 = vld [vmem:[%s1750 + $0x4] sm:$0xf]
        %v1753 = vld [vmem:[%s1750 + $0x8] sm:$0xf]
        %v1754 = vld [vmem:[%s1750 + $0xc] sm:$0xf]
        %v1755 = vld [vmem:[%s1750 + $0x10] sm:$0xf]
        %v1756 = vld [vmem:[%s1750 + $0x14] sm:$0xf]
        %v1757 = vld [vmem:[%s1750 + $0x18] sm:$0xf]
        %v1758 = vld [vmem:[%s1750 + $0x1c] sm:$0xf]
        %v1759 = vld [vmem:[%s1750 + $0x20] sm:$0xf]
        %v1760 = vld [vmem:[%s1750 + $0x24] sm:$0xf]
        %v1761 = vld [vmem:[%s1750 + $0x28] sm:$0xf]
        %v1762 = vld [vmem:[%s1750 + $0x2c] sm:$0xf]
        %v1763 = vld [vmem:[%s1750 + $0x30] sm:$0xf]
        %v1764 = vld [vmem:[%s1750 + $0x34] sm:$0xf]
        %v1765 = vld [vmem:[%s1750 + $0x38] sm:$0xf]
        %v1766 = vld [vmem:[%s1750 + $0x3c] sm:$0xf]
        %v1783 = vunpack.c.l.b16 %v1751
        %v1784 = vunpack.c.l.b16 %v1752
        %v1785 = vunpack.c.l.b16 %v1753
        %v1786 = vunpack.c.l.b16 %v1754
        %v1787 = vunpack.c.l.b16 %v1755
        %v1788 = vunpack.c.l.b16 %v1756
        %v1789 = vunpack.c.l.b16 %v1757
        %v1790 = vunpack.c.l.b16 %v1758
        %v1791 = vunpack.c.l.b16 %v1759
        %v1792 = vunpack.c.l.b16 %v1760
        %v1793 = vunpack.c.l.b16 %v1761
        %v1794 = vunpack.c.l.b16 %v1762
        %v1795 = vunpack.c.l.b16 %v1763
        %v1796 = vunpack.c.l.b16 %v1764
        %v1797 = vunpack.c.l.b16 %v1765
        %v1798 = vunpack.c.l.b16 %v1766
        %v1799 = vpack.c.b16 %v1784, %v1783
        %v1800 = vpack.c.b16 %v1786, %v1785
        %v1801 = vpack.c.b16 %v1788, %v1787
        %v1802 = vpack.c.b16 %v1790, %v1789
        %v1803 = vpack.c.b16 %v1792, %v1791
        %v1804 = vpack.c.b16 %v1794, %v1793
        %v1805 = vpack.c.b16 %v1796, %v1795
        %v1806 = vpack.c.b16 %v1798, %v1797
        %1815 = vmatprep.subr.bf16.mxu0 0
        %1816 = vmatpush1.bf16.msra.mxu0 %v1799
        %1817 = vmatprep.subr.bf16.mxu0 0
        %1818 = vmatpush1.bf16.msra.mxu0 %v1800
        %1819 = vmatprep.subr.bf16.mxu0 0
        %1820 = vmatpush1.bf16.msra.mxu0 %v1801
        %1821 = vmatprep.subr.bf16.mxu0 0
        %1822 = vmatpush1.bf16.msra.mxu0 %v1802
        %1823 = vmatprep.subr.bf16.mxu0 0
        %1824 = vmatpush1.bf16.msra.mxu0 %v1803
        %1825 = vmatprep.subr.bf16.mxu0 0
        %1826 = vmatpush1.bf16.msra.mxu0 %v1804
        %1827 = vmatprep.subr.bf16.mxu0 0
        %1828 = vmatpush1.bf16.msra.mxu0 %v1805
        %1829 = vmatprep.subr.bf16.mxu0 0
        %1830 = vmatpush1.bf16.msra.mxu0 %v1806
        %1831 = vmatprep.subr.bf16.mxu0 0
        %1832 = vmatpush1.bf16.msra.mxu0 0
        %1833 = vmatprep.subr.bf16.mxu0 0
        %1834 = vmatpush1.bf16.msra.mxu0 0
        %1835 = vmatprep.subr.bf16.mxu0 0
        %1836 = vmatpush1.bf16.msra.mxu0 0
        %1837 = vmatprep.subr.bf16.mxu0 0
        %1838 = vmatpush1.bf16.msra.mxu0 0
        %1839 = vmatprep.subr.bf16.mxu0 0
        %1840 = vmatpush1.bf16.msra.mxu0 0
        %1841 = vmatprep.subr.bf16.mxu0 0
        %1842 = vmatpush1.bf16.msra.mxu0 0
        %1843 = vmatprep.subr.bf16.mxu0 0
        %1844 = vmatpush1.bf16.msra.mxu0 0
        %1845 = vmatprep.subr.bf16.mxu0 0
        %1846 = vmatpush1.bf16.msra.mxu0 0
        %1847 = vmatprep.mubr.bf16.mxu0 0
        %1848 = vmatmul.mubr.bf16.gmra.mrb[0].mxu0 %v1732
        %v1849 = vpop.f32.mrb[0].mxu0
        %v1850 = vadd.f32 0.0, %v1849
        %v1851 = vpop.f32.mrb[0].mxu0
        %v1852 = vpop.f32.mrb[0].mxu0
        %v1853 = vadd.f32 0.0, %v1852
        %v1854 = vpop.f32.mrb[0].mxu0
        %1855 = vmatprep.mubr.bf16.mxu0 0
        %1856 = vmatmul.mubr.bf16.gmra.mrb[0].mxu0 %v1733
        %v1857 = vpop.f32.mrb[0].mxu0
        %v1858 = vadd.f32 0.0, %v1857
        %v1859 = vpop.f32.mrb[0].mxu0
        %v1860 = vpop.f32.mrb[0].mxu0
        %v1861 = vadd.f32 0.0, %v1860
        %v1862 = vpop.f32.mrb[0].mxu0
        %1863 = vmatprep.mubr.bf16.mxu0 0
        %1864 = vmatmul.mubr.bf16.gmra.mrb[0].mxu0 %v1734
        %v1865 = vpop.f32.mrb[0].mxu0
        %v1866 = vadd.f32 0.0, %v1865
        %v1867 = vpop.f32.mrb[0].mxu0
        %v1868 = vpop.f32.mrb[0].mxu0
        %v1869 = vadd.f32 0.0, %v1868
        %v1870 = vpop.f32.mrb[0].mxu0
        %1871 = vmatprep.mubr.bf16.mxu0 0
        %1872 = vmatmul.mubr.bf16.gmra.mrb[0].mxu0 %v1735
        %v1873 = vpop.f32.mrb[0].mxu0
        %v1874 = vadd.f32 0.0, %v1873
        %v1875 = vpop.f32.mrb[0].mxu0
        %v1876 = vpop.f32.mrb[0].mxu0
        %v1877 = vadd.f32 0.0, %v1876
        %v1878 = vpop.f32.mrb[0].mxu0
        %1879 = vmatprep.mubr.bf16.mxu0 0
        %1880 = vmatmul.mubr.bf16.gmra.mrb[0].mxu0 %v1736
        %v1881 = vpop.f32.mrb[0].mxu0
        %v1882 = vadd.f32 0.0, %v1881
        %v1883 = vpop.f32.mrb[0].mxu0
        %v1884 = vpop.f32.mrb[0].mxu0
        %v1885 = vadd.f32 0.0, %v1884
        %v1886 = vpop.f32.mrb[0].mxu0
        %1887 = vmatprep.mubr.bf16.mxu0 0
        %1888 = vmatmul.mubr.bf16.gmra.mrb[0].mxu0 %v1737
        %v1889 = vpop.f32.mrb[0].mxu0
        %v1890 = vadd.f32 0.0, %v1889
        %v1891 = vpop.f32.mrb[0].mxu0
        %v1892 = vpop.f32.mrb[0].mxu0
        %v1893 = vadd.f32 0.0, %v1892
        %v1894 = vpop.f32.mrb[0].mxu0
        %1895 = vmatprep.mubr.bf16.mxu0 0
        %1896 = vmatmul.mubr.bf16.gmra.mrb[0].mxu0 %v1738
        %v1897 = vpop.f32.mrb[0].mxu0
        %v1898 = vadd.f32 0.0, %v1897
        %v1899 = vpop.f32.mrb[0].mxu0
        %v1900 = vpop.f32.mrb[0].mxu0
        %v1901 = vadd.f32 0.0, %v1900
        %v1902 = vpop.f32.mrb[0].mxu0
        %1903 = vmatprep.mubr.bf16.mxu0 0
        %1904 = vmatmul.mubr.bf16.gmra.mrb[0].mxu0 %v1739
        %v1905 = vpop.f32.mrb[0].mxu0
        %v1906 = vadd.f32 0.0, %v1905
        %v1907 = vpop.f32.mrb[0].mxu0
        %v1908 = vpop.f32.mrb[0].mxu0
        %v1909 = vadd.f32 0.0, %v1908
        %v1910 = vpop.f32.mrb[0].mxu0
        %1911 = vmatprep.mubr.bf16.mxu0 0
        %1912 = vmatmul.mubr.bf16.gmra.mrb[0].mxu0 %v1740
        %v1913 = vpop.f32.mrb[0].mxu0
        %v1914 = vadd.f32 0.0, %v1913
        %v1915 = vpop.f32.mrb[0].mxu0
        %v1916 = vpop.f32.mrb[0].mxu0
        %v1917 = vadd.f32 0.0, %v1916
        %v1918 = vpop.f32.mrb[0].mxu0
        %1919 = vmatprep.mubr.bf16.mxu0 0
        %1920 = vmatmul.mubr.bf16.gmra.mrb[0].mxu0 %v1741
        %v1921 = vpop.f32.mrb[0].mxu0
        %v1922 = vadd.f32 0.0, %v1921
        %v1923 = vpop.f32.mrb[0].mxu0
        %v1924 = vpop.f32.mrb[0].mxu0
        %v1925 = vadd.f32 0.0, %v1924
        %v1926 = vpop.f32.mrb[0].mxu0
        %1927 = vmatprep.mubr.bf16.mxu0 0
        %1928 = vmatmul.mubr.bf16.gmra.mrb[0].mxu0 %v1742
        %v1929 = vpop.f32.mrb[0].mxu0
        %v1930 = vadd.f32 0.0, %v1929
        %v1931 = vpop.f32.mrb[0].mxu0
        %v1932 = vpop.f32.mrb[0].mxu0
        %v1933 = vadd.f32 0.0, %v1932
        %v1934 = vpop.f32.mrb[0].mxu0
        %1935 = vmatprep.mubr.bf16.mxu0 0
        %1936 = vmatmul.mubr.bf16.gmra.mrb[0].mxu0 %v1743
        %v1937 = vpop.f32.mrb[0].mxu0
        %v1938 = vadd.f32 0.0, %v1937
        %v1939 = vpop.f32.mrb[0].mxu0
        %v1940 = vpop.f32.mrb[0].mxu0
        %v1941 = vadd.f32 0.0, %v1940
        %v1942 = vpop.f32.mrb[0].mxu0
        %1943 = vmatprep.mubr.bf16.mxu0 0
        %1944 = vmatmul.mubr.bf16.gmra.mrb[0].mxu0 %v1744
        %v1945 = vpop.f32.mrb[0].mxu0
        %v1946 = vadd.f32 0.0, %v1945
        %v1947 = vpop.f32.mrb[0].mxu0
        %v1948 = vpop.f32.mrb[0].mxu0
        %v1949 = vadd.f32 0.0, %v1948
        %v1950 = vpop.f32.mrb[0].mxu0
        %1951 = vmatprep.mubr.bf16.mxu0 0
        %1952 = vmatmul.mubr.bf16.gmra.mrb[0].mxu0 %v1745
        %v1953 = vpop.f32.mrb[0].mxu0
        %v1954 = vadd.f32 0.0, %v1953
        %v1955 = vpop.f32.mrb[0].mxu0
        %v1956 = vpop.f32.mrb[0].mxu0
        %v1957 = vadd.f32 0.0, %v1956
        %v1958 = vpop.f32.mrb[0].mxu0
        %1959 = vmatprep.mubr.bf16.mxu0 0
        %1960 = vmatmul.mubr.bf16.gmra.mrb[0].mxu0 %v1746
        %v1961 = vpop.f32.mrb[0].mxu0
        %v1962 = vadd.f32 0.0, %v1961
        %v1963 = vpop.f32.mrb[0].mxu0
        %v1964 = vpop.f32.mrb[0].mxu0
        %v1965 = vadd.f32 0.0, %v1964
        %v1966 = vpop.f32.mrb[0].mxu0
        %1967 = vmatprep.mubr.bf16.mxu0 0
        %1968 = vmatmul.mubr.bf16.gmra.mrb[0].mxu0 %v1747
        %v1969 = vpop.f32.mrb[0].mxu0
        %v1970 = vadd.f32 0.0, %v1969
        %v1971 = vpop.f32.mrb[0].mxu0
        %v1972 = vpop.f32.mrb[0].mxu0
        %v1973 = vadd.f32 0.0, %v1972
        %v1974 = vpop.f32.mrb[0].mxu0
        %1975 = vmatprep.mubr.bf16.mxu0 0
        %1976 = vmatmul.mubr.bf16.gmra.mrb[0].mxu0 %v1748
        %v1977 = vpop.f32.mrb[0].mxu0
        %v1978 = vadd.f32 0.0, %v1977
        %v1979 = vpop.f32.mrb[0].mxu0
        %v1980 = vpop.f32.mrb[0].mxu0
        %v1981 = vadd.f32 0.0, %v1980
        %v1982 = vpop.f32.mrb[0].mxu0
        %1983 = vmatprep.mubr.bf16.mxu0 0
        %1984 = vmatmul.mubr.bf16.gmra.mrb[0].mxu0 %v1749
        %v1985 = vpop.f32.mrb[0].mxu0
        %v1986 = vadd.f32 0.0, %v1985
        %v1987 = vpop.f32.mrb[0].mxu0
        %v1988 = vpop.f32.mrb[0].mxu0
        %v1989 = vadd.f32 0.0, %v1988
        %v1990 = vpop.f32.mrb[0].mxu0
        %1991 = vdwg.mxu0
        %v1992 = vadd.f32 %v1554, %v1850
        %v1993 = vadd.f32 %v1557, %v1853
        %v1994 = vadd.f32 %v1562, %v1858
        %v1995 = vadd.f32 %v1565, %v1861
        %v1996 = vadd.f32 %v1570, %v1866
        %v1997 = vadd.f32 %v1573, %v1869
        %v1998 = vadd.f32 %v1578, %v1874
        %v1999 = vadd.f32 %v1581, %v1877
        %v2000 = vadd.f32 %v1586, %v1882
        %v2001 = vadd.f32 %v1589, %v1885
        %v2002 = vadd.f32 %v1594, %v1890
        %v2003 = vadd.f32 %v1597, %v1893
        %v2004 = vadd.f32 %v1602, %v1898
        %v2005 = vadd.f32 %v1605, %v1901
        %v2006 = vadd.f32 %v1610, %v1906
        %v2007 = vadd.f32 %v1613, %v1909
        %v2008 = vadd.f32 %v1618, %v1914
        %v2009 = vadd.f32 %v1621, %v1917
        %v2010 = vadd.f32 %v1626, %v1922
        %v2011 = vadd.f32 %v1629, %v1925
        %v2012 = vadd.f32 %v1634, %v1930
        %v2013 = vadd.f32 %v1637, %v1933
        %v2014 = vadd.f32 %v1642, %v1938
        %v2015 = vadd.f32 %v1645, %v1941
        %v2016 = vadd.f32 %v1650, %v1946
        %v2017 = vadd.f32 %v1653, %v1949
        %v2018 = vadd.f32 %v1658, %v1954
        %v2019 = vadd.f32 %v1661, %v1957
        %v2020 = vadd.f32 %v1666, %v1962
        %v2021 = vadd.f32 %v1669, %v1965
        %v2022 = vadd.f32 %v1674, %v1970
        %v2023 = vadd.f32 %v1677, %v1973
        %v2024 = vadd.f32 %v1682, %v1978
        %v2025 = vadd.f32 %v1685, %v1981
        %v2026 = vadd.f32 %v1690, %v1986
        %v2027 = vadd.f32 %v1693, %v1989
        %v2028 = vld [vmem:[%s388 + $0x12] sm:$0xff]
        %v2029 = vld [vmem:[%s388 + $0x1a] sm:$0xff]
        %v2030 = vld [vmem:[%s388 + $0x22] sm:$0xff]
        %v2031 = vld [vmem:[%s388 + $0x2a] sm:$0xff]
        %v2032 = vld [vmem:[%s388 + $0x32] sm:$0xff]
        %v2033 = vld [vmem:[%s388 + $0x3a] sm:$0xff]
        %v2034 = vld [vmem:[%s388 + $0x42] sm:$0xff]
        %v2035 = vld [vmem:[%s388 + $0x4a] sm:$0xff]
        %v2036 = vld [vmem:[%s388 + $0x52] sm:$0xff]
        %v2037 = vld [vmem:[%s388 + $0x5a] sm:$0xff]
        %v2038 = vld [vmem:[%s388 + $0x62] sm:$0xff]
        %v2039 = vld [vmem:[%s388 + $0x6a] sm:$0xff]
        %v2040 = vld [vmem:[%s388 + $0x72] sm:$0xff]
        %v2041 = vld [vmem:[%s388 + $0x7a] sm:$0xff]
        %v2042 = vld [vmem:[%s388 + $0x82] sm:$0xff]
        %v2043 = vld [vmem:[%s388 + $0x8a] sm:$0xff]
        %v2044 = vld [vmem:[%s388 + $0x92] sm:$0xff]
        %v2045 = vld [vmem:[%s388 + $0x9a] sm:$0xff]
        %v2046 = vld [vmem:[%s388 + $0xa2] sm:$0xff]
        %v2047 = vld [vmem:[%s388 + $0xaa] sm:$0xff]
        %v2048 = vld [vmem:[%s388 + $0xb2] sm:$0xff]
        %v2049 = vld [vmem:[%s388 + $0xba] sm:$0xff]
        %v2050 = vld [vmem:[%s388 + $0xc2] sm:$0xff]
        %v2051 = vld [vmem:[%s388 + $0xca] sm:$0xff]
        %v2052 = vld [vmem:[%s388 + $0xd2] sm:$0xff]
        %v2053 = vld [vmem:[%s388 + $0xda] sm:$0xff]
        %v2054 = vld [vmem:[%s388 + $0xe2] sm:$0xff]
        %v2055 = vld [vmem:[%s388 + $0xea] sm:$0xff]
        %v2056 = vld [vmem:[%s388 + $0xf2] sm:$0xff]
        %v2057 = vld [vmem:[%s388 + $0xfa] sm:$0xff]
        %v2058 = vld [vmem:[%s388 + $0x102] sm:$0xff]
        %v2059 = vld [vmem:[%s388 + $0x10a] sm:$0xff]
        %v2060 = vld [vmem:[%s388 + $0x112] sm:$0xff]
        %v2061 = vld [vmem:[%s388 + $0x11a] sm:$0xff]
        %v2062 = vld [vmem:[%s388 + $0x122] sm:$0xff]
        %v2063 = vld [vmem:[%s388 + $0x12a] sm:$0xff]
        %v2064 = vpack.c.bf16 %v2029, %v2028
        %v2065 = vpack.c.bf16 %v2031, %v2030
        %v2066 = vpack.c.bf16 %v2033, %v2032
        %v2067 = vpack.c.bf16 %v2035, %v2034
        %v2068 = vpack.c.bf16 %v2037, %v2036
        %v2069 = vpack.c.bf16 %v2039, %v2038
        %v2070 = vpack.c.bf16 %v2041, %v2040
        %v2071 = vpack.c.bf16 %v2043, %v2042
        %v2072 = vpack.c.bf16 %v2045, %v2044
        %v2073 = vpack.c.bf16 %v2047, %v2046
        %v2074 = vpack.c.bf16 %v2049, %v2048
        %v2075 = vpack.c.bf16 %v2051, %v2050
        %v2076 = vpack.c.bf16 %v2053, %v2052
        %v2077 = vpack.c.bf16 %v2055, %v2054
        %v2078 = vpack.c.bf16 %v2057, %v2056
        %v2079 = vpack.c.bf16 %v2059, %v2058
        %v2080 = vpack.c.bf16 %v2061, %v2060
        %v2081 = vpack.c.bf16 %v2063, %v2062
        %s2082 = scalar_lea.vmem [#allocation6], 192
        %v2083 = vld [vmem:[%s2082] sm:$0xf]
        %v2084 = vld [vmem:[%s2082 + $0x4] sm:$0xf]
        %v2085 = vld [vmem:[%s2082 + $0x8] sm:$0xf]
        %v2086 = vld [vmem:[%s2082 + $0xc] sm:$0xf]
        %v2087 = vld [vmem:[%s2082 + $0x10] sm:$0xf]
        %v2088 = vld [vmem:[%s2082 + $0x14] sm:$0xf]
        %v2089 = vld [vmem:[%s2082 + $0x18] sm:$0xf]
        %v2090 = vld [vmem:[%s2082 + $0x1c] sm:$0xf]
        %v2091 = vld [vmem:[%s2082 + $0x20] sm:$0xf]
        %v2092 = vld [vmem:[%s2082 + $0x24] sm:$0xf]
        %v2093 = vld [vmem:[%s2082 + $0x28] sm:$0xf]
        %v2094 = vld [vmem:[%s2082 + $0x2c] sm:$0xf]
        %v2095 = vld [vmem:[%s2082 + $0x30] sm:$0xf]
        %v2096 = vld [vmem:[%s2082 + $0x34] sm:$0xf]
        %v2097 = vld [vmem:[%s2082 + $0x38] sm:$0xf]
        %v2098 = vld [vmem:[%s2082 + $0x3c] sm:$0xf]
        %v2115 = vunpack.c.l.b16 %v2083
        %v2116 = vunpack.c.l.b16 %v2084
        %v2117 = vunpack.c.l.b16 %v2085
        %v2118 = vunpack.c.l.b16 %v2086
        %v2119 = vunpack.c.l.b16 %v2087
        %v2120 = vunpack.c.l.b16 %v2088
        %v2121 = vunpack.c.l.b16 %v2089
        %v2122 = vunpack.c.l.b16 %v2090
        %v2123 = vunpack.c.l.b16 %v2091
        %v2124 = vunpack.c.l.b16 %v2092
        %v2125 = vunpack.c.l.b16 %v2093
        %v2126 = vunpack.c.l.b16 %v2094
        %v2127 = vunpack.c.l.b16 %v2095
        %v2128 = vunpack.c.l.b16 %v2096
        %v2129 = vunpack.c.l.b16 %v2097
        %v2130 = vunpack.c.l.b16 %v2098
        %v2131 = vpack.c.b16 %v2116, %v2115
        %v2132 = vpack.c.b16 %v2118, %v2117
        %v2133 = vpack.c.b16 %v2120, %v2119
        %v2134 = vpack.c.b16 %v2122, %v2121
        %v2135 = vpack.c.b16 %v2124, %v2123
        %v2136 = vpack.c.b16 %v2126, %v2125
        %v2137 = vpack.c.b16 %v2128, %v2127
        %v2138 = vpack.c.b16 %v2130, %v2129
        %2147 = vmatprep.subr.bf16.mxu0 0
        %2148 = vmatpush1.bf16.msra.mxu0 %v2131
        %2149 = vmatprep.subr.bf16.mxu0 0
        %2150 = vmatpush1.bf16.msra.mxu0 %v2132
        %2151 = vmatprep.subr.bf16.mxu0 0
        %2152 = vmatpush1.bf16.msra.mxu0 %v2133
        %2153 = vmatprep.subr.bf16.mxu0 0
        %2154 = vmatpush1.bf16.msra.mxu0 %v2134
        %2155 = vmatprep.subr.bf16.mxu0 0
        %2156 = vmatpush1.bf16.msra.mxu0 %v2135
        %2157 = vmatprep.subr.bf16.mxu0 0
        %2158 = vmatpush1.bf16.msra.mxu0 %v2136
        %2159 = vmatprep.subr.bf16.mxu0 0
        %2160 = vmatpush1.bf16.msra.mxu0 %v2137
        %2161 = vmatprep.subr.bf16.mxu0 0
        %2162 = vmatpush1.bf16.msra.mxu0 %v2138
        %2163 = vmatprep.subr.bf16.mxu0 0
        %2164 = vmatpush1.bf16.msra.mxu0 0
        %2165 = vmatprep.subr.bf16.mxu0 0
        %2166 = vmatpush1.bf16.msra.mxu0 0
        %2167 = vmatprep.subr.bf16.mxu0 0
        %2168 = vmatpush1.bf16.msra.mxu0 0
        %2169 = vmatprep.subr.bf16.mxu0 0
        %2170 = vmatpush1.bf16.msra.mxu0 0
        %2171 = vmatprep.subr.bf16.mxu0 0
        %2172 = vmatpush1.bf16.msra.mxu0 0
        %2173 = vmatprep.subr.bf16.mxu0 0
        %2174 = vmatpush1.bf16.msra.mxu0 0
        %2175 = vmatprep.subr.bf16.mxu0 0
        %2176 = vmatpush1.bf16.msra.mxu0 0
        %2177 = vmatprep.subr.bf16.mxu0 0
        %2178 = vmatpush1.bf16.msra.mxu0 0
        %2179 = vmatprep.mubr.bf16.mxu0 0
        %2180 = vmatmul.mubr.bf16.gmra.mrb[0].mxu0 %v2064
        %v2181 = vpop.f32.mrb[0].mxu0
        %v2182 = vadd.f32 0.0, %v2181
        %v2183 = vpop.f32.mrb[0].mxu0
        %v2184 = vpop.f32.mrb[0].mxu0
        %v2185 = vadd.f32 0.0, %v2184
        %v2186 = vpop.f32.mrb[0].mxu0
        %2187 = vmatprep.mubr.bf16.mxu0 0
        %2188 = vmatmul.mubr.bf16.gmra.mrb[0].mxu0 %v2065
        %v2189 = vpop.f32.mrb[0].mxu0
        %v2190 = vadd.f32 0.0, %v2189
        %v2191 = vpop.f32.mrb[0].mxu0
        %v2192 = vpop.f32.mrb[0].mxu0
        %v2193 = vadd.f32 0.0, %v2192
        %v2194 = vpop.f32.mrb[0].mxu0
        %2195 = vmatprep.mubr.bf16.mxu0 0
        %2196 = vmatmul.mubr.bf16.gmra.mrb[0].mxu0 %v2066
        %v2197 = vpop.f32.mrb[0].mxu0
        %v2198 = vadd.f32 0.0, %v2197
        %v2199 = vpop.f32.mrb[0].mxu0
        %v2200 = vpop.f32.mrb[0].mxu0
        %v2201 = vadd.f32 0.0, %v2200
        %v2202 = vpop.f32.mrb[0].mxu0
        %2203 = vmatprep.mubr.bf16.mxu0 0
        %2204 = vmatmul.mubr.bf16.gmra.mrb[0].mxu0 %v2067
        %v2205 = vpop.f32.mrb[0].mxu0
        %v2206 = vadd.f32 0.0, %v2205
        %v2207 = vpop.f32.mrb[0].mxu0
        %v2208 = vpop.f32.mrb[0].mxu0
        %v2209 = vadd.f32 0.0, %v2208
        %v2210 = vpop.f32.mrb[0].mxu0
        %2211 = vmatprep.mubr.bf16.mxu0 0
        %2212 = vmatmul.mubr.bf16.gmra.mrb[0].mxu0 %v2068
        %v2213 = vpop.f32.mrb[0].mxu0
        %v2214 = vadd.f32 0.0, %v2213
        %v2215 = vpop.f32.mrb[0].mxu0
        %v2216 = vpop.f32.mrb[0].mxu0
        %v2217 = vadd.f32 0.0, %v2216
        %v2218 = vpop.f32.mrb[0].mxu0
        %2219 = vmatprep.mubr.bf16.mxu0 0
        %2220 = vmatmul.mubr.bf16.gmra.mrb[0].mxu0 %v2069
        %v2221 = vpop.f32.mrb[0].mxu0
        %v2222 = vadd.f32 0.0, %v2221
        %v2223 = vpop.f32.mrb[0].mxu0
        %v2224 = vpop.f32.mrb[0].mxu0
        %v2225 = vadd.f32 0.0, %v2224
        %v2226 = vpop.f32.mrb[0].mxu0
        %2227 = vmatprep.mubr.bf16.mxu0 0
        %2228 = vmatmul.mubr.bf16.gmra.mrb[0].mxu0 %v2070
        %v2229 = vpop.f32.mrb[0].mxu0
        %v2230 = vadd.f32 0.0, %v2229
        %v2231 = vpop.f32.mrb[0].mxu0
        %v2232 = vpop.f32.mrb[0].mxu0
        %v2233 = vadd.f32 0.0, %v2232
        %v2234 = vpop.f32.mrb[0].mxu0
        %2235 = vmatprep.mubr.bf16.mxu0 0
        %2236 = vmatmul.mubr.bf16.gmra.mrb[0].mxu0 %v2071
        %v2237 = vpop.f32.mrb[0].mxu0
        %v2238 = vadd.f32 0.0, %v2237
        %v2239 = vpop.f32.mrb[0].mxu0
        %v2240 = vpop.f32.mrb[0].mxu0
        %v2241 = vadd.f32 0.0, %v2240
        %v2242 = vpop.f32.mrb[0].mxu0
        %2243 = vmatprep.mubr.bf16.mxu0 0
        %2244 = vmatmul.mubr.bf16.gmra.mrb[0].mxu0 %v2072
        %v2245 = vpop.f32.mrb[0].mxu0
        %v2246 = vadd.f32 0.0, %v2245
        %v2247 = vpop.f32.mrb[0].mxu0
        %v2248 = vpop.f32.mrb[0].mxu0
        %v2249 = vadd.f32 0.0, %v2248
        %v2250 = vpop.f32.mrb[0].mxu0
        %2251 = vmatprep.mubr.bf16.mxu0 0
        %2252 = vmatmul.mubr.bf16.gmra.mrb[0].mxu0 %v2073
        %v2253 = vpop.f32.mrb[0].mxu0
        %v2254 = vadd.f32 0.0, %v2253
        %v2255 = vpop.f32.mrb[0].mxu0
        %v2256 = vpop.f32.mrb[0].mxu0
        %v2257 = vadd.f32 0.0, %v2256
        %v2258 = vpop.f32.mrb[0].mxu0
        %2259 = vmatprep.mubr.bf16.mxu0 0
        %2260 = vmatmul.mubr.bf16.gmra.mrb[0].mxu0 %v2074
        %v2261 = vpop.f32.mrb[0].mxu0
        %v2262 = vadd.f32 0.0, %v2261
        %v2263 = vpop.f32.mrb[0].mxu0
        %v2264 = vpop.f32.mrb[0].mxu0
        %v2265 = vadd.f32 0.0, %v2264
        %v2266 = vpop.f32.mrb[0].mxu0
        %2267 = vmatprep.mubr.bf16.mxu0 0
        %2268 = vmatmul.mubr.bf16.gmra.mrb[0].mxu0 %v2075
        %v2269 = vpop.f32.mrb[0].mxu0
        %v2270 = vadd.f32 0.0, %v2269
        %v2271 = vpop.f32.mrb[0].mxu0
        %v2272 = vpop.f32.mrb[0].mxu0
        %v2273 = vadd.f32 0.0, %v2272
        %v2274 = vpop.f32.mrb[0].mxu0
        %2275 = vmatprep.mubr.bf16.mxu0 0
        %2276 = vmatmul.mubr.bf16.gmra.mrb[0].mxu0 %v2076
        %v2277 = vpop.f32.mrb[0].mxu0
        %v2278 = vadd.f32 0.0, %v2277
        %v2279 = vpop.f32.mrb[0].mxu0
        %v2280 = vpop.f32.mrb[0].mxu0
        %v2281 = vadd.f32 0.0, %v2280
        %v2282 = vpop.f32.mrb[0].mxu0
        %2283 = vmatprep.mubr.bf16.mxu0 0
        %2284 = vmatmul.mubr.bf16.gmra.mrb[0].mxu0 %v2077
        %v2285 = vpop.f32.mrb[0].mxu0
        %v2286 = vadd.f32 0.0, %v2285
        %v2287 = vpop.f32.mrb[0].mxu0
        %v2288 = vpop.f32.mrb[0].mxu0
        %v2289 = vadd.f32 0.0, %v2288
        %v2290 = vpop.f32.mrb[0].mxu0
        %2291 = vmatprep.mubr.bf16.mxu0 0
        %2292 = vmatmul.mubr.bf16.gmra.mrb[0].mxu0 %v2078
        %v2293 = vpop.f32.mrb[0].mxu0
        %v2294 = vadd.f32 0.0, %v2293
        %v2295 = vpop.f32.mrb[0].mxu0
        %v2296 = vpop.f32.mrb[0].mxu0
        %v2297 = vadd.f32 0.0, %v2296
        %v2298 = vpop.f32.mrb[0].mxu0
        %2299 = vmatprep.mubr.bf16.mxu0 0
        %2300 = vmatmul.mubr.bf16.gmra.mrb[0].mxu0 %v2079
        %v2301 = vpop.f32.mrb[0].mxu0
        %v2302 = vadd.f32 0.0, %v2301
        %v2303 = vpop.f32.mrb[0].mxu0
        %v2304 = vpop.f32.mrb[0].mxu0
        %v2305 = vadd.f32 0.0, %v2304
        %v2306 = vpop.f32.mrb[0].mxu0
        %2307 = vmatprep.mubr.bf16.mxu0 0
        %2308 = vmatmul.mubr.bf16.gmra.mrb[0].mxu0 %v2080
        %v2309 = vpop.f32.mrb[0].mxu0
        %v2310 = vadd.f32 0.0, %v2309
        %v2311 = vpop.f32.mrb[0].mxu0
        %v2312 = vpop.f32.mrb[0].mxu0
        %v2313 = vadd.f32 0.0, %v2312
        %v2314 = vpop.f32.mrb[0].mxu0
        %2315 = vmatprep.mubr.bf16.mxu0 0
        %2316 = vmatmul.mubr.bf16.gmra.mrb[0].mxu0 %v2081
        %v2317 = vpop.f32.mrb[0].mxu0
        %v2318 = vadd.f32 0.0, %v2317
        %v2319 = vpop.f32.mrb[0].mxu0
        %v2320 = vpop.f32.mrb[0].mxu0
        %v2321 = vadd.f32 0.0, %v2320
        %v2322 = vpop.f32.mrb[0].mxu0
        %2323 = vdwg.mxu0
        %v2324 = vadd.f32 %v1992, %v2182
        %v2325 = vadd.f32 %v1993, %v2185
        %v2326 = vadd.f32 %v1994, %v2190
        %v2327 = vadd.f32 %v1995, %v2193
        %v2328 = vadd.f32 %v1996, %v2198
        %v2329 = vadd.f32 %v1997, %v2201
        %v2330 = vadd.f32 %v1998, %v2206
        %v2331 = vadd.f32 %v1999, %v2209
        %v2332 = vadd.f32 %v2000, %v2214
        %v2333 = vadd.f32 %v2001, %v2217
        %v2334 = vadd.f32 %v2002, %v2222
        %v2335 = vadd.f32 %v2003, %v2225
        %v2336 = vadd.f32 %v2004, %v2230
        %v2337 = vadd.f32 %v2005, %v2233
        %v2338 = vadd.f32 %v2006, %v2238
        %v2339 = vadd.f32 %v2007, %v2241
        %v2340 = vadd.f32 %v2008, %v2246
        %v2341 = vadd.f32 %v2009, %v2249
        %v2342 = vadd.f32 %v2010, %v2254
        %v2343 = vadd.f32 %v2011, %v2257
        %v2344 = vadd.f32 %v2012, %v2262
        %v2345 = vadd.f32 %v2013, %v2265
        %v2346 = vadd.f32 %v2014, %v2270
        %v2347 = vadd.f32 %v2015, %v2273
        %v2348 = vadd.f32 %v2016, %v2278
        %v2349 = vadd.f32 %v2017, %v2281
        %v2350 = vadd.f32 %v2018, %v2286
        %v2351 = vadd.f32 %v2019, %v2289
        %v2352 = vadd.f32 %v2020, %v2294
        %v2353 = vadd.f32 %v2021, %v2297
        %v2354 = vadd.f32 %v2022, %v2302
        %v2355 = vadd.f32 %v2023, %v2305
        %v2356 = vadd.f32 %v2024, %v2310
        %v2357 = vadd.f32 %v2025, %v2313
        %v2358 = vadd.f32 %v2026, %v2318
        %v2359 = vadd.f32 %v2027, %v2321
        %v2360 = vld [vmem:[%s388 + $0x13] sm:$0xff]
        %v2361 = vld [vmem:[%s388 + $0x1b] sm:$0xff]
        %v2362 = vld [vmem:[%s388 + $0x23] sm:$0xff]
        %v2363 = vld [vmem:[%s388 + $0x2b] sm:$0xff]
        %v2364 = vld [vmem:[%s388 + $0x33] sm:$0xff]
        %v2365 = vld [vmem:[%s388 + $0x3b] sm:$0xff]
        %v2366 = vld [vmem:[%s388 + $0x43] sm:$0xff]
        %v2367 = vld [vmem:[%s388 + $0x4b] sm:$0xff]
        %v2368 = vld [vmem:[%s388 + $0x53] sm:$0xff]
        %v2369 = vld [vmem:[%s388 + $0x5b] sm:$0xff]
        %v2370 = vld [vmem:[%s388 + $0x63] sm:$0xff]
        %v2371 = vld [vmem:[%s388 + $0x6b] sm:$0xff]
        %v2372 = vld [vmem:[%s388 + $0x73] sm:$0xff]
        %v2373 = vld [vmem:[%s388 + $0x7b] sm:$0xff]
        %v2374 = vld [vmem:[%s388 + $0x83] sm:$0xff]
        %v2375 = vld [vmem:[%s388 + $0x8b] sm:$0xff]
        %v2376 = vld [vmem:[%s388 + $0x93] sm:$0xff]
        %v2377 = vld [vmem:[%s388 + $0x9b] sm:$0xff]
        %v2378 = vld [vmem:[%s388 + $0xa3] sm:$0xff]
        %v2379 = vld [vmem:[%s388 + $0xab] sm:$0xff]
        %v2380 = vld [vmem:[%s388 + $0xb3] sm:$0xff]
        %v2381 = vld [vmem:[%s388 + $0xbb] sm:$0xff]
        %v2382 = vld [vmem:[%s388 + $0xc3] sm:$0xff]
        %v2383 = vld [vmem:[%s388 + $0xcb] sm:$0xff]
        %v2384 = vld [vmem:[%s388 + $0xd3] sm:$0xff]
        %v2385 = vld [vmem:[%s388 + $0xdb] sm:$0xff]
        %v2386 = vld [vmem:[%s388 + $0xe3] sm:$0xff]
        %v2387 = vld [vmem:[%s388 + $0xeb] sm:$0xff]
        %v2388 = vld [vmem:[%s388 + $0xf3] sm:$0xff]
        %v2389 = vld [vmem:[%s388 + $0xfb] sm:$0xff]
        %v2390 = vld [vmem:[%s388 + $0x103] sm:$0xff]
        %v2391 = vld [vmem:[%s388 + $0x10b] sm:$0xff]
        %v2392 = vld [vmem:[%s388 + $0x113] sm:$0xff]
        %v2393 = vld [vmem:[%s388 + $0x11b] sm:$0xff]
        %v2394 = vld [vmem:[%s388 + $0x123] sm:$0xff]
        %v2395 = vld [vmem:[%s388 + $0x12b] sm:$0xff]
        %v2396 = vpack.c.bf16 %v2361, %v2360
        %v2397 = vpack.c.bf16 %v2363, %v2362
        %v2398 = vpack.c.bf16 %v2365, %v2364
        %v2399 = vpack.c.bf16 %v2367, %v2366
        %v2400 = vpack.c.bf16 %v2369, %v2368
        %v2401 = vpack.c.bf16 %v2371, %v2370
        %v2402 = vpack.c.bf16 %v2373, %v2372
        %v2403 = vpack.c.bf16 %v2375, %v2374
        %v2404 = vpack.c.bf16 %v2377, %v2376
        %v2405 = vpack.c.bf16 %v2379, %v2378
        %v2406 = vpack.c.bf16 %v2381, %v2380
        %v2407 = vpack.c.bf16 %v2383, %v2382
        %v2408 = vpack.c.bf16 %v2385, %v2384
        %v2409 = vpack.c.bf16 %v2387, %v2386
        %v2410 = vpack.c.bf16 %v2389, %v2388
        %v2411 = vpack.c.bf16 %v2391, %v2390
        %v2412 = vpack.c.bf16 %v2393, %v2392
        %v2413 = vpack.c.bf16 %v2395, %v2394
        %s2414 = scalar_lea.vmem [#allocation6], 256
        %v2415 = vld [vmem:[%s2414] sm:$0xf]
        %v2416 = vld [vmem:[%s2414 + $0x4] sm:$0xf]
        %v2417 = vld [vmem:[%s2414 + $0x8] sm:$0xf]
        %v2418 = vld [vmem:[%s2414 + $0xc] sm:$0xf]
        %v2419 = vld [vmem:[%s2414 + $0x10] sm:$0xf]
        %v2420 = vld [vmem:[%s2414 + $0x14] sm:$0xf]
        %v2421 = vld [vmem:[%s2414 + $0x18] sm:$0xf]
        %v2422 = vld [vmem:[%s2414 + $0x1c] sm:$0xf]
        %v2423 = vld [vmem:[%s2414 + $0x20] sm:$0xf]
        %v2424 = vld [vmem:[%s2414 + $0x24] sm:$0xf]
        %v2425 = vld [vmem:[%s2414 + $0x28] sm:$0xf]
        %v2426 = vld [vmem:[%s2414 + $0x2c] sm:$0xf]
        %v2427 = vld [vmem:[%s2414 + $0x30] sm:$0xf]
        %v2428 = vld [vmem:[%s2414 + $0x34] sm:$0xf]
        %v2429 = vld [vmem:[%s2414 + $0x38] sm:$0xf]
        %v2430 = vld [vmem:[%s2414 + $0x3c] sm:$0xf]
        %v2447 = vunpack.c.l.b16 %v2415
        %v2448 = vunpack.c.l.b16 %v2416
        %v2449 = vunpack.c.l.b16 %v2417
        %v2450 = vunpack.c.l.b16 %v2418
        %v2451 = vunpack.c.l.b16 %v2419
        %v2452 = vunpack.c.l.b16 %v2420
        %v2453 = vunpack.c.l.b16 %v2421
        %v2454 = vunpack.c.l.b16 %v2422
        %v2455 = vunpack.c.l.b16 %v2423
        %v2456 = vunpack.c.l.b16 %v2424
        %v2457 = vunpack.c.l.b16 %v2425
        %v2458 = vunpack.c.l.b16 %v2426
        %v2459 = vunpack.c.l.b16 %v2427
        %v2460 = vunpack.c.l.b16 %v2428
        %v2461 = vunpack.c.l.b16 %v2429
        %v2462 = vunpack.c.l.b16 %v2430
        %v2463 = vpack.c.b16 %v2448, %v2447
        %v2464 = vpack.c.b16 %v2450, %v2449
        %v2465 = vpack.c.b16 %v2452, %v2451
        %v2466 = vpack.c.b16 %v2454, %v2453
        %v2467 = vpack.c.b16 %v2456, %v2455
        %v2468 = vpack.c.b16 %v2458, %v2457
        %v2469 = vpack.c.b16 %v2460, %v2459
        %v2470 = vpack.c.b16 %v2462, %v2461
        %2479 = vmatprep.subr.bf16.mxu0 0
        %2480 = vmatpush1.bf16.msra.mxu0 %v2463
        %2481 = vmatprep.subr.bf16.mxu0 0
        %2482 = vmatpush1.bf16.msra.mxu0 %v2464
        %2483 = vmatprep.subr.bf16.mxu0 0
        %2484 = vmatpush1.bf16.msra.mxu0 %v2465
        %2485 = vmatprep.subr.bf16.mxu0 0
        %2486 = vmatpush1.bf16.msra.mxu0 %v2466
        %2487 = vmatprep.subr.bf16.mxu0 0
        %2488 = vmatpush1.bf16.msra.mxu0 %v2467
        %2489 = vmatprep.subr.bf16.mxu0 0
        %2490 = vmatpush1.bf16.msra.mxu0 %v2468
        %2491 = vmatprep.subr.bf16.mxu0 0
        %2492 = vmatpush1.bf16.msra.mxu0 %v2469
        %2493 = vmatprep.subr.bf16.mxu0 0
        %2494 = vmatpush1.bf16.msra.mxu0 %v2470
        %2495 = vmatprep.subr.bf16.mxu0 0
        %2496 = vmatpush1.bf16.msra.mxu0 0
        %2497 = vmatprep.subr.bf16.mxu0 0
        %2498 = vmatpush1.bf16.msra.mxu0 0
        %2499 = vmatprep.subr.bf16.mxu0 0
        %2500 = vmatpush1.bf16.msra.mxu0 0
        %2501 = vmatprep.subr.bf16.mxu0 0
        %2502 = vmatpush1.bf16.msra.mxu0 0
        %2503 = vmatprep.subr.bf16.mxu0 0
        %2504 = vmatpush1.bf16.msra.mxu0 0
        %2505 = vmatprep.subr.bf16.mxu0 0
        %2506 = vmatpush1.bf16.msra.mxu0 0
        %2507 = vmatprep.subr.bf16.mxu0 0
        %2508 = vmatpush1.bf16.msra.mxu0 0
        %2509 = vmatprep.subr.bf16.mxu0 0
        %2510 = vmatpush1.bf16.msra.mxu0 0
        %2511 = vmatprep.mubr.bf16.mxu0 0
        %2512 = vmatmul.mubr.bf16.gmra.mrb[0].mxu0 %v2396
        %v2513 = vpop.f32.mrb[0].mxu0
        %v2514 = vadd.f32 0.0, %v2513
        %v2515 = vpop.f32.mrb[0].mxu0
        %v2516 = vpop.f32.mrb[0].mxu0
        %v2517 = vadd.f32 0.0, %v2516
        %v2518 = vpop.f32.mrb[0].mxu0
        %2519 = vmatprep.mubr.bf16.mxu0 0
        %2520 = vmatmul.mubr.bf16.gmra.mrb[0].mxu0 %v2397
        %v2521 = vpop.f32.mrb[0].mxu0
        %v2522 = vadd.f32 0.0, %v2521
        %v2523 = vpop.f32.mrb[0].mxu0
        %v2524 = vpop.f32.mrb[0].mxu0
        %v2525 = vadd.f32 0.0, %v2524
        %v2526 = vpop.f32.mrb[0].mxu0
        %2527 = vmatprep.mubr.bf16.mxu0 0
        %2528 = vmatmul.mubr.bf16.gmra.mrb[0].mxu0 %v2398
        %v2529 = vpop.f32.mrb[0].mxu0
        %v2530 = vadd.f32 0.0, %v2529
        %v2531 = vpop.f32.mrb[0].mxu0
        %v2532 = vpop.f32.mrb[0].mxu0
        %v2533 = vadd.f32 0.0, %v2532
        %v2534 = vpop.f32.mrb[0].mxu0
        %2535 = vmatprep.mubr.bf16.mxu0 0
        %2536 = vmatmul.mubr.bf16.gmra.mrb[0].mxu0 %v2399
        %v2537 = vpop.f32.mrb[0].mxu0
        %v2538 = vadd.f32 0.0, %v2537
        %v2539 = vpop.f32.mrb[0].mxu0
        %v2540 = vpop.f32.mrb[0].mxu0
        %v2541 = vadd.f32 0.0, %v2540
        %v2542 = vpop.f32.mrb[0].mxu0
        %2543 = vmatprep.mubr.bf16.mxu0 0
        %2544 = vmatmul.mubr.bf16.gmra.mrb[0].mxu0 %v2400
        %v2545 = vpop.f32.mrb[0].mxu0
        %v2546 = vadd.f32 0.0, %v2545
        %v2547 = vpop.f32.mrb[0].mxu0
        %v2548 = vpop.f32.mrb[0].mxu0
        %v2549 = vadd.f32 0.0, %v2548
        %v2550 = vpop.f32.mrb[0].mxu0
        %2551 = vmatprep.mubr.bf16.mxu0 0
        %2552 = vmatmul.mubr.bf16.gmra.mrb[0].mxu0 %v2401
        %v2553 = vpop.f32.mrb[0].mxu0
        %v2554 = vadd.f32 0.0, %v2553
        %v2555 = vpop.f32.mrb[0].mxu0
        %v2556 = vpop.f32.mrb[0].mxu0
        %v2557 = vadd.f32 0.0, %v2556
        %v2558 = vpop.f32.mrb[0].mxu0
        %2559 = vmatprep.mubr.bf16.mxu0 0
        %2560 = vmatmul.mubr.bf16.gmra.mrb[0].mxu0 %v2402
        %v2561 = vpop.f32.mrb[0].mxu0
        %v2562 = vadd.f32 0.0, %v2561
        %v2563 = vpop.f32.mrb[0].mxu0
        %v2564 = vpop.f32.mrb[0].mxu0
        %v2565 = vadd.f32 0.0, %v2564
        %v2566 = vpop.f32.mrb[0].mxu0
        %2567 = vmatprep.mubr.bf16.mxu0 0
        %2568 = vmatmul.mubr.bf16.gmra.mrb[0].mxu0 %v2403
        %v2569 = vpop.f32.mrb[0].mxu0
        %v2570 = vadd.f32 0.0, %v2569
        %v2571 = vpop.f32.mrb[0].mxu0
        %v2572 = vpop.f32.mrb[0].mxu0
        %v2573 = vadd.f32 0.0, %v2572
        %v2574 = vpop.f32.mrb[0].mxu0
        %2575 = vmatprep.mubr.bf16.mxu0 0
        %2576 = vmatmul.mubr.bf16.gmra.mrb[0].mxu0 %v2404
        %v2577 = vpop.f32.mrb[0].mxu0
        %v2578 = vadd.f32 0.0, %v2577
        %v2579 = vpop.f32.mrb[0].mxu0
        %v2580 = vpop.f32.mrb[0].mxu0
        %v2581 = vadd.f32 0.0, %v2580
        %v2582 = vpop.f32.mrb[0].mxu0
        %2583 = vmatprep.mubr.bf16.mxu0 0
        %2584 = vmatmul.mubr.bf16.gmra.mrb[0].mxu0 %v2405
        %v2585 = vpop.f32.mrb[0].mxu0
        %v2586 = vadd.f32 0.0, %v2585
        %v2587 = vpop.f32.mrb[0].mxu0
        %v2588 = vpop.f32.mrb[0].mxu0
        %v2589 = vadd.f32 0.0, %v2588
        %v2590 = vpop.f32.mrb[0].mxu0
        %2591 = vmatprep.mubr.bf16.mxu0 0
        %2592 = vmatmul.mubr.bf16.gmra.mrb[0].mxu0 %v2406
        %v2593 = vpop.f32.mrb[0].mxu0
        %v2594 = vadd.f32 0.0, %v2593
        %v2595 = vpop.f32.mrb[0].mxu0
        %v2596 = vpop.f32.mrb[0].mxu0
        %v2597 = vadd.f32 0.0, %v2596
        %v2598 = vpop.f32.mrb[0].mxu0
        %2599 = vmatprep.mubr.bf16.mxu0 0
        %2600 = vmatmul.mubr.bf16.gmra.mrb[0].mxu0 %v2407
        %v2601 = vpop.f32.mrb[0].mxu0
        %v2602 = vadd.f32 0.0, %v2601
        %v2603 = vpop.f32.mrb[0].mxu0
        %v2604 = vpop.f32.mrb[0].mxu0
        %v2605 = vadd.f32 0.0, %v2604
        %v2606 = vpop.f32.mrb[0].mxu0
        %2607 = vmatprep.mubr.bf16.mxu0 0
        %2608 = vmatmul.mubr.bf16.gmra.mrb[0].mxu0 %v2408
        %v2609 = vpop.f32.mrb[0].mxu0
        %v2610 = vadd.f32 0.0, %v2609
        %v2611 = vpop.f32.mrb[0].mxu0
        %v2612 = vpop.f32.mrb[0].mxu0
        %v2613 = vadd.f32 0.0, %v2612
        %v2614 = vpop.f32.mrb[0].mxu0
        %2615 = vmatprep.mubr.bf16.mxu0 0
        %2616 = vmatmul.mubr.bf16.gmra.mrb[0].mxu0 %v2409
        %v2617 = vpop.f32.mrb[0].mxu0
        %v2618 = vadd.f32 0.0, %v2617
        %v2619 = vpop.f32.mrb[0].mxu0
        %v2620 = vpop.f32.mrb[0].mxu0
        %v2621 = vadd.f32 0.0, %v2620
        %v2622 = vpop.f32.mrb[0].mxu0
        %2623 = vmatprep.mubr.bf16.mxu0 0
        %2624 = vmatmul.mubr.bf16.gmra.mrb[0].mxu0 %v2410
        %v2625 = vpop.f32.mrb[0].mxu0
        %v2626 = vadd.f32 0.0, %v2625
        %v2627 = vpop.f32.mrb[0].mxu0
        %v2628 = vpop.f32.mrb[0].mxu0
        %v2629 = vadd.f32 0.0, %v2628
        %v2630 = vpop.f32.mrb[0].mxu0
        %2631 = vmatprep.mubr.bf16.mxu0 0
        %2632 = vmatmul.mubr.bf16.gmra.mrb[0].mxu0 %v2411
        %v2633 = vpop.f32.mrb[0].mxu0
        %v2634 = vadd.f32 0.0, %v2633
        %v2635 = vpop.f32.mrb[0].mxu0
        %v2636 = vpop.f32.mrb[0].mxu0
        %v2637 = vadd.f32 0.0, %v2636
        %v2638 = vpop.f32.mrb[0].mxu0
        %2639 = vmatprep.mubr.bf16.mxu0 0
        %2640 = vmatmul.mubr.bf16.gmra.mrb[0].mxu0 %v2412
        %v2641 = vpop.f32.mrb[0].mxu0
        %v2642 = vadd.f32 0.0, %v2641
        %v2643 = vpop.f32.mrb[0].mxu0
        %v2644 = vpop.f32.mrb[0].mxu0
        %v2645 = vadd.f32 0.0, %v2644
        %v2646 = vpop.f32.mrb[0].mxu0
        %2647 = vmatprep.mubr.bf16.mxu0 0
        %2648 = vmatmul.mubr.bf16.gmra.mrb[0].mxu0 %v2413
        %v2649 = vpop.f32.mrb[0].mxu0
        %v2650 = vadd.f32 0.0, %v2649
        %v2651 = vpop.f32.mrb[0].mxu0
        %v2652 = vpop.f32.mrb[0].mxu0
        %v2653 = vadd.f32 0.0, %v2652
        %v2654 = vpop.f32.mrb[0].mxu0
        %2655 = vdwg.mxu0
        %v2656 = vadd.f32 %v2324, %v2514
        %v2657 = vadd.f32 %v2325, %v2517
        %v2658 = vadd.f32 %v2326, %v2522
        %v2659 = vadd.f32 %v2327, %v2525
        %v2660 = vadd.f32 %v2328, %v2530
        %v2661 = vadd.f32 %v2329, %v2533
        %v2662 = vadd.f32 %v2330, %v2538
        %v2663 = vadd.f32 %v2331, %v2541
        %v2664 = vadd.f32 %v2332, %v2546
        %v2665 = vadd.f32 %v2333, %v2549
        %v2666 = vadd.f32 %v2334, %v2554
        %v2667 = vadd.f32 %v2335, %v2557
        %v2668 = vadd.f32 %v2336, %v2562
        %v2669 = vadd.f32 %v2337, %v2565
        %v2670 = vadd.f32 %v2338, %v2570
        %v2671 = vadd.f32 %v2339, %v2573
        %v2672 = vadd.f32 %v2340, %v2578
        %v2673 = vadd.f32 %v2341, %v2581
        %v2674 = vadd.f32 %v2342, %v2586
        %v2675 = vadd.f32 %v2343, %v2589
        %v2676 = vadd.f32 %v2344, %v2594
        %v2677 = vadd.f32 %v2345, %v2597
        %v2678 = vadd.f32 %v2346, %v2602
        %v2679 = vadd.f32 %v2347, %v2605
        %v2680 = vadd.f32 %v2348, %v2610
        %v2681 = vadd.f32 %v2349, %v2613
        %v2682 = vadd.f32 %v2350, %v2618
        %v2683 = vadd.f32 %v2351, %v2621
        %v2684 = vadd.f32 %v2352, %v2626
        %v2685 = vadd.f32 %v2353, %v2629
        %v2686 = vadd.f32 %v2354, %v2634
        %v2687 = vadd.f32 %v2355, %v2637
        %v2688 = vadd.f32 %v2356, %v2642
        %v2689 = vadd.f32 %v2357, %v2645
        %v2690 = vadd.f32 %v2358, %v2650
        %v2691 = vadd.f32 %v2359, %v2653
        %v2692 = vld [vmem:[%s388 + $0x14] sm:$0xff]
        %v2693 = vld [vmem:[%s388 + $0x1c] sm:$0xff]
        %v2694 = vld [vmem:[%s388 + $0x24] sm:$0xff]
        %v2695 = vld [vmem:[%s388 + $0x2c] sm:$0xff]
        %v2696 = vld [vmem:[%s388 + $0x34] sm:$0xff]
        %v2697 = vld [vmem:[%s388 + $0x3c] sm:$0xff]
        %v2698 = vld [vmem:[%s388 + $0x44] sm:$0xff]
        %v2699 = vld [vmem:[%s388 + $0x4c] sm:$0xff]
        %v2700 = vld [vmem:[%s388 + $0x54] sm:$0xff]
        %v2701 = vld [vmem:[%s388 + $0x5c] sm:$0xff]
        %v2702 = vld [vmem:[%s388 + $0x64] sm:$0xff]
        %v2703 = vld [vmem:[%s388 + $0x6c] sm:$0xff]
        %v2704 = vld [vmem:[%s388 + $0x74] sm:$0xff]
        %v2705 = vld [vmem:[%s388 + $0x7c] sm:$0xff]
        %v2706 = vld [vmem:[%s388 + $0x84] sm:$0xff]
        %v2707 = vld [vmem:[%s388 + $0x8c] sm:$0xff]
        %v2708 = vld [vmem:[%s388 + $0x94] sm:$0xff]
        %v2709 = vld [vmem:[%s388 + $0x9c] sm:$0xff]
        %v2710 = vld [vmem:[%s388 + $0xa4] sm:$0xff]
        %v2711 = vld [vmem:[%s388 + $0xac] sm:$0xff]
        %v2712 = vld [vmem:[%s388 + $0xb4] sm:$0xff]
        %v2713 = vld [vmem:[%s388 + $0xbc] sm:$0xff]
        %v2714 = vld [vmem:[%s388 + $0xc4] sm:$0xff]
        %v2715 = vld [vmem:[%s388 + $0xcc] sm:$0xff]
        %v2716 = vld [vmem:[%s388 + $0xd4] sm:$0xff]
        %v2717 = vld [vmem:[%s388 + $0xdc] sm:$0xff]
        %v2718 = vld [vmem:[%s388 + $0xe4] sm:$0xff]
        %v2719 = vld [vmem:[%s388 + $0xec] sm:$0xff]
        %v2720 = vld [vmem:[%s388 + $0xf4] sm:$0xff]
        %v2721 = vld [vmem:[%s388 + $0xfc] sm:$0xff]
        %v2722 = vld [vmem:[%s388 + $0x104] sm:$0xff]
        %v2723 = vld [vmem:[%s388 + $0x10c] sm:$0xff]
        %v2724 = vld [vmem:[%s388 + $0x114] sm:$0xff]
        %v2725 = vld [vmem:[%s388 + $0x11c] sm:$0xff]
        %v2726 = vld [vmem:[%s388 + $0x124] sm:$0xff]
        %v2727 = vld [vmem:[%s388 + $0x12c] sm:$0xff]
        %v2728 = vpack.c.bf16 %v2693, %v2692
        %v2729 = vpack.c.bf16 %v2695, %v2694
        %v2730 = vpack.c.bf16 %v2697, %v2696
        %v2731 = vpack.c.bf16 %v2699, %v2698
        %v2732 = vpack.c.bf16 %v2701, %v2700
        %v2733 = vpack.c.bf16 %v2703, %v2702
        %v2734 = vpack.c.bf16 %v2705, %v2704
        %v2735 = vpack.c.bf16 %v2707, %v2706
        %v2736 = vpack.c.bf16 %v2709, %v2708
        %v2737 = vpack.c.bf16 %v2711, %v2710
        %v2738 = vpack.c.bf16 %v2713, %v2712
        %v2739 = vpack.c.bf16 %v2715, %v2714
        %v2740 = vpack.c.bf16 %v2717, %v2716
        %v2741 = vpack.c.bf16 %v2719, %v2718
        %v2742 = vpack.c.bf16 %v2721, %v2720
        %v2743 = vpack.c.bf16 %v2723, %v2722
        %v2744 = vpack.c.bf16 %v2725, %v2724
        %v2745 = vpack.c.bf16 %v2727, %v2726
        %s2746 = scalar_lea.vmem [#allocation6], 320
        %v2747 = vld [vmem:[%s2746] sm:$0xf]
        %v2748 = vld [vmem:[%s2746 + $0x4] sm:$0xf]
        %v2749 = vld [vmem:[%s2746 + $0x8] sm:$0xf]
        %v2750 = vld [vmem:[%s2746 + $0xc] sm:$0xf]
        %v2751 = vld [vmem:[%s2746 + $0x10] sm:$0xf]
        %v2752 = vld [vmem:[%s2746 + $0x14] sm:$0xf]
        %v2753 = vld [vmem:[%s2746 + $0x18] sm:$0xf]
        %v2754 = vld [vmem:[%s2746 + $0x1c] sm:$0xf]
        %v2755 = vld [vmem:[%s2746 + $0x20] sm:$0xf]
        %v2756 = vld [vmem:[%s2746 + $0x24] sm:$0xf]
        %v2757 = vld [vmem:[%s2746 + $0x28] sm:$0xf]
        %v2758 = vld [vmem:[%s2746 + $0x2c] sm:$0xf]
        %v2759 = vld [vmem:[%s2746 + $0x30] sm:$0xf]
        %v2760 = vld [vmem:[%s2746 + $0x34] sm:$0xf]
        %v2761 = vld [vmem:[%s2746 + $0x38] sm:$0xf]
        %v2762 = vld [vmem:[%s2746 + $0x3c] sm:$0xf]
        %v2779 = vunpack.c.l.b16 %v2747
        %v2780 = vunpack.c.l.b16 %v2748
        %v2781 = vunpack.c.l.b16 %v2749
        %v2782 = vunpack.c.l.b16 %v2750
        %v2783 = vunpack.c.l.b16 %v2751
        %v2784 = vunpack.c.l.b16 %v2752
        %v2785 = vunpack.c.l.b16 %v2753
        %v2786 = vunpack.c.l.b16 %v2754
        %v2787 = vunpack.c.l.b16 %v2755
        %v2788 = vunpack.c.l.b16 %v2756
        %v2789 = vunpack.c.l.b16 %v2757
        %v2790 = vunpack.c.l.b16 %v2758
        %v2791 = vunpack.c.l.b16 %v2759
        %v2792 = vunpack.c.l.b16 %v2760
        %v2793 = vunpack.c.l.b16 %v2761
        %v2794 = vunpack.c.l.b16 %v2762
        %v2795 = vpack.c.b16 %v2780, %v2779
        %v2796 = vpack.c.b16 %v2782, %v2781
        %v2797 = vpack.c.b16 %v2784, %v2783
        %v2798 = vpack.c.b16 %v2786, %v2785
        %v2799 = vpack.c.b16 %v2788, %v2787
        %v2800 = vpack.c.b16 %v2790, %v2789
        %v2801 = vpack.c.b16 %v2792, %v2791
        %v2802 = vpack.c.b16 %v2794, %v2793
        %2811 = vmatprep.subr.bf16.mxu0 0
        %2812 = vmatpush1.bf16.msra.mxu0 %v2795
        %2813 = vmatprep.subr.bf16.mxu0 0
        %2814 = vmatpush1.bf16.msra.mxu0 %v2796
        %2815 = vmatprep.subr.bf16.mxu0 0
        %2816 = vmatpush1.bf16.msra.mxu0 %v2797
        %2817 = vmatprep.subr.bf16.mxu0 0
        %2818 = vmatpush1.bf16.msra.mxu0 %v2798
        %2819 = vmatprep.subr.bf16.mxu0 0
        %2820 = vmatpush1.bf16.msra.mxu0 %v2799
        %2821 = vmatprep.subr.bf16.mxu0 0
        %2822 = vmatpush1.bf16.msra.mxu0 %v2800
        %2823 = vmatprep.subr.bf16.mxu0 0
        %2824 = vmatpush1.bf16.msra.mxu0 %v2801
        %2825 = vmatprep.subr.bf16.mxu0 0
        %2826 = vmatpush1.bf16.msra.mxu0 %v2802
        %2827 = vmatprep.subr.bf16.mxu0 0
        %2828 = vmatpush1.bf16.msra.mxu0 0
        %2829 = vmatprep.subr.bf16.mxu0 0
        %2830 = vmatpush1.bf16.msra.mxu0 0
        %2831 = vmatprep.subr.bf16.mxu0 0
        %2832 = vmatpush1.bf16.msra.mxu0 0
        %2833 = vmatprep.subr.bf16.mxu0 0
        %2834 = vmatpush1.bf16.msra.mxu0 0
        %2835 = vmatprep.subr.bf16.mxu0 0
        %2836 = vmatpush1.bf16.msra.mxu0 0
        %2837 = vmatprep.subr.bf16.mxu0 0
        %2838 = vmatpush1.bf16.msra.mxu0 0
        %2839 = vmatprep.subr.bf16.mxu0 0
        %2840 = vmatpush1.bf16.msra.mxu0 0
        %2841 = vmatprep.subr.bf16.mxu0 0
        %2842 = vmatpush1.bf16.msra.mxu0 0
        %2843 = vmatprep.mubr.bf16.mxu0 0
        %2844 = vmatmul.mubr.bf16.gmra.mrb[0].mxu0 %v2728
        %v2845 = vpop.f32.mrb[0].mxu0
        %v2846 = vadd.f32 0.0, %v2845
        %v2847 = vpop.f32.mrb[0].mxu0
        %v2848 = vpop.f32.mrb[0].mxu0
        %v2849 = vadd.f32 0.0, %v2848
        %v2850 = vpop.f32.mrb[0].mxu0
        %2851 = vmatprep.mubr.bf16.mxu0 0
        %2852 = vmatmul.mubr.bf16.gmra.mrb[0].mxu0 %v2729
        %v2853 = vpop.f32.mrb[0].mxu0
        %v2854 = vadd.f32 0.0, %v2853
        %v2855 = vpop.f32.mrb[0].mxu0
        %v2856 = vpop.f32.mrb[0].mxu0
        %v2857 = vadd.f32 0.0, %v2856
        %v2858 = vpop.f32.mrb[0].mxu0
        %2859 = vmatprep.mubr.bf16.mxu0 0
        %2860 = vmatmul.mubr.bf16.gmra.mrb[0].mxu0 %v2730
        %v2861 = vpop.f32.mrb[0].mxu0
        %v2862 = vadd.f32 0.0, %v2861
        %v2863 = vpop.f32.mrb[0].mxu0
        %v2864 = vpop.f32.mrb[0].mxu0
        %v2865 = vadd.f32 0.0, %v2864
        %v2866 = vpop.f32.mrb[0].mxu0
        %2867 = vmatprep.mubr.bf16.mxu0 0
        %2868 = vmatmul.mubr.bf16.gmra.mrb[0].mxu0 %v2731
        %v2869 = vpop.f32.mrb[0].mxu0
        %v2870 = vadd.f32 0.0, %v2869
        %v2871 = vpop.f32.mrb[0].mxu0
        %v2872 = vpop.f32.mrb[0].mxu0
        %v2873 = vadd.f32 0.0, %v2872
        %v2874 = vpop.f32.mrb[0].mxu0
        %2875 = vmatprep.mubr.bf16.mxu0 0
        %2876 = vmatmul.mubr.bf16.gmra.mrb[0].mxu0 %v2732
        %v2877 = vpop.f32.mrb[0].mxu0
        %v2878 = vadd.f32 0.0, %v2877
        %v2879 = vpop.f32.mrb[0].mxu0
        %v2880 = vpop.f32.mrb[0].mxu0
        %v2881 = vadd.f32 0.0, %v2880
        %v2882 = vpop.f32.mrb[0].mxu0
        %2883 = vmatprep.mubr.bf16.mxu0 0
        %2884 = vmatmul.mubr.bf16.gmra.mrb[0].mxu0 %v2733
        %v2885 = vpop.f32.mrb[0].mxu0
        %v2886 = vadd.f32 0.0, %v2885
        %v2887 = vpop.f32.mrb[0].mxu0
        %v2888 = vpop.f32.mrb[0].mxu0
        %v2889 = vadd.f32 0.0, %v2888
        %v2890 = vpop.f32.mrb[0].mxu0
        %2891 = vmatprep.mubr.bf16.mxu0 0
        %2892 = vmatmul.mubr.bf16.gmra.mrb[0].mxu0 %v2734
        %v2893 = vpop.f32.mrb[0].mxu0
        %v2894 = vadd.f32 0.0, %v2893
        %v2895 = vpop.f32.mrb[0].mxu0
        %v2896 = vpop.f32.mrb[0].mxu0
        %v2897 = vadd.f32 0.0, %v2896
        %v2898 = vpop.f32.mrb[0].mxu0
        %2899 = vmatprep.mubr.bf16.mxu0 0
        %2900 = vmatmul.mubr.bf16.gmra.mrb[0].mxu0 %v2735
        %v2901 = vpop.f32.mrb[0].mxu0
        %v2902 = vadd.f32 0.0, %v2901
        %v2903 = vpop.f32.mrb[0].mxu0
        %v2904 = vpop.f32.mrb[0].mxu0
        %v2905 = vadd.f32 0.0, %v2904
        %v2906 = vpop.f32.mrb[0].mxu0
        %2907 = vmatprep.mubr.bf16.mxu0 0
        %2908 = vmatmul.mubr.bf16.gmra.mrb[0].mxu0 %v2736
        %v2909 = vpop.f32.mrb[0].mxu0
        %v2910 = vadd.f32 0.0, %v2909
        %v2911 = vpop.f32.mrb[0].mxu0
        %v2912 = vpop.f32.mrb[0].mxu0
        %v2913 = vadd.f32 0.0, %v2912
        %v2914 = vpop.f32.mrb[0].mxu0
        %2915 = vmatprep.mubr.bf16.mxu0 0
        %2916 = vmatmul.mubr.bf16.gmra.mrb[0].mxu0 %v2737
        %v2917 = vpop.f32.mrb[0].mxu0
        %v2918 = vadd.f32 0.0, %v2917
        %v2919 = vpop.f32.mrb[0].mxu0
        %v2920 = vpop.f32.mrb[0].mxu0
        %v2921 = vadd.f32 0.0, %v2920
        %v2922 = vpop.f32.mrb[0].mxu0
        %2923 = vmatprep.mubr.bf16.mxu0 0
        %2924 = vmatmul.mubr.bf16.gmra.mrb[0].mxu0 %v2738
        %v2925 = vpop.f32.mrb[0].mxu0
        %v2926 = vadd.f32 0.0, %v2925
        %v2927 = vpop.f32.mrb[0].mxu0
        %v2928 = vpop.f32.mrb[0].mxu0
        %v2929 = vadd.f32 0.0, %v2928
        %v2930 = vpop.f32.mrb[0].mxu0
        %2931 = vmatprep.mubr.bf16.mxu0 0
        %2932 = vmatmul.mubr.bf16.gmra.mrb[0].mxu0 %v2739
        %v2933 = vpop.f32.mrb[0].mxu0
        %v2934 = vadd.f32 0.0, %v2933
        %v2935 = vpop.f32.mrb[0].mxu0
        %v2936 = vpop.f32.mrb[0].mxu0
        %v2937 = vadd.f32 0.0, %v2936
        %v2938 = vpop.f32.mrb[0].mxu0
        %2939 = vmatprep.mubr.bf16.mxu0 0
        %2940 = vmatmul.mubr.bf16.gmra.mrb[0].mxu0 %v2740
        %v2941 = vpop.f32.mrb[0].mxu0
        %v2942 = vadd.f32 0.0, %v2941
        %v2943 = vpop.f32.mrb[0].mxu0
        %v2944 = vpop.f32.mrb[0].mxu0
        %v2945 = vadd.f32 0.0, %v2944
        %v2946 = vpop.f32.mrb[0].mxu0
        %2947 = vmatprep.mubr.bf16.mxu0 0
        %2948 = vmatmul.mubr.bf16.gmra.mrb[0].mxu0 %v2741
        %v2949 = vpop.f32.mrb[0].mxu0
        %v2950 = vadd.f32 0.0, %v2949
        %v2951 = vpop.f32.mrb[0].mxu0
        %v2952 = vpop.f32.mrb[0].mxu0
        %v2953 = vadd.f32 0.0, %v2952
        %v2954 = vpop.f32.mrb[0].mxu0
        %2955 = vmatprep.mubr.bf16.mxu0 0
        %2956 = vmatmul.mubr.bf16.gmra.mrb[0].mxu0 %v2742
        %v2957 = vpop.f32.mrb[0].mxu0
        %v2958 = vadd.f32 0.0, %v2957
        %v2959 = vpop.f32.mrb[0].mxu0
        %v2960 = vpop.f32.mrb[0].mxu0
        %v2961 = vadd.f32 0.0, %v2960
        %v2962 = vpop.f32.mrb[0].mxu0
        %2963 = vmatprep.mubr.bf16.mxu0 0
        %2964 = vmatmul.mubr.bf16.gmra.mrb[0].mxu0 %v2743
        %v2965 = vpop.f32.mrb[0].mxu0
        %v2966 = vadd.f32 0.0, %v2965
        %v2967 = vpop.f32.mrb[0].mxu0
        %v2968 = vpop.f32.mrb[0].mxu0
        %v2969 = vadd.f32 0.0, %v2968
        %v2970 = vpop.f32.mrb[0].mxu0
        %2971 = vmatprep.mubr.bf16.mxu0 0
        %2972 = vmatmul.mubr.bf16.gmra.mrb[0].mxu0 %v2744
        %v2973 = vpop.f32.mrb[0].mxu0
        %v2974 = vadd.f32 0.0, %v2973
        %v2975 = vpop.f32.mrb[0].mxu0
        %v2976 = vpop.f32.mrb[0].mxu0
        %v2977 = vadd.f32 0.0, %v2976
        %v2978 = vpop.f32.mrb[0].mxu0
        %2979 = vmatprep.mubr.bf16.mxu0 0
        %2980 = vmatmul.mubr.bf16.gmra.mrb[0].mxu0 %v2745
        %v2981 = vpop.f32.mrb[0].mxu0
        %v2982 = vadd.f32 0.0, %v2981
        %v2983 = vpop.f32.mrb[0].mxu0
        %v2984 = vpop.f32.mrb[0].mxu0
        %v2985 = vadd.f32 0.0, %v2984
        %v2986 = vpop.f32.mrb[0].mxu0
        %2987 = vdwg.mxu0
        %v2988 = vadd.f32 %v2656, %v2846
        %v2989 = vadd.f32 %v2657, %v2849
        %v2990 = vadd.f32 %v2658, %v2854
        %v2991 = vadd.f32 %v2659, %v2857
        %v2992 = vadd.f32 %v2660, %v2862
        %v2993 = vadd.f32 %v2661, %v2865
        %v2994 = vadd.f32 %v2662, %v2870
        %v2995 = vadd.f32 %v2663, %v2873
        %v2996 = vadd.f32 %v2664, %v2878
        %v2997 = vadd.f32 %v2665, %v2881
        %v2998 = vadd.f32 %v2666, %v2886
        %v2999 = vadd.f32 %v2667, %v2889
        %v3000 = vadd.f32 %v2668, %v2894
        %v3001 = vadd.f32 %v2669, %v2897
        %v3002 = vadd.f32 %v2670, %v2902
        %v3003 = vadd.f32 %v2671, %v2905
        %v3004 = vadd.f32 %v2672, %v2910
        %v3005 = vadd.f32 %v2673, %v2913
        %v3006 = vadd.f32 %v2674, %v2918
        %v3007 = vadd.f32 %v2675, %v2921
        %v3008 = vadd.f32 %v2676, %v2926
        %v3009 = vadd.f32 %v2677, %v2929
        %v3010 = vadd.f32 %v2678, %v2934
        %v3011 = vadd.f32 %v2679, %v2937
        %v3012 = vadd.f32 %v2680, %v2942
        %v3013 = vadd.f32 %v2681, %v2945
        %v3014 = vadd.f32 %v2682, %v2950
        %v3015 = vadd.f32 %v2683, %v2953
        %v3016 = vadd.f32 %v2684, %v2958
        %v3017 = vadd.f32 %v2685, %v2961
        %v3018 = vadd.f32 %v2686, %v2966
        %v3019 = vadd.f32 %v2687, %v2969
        %v3020 = vadd.f32 %v2688, %v2974
        %v3021 = vadd.f32 %v2689, %v2977
        %v3022 = vadd.f32 %v2690, %v2982
        %v3023 = vadd.f32 %v2691, %v2985
        %v3024 = vld [vmem:[%s388 + $0x24] sm:$0xff]
        %v3025 = vld [vmem:[%s388 + $0x2c] sm:$0xff]
        %v3026 = vld [vmem:[%s388 + $0x34] sm:$0xff]
        %v3027 = vld [vmem:[%s388 + $0x3c] sm:$0xff]
        %v3028 = vld [vmem:[%s388 + $0x44] sm:$0xff]
        %v3029 = vld [vmem:[%s388 + $0x4c] sm:$0xff]
        %v3030 = vld [vmem:[%s388 + $0x54] sm:$0xff]
        %v3031 = vld [vmem:[%s388 + $0x5c] sm:$0xff]
        %v3032 = vld [vmem:[%s388 + $0x64] sm:$0xff]
        %v3033 = vld [vmem:[%s388 + $0x6c] sm:$0xff]
        %v3034 = vld [vmem:[%s388 + $0x74] sm:$0xff]
        %v3035 = vld [vmem:[%s388 + $0x7c] sm:$0xff]
        %v3036 = vld [vmem:[%s388 + $0x84] sm:$0xff]
        %v3037 = vld [vmem:[%s388 + $0x8c] sm:$0xff]
        %v3038 = vld [vmem:[%s388 + $0x94] sm:$0xff]
        %v3039 = vld [vmem:[%s388 + $0x9c] sm:$0xff]
        %v3040 = vld [vmem:[%s388 + $0xa4] sm:$0xff]
        %v3041 = vld [vmem:[%s388 + $0xac] sm:$0xff]
        %v3042 = vld [vmem:[%s388 + $0xb4] sm:$0xff]
        %v3043 = vld [vmem:[%s388 + $0xbc] sm:$0xff]
        %v3044 = vld [vmem:[%s388 + $0xc4] sm:$0xff]
        %v3045 = vld [vmem:[%s388 + $0xcc] sm:$0xff]
        %v3046 = vld [vmem:[%s388 + $0xd4] sm:$0xff]
        %v3047 = vld [vmem:[%s388 + $0xdc] sm:$0xff]
        %v3048 = vld [vmem:[%s388 + $0xe4] sm:$0xff]
        %v3049 = vld [vmem:[%s388 + $0xec] sm:$0xff]
        %v3050 = vld [vmem:[%s388 + $0xf4] sm:$0xff]
        %v3051 = vld [vmem:[%s388 + $0xfc] sm:$0xff]
        %v3052 = vld [vmem:[%s388 + $0x104] sm:$0xff]
        %v3053 = vld [vmem:[%s388 + $0x10c] sm:$0xff]
        %v3054 = vld [vmem:[%s388 + $0x114] sm:$0xff]
        %v3055 = vld [vmem:[%s388 + $0x11c] sm:$0xff]
        %v3056 = vld [vmem:[%s388 + $0x124] sm:$0xff]
        %v3057 = vld [vmem:[%s388 + $0x12c] sm:$0xff]
        %v3058 = vld [vmem:[%s388 + $0x134] sm:$0xff]
        %v3059 = vld [vmem:[%s388 + $0x13c] sm:$0xff]
        %v3060 = vpack.c.bf16 %v3025, %v3024
        %v3061 = vpack.c.bf16 %v3027, %v3026
        %v3062 = vpack.c.bf16 %v3029, %v3028
        %v3063 = vpack.c.bf16 %v3031, %v3030
        %v3064 = vpack.c.bf16 %v3033, %v3032
        %v3065 = vpack.c.bf16 %v3035, %v3034
        %v3066 = vpack.c.bf16 %v3037, %v3036
        %v3067 = vpack.c.bf16 %v3039, %v3038
        %v3068 = vpack.c.bf16 %v3041, %v3040
        %v3069 = vpack.c.bf16 %v3043, %v3042
        %v3070 = vpack.c.bf16 %v3045, %v3044
        %v3071 = vpack.c.bf16 %v3047, %v3046
        %v3072 = vpack.c.bf16 %v3049, %v3048
        %v3073 = vpack.c.bf16 %v3051, %v3050
        %v3074 = vpack.c.bf16 %v3053, %v3052
        %v3075 = vpack.c.bf16 %v3055, %v3054
        %v3076 = vpack.c.bf16 %v3057, %v3056
        %v3077 = vpack.c.bf16 %v3059, %v3058
        %s3078 = scalar_lea.vmem [#allocation6], 384
        %v3079 = vld [vmem:[%s3078] sm:$0xf]
        %v3080 = vld [vmem:[%s3078 + $0x4] sm:$0xf]
        %v3081 = vld [vmem:[%s3078 + $0x8] sm:$0xf]
        %v3082 = vld [vmem:[%s3078 + $0xc] sm:$0xf]
        %v3083 = vld [vmem:[%s3078 + $0x10] sm:$0xf]
        %v3084 = vld [vmem:[%s3078 + $0x14] sm:$0xf]
        %v3085 = vld [vmem:[%s3078 + $0x18] sm:$0xf]
        %v3086 = vld [vmem:[%s3078 + $0x1c] sm:$0xf]
        %v3087 = vld [vmem:[%s3078 + $0x20] sm:$0xf]
        %v3088 = vld [vmem:[%s3078 + $0x24] sm:$0xf]
        %v3089 = vld [vmem:[%s3078 + $0x28] sm:$0xf]
        %v3090 = vld [vmem:[%s3078 + $0x2c] sm:$0xf]
        %v3091 = vld [vmem:[%s3078 + $0x30] sm:$0xf]
        %v3092 = vld [vmem:[%s3078 + $0x34] sm:$0xf]
        %v3093 = vld [vmem:[%s3078 + $0x38] sm:$0xf]
        %v3094 = vld [vmem:[%s3078 + $0x3c] sm:$0xf]
        %v3111 = vunpack.c.l.b16 %v3079
        %v3112 = vunpack.c.l.b16 %v3080
        %v3113 = vunpack.c.l.b16 %v3081
        %v3114 = vunpack.c.l.b16 %v3082
        %v3115 = vunpack.c.l.b16 %v3083
        %v3116 = vunpack.c.l.b16 %v3084
        %v3117 = vunpack.c.l.b16 %v3085
        %v3118 = vunpack.c.l.b16 %v3086
        %v3119 = vunpack.c.l.b16 %v3087
        %v3120 = vunpack.c.l.b16 %v3088
        %v3121 = vunpack.c.l.b16 %v3089
        %v3122 = vunpack.c.l.b16 %v3090
        %v3123 = vunpack.c.l.b16 %v3091
        %v3124 = vunpack.c.l.b16 %v3092
        %v3125 = vunpack.c.l.b16 %v3093
        %v3126 = vunpack.c.l.b16 %v3094
        %v3127 = vpack.c.b16 %v3112, %v3111
        %v3128 = vpack.c.b16 %v3114, %v3113
        %v3129 = vpack.c.b16 %v3116, %v3115
        %v3130 = vpack.c.b16 %v3118, %v3117
        %v3131 = vpack.c.b16 %v3120, %v3119
        %v3132 = vpack.c.b16 %v3122, %v3121
        %v3133 = vpack.c.b16 %v3124, %v3123
        %v3134 = vpack.c.b16 %v3126, %v3125
        %3143 = vmatprep.subr.bf16.mxu0 0
        %3144 = vmatpush1.bf16.msra.mxu0 %v3127
        %3145 = vmatprep.subr.bf16.mxu0 0
        %3146 = vmatpush1.bf16.msra.mxu0 %v3128
        %3147 = vmatprep.subr.bf16.mxu0 0
        %3148 = vmatpush1.bf16.msra.mxu0 %v3129
        %3149 = vmatprep.subr.bf16.mxu0 0
        %3150 = vmatpush1.bf16.msra.mxu0 %v3130
        %3151 = vmatprep.subr.bf16.mxu0 0
        %3152 = vmatpush1.bf16.msra.mxu0 %v3131
        %3153 = vmatprep.subr.bf16.mxu0 0
        %3154 = vmatpush1.bf16.msra.mxu0 %v3132
        %3155 = vmatprep.subr.bf16.mxu0 0
        %3156 = vmatpush1.bf16.msra.mxu0 %v3133
        %3157 = vmatprep.subr.bf16.mxu0 0
        %3158 = vmatpush1.bf16.msra.mxu0 %v3134
        %3159 = vmatprep.subr.bf16.mxu0 0
        %3160 = vmatpush1.bf16.msra.mxu0 0
        %3161 = vmatprep.subr.bf16.mxu0 0
        %3162 = vmatpush1.bf16.msra.mxu0 0
        %3163 = vmatprep.subr.bf16.mxu0 0
        %3164 = vmatpush1.bf16.msra.mxu0 0
        %3165 = vmatprep.subr.bf16.mxu0 0
        %3166 = vmatpush1.bf16.msra.mxu0 0
        %3167 = vmatprep.subr.bf16.mxu0 0
        %3168 = vmatpush1.bf16.msra.mxu0 0
        %3169 = vmatprep.subr.bf16.mxu0 0
        %3170 = vmatpush1.bf16.msra.mxu0 0
        %3171 = vmatprep.subr.bf16.mxu0 0
        %3172 = vmatpush1.bf16.msra.mxu0 0
        %3173 = vmatprep.subr.bf16.mxu0 0
        %3174 = vmatpush1.bf16.msra.mxu0 0
        %3175 = vmatprep.mubr.bf16.mxu0 0
        %3176 = vmatmul.mubr.bf16.gmra.mrb[0].mxu0 %v3060
        %v3177 = vpop.f32.mrb[0].mxu0
        %v3178 = vadd.f32 0.0, %v3177
        %v3179 = vpop.f32.mrb[0].mxu0
        %v3180 = vpop.f32.mrb[0].mxu0
        %v3181 = vadd.f32 0.0, %v3180
        %v3182 = vpop.f32.mrb[0].mxu0
        %3183 = vmatprep.mubr.bf16.mxu0 0
        %3184 = vmatmul.mubr.bf16.gmra.mrb[0].mxu0 %v3061
        %v3185 = vpop.f32.mrb[0].mxu0
        %v3186 = vadd.f32 0.0, %v3185
        %v3187 = vpop.f32.mrb[0].mxu0
        %v3188 = vpop.f32.mrb[0].mxu0
        %v3189 = vadd.f32 0.0, %v3188
        %v3190 = vpop.f32.mrb[0].mxu0
        %3191 = vmatprep.mubr.bf16.mxu0 0
        %3192 = vmatmul.mubr.bf16.gmra.mrb[0].mxu0 %v3062
        %v3193 = vpop.f32.mrb[0].mxu0
        %v3194 = vadd.f32 0.0, %v3193
        %v3195 = vpop.f32.mrb[0].mxu0
        %v3196 = vpop.f32.mrb[0].mxu0
        %v3197 = vadd.f32 0.0, %v3196
        %v3198 = vpop.f32.mrb[0].mxu0
        %3199 = vmatprep.mubr.bf16.mxu0 0
        %3200 = vmatmul.mubr.bf16.gmra.mrb[0].mxu0 %v3063
        %v3201 = vpop.f32.mrb[0].mxu0
        %v3202 = vadd.f32 0.0, %v3201
        %v3203 = vpop.f32.mrb[0].mxu0
        %v3204 = vpop.f32.mrb[0].mxu0
        %v3205 = vadd.f32 0.0, %v3204
        %v3206 = vpop.f32.mrb[0].mxu0
        %3207 = vmatprep.mubr.bf16.mxu0 0
        %3208 = vmatmul.mubr.bf16.gmra.mrb[0].mxu0 %v3064
        %v3209 = vpop.f32.mrb[0].mxu0
        %v3210 = vadd.f32 0.0, %v3209
        %v3211 = vpop.f32.mrb[0].mxu0
        %v3212 = vpop.f32.mrb[0].mxu0
        %v3213 = vadd.f32 0.0, %v3212
        %v3214 = vpop.f32.mrb[0].mxu0
        %3215 = vmatprep.mubr.bf16.mxu0 0
        %3216 = vmatmul.mubr.bf16.gmra.mrb[0].mxu0 %v3065
        %v3217 = vpop.f32.mrb[0].mxu0
        %v3218 = vadd.f32 0.0, %v3217
        %v3219 = vpop.f32.mrb[0].mxu0
        %v3220 = vpop.f32.mrb[0].mxu0
        %v3221 = vadd.f32 0.0, %v3220
        %v3222 = vpop.f32.mrb[0].mxu0
        %3223 = vmatprep.mubr.bf16.mxu0 0
        %3224 = vmatmul.mubr.bf16.gmra.mrb[0].mxu0 %v3066
        %v3225 = vpop.f32.mrb[0].mxu0
        %v3226 = vadd.f32 0.0, %v3225
        %v3227 = vpop.f32.mrb[0].mxu0
        %v3228 = vpop.f32.mrb[0].mxu0
        %v3229 = vadd.f32 0.0, %v3228
        %v3230 = vpop.f32.mrb[0].mxu0
        %3231 = vmatprep.mubr.bf16.mxu0 0
        %3232 = vmatmul.mubr.bf16.gmra.mrb[0].mxu0 %v3067
        %v3233 = vpop.f32.mrb[0].mxu0
        %v3234 = vadd.f32 0.0, %v3233
        %v3235 = vpop.f32.mrb[0].mxu0
        %v3236 = vpop.f32.mrb[0].mxu0
        %v3237 = vadd.f32 0.0, %v3236
        %v3238 = vpop.f32.mrb[0].mxu0
        %3239 = vmatprep.mubr.bf16.mxu0 0
        %3240 = vmatmul.mubr.bf16.gmra.mrb[0].mxu0 %v3068
        %v3241 = vpop.f32.mrb[0].mxu0
        %v3242 = vadd.f32 0.0, %v3241
        %v3243 = vpop.f32.mrb[0].mxu0
        %v3244 = vpop.f32.mrb[0].mxu0
        %v3245 = vadd.f32 0.0, %v3244
        %v3246 = vpop.f32.mrb[0].mxu0
        %3247 = vmatprep.mubr.bf16.mxu0 0
        %3248 = vmatmul.mubr.bf16.gmra.mrb[0].mxu0 %v3069
        %v3249 = vpop.f32.mrb[0].mxu0
        %v3250 = vadd.f32 0.0, %v3249
        %v3251 = vpop.f32.mrb[0].mxu0
        %v3252 = vpop.f32.mrb[0].mxu0
        %v3253 = vadd.f32 0.0, %v3252
        %v3254 = vpop.f32.mrb[0].mxu0
        %3255 = vmatprep.mubr.bf16.mxu0 0
        %3256 = vmatmul.mubr.bf16.gmra.mrb[0].mxu0 %v3070
        %v3257 = vpop.f32.mrb[0].mxu0
        %v3258 = vadd.f32 0.0, %v3257
        %v3259 = vpop.f32.mrb[0].mxu0
        %v3260 = vpop.f32.mrb[0].mxu0
        %v3261 = vadd.f32 0.0, %v3260
        %v3262 = vpop.f32.mrb[0].mxu0
        %3263 = vmatprep.mubr.bf16.mxu0 0
        %3264 = vmatmul.mubr.bf16.gmra.mrb[0].mxu0 %v3071
        %v3265 = vpop.f32.mrb[0].mxu0
        %v3266 = vadd.f32 0.0, %v3265
        %v3267 = vpop.f32.mrb[0].mxu0
        %v3268 = vpop.f32.mrb[0].mxu0
        %v3269 = vadd.f32 0.0, %v3268
        %v3270 = vpop.f32.mrb[0].mxu0
        %3271 = vmatprep.mubr.bf16.mxu0 0
        %3272 = vmatmul.mubr.bf16.gmra.mrb[0].mxu0 %v3072
        %v3273 = vpop.f32.mrb[0].mxu0
        %v3274 = vadd.f32 0.0, %v3273
        %v3275 = vpop.f32.mrb[0].mxu0
        %v3276 = vpop.f32.mrb[0].mxu0
        %v3277 = vadd.f32 0.0, %v3276
        %v3278 = vpop.f32.mrb[0].mxu0
        %3279 = vmatprep.mubr.bf16.mxu0 0
        %3280 = vmatmul.mubr.bf16.gmra.mrb[0].mxu0 %v3073
        %v3281 = vpop.f32.mrb[0].mxu0
        %v3282 = vadd.f32 0.0, %v3281
        %v3283 = vpop.f32.mrb[0].mxu0
        %v3284 = vpop.f32.mrb[0].mxu0
        %v3285 = vadd.f32 0.0, %v3284
        %v3286 = vpop.f32.mrb[0].mxu0
        %3287 = vmatprep.mubr.bf16.mxu0 0
        %3288 = vmatmul.mubr.bf16.gmra.mrb[0].mxu0 %v3074
        %v3289 = vpop.f32.mrb[0].mxu0
        %v3290 = vadd.f32 0.0, %v3289
        %v3291 = vpop.f32.mrb[0].mxu0
        %v3292 = vpop.f32.mrb[0].mxu0
        %v3293 = vadd.f32 0.0, %v3292
        %v3294 = vpop.f32.mrb[0].mxu0
        %3295 = vmatprep.mubr.bf16.mxu0 0
        %3296 = vmatmul.mubr.bf16.gmra.mrb[0].mxu0 %v3075
        %v3297 = vpop.f32.mrb[0].mxu0
        %v3298 = vadd.f32 0.0, %v3297
        %v3299 = vpop.f32.mrb[0].mxu0
        %v3300 = vpop.f32.mrb[0].mxu0
        %v3301 = vadd.f32 0.0, %v3300
        %v3302 = vpop.f32.mrb[0].mxu0
        %3303 = vmatprep.mubr.bf16.mxu0 0
        %3304 = vmatmul.mubr.bf16.gmra.mrb[0].mxu0 %v3076
        %v3305 = vpop.f32.mrb[0].mxu0
        %v3306 = vadd.f32 0.0, %v3305
        %v3307 = vpop.f32.mrb[0].mxu0
        %v3308 = vpop.f32.mrb[0].mxu0
        %v3309 = vadd.f32 0.0, %v3308
        %v3310 = vpop.f32.mrb[0].mxu0
        %3311 = vmatprep.mubr.bf16.mxu0 0
        %3312 = vmatmul.mubr.bf16.gmra.mrb[0].mxu0 %v3077
        %v3313 = vpop.f32.mrb[0].mxu0
        %v3314 = vadd.f32 0.0, %v3313
        %v3315 = vpop.f32.mrb[0].mxu0
        %v3316 = vpop.f32.mrb[0].mxu0
        %v3317 = vadd.f32 0.0, %v3316
        %v3318 = vpop.f32.mrb[0].mxu0
        %3319 = vdwg.mxu0
        %v3320 = vadd.f32 %v2988, %v3178
        %v3321 = vadd.f32 %v2989, %v3181
        %v3322 = vadd.f32 %v2990, %v3186
        %v3323 = vadd.f32 %v2991, %v3189
        %v3324 = vadd.f32 %v2992, %v3194
        %v3325 = vadd.f32 %v2993, %v3197
        %v3326 = vadd.f32 %v2994, %v3202
        %v3327 = vadd.f32 %v2995, %v3205
        %v3328 = vadd.f32 %v2996, %v3210
        %v3329 = vadd.f32 %v2997, %v3213
        %v3330 = vadd.f32 %v2998, %v3218
        %v3331 = vadd.f32 %v2999, %v3221
        %v3332 = vadd.f32 %v3000, %v3226
        %v3333 = vadd.f32 %v3001, %v3229
        %v3334 = vadd.f32 %v3002, %v3234
        %v3335 = vadd.f32 %v3003, %v3237
        %v3336 = vadd.f32 %v3004, %v3242
        %v3337 = vadd.f32 %v3005, %v3245
        %v3338 = vadd.f32 %v3006, %v3250
        %v3339 = vadd.f32 %v3007, %v3253
        %v3340 = vadd.f32 %v3008, %v3258
        %v3341 = vadd.f32 %v3009, %v3261
        %v3342 = vadd.f32 %v3010, %v3266
        %v3343 = vadd.f32 %v3011, %v3269
        %v3344 = vadd.f32 %v3012, %v3274
        %v3345 = vadd.f32 %v3013, %v3277
        %v3346 = vadd.f32 %v3014, %v3282
        %v3347 = vadd.f32 %v3015, %v3285
        %v3348 = vadd.f32 %v3016, %v3290
        %v3349 = vadd.f32 %v3017, %v3293
        %v3350 = vadd.f32 %v3018, %v3298
        %v3351 = vadd.f32 %v3019, %v3301
        %v3352 = vadd.f32 %v3020, %v3306
        %v3353 = vadd.f32 %v3021, %v3309
        %v3354 = vadd.f32 %v3022, %v3314
        %v3355 = vadd.f32 %v3023, %v3317
        %v3356 = vld [vmem:[%s388 + $0x25] sm:$0xff]
        %v3357 = vld [vmem:[%s388 + $0x2d] sm:$0xff]
        %v3358 = vld [vmem:[%s388 + $0x35] sm:$0xff]
        %v3359 = vld [vmem:[%s388 + $0x3d] sm:$0xff]
        %v3360 = vld [vmem:[%s388 + $0x45] sm:$0xff]
        %v3361 = vld [vmem:[%s388 + $0x4d] sm:$0xff]
        %v3362 = vld [vmem:[%s388 + $0x55] sm:$0xff]
        %v3363 = vld [vmem:[%s388 + $0x5d] sm:$0xff]
        %v3364 = vld [vmem:[%s388 + $0x65] sm:$0xff]
        %v3365 = vld [vmem:[%s388 + $0x6d] sm:$0xff]
        %v3366 = vld [vmem:[%s388 + $0x75] sm:$0xff]
        %v3367 = vld [vmem:[%s388 + $0x7d] sm:$0xff]
        %v3368 = vld [vmem:[%s388 + $0x85] sm:$0xff]
        %v3369 = vld [vmem:[%s388 + $0x8d] sm:$0xff]
        %v3370 = vld [vmem:[%s388 + $0x95] sm:$0xff]
        %v3371 = vld [vmem:[%s388 + $0x9d] sm:$0xff]
        %v3372 = vld [vmem:[%s388 + $0xa5] sm:$0xff]
        %v3373 = vld [vmem:[%s388 + $0xad] sm:$0xff]
        %v3374 = vld [vmem:[%s388 + $0xb5] sm:$0xff]
        %v3375 = vld [vmem:[%s388 + $0xbd] sm:$0xff]
        %v3376 = vld [vmem:[%s388 + $0xc5] sm:$0xff]
        %v3377 = vld [vmem:[%s388 + $0xcd] sm:$0xff]
        %v3378 = vld [vmem:[%s388 + $0xd5] sm:$0xff]
        %v3379 = vld [vmem:[%s388 + $0xdd] sm:$0xff]
        %v3380 = vld [vmem:[%s388 + $0xe5] sm:$0xff]
        %v3381 = vld [vmem:[%s388 + $0xed] sm:$0xff]
        %v3382 = vld [vmem:[%s388 + $0xf5] sm:$0xff]
        %v3383 = vld [vmem:[%s388 + $0xfd] sm:$0xff]
        %v3384 = vld [vmem:[%s388 + $0x105] sm:$0xff]
        %v3385 = vld [vmem:[%s388 + $0x10d] sm:$0xff]
        %v3386 = vld [vmem:[%s388 + $0x115] sm:$0xff]
        %v3387 = vld [vmem:[%s388 + $0x11d] sm:$0xff]
        %v3388 = vld [vmem:[%s388 + $0x125] sm:$0xff]
        %v3389 = vld [vmem:[%s388 + $0x12d] sm:$0xff]
        %v3390 = vld [vmem:[%s388 + $0x135] sm:$0xff]
        %v3391 = vld [vmem:[%s388 + $0x13d] sm:$0xff]
        %v3392 = vpack.c.bf16 %v3357, %v3356
        %v3393 = vpack.c.bf16 %v3359, %v3358
        %v3394 = vpack.c.bf16 %v3361, %v3360
        %v3395 = vpack.c.bf16 %v3363, %v3362
        %v3396 = vpack.c.bf16 %v3365, %v3364
        %v3397 = vpack.c.bf16 %v3367, %v3366
        %v3398 = vpack.c.bf16 %v3369, %v3368
        %v3399 = vpack.c.bf16 %v3371, %v3370
        %v3400 = vpack.c.bf16 %v3373, %v3372
        %v3401 = vpack.c.bf16 %v3375, %v3374
        %v3402 = vpack.c.bf16 %v3377, %v3376
        %v3403 = vpack.c.bf16 %v3379, %v3378
        %v3404 = vpack.c.bf16 %v3381, %v3380
        %v3405 = vpack.c.bf16 %v3383, %v3382
        %v3406 = vpack.c.bf16 %v3385, %v3384
        %v3407 = vpack.c.bf16 %v3387, %v3386
        %v3408 = vpack.c.bf16 %v3389, %v3388
        %v3409 = vpack.c.bf16 %v3391, %v3390
        %s3410 = scalar_lea.vmem [#allocation6], 448
        %v3411 = vld [vmem:[%s3410] sm:$0xf]
        %v3412 = vld [vmem:[%s3410 + $0x4] sm:$0xf]
        %v3413 = vld [vmem:[%s3410 + $0x8] sm:$0xf]
        %v3414 = vld [vmem:[%s3410 + $0xc] sm:$0xf]
        %v3415 = vld [vmem:[%s3410 + $0x10] sm:$0xf]
        %v3416 = vld [vmem:[%s3410 + $0x14] sm:$0xf]
        %v3417 = vld [vmem:[%s3410 + $0x18] sm:$0xf]
        %v3418 = vld [vmem:[%s3410 + $0x1c] sm:$0xf]
        %v3419 = vld [vmem:[%s3410 + $0x20] sm:$0xf]
        %v3420 = vld [vmem:[%s3410 + $0x24] sm:$0xf]
        %v3421 = vld [vmem:[%s3410 + $0x28] sm:$0xf]
        %v3422 = vld [vmem:[%s3410 + $0x2c] sm:$0xf]
        %v3423 = vld [vmem:[%s3410 + $0x30] sm:$0xf]
        %v3424 = vld [vmem:[%s3410 + $0x34] sm:$0xf]
        %v3425 = vld [vmem:[%s3410 + $0x38] sm:$0xf]
        %v3426 = vld [vmem:[%s3410 + $0x3c] sm:$0xf]
        %v3443 = vunpack.c.l.b16 %v3411
        %v3444 = vunpack.c.l.b16 %v3412
        %v3445 = vunpack.c.l.b16 %v3413
        %v3446 = vunpack.c.l.b16 %v3414
        %v3447 = vunpack.c.l.b16 %v3415
        %v3448 = vunpack.c.l.b16 %v3416
        %v3449 = vunpack.c.l.b16 %v3417
        %v3450 = vunpack.c.l.b16 %v3418
        %v3451 = vunpack.c.l.b16 %v3419
        %v3452 = vunpack.c.l.b16 %v3420
        %v3453 = vunpack.c.l.b16 %v3421
        %v3454 = vunpack.c.l.b16 %v3422
        %v3455 = vunpack.c.l.b16 %v3423
        %v3456 = vunpack.c.l.b16 %v3424
        %v3457 = vunpack.c.l.b16 %v3425
        %v3458 = vunpack.c.l.b16 %v3426
        %v3459 = vpack.c.b16 %v3444, %v3443
        %v3460 = vpack.c.b16 %v3446, %v3445
        %v3461 = vpack.c.b16 %v3448, %v3447
        %v3462 = vpack.c.b16 %v3450, %v3449
        %v3463 = vpack.c.b16 %v3452, %v3451
        %v3464 = vpack.c.b16 %v3454, %v3453
        %v3465 = vpack.c.b16 %v3456, %v3455
        %v3466 = vpack.c.b16 %v3458, %v3457
        %3475 = vmatprep.subr.bf16.mxu0 0
        %3476 = vmatpush1.bf16.msra.mxu0 %v3459
        %3477 = vmatprep.subr.bf16.mxu0 0
        %3478 = vmatpush1.bf16.msra.mxu0 %v3460
        %3479 = vmatprep.subr.bf16.mxu0 0
        %3480 = vmatpush1.bf16.msra.mxu0 %v3461
        %3481 = vmatprep.subr.bf16.mxu0 0
        %3482 = vmatpush1.bf16.msra.mxu0 %v3462
        %3483 = vmatprep.subr.bf16.mxu0 0
        %3484 = vmatpush1.bf16.msra.mxu0 %v3463
        %3485 = vmatprep.subr.bf16.mxu0 0
        %3486 = vmatpush1.bf16.msra.mxu0 %v3464
        %3487 = vmatprep.subr.bf16.mxu0 0
        %3488 = vmatpush1.bf16.msra.mxu0 %v3465
        %3489 = vmatprep.subr.bf16.mxu0 0
        %3490 = vmatpush1.bf16.msra.mxu0 %v3466
        %3491 = vmatprep.subr.bf16.mxu0 0
        %3492 = vmatpush1.bf16.msra.mxu0 0
        %3493 = vmatprep.subr.bf16.mxu0 0
        %3494 = vmatpush1.bf16.msra.mxu0 0
        %3495 = vmatprep.subr.bf16.mxu0 0
        %3496 = vmatpush1.bf16.msra.mxu0 0
        %3497 = vmatprep.subr.bf16.mxu0 0
        %3498 = vmatpush1.bf16.msra.mxu0 0
        %3499 = vmatprep.subr.bf16.mxu0 0
        %3500 = vmatpush1.bf16.msra.mxu0 0
        %3501 = vmatprep.subr.bf16.mxu0 0
        %3502 = vmatpush1.bf16.msra.mxu0 0
        %3503 = vmatprep.subr.bf16.mxu0 0
        %3504 = vmatpush1.bf16.msra.mxu0 0
        %3505 = vmatprep.subr.bf16.mxu0 0
        %3506 = vmatpush1.bf16.msra.mxu0 0
        %3507 = vmatprep.mubr.bf16.mxu0 0
        %3508 = vmatmul.mubr.bf16.gmra.mrb[0].mxu0 %v3392
        %v3509 = vpop.f32.mrb[0].mxu0
        %v3510 = vadd.f32 0.0, %v3509
        %v3511 = vpop.f32.mrb[0].mxu0
        %v3512 = vpop.f32.mrb[0].mxu0
        %v3513 = vadd.f32 0.0, %v3512
        %v3514 = vpop.f32.mrb[0].mxu0
        %3515 = vmatprep.mubr.bf16.mxu0 0
        %3516 = vmatmul.mubr.bf16.gmra.mrb[0].mxu0 %v3393
        %v3517 = vpop.f32.mrb[0].mxu0
        %v3518 = vadd.f32 0.0, %v3517
        %v3519 = vpop.f32.mrb[0].mxu0
        %v3520 = vpop.f32.mrb[0].mxu0
        %v3521 = vadd.f32 0.0, %v3520
        %v3522 = vpop.f32.mrb[0].mxu0
        %3523 = vmatprep.mubr.bf16.mxu0 0
        %3524 = vmatmul.mubr.bf16.gmra.mrb[0].mxu0 %v3394
        %v3525 = vpop.f32.mrb[0].mxu0
        %v3526 = vadd.f32 0.0, %v3525
        %v3527 = vpop.f32.mrb[0].mxu0
        %v3528 = vpop.f32.mrb[0].mxu0
        %v3529 = vadd.f32 0.0, %v3528
        %v3530 = vpop.f32.mrb[0].mxu0
        %3531 = vmatprep.mubr.bf16.mxu0 0
        %3532 = vmatmul.mubr.bf16.gmra.mrb[0].mxu0 %v3395
        %v3533 = vpop.f32.mrb[0].mxu0
        %v3534 = vadd.f32 0.0, %v3533
        %v3535 = vpop.f32.mrb[0].mxu0
        %v3536 = vpop.f32.mrb[0].mxu0
        %v3537 = vadd.f32 0.0, %v3536
        %v3538 = vpop.f32.mrb[0].mxu0
        %3539 = vmatprep.mubr.bf16.mxu0 0
        %3540 = vmatmul.mubr.bf16.gmra.mrb[0].mxu0 %v3396
        %v3541 = vpop.f32.mrb[0].mxu0
        %v3542 = vadd.f32 0.0, %v3541
        %v3543 = vpop.f32.mrb[0].mxu0
        %v3544 = vpop.f32.mrb[0].mxu0
        %v3545 = vadd.f32 0.0, %v3544
        %v3546 = vpop.f32.mrb[0].mxu0
        %3547 = vmatprep.mubr.bf16.mxu0 0
        %3548 = vmatmul.mubr.bf16.gmra.mrb[0].mxu0 %v3397
        %v3549 = vpop.f32.mrb[0].mxu0
        %v3550 = vadd.f32 0.0, %v3549
        %v3551 = vpop.f32.mrb[0].mxu0
        %v3552 = vpop.f32.mrb[0].mxu0
        %v3553 = vadd.f32 0.0, %v3552
        %v3554 = vpop.f32.mrb[0].mxu0
        %3555 = vmatprep.mubr.bf16.mxu0 0
        %3556 = vmatmul.mubr.bf16.gmra.mrb[0].mxu0 %v3398
        %v3557 = vpop.f32.mrb[0].mxu0
        %v3558 = vadd.f32 0.0, %v3557
        %v3559 = vpop.f32.mrb[0].mxu0
        %v3560 = vpop.f32.mrb[0].mxu0
        %v3561 = vadd.f32 0.0, %v3560
        %v3562 = vpop.f32.mrb[0].mxu0
        %3563 = vmatprep.mubr.bf16.mxu0 0
        %3564 = vmatmul.mubr.bf16.gmra.mrb[0].mxu0 %v3399
        %v3565 = vpop.f32.mrb[0].mxu0
        %v3566 = vadd.f32 0.0, %v3565
        %v3567 = vpop.f32.mrb[0].mxu0
        %v3568 = vpop.f32.mrb[0].mxu0
        %v3569 = vadd.f32 0.0, %v3568
        %v3570 = vpop.f32.mrb[0].mxu0
        %3571 = vmatprep.mubr.bf16.mxu0 0
        %3572 = vmatmul.mubr.bf16.gmra.mrb[0].mxu0 %v3400
        %v3573 = vpop.f32.mrb[0].mxu0
        %v3574 = vadd.f32 0.0, %v3573
        %v3575 = vpop.f32.mrb[0].mxu0
        %v3576 = vpop.f32.mrb[0].mxu0
        %v3577 = vadd.f32 0.0, %v3576
        %v3578 = vpop.f32.mrb[0].mxu0
        %3579 = vmatprep.mubr.bf16.mxu0 0
        %3580 = vmatmul.mubr.bf16.gmra.mrb[0].mxu0 %v3401
        %v3581 = vpop.f32.mrb[0].mxu0
        %v3582 = vadd.f32 0.0, %v3581
        %v3583 = vpop.f32.mrb[0].mxu0
        %v3584 = vpop.f32.mrb[0].mxu0
        %v3585 = vadd.f32 0.0, %v3584
        %v3586 = vpop.f32.mrb[0].mxu0
        %3587 = vmatprep.mubr.bf16.mxu0 0
        %3588 = vmatmul.mubr.bf16.gmra.mrb[0].mxu0 %v3402
        %v3589 = vpop.f32.mrb[0].mxu0
        %v3590 = vadd.f32 0.0, %v3589
        %v3591 = vpop.f32.mrb[0].mxu0
        %v3592 = vpop.f32.mrb[0].mxu0
        %v3593 = vadd.f32 0.0, %v3592
        %v3594 = vpop.f32.mrb[0].mxu0
        %3595 = vmatprep.mubr.bf16.mxu0 0
        %3596 = vmatmul.mubr.bf16.gmra.mrb[0].mxu0 %v3403
        %v3597 = vpop.f32.mrb[0].mxu0
        %v3598 = vadd.f32 0.0, %v3597
        %v3599 = vpop.f32.mrb[0].mxu0
        %v3600 = vpop.f32.mrb[0].mxu0
        %v3601 = vadd.f32 0.0, %v3600
        %v3602 = vpop.f32.mrb[0].mxu0
        %3603 = vmatprep.mubr.bf16.mxu0 0
        %3604 = vmatmul.mubr.bf16.gmra.mrb[0].mxu0 %v3404
        %v3605 = vpop.f32.mrb[0].mxu0
        %v3606 = vadd.f32 0.0, %v3605
        %v3607 = vpop.f32.mrb[0].mxu0
        %v3608 = vpop.f32.mrb[0].mxu0
        %v3609 = vadd.f32 0.0, %v3608
        %v3610 = vpop.f32.mrb[0].mxu0
        %3611 = vmatprep.mubr.bf16.mxu0 0
        %3612 = vmatmul.mubr.bf16.gmra.mrb[0].mxu0 %v3405
        %v3613 = vpop.f32.mrb[0].mxu0
        %v3614 = vadd.f32 0.0, %v3613
        %v3615 = vpop.f32.mrb[0].mxu0
        %v3616 = vpop.f32.mrb[0].mxu0
        %v3617 = vadd.f32 0.0, %v3616
        %v3618 = vpop.f32.mrb[0].mxu0
        %3619 = vmatprep.mubr.bf16.mxu0 0
        %3620 = vmatmul.mubr.bf16.gmra.mrb[0].mxu0 %v3406
        %v3621 = vpop.f32.mrb[0].mxu0
        %v3622 = vadd.f32 0.0, %v3621
        %v3623 = vpop.f32.mrb[0].mxu0
        %v3624 = vpop.f32.mrb[0].mxu0
        %v3625 = vadd.f32 0.0, %v3624
        %v3626 = vpop.f32.mrb[0].mxu0
        %3627 = vmatprep.mubr.bf16.mxu0 0
        %3628 = vmatmul.mubr.bf16.gmra.mrb[0].mxu0 %v3407
        %v3629 = vpop.f32.mrb[0].mxu0
        %v3630 = vadd.f32 0.0, %v3629
        %v3631 = vpop.f32.mrb[0].mxu0
        %v3632 = vpop.f32.mrb[0].mxu0
        %v3633 = vadd.f32 0.0, %v3632
        %v3634 = vpop.f32.mrb[0].mxu0
        %3635 = vmatprep.mubr.bf16.mxu0 0
        %3636 = vmatmul.mubr.bf16.gmra.mrb[0].mxu0 %v3408
        %v3637 = vpop.f32.mrb[0].mxu0
        %v3638 = vadd.f32 0.0, %v3637
        %v3639 = vpop.f32.mrb[0].mxu0
        %v3640 = vpop.f32.mrb[0].mxu0
        %v3641 = vadd.f32 0.0, %v3640
        %v3642 = vpop.f32.mrb[0].mxu0
        %3643 = vmatprep.mubr.bf16.mxu0 0
        %3644 = vmatmul.mubr.bf16.gmra.mrb[0].mxu0 %v3409
        %v3645 = vpop.f32.mrb[0].mxu0
        %v3646 = vadd.f32 0.0, %v3645
        %v3647 = vpop.f32.mrb[0].mxu0
        %v3648 = vpop.f32.mrb[0].mxu0
        %v3649 = vadd.f32 0.0, %v3648
        %v3650 = vpop.f32.mrb[0].mxu0
        %3651 = vdwg.mxu0
        %v3652 = vadd.f32 %v3320, %v3510
        %v3653 = vadd.f32 %v3321, %v3513
        %v3654 = vadd.f32 %v3322, %v3518
        %v3655 = vadd.f32 %v3323, %v3521
        %v3656 = vadd.f32 %v3324, %v3526
        %v3657 = vadd.f32 %v3325, %v3529
        %v3658 = vadd.f32 %v3326, %v3534
        %v3659 = vadd.f32 %v3327, %v3537
        %v3660 = vadd.f32 %v3328, %v3542
        %v3661 = vadd.f32 %v3329, %v3545
        %v3662 = vadd.f32 %v3330, %v3550
        %v3663 = vadd.f32 %v3331, %v3553
        %v3664 = vadd.f32 %v3332, %v3558
        %v3665 = vadd.f32 %v3333, %v3561
        %v3666 = vadd.f32 %v3334, %v3566
        %v3667 = vadd.f32 %v3335, %v3569
        %v3668 = vadd.f32 %v3336, %v3574
        %v3669 = vadd.f32 %v3337, %v3577
        %v3670 = vadd.f32 %v3338, %v3582
        %v3671 = vadd.f32 %v3339, %v3585
        %v3672 = vadd.f32 %v3340, %v3590
        %v3673 = vadd.f32 %v3341, %v3593
        %v3674 = vadd.f32 %v3342, %v3598
        %v3675 = vadd.f32 %v3343, %v3601
        %v3676 = vadd.f32 %v3344, %v3606
        %v3677 = vadd.f32 %v3345, %v3609
        %v3678 = vadd.f32 %v3346, %v3614
        %v3679 = vadd.f32 %v3347, %v3617
        %v3680 = vadd.f32 %v3348, %v3622
        %v3681 = vadd.f32 %v3349, %v3625
        %v3682 = vadd.f32 %v3350, %v3630
        %v3683 = vadd.f32 %v3351, %v3633
        %v3684 = vadd.f32 %v3352, %v3638
        %v3685 = vadd.f32 %v3353, %v3641
        %v3686 = vadd.f32 %v3354, %v3646
        %v3687 = vadd.f32 %v3355, %v3649
        %v3688 = vld [vmem:[%s388 + $0x26] sm:$0xff]
        %v3689 = vld [vmem:[%s388 + $0x2e] sm:$0xff]
        %v3690 = vld [vmem:[%s388 + $0x36] sm:$0xff]
        %v3691 = vld [vmem:[%s388 + $0x3e] sm:$0xff]
        %v3692 = vld [vmem:[%s388 + $0x46] sm:$0xff]
        %v3693 = vld [vmem:[%s388 + $0x4e] sm:$0xff]
        %v3694 = vld [vmem:[%s388 + $0x56] sm:$0xff]
        %v3695 = vld [vmem:[%s388 + $0x5e] sm:$0xff]
        %v3696 = vld [vmem:[%s388 + $0x66] sm:$0xff]
        %v3697 = vld [vmem:[%s388 + $0x6e] sm:$0xff]
        %v3698 = vld [vmem:[%s388 + $0x76] sm:$0xff]
        %v3699 = vld [vmem:[%s388 + $0x7e] sm:$0xff]
        %v3700 = vld [vmem:[%s388 + $0x86] sm:$0xff]
        %v3701 = vld [vmem:[%s388 + $0x8e] sm:$0xff]
        %v3702 = vld [vmem:[%s388 + $0x96] sm:$0xff]
        %v3703 = vld [vmem:[%s388 + $0x9e] sm:$0xff]
        %v3704 = vld [vmem:[%s388 + $0xa6] sm:$0xff]
        %v3705 = vld [vmem:[%s388 + $0xae] sm:$0xff]
        %v3706 = vld [vmem:[%s388 + $0xb6] sm:$0xff]
        %v3707 = vld [vmem:[%s388 + $0xbe] sm:$0xff]
        %v3708 = vld [vmem:[%s388 + $0xc6] sm:$0xff]
        %v3709 = vld [vmem:[%s388 + $0xce] sm:$0xff]
        %v3710 = vld [vmem:[%s388 + $0xd6] sm:$0xff]
        %v3711 = vld [vmem:[%s388 + $0xde] sm:$0xff]
        %v3712 = vld [vmem:[%s388 + $0xe6] sm:$0xff]
        %v3713 = vld [vmem:[%s388 + $0xee] sm:$0xff]
        %v3714 = vld [vmem:[%s388 + $0xf6] sm:$0xff]
        %v3715 = vld [vmem:[%s388 + $0xfe] sm:$0xff]
        %v3716 = vld [vmem:[%s388 + $0x106] sm:$0xff]
        %v3717 = vld [vmem:[%s388 + $0x10e] sm:$0xff]
        %v3718 = vld [vmem:[%s388 + $0x116] sm:$0xff]
        %v3719 = vld [vmem:[%s388 + $0x11e] sm:$0xff]
        %v3720 = vld [vmem:[%s388 + $0x126] sm:$0xff]
        %v3721 = vld [vmem:[%s388 + $0x12e] sm:$0xff]
        %v3722 = vld [vmem:[%s388 + $0x136] sm:$0xff]
        %v3723 = vld [vmem:[%s388 + $0x13e] sm:$0xff]
        %v3724 = vpack.c.bf16 %v3689, %v3688
        %v3725 = vpack.c.bf16 %v3691, %v3690
        %v3726 = vpack.c.bf16 %v3693, %v3692
        %v3727 = vpack.c.bf16 %v3695, %v3694
        %v3728 = vpack.c.bf16 %v3697, %v3696
        %v3729 = vpack.c.bf16 %v3699, %v3698
        %v3730 = vpack.c.bf16 %v3701, %v3700
        %v3731 = vpack.c.bf16 %v3703, %v3702
        %v3732 = vpack.c.bf16 %v3705, %v3704
        %v3733 = vpack.c.bf16 %v3707, %v3706
        %v3734 = vpack.c.bf16 %v3709, %v3708
        %v3735 = vpack.c.bf16 %v3711, %v3710
        %v3736 = vpack.c.bf16 %v3713, %v3712
        %v3737 = vpack.c.bf16 %v3715, %v3714
        %v3738 = vpack.c.bf16 %v3717, %v3716
        %v3739 = vpack.c.bf16 %v3719, %v3718
        %v3740 = vpack.c.bf16 %v3721, %v3720
        %v3741 = vpack.c.bf16 %v3723, %v3722
        %s3742 = scalar_lea.vmem [#allocation6], 512
        %v3743 = vld [vmem:[%s3742] sm:$0xf]
        %v3744 = vld [vmem:[%s3742 + $0x4] sm:$0xf]
        %v3745 = vld [vmem:[%s3742 + $0x8] sm:$0xf]
        %v3746 = vld [vmem:[%s3742 + $0xc] sm:$0xf]
        %v3747 = vld [vmem:[%s3742 + $0x10] sm:$0xf]
        %v3748 = vld [vmem:[%s3742 + $0x14] sm:$0xf]
        %v3749 = vld [vmem:[%s3742 + $0x18] sm:$0xf]
        %v3750 = vld [vmem:[%s3742 + $0x1c] sm:$0xf]
        %v3751 = vld [vmem:[%s3742 + $0x20] sm:$0xf]
        %v3752 = vld [vmem:[%s3742 + $0x24] sm:$0xf]
        %v3753 = vld [vmem:[%s3742 + $0x28] sm:$0xf]
        %v3754 = vld [vmem:[%s3742 + $0x2c] sm:$0xf]
        %v3755 = vld [vmem:[%s3742 + $0x30] sm:$0xf]
        %v3756 = vld [vmem:[%s3742 + $0x34] sm:$0xf]
        %v3757 = vld [vmem:[%s3742 + $0x38] sm:$0xf]
        %v3758 = vld [vmem:[%s3742 + $0x3c] sm:$0xf]
        %v3775 = vunpack.c.l.b16 %v3743
        %v3776 = vunpack.c.l.b16 %v3744
        %v3777 = vunpack.c.l.b16 %v3745
        %v3778 = vunpack.c.l.b16 %v3746
        %v3779 = vunpack.c.l.b16 %v3747
        %v3780 = vunpack.c.l.b16 %v3748
        %v3781 = vunpack.c.l.b16 %v3749
        %v3782 = vunpack.c.l.b16 %v3750
        %v3783 = vunpack.c.l.b16 %v3751
        %v3784 = vunpack.c.l.b16 %v3752
        %v3785 = vunpack.c.l.b16 %v3753
        %v3786 = vunpack.c.l.b16 %v3754
        %v3787 = vunpack.c.l.b16 %v3755
        %v3788 = vunpack.c.l.b16 %v3756
        %v3789 = vunpack.c.l.b16 %v3757
        %v3790 = vunpack.c.l.b16 %v3758
        %v3791 = vpack.c.b16 %v3776, %v3775
        %v3792 = vpack.c.b16 %v3778, %v3777
        %v3793 = vpack.c.b16 %v3780, %v3779
        %v3794 = vpack.c.b16 %v3782, %v3781
        %v3795 = vpack.c.b16 %v3784, %v3783
        %v3796 = vpack.c.b16 %v3786, %v3785
        %v3797 = vpack.c.b16 %v3788, %v3787
        %v3798 = vpack.c.b16 %v3790, %v3789
        %3807 = vmatprep.subr.bf16.mxu0 0
        %3808 = vmatpush1.bf16.msra.mxu0 %v3791
        %3809 = vmatprep.subr.bf16.mxu0 0
        %3810 = vmatpush1.bf16.msra.mxu0 %v3792
        %3811 = vmatprep.subr.bf16.mxu0 0
        %3812 = vmatpush1.bf16.msra.mxu0 %v3793
        %3813 = vmatprep.subr.bf16.mxu0 0
        %3814 = vmatpush1.bf16.msra.mxu0 %v3794
        %3815 = vmatprep.subr.bf16.mxu0 0
        %3816 = vmatpush1.bf16.msra.mxu0 %v3795
        %3817 = vmatprep.subr.bf16.mxu0 0
        %3818 = vmatpush1.bf16.msra.mxu0 %v3796
        %3819 = vmatprep.subr.bf16.mxu0 0
        %3820 = vmatpush1.bf16.msra.mxu0 %v3797
        %3821 = vmatprep.subr.bf16.mxu0 0
        %3822 = vmatpush1.bf16.msra.mxu0 %v3798
        %3823 = vmatprep.subr.bf16.mxu0 0
        %3824 = vmatpush1.bf16.msra.mxu0 0
        %3825 = vmatprep.subr.bf16.mxu0 0
        %3826 = vmatpush1.bf16.msra.mxu0 0
        %3827 = vmatprep.subr.bf16.mxu0 0
        %3828 = vmatpush1.bf16.msra.mxu0 0
        %3829 = vmatprep.subr.bf16.mxu0 0
        %3830 = vmatpush1.bf16.msra.mxu0 0
        %3831 = vmatprep.subr.bf16.mxu0 0
        %3832 = vmatpush1.bf16.msra.mxu0 0
        %3833 = vmatprep.subr.bf16.mxu0 0
        %3834 = vmatpush1.bf16.msra.mxu0 0
        %3835 = vmatprep.subr.bf16.mxu0 0
        %3836 = vmatpush1.bf16.msra.mxu0 0
        %3837 = vmatprep.subr.bf16.mxu0 0
        %3838 = vmatpush1.bf16.msra.mxu0 0
        %3839 = vmatprep.mubr.bf16.mxu0 0
        %3840 = vmatmul.mubr.bf16.gmra.mrb[0].mxu0 %v3724
        %v3841 = vpop.f32.mrb[0].mxu0
        %v3842 = vadd.f32 0.0, %v3841
        %v3843 = vpop.f32.mrb[0].mxu0
        %v3844 = vpop.f32.mrb[0].mxu0
        %v3845 = vadd.f32 0.0, %v3844
        %v3846 = vpop.f32.mrb[0].mxu0
        %3847 = vmatprep.mubr.bf16.mxu0 0
        %3848 = vmatmul.mubr.bf16.gmra.mrb[0].mxu0 %v3725
        %v3849 = vpop.f32.mrb[0].mxu0
        %v3850 = vadd.f32 0.0, %v3849
        %v3851 = vpop.f32.mrb[0].mxu0
        %v3852 = vpop.f32.mrb[0].mxu0
        %v3853 = vadd.f32 0.0, %v3852
        %v3854 = vpop.f32.mrb[0].mxu0
        %3855 = vmatprep.mubr.bf16.mxu0 0
        %3856 = vmatmul.mubr.bf16.gmra.mrb[0].mxu0 %v3726
        %v3857 = vpop.f32.mrb[0].mxu0
        %v3858 = vadd.f32 0.0, %v3857
        %v3859 = vpop.f32.mrb[0].mxu0
        %v3860 = vpop.f32.mrb[0].mxu0
        %v3861 = vadd.f32 0.0, %v3860
        %v3862 = vpop.f32.mrb[0].mxu0
        %3863 = vmatprep.mubr.bf16.mxu0 0
        %3864 = vmatmul.mubr.bf16.gmra.mrb[0].mxu0 %v3727
        %v3865 = vpop.f32.mrb[0].mxu0
        %v3866 = vadd.f32 0.0, %v3865
        %v3867 = vpop.f32.mrb[0].mxu0
        %v3868 = vpop.f32.mrb[0].mxu0
        %v3869 = vadd.f32 0.0, %v3868
        %v3870 = vpop.f32.mrb[0].mxu0
        %3871 = vmatprep.mubr.bf16.mxu0 0
        %3872 = vmatmul.mubr.bf16.gmra.mrb[0].mxu0 %v3728
        %v3873 = vpop.f32.mrb[0].mxu0
        %v3874 = vadd.f32 0.0, %v3873
        %v3875 = vpop.f32.mrb[0].mxu0
        %v3876 = vpop.f32.mrb[0].mxu0
        %v3877 = vadd.f32 0.0, %v3876
        %v3878 = vpop.f32.mrb[0].mxu0
        %3879 = vmatprep.mubr.bf16.mxu0 0
        %3880 = vmatmul.mubr.bf16.gmra.mrb[0].mxu0 %v3729
        %v3881 = vpop.f32.mrb[0].mxu0
        %v3882 = vadd.f32 0.0, %v3881
        %v3883 = vpop.f32.mrb[0].mxu0
        %v3884 = vpop.f32.mrb[0].mxu0
        %v3885 = vadd.f32 0.0, %v3884
        %v3886 = vpop.f32.mrb[0].mxu0
        %3887 = vmatprep.mubr.bf16.mxu0 0
        %3888 = vmatmul.mubr.bf16.gmra.mrb[0].mxu0 %v3730
        %v3889 = vpop.f32.mrb[0].mxu0
        %v3890 = vadd.f32 0.0, %v3889
        %v3891 = vpop.f32.mrb[0].mxu0
        %v3892 = vpop.f32.mrb[0].mxu0
        %v3893 = vadd.f32 0.0, %v3892
        %v3894 = vpop.f32.mrb[0].mxu0
        %3895 = vmatprep.mubr.bf16.mxu0 0
        %3896 = vmatmul.mubr.bf16.gmra.mrb[0].mxu0 %v3731
        %v3897 = vpop.f32.mrb[0].mxu0
        %v3898 = vadd.f32 0.0, %v3897
        %v3899 = vpop.f32.mrb[0].mxu0
        %v3900 = vpop.f32.mrb[0].mxu0
        %v3901 = vadd.f32 0.0, %v3900
        %v3902 = vpop.f32.mrb[0].mxu0
        %3903 = vmatprep.mubr.bf16.mxu0 0
        %3904 = vmatmul.mubr.bf16.gmra.mrb[0].mxu0 %v3732
        %v3905 = vpop.f32.mrb[0].mxu0
        %v3906 = vadd.f32 0.0, %v3905
        %v3907 = vpop.f32.mrb[0].mxu0
        %v3908 = vpop.f32.mrb[0].mxu0
        %v3909 = vadd.f32 0.0, %v3908
        %v3910 = vpop.f32.mrb[0].mxu0
        %3911 = vmatprep.mubr.bf16.mxu0 0
        %3912 = vmatmul.mubr.bf16.gmra.mrb[0].mxu0 %v3733
        %v3913 = vpop.f32.mrb[0].mxu0
        %v3914 = vadd.f32 0.0, %v3913
        %v3915 = vpop.f32.mrb[0].mxu0
        %v3916 = vpop.f32.mrb[0].mxu0
        %v3917 = vadd.f32 0.0, %v3916
        %v3918 = vpop.f32.mrb[0].mxu0
        %3919 = vmatprep.mubr.bf16.mxu0 0
        %3920 = vmatmul.mubr.bf16.gmra.mrb[0].mxu0 %v3734
        %v3921 = vpop.f32.mrb[0].mxu0
        %v3922 = vadd.f32 0.0, %v3921
        %v3923 = vpop.f32.mrb[0].mxu0
        %v3924 = vpop.f32.mrb[0].mxu0
        %v3925 = vadd.f32 0.0, %v3924
        %v3926 = vpop.f32.mrb[0].mxu0
        %3927 = vmatprep.mubr.bf16.mxu0 0
        %3928 = vmatmul.mubr.bf16.gmra.mrb[0].mxu0 %v3735
        %v3929 = vpop.f32.mrb[0].mxu0
        %v3930 = vadd.f32 0.0, %v3929
        %v3931 = vpop.f32.mrb[0].mxu0
        %v3932 = vpop.f32.mrb[0].mxu0
        %v3933 = vadd.f32 0.0, %v3932
        %v3934 = vpop.f32.mrb[0].mxu0
        %3935 = vmatprep.mubr.bf16.mxu0 0
        %3936 = vmatmul.mubr.bf16.gmra.mrb[0].mxu0 %v3736
        %v3937 = vpop.f32.mrb[0].mxu0
        %v3938 = vadd.f32 0.0, %v3937
        %v3939 = vpop.f32.mrb[0].mxu0
        %v3940 = vpop.f32.mrb[0].mxu0
        %v3941 = vadd.f32 0.0, %v3940
        %v3942 = vpop.f32.mrb[0].mxu0
        %3943 = vmatprep.mubr.bf16.mxu0 0
        %3944 = vmatmul.mubr.bf16.gmra.mrb[0].mxu0 %v3737
        %v3945 = vpop.f32.mrb[0].mxu0
        %v3946 = vadd.f32 0.0, %v3945
        %v3947 = vpop.f32.mrb[0].mxu0
        %v3948 = vpop.f32.mrb[0].mxu0
        %v3949 = vadd.f32 0.0, %v3948
        %v3950 = vpop.f32.mrb[0].mxu0
        %3951 = vmatprep.mubr.bf16.mxu0 0
        %3952 = vmatmul.mubr.bf16.gmra.mrb[0].mxu0 %v3738
        %v3953 = vpop.f32.mrb[0].mxu0
        %v3954 = vadd.f32 0.0, %v3953
        %v3955 = vpop.f32.mrb[0].mxu0
        %v3956 = vpop.f32.mrb[0].mxu0
        %v3957 = vadd.f32 0.0, %v3956
        %v3958 = vpop.f32.mrb[0].mxu0
        %3959 = vmatprep.mubr.bf16.mxu0 0
        %3960 = vmatmul.mubr.bf16.gmra.mrb[0].mxu0 %v3739
        %v3961 = vpop.f32.mrb[0].mxu0
        %v3962 = vadd.f32 0.0, %v3961
        %v3963 = vpop.f32.mrb[0].mxu0
        %v3964 = vpop.f32.mrb[0].mxu0
        %v3965 = vadd.f32 0.0, %v3964
        %v3966 = vpop.f32.mrb[0].mxu0
        %3967 = vmatprep.mubr.bf16.mxu0 0
        %3968 = vmatmul.mubr.bf16.gmra.mrb[0].mxu0 %v3740
        %v3969 = vpop.f32.mrb[0].mxu0
        %v3970 = vadd.f32 0.0, %v3969
        %v3971 = vpop.f32.mrb[0].mxu0
        %v3972 = vpop.f32.mrb[0].mxu0
        %v3973 = vadd.f32 0.0, %v3972
        %v3974 = vpop.f32.mrb[0].mxu0
        %3975 = vmatprep.mubr.bf16.mxu0 0
        %3976 = vmatmul.mubr.bf16.gmra.mrb[0].mxu0 %v3741
        %v3977 = vpop.f32.mrb[0].mxu0
        %v3978 = vadd.f32 0.0, %v3977
        %v3979 = vpop.f32.mrb[0].mxu0
        %v3980 = vpop.f32.mrb[0].mxu0
        %v3981 = vadd.f32 0.0, %v3980
        %v3982 = vpop.f32.mrb[0].mxu0
        %3983 = vdwg.mxu0
        %v3984 = vadd.f32 %v3652, %v3842
        %v3985 = vadd.f32 %v3653, %v3845
        %v3986 = vadd.f32 %v3654, %v3850
        %v3987 = vadd.f32 %v3655, %v3853
        %v3988 = vadd.f32 %v3656, %v3858
        %v3989 = vadd.f32 %v3657, %v3861
        %v3990 = vadd.f32 %v3658, %v3866
        %v3991 = vadd.f32 %v3659, %v3869
        %v3992 = vadd.f32 %v3660, %v3874
        %v3993 = vadd.f32 %v3661, %v3877
        %v3994 = vadd.f32 %v3662, %v3882
        %v3995 = vadd.f32 %v3663, %v3885
        %v3996 = vadd.f32 %v3664, %v3890
        %v3997 = vadd.f32 %v3665, %v3893
        %v3998 = vadd.f32 %v3666, %v3898
        %v3999 = vadd.f32 %v3667, %v3901
        %v4000 = vadd.f32 %v3668, %v3906
        %v4001 = vadd.f32 %v3669, %v3909
        %v4002 = vadd.f32 %v3670, %v3914
        %v4003 = vadd.f32 %v3671, %v3917
        %v4004 = vadd.f32 %v3672, %v3922
        %v4005 = vadd.f32 %v3673, %v3925
        %v4006 = vadd.f32 %v3674, %v3930
        %v4007 = vadd.f32 %v3675, %v3933
        %v4008 = vadd.f32 %v3676, %v3938
        %v4009 = vadd.f32 %v3677, %v3941
        %v4010 = vadd.f32 %v3678, %v3946
        %v4011 = vadd.f32 %v3679, %v3949
        %v4012 = vadd.f32 %v3680, %v3954
        %v4013 = vadd.f32 %v3681, %v3957
        %v4014 = vadd.f32 %v3682, %v3962
        %v4015 = vadd.f32 %v3683, %v3965
        %v4016 = vadd.f32 %v3684, %v3970
        %v4017 = vadd.f32 %v3685, %v3973
        %v4018 = vadd.f32 %v3686, %v3978
        %v4019 = vadd.f32 %v3687, %v3981
        %v4020 = vld [vmem:[#allocation8] sm:$0x1]
        %v4022 = vlaneseq
        %v4023 = vshrl.u32 %v4022, 7
        %v4024 = vsub.s32 0, %v4023
        %v4025 = vrot.slane %v4020, %v4024
        %v4027 = vadd.f32 %v3984, %v4025
        %v4028 = vadd.f32 %v3985, %v4025
        %v4029 = vadd.f32 %v3986, %v4025
        %v4030 = vadd.f32 %v3987, %v4025
        %v4031 = vadd.f32 %v3988, %v4025
        %v4032 = vadd.f32 %v3989, %v4025
        %v4033 = vadd.f32 %v3990, %v4025
        %v4034 = vadd.f32 %v3991, %v4025
        %v4035 = vadd.f32 %v3992, %v4025
        %v4036 = vadd.f32 %v3993, %v4025
        %v4037 = vadd.f32 %v3994, %v4025
        %v4038 = vadd.f32 %v3995, %v4025
        %v4039 = vadd.f32 %v3996, %v4025
        %v4040 = vadd.f32 %v3997, %v4025
        %v4041 = vadd.f32 %v3998, %v4025
        %v4042 = vadd.f32 %v3999, %v4025
        %v4043 = vadd.f32 %v4000, %v4025
        %v4044 = vadd.f32 %v4001, %v4025
        %v4045 = vadd.f32 %v4002, %v4025
        %v4046 = vadd.f32 %v4003, %v4025
        %v4047 = vadd.f32 %v4004, %v4025
        %v4048 = vadd.f32 %v4005, %v4025
        %v4049 = vadd.f32 %v4006, %v4025
        %v4050 = vadd.f32 %v4007, %v4025
        %v4051 = vadd.f32 %v4008, %v4025
        %v4052 = vadd.f32 %v4009, %v4025
        %v4053 = vadd.f32 %v4010, %v4025
        %v4054 = vadd.f32 %v4011, %v4025
        %v4055 = vadd.f32 %v4012, %v4025
        %v4056 = vadd.f32 %v4013, %v4025
        %v4057 = vadd.f32 %v4014, %v4025
        %v4058 = vadd.f32 %v4015, %v4025
        %v4059 = vadd.f32 %v4016, %v4025
        %v4060 = vadd.f32 %v4017, %v4025
        %v4061 = vadd.f32 %v4018, %v4025
        %v4062 = vadd.f32 %v4019, %v4025
        %v4063 = vsel %vm1069, 1, 0
        %v4064 = vsel %vm1070, 1, 0
        %v4065 = vsel %vm1071, 1, 0
        %v4066 = vsel %vm1072, 1, 0
        %v4067 = vsel %vm1073, 1, 0
        %v4068 = vsel %vm1074, 1, 0
        %v4069 = vsel %vm1075, 1, 0
        %v4070 = vsel %vm1076, 1, 0
        %v4071 = vsel %vm1077, 1, 0
        %v4072 = vsel %vm1078, 1, 0
        %v4073 = vsel %vm1079, 1, 0
        %v4074 = vsel %vm1080, 1, 0
        %v4075 = vsel %vm1081, 1, 0
        %v4076 = vsel %vm1082, 1, 0
        %v4077 = vsel %vm1083, 1, 0
        %v4078 = vsel %vm1084, 1, 0
        %v4079 = vsel %vm1085, 1, 0
        %v4080 = vsel %vm1086, 1, 0
        %v4081 = vsel %vm1087, 1, 0
        %v4082 = vsel %vm1088, 1, 0
        %v4083 = vsel %vm1089, 1, 0
        %v4084 = vsel %vm1090, 1, 0
        %v4085 = vsel %vm1091, 1, 0
        %v4086 = vsel %vm1092, 1, 0
        %v4087 = vsel %vm1093, 1, 0
        %v4088 = vsel %vm1094, 1, 0
        %v4089 = vsel %vm1095, 1, 0
        %v4090 = vsel %vm1096, 1, 0
        %v4091 = vsel %vm1097, 1, 0
        %v4092 = vsel %vm1098, 1, 0
        %v4093 = vsel %vm1099, 1, 0
        %v4094 = vsel %vm1100, 1, 0
        %v4095 = vsel %vm1101, 1, 0
        %v4096 = vsel %vm1102, 1, 0
        %v4097 = vsel %vm1103, 1, 0
        %v4098 = vsel %vm1104, 1, 0
        %vm4099 = vcmp.eq.s32.totalorder %v4063, 1
        %vm4100 = vcmp.eq.s32.totalorder %v4064, 1
        %vm4101 = vcmp.eq.s32.totalorder %v4065, 1
        %vm4102 = vcmp.eq.s32.totalorder %v4066, 1
        %vm4103 = vcmp.eq.s32.totalorder %v4067, 1
        %vm4104 = vcmp.eq.s32.totalorder %v4068, 1
        %vm4105 = vcmp.eq.s32.totalorder %v4069, 1
        %vm4106 = vcmp.eq.s32.totalorder %v4070, 1
        %vm4107 = vcmp.eq.s32.totalorder %v4071, 1
        %vm4108 = vcmp.eq.s32.totalorder %v4072, 1
        %vm4109 = vcmp.eq.s32.totalorder %v4073, 1
        %vm4110 = vcmp.eq.s32.totalorder %v4074, 1
        %vm4111 = vcmp.eq.s32.totalorder %v4075, 1
        %vm4112 = vcmp.eq.s32.totalorder %v4076, 1
        %vm4113 = vcmp.eq.s32.totalorder %v4077, 1
        %vm4114 = vcmp.eq.s32.totalorder %v4078, 1
        %vm4115 = vcmp.eq.s32.totalorder %v4079, 1
        %vm4116 = vcmp.eq.s32.totalorder %v4080, 1
        %vm4117 = vcmp.eq.s32.totalorder %v4081, 1
        %vm4118 = vcmp.eq.s32.totalorder %v4082, 1
        %vm4119 = vcmp.eq.s32.totalorder %v4083, 1
        %vm4120 = vcmp.eq.s32.totalorder %v4084, 1
        %vm4121 = vcmp.eq.s32.totalorder %v4085, 1
        %vm4122 = vcmp.eq.s32.totalorder %v4086, 1
        %vm4123 = vcmp.eq.s32.totalorder %v4087, 1
        %vm4124 = vcmp.eq.s32.totalorder %v4088, 1
        %vm4125 = vcmp.eq.s32.totalorder %v4089, 1
        %vm4126 = vcmp.eq.s32.totalorder %v4090, 1
        %vm4127 = vcmp.eq.s32.totalorder %v4091, 1
        %vm4128 = vcmp.eq.s32.totalorder %v4092, 1
        %vm4129 = vcmp.eq.s32.totalorder %v4093, 1
        %vm4130 = vcmp.eq.s32.totalorder %v4094, 1
        %vm4131 = vcmp.eq.s32.totalorder %v4095, 1
        %vm4132 = vcmp.eq.s32.totalorder %v4096, 1
        %vm4133 = vcmp.eq.s32.totalorder %v4097, 1
        %vm4134 = vcmp.eq.s32.totalorder %v4098, 1
        %v4135 = vsel %vm4099, %v4027, 0.0
        %v4136 = vsel %vm4100, %v4028, 0.0
        %v4137 = vsel %vm4101, %v4029, 0.0
        %v4138 = vsel %vm4102, %v4030, 0.0
        %v4139 = vsel %vm4103, %v4031, 0.0
        %v4140 = vsel %vm4104, %v4032, 0.0
        %v4141 = vsel %vm4105, %v4033, 0.0
        %v4142 = vsel %vm4106, %v4034, 0.0
        %v4143 = vsel %vm4107, %v4035, 0.0
        %v4144 = vsel %vm4108, %v4036, 0.0
        %v4145 = vsel %vm4109, %v4037, 0.0
        %v4146 = vsel %vm4110, %v4038, 0.0
        %v4147 = vsel %vm4111, %v4039, 0.0
        %v4148 = vsel %vm4112, %v4040, 0.0
        %v4149 = vsel %vm4113, %v4041, 0.0
        %v4150 = vsel %vm4114, %v4042, 0.0
        %v4151 = vsel %vm4115, %v4043, 0.0
        %v4152 = vsel %vm4116, %v4044, 0.0
        %v4153 = vsel %vm4117, %v4045, 0.0
        %v4154 = vsel %vm4118, %v4046, 0.0
        %v4155 = vsel %vm4119, %v4047, 0.0
        %v4156 = vsel %vm4120, %v4048, 0.0
        %v4157 = vsel %vm4121, %v4049, 0.0
        %v4158 = vsel %vm4122, %v4050, 0.0
        %v4159 = vsel %vm4123, %v4051, 0.0
        %v4160 = vsel %vm4124, %v4052, 0.0
        %v4161 = vsel %vm4125, %v4053, 0.0
        %v4162 = vsel %vm4126, %v4054, 0.0
        %v4163 = vsel %vm4127, %v4055, 0.0
        %v4164 = vsel %vm4128, %v4056, 0.0
        %v4165 = vsel %vm4129, %v4057, 0.0
        %v4166 = vsel %vm4130, %v4058, 0.0
        %v4167 = vsel %vm4131, %v4059, 0.0
        %v4168 = vsel %vm4132, %v4060, 0.0
        %v4169 = vsel %vm4133, %v4061, 0.0
        %v4170 = vsel %vm4134, %v4062, 0.0
        %v4171 = vadd.f32 %v4135, %v4136
        %v4172 = vadd.f32 %v4171, %v4137
        %v4173 = vadd.f32 %v4172, %v4138
        %v4174 = vadd.f32 %v4173, %v4139
        %v4175 = vadd.f32 %v4174, %v4140
        %v4176 = vadd.f32 %v4175, %v4141
        %v4177 = vadd.f32 %v4176, %v4142
        %v4178 = vadd.f32 %v4177, %v4143
        %v4179 = vadd.f32 %v4178, %v4144
        %v4180 = vadd.f32 %v4179, %v4145
        %v4181 = vadd.f32 %v4180, %v4146
        %v4182 = vadd.f32 %v4181, %v4147
        %v4183 = vadd.f32 %v4182, %v4148
        %v4184 = vadd.f32 %v4183, %v4149
        %v4185 = vadd.f32 %v4184, %v4150
        %v4186 = vadd.f32 %v4185, %v4151
        %v4187 = vadd.f32 %v4186, %v4152
        %v4188 = vadd.f32 %v4187, %v4153
        %v4189 = vadd.f32 %v4188, %v4154
        %v4190 = vadd.f32 %v4189, %v4155
        %v4191 = vadd.f32 %v4190, %v4156
        %v4192 = vadd.f32 %v4191, %v4157
        %v4193 = vadd.f32 %v4192, %v4158
        %v4194 = vadd.f32 %v4193, %v4159
        %v4195 = vadd.f32 %v4194, %v4160
        %v4196 = vadd.f32 %v4195, %v4161
        %v4197 = vadd.f32 %v4196, %v4162
        %v4198 = vadd.f32 %v4197, %v4163
        %v4199 = vadd.f32 %v4198, %v4164
        %v4200 = vadd.f32 %v4199, %v4165
        %v4201 = vadd.f32 %v4200, %v4166
        %v4202 = vadd.f32 %v4201, %v4167
        %v4203 = vadd.f32 %v4202, %v4168
        %v4204 = vadd.f32 %v4203, %v4169
        %v4205 = vadd.f32 %v4204, %v4170
        %v4206 = vrot.slane %v4205, 4
        %v4207 = vadd.f32 %v4205, %v4206
        %v4208 = vrot.slane %v4207, 2
        %v4209 = vadd.f32 %v4207, %v4208
        %v4210 = vrot.slane %v4209, 1
        %v4211 = vadd.f32 %v4209, %v4210
        %v4212 = vmul.f32 %v4135, %v4135
        %v4213 = vmul.f32 %v4136, %v4136
        %v4214 = vmul.f32 %v4137, %v4137
        %v4215 = vmul.f32 %v4138, %v4138
        %v4216 = vmul.f32 %v4139, %v4139
        %v4217 = vmul.f32 %v4140, %v4140
        %v4218 = vmul.f32 %v4141, %v4141
        %v4219 = vmul.f32 %v4142, %v4142
        %v4220 = vmul.f32 %v4143, %v4143
        %v4221 = vmul.f32 %v4144, %v4144
        %v4222 = vmul.f32 %v4145, %v4145
        %v4223 = vmul.f32 %v4146, %v4146
        %v4224 = vmul.f32 %v4147, %v4147
        %v4225 = vmul.f32 %v4148, %v4148
        %v4226 = vmul.f32 %v4149, %v4149
        %v4227 = vmul.f32 %v4150, %v4150
        %v4228 = vmul.f32 %v4151, %v4151
        %v4229 = vmul.f32 %v4152, %v4152
        %v4230 = vmul.f32 %v4153, %v4153
        %v4231 = vmul.f32 %v4154, %v4154
        %v4232 = vmul.f32 %v4155, %v4155
        %v4233 = vmul.f32 %v4156, %v4156
        %v4234 = vmul.f32 %v4157, %v4157
        %v4235 = vmul.f32 %v4158, %v4158
        %v4236 = vmul.f32 %v4159, %v4159
        %v4237 = vmul.f32 %v4160, %v4160
        %v4238 = vmul.f32 %v4161, %v4161
        %v4239 = vmul.f32 %v4162, %v4162
        %v4240 = vmul.f32 %v4163, %v4163
        %v4241 = vmul.f32 %v4164, %v4164
        %v4242 = vmul.f32 %v4165, %v4165
        %v4243 = vmul.f32 %v4166, %v4166
        %v4244 = vmul.f32 %v4167, %v4167
        %v4245 = vmul.f32 %v4168, %v4168
        %v4246 = vmul.f32 %v4169, %v4169
        %v4247 = vmul.f32 %v4170, %v4170
        %v4248 = vadd.f32 %v4212, %v4213
        %v4249 = vadd.f32 %v4248, %v4214
        %v4250 = vadd.f32 %v4249, %v4215
        %v4251 = vadd.f32 %v4250, %v4216
        %v4252 = vadd.f32 %v4251, %v4217
        %v4253 = vadd.f32 %v4252, %v4218
        %v4254 = vadd.f32 %v4253, %v4219
        %v4255 = vadd.f32 %v4254, %v4220
        %v4256 = vadd.f32 %v4255, %v4221
        %v4257 = vadd.f32 %v4256, %v4222
        %v4258 = vadd.f32 %v4257, %v4223
        %v4259 = vadd.f32 %v4258, %v4224
        %v4260 = vadd.f32 %v4259, %v4225
        %v4261 = vadd.f32 %v4260, %v4226
        %v4262 = vadd.f32 %v4261, %v4227
        %v4263 = vadd.f32 %v4262, %v4228
        %v4264 = vadd.f32 %v4263, %v4229
        %v4265 = vadd.f32 %v4264, %v4230
        %v4266 = vadd.f32 %v4265, %v4231
        %v4267 = vadd.f32 %v4266, %v4232
        %v4268 = vadd.f32 %v4267, %v4233
        %v4269 = vadd.f32 %v4268, %v4234
        %v4270 = vadd.f32 %v4269, %v4235
        %v4271 = vadd.f32 %v4270, %v4236
        %v4272 = vadd.f32 %v4271, %v4237
        %v4273 = vadd.f32 %v4272, %v4238
        %v4274 = vadd.f32 %v4273, %v4239
        %v4275 = vadd.f32 %v4274, %v4240
        %v4276 = vadd.f32 %v4275, %v4241
        %v4277 = vadd.f32 %v4276, %v4242
        %v4278 = vadd.f32 %v4277, %v4243
        %v4279 = vadd.f32 %v4278, %v4244
        %v4280 = vadd.f32 %v4279, %v4245
        %v4281 = vadd.f32 %v4280, %v4246
        %v4282 = vadd.f32 %v4281, %v4247
        %v4283 = vrot.slane %v4282, 4
        %v4284 = vadd.f32 %v4282, %v4283
        %v4285 = vrot.slane %v4284, 2
        %v4286 = vadd.f32 %v4284, %v4285
        %v4287 = vrot.slane %v4286, 1
        %v4288 = vadd.f32 %v4286, %v4287
        %v4289 = vmul.f32 %v4211, 0.00390625
        %v4290 = vmul.f32 %v4288, 0.00390625
        %v4291 = vmul.f32 %v4289, %v4289
        %v4292 = vsub.f32 %v4290, %v4291
        %v4293 = vmax.f32 %v4292, 0.0
        %v4294 = vadd.f32 %v4293, 1e-05
        %v4295 = vrsqrt.pop %v4294
        %v4296 = vld [vmem:[#allocation9] sm:$0x1]
        %v4297 = vmul.f32 %v4295, %v4296
        %v4298 = vsub.f32 %v4027, %v4289
        %v4299 = vsub.f32 %v4028, %v4289
        %v4300 = vsub.f32 %v4029, %v4289
        %v4301 = vsub.f32 %v4030, %v4289
        %v4302 = vsub.f32 %v4031, %v4289
        %v4303 = vsub.f32 %v4032, %v4289
        %v4304 = vsub.f32 %v4033, %v4289
        %v4305 = vsub.f32 %v4034, %v4289
        %v4306 = vsub.f32 %v4035, %v4289
        %v4307 = vsub.f32 %v4036, %v4289
        %v4308 = vsub.f32 %v4037, %v4289
        %v4309 = vsub.f32 %v4038, %v4289
        %v4310 = vsub.f32 %v4039, %v4289
        %v4311 = vsub.f32 %v4040, %v4289
        %v4312 = vsub.f32 %v4041, %v4289
        %v4313 = vsub.f32 %v4042, %v4289
        %v4314 = vsub.f32 %v4043, %v4289
        %v4315 = vsub.f32 %v4044, %v4289
        %v4316 = vsub.f32 %v4045, %v4289
        %v4317 = vsub.f32 %v4046, %v4289
        %v4318 = vsub.f32 %v4047, %v4289
        %v4319 = vsub.f32 %v4048, %v4289
        %v4320 = vsub.f32 %v4049, %v4289
        %v4321 = vsub.f32 %v4050, %v4289
        %v4322 = vsub.f32 %v4051, %v4289
        %v4323 = vsub.f32 %v4052, %v4289
        %v4324 = vsub.f32 %v4053, %v4289
        %v4325 = vsub.f32 %v4054, %v4289
        %v4326 = vsub.f32 %v4055, %v4289
        %v4327 = vsub.f32 %v4056, %v4289
        %v4328 = vsub.f32 %v4057, %v4289
        %v4329 = vsub.f32 %v4058, %v4289
        %v4330 = vsub.f32 %v4059, %v4289
        %v4331 = vsub.f32 %v4060, %v4289
        %v4332 = vsub.f32 %v4061, %v4289
        %v4333 = vsub.f32 %v4062, %v4289
        %v4334 = vlaneseq
        %v4335 = vshrl.u32 %v4334, 7
        %v4336 = vsub.s32 0, %v4335
        %v4337 = vrot.slane %v4297, %v4336
        %v4338 = vmul.f32 %v4298, %v4337
        %v4339 = vmul.f32 %v4299, %v4337
        %v4340 = vmul.f32 %v4300, %v4337
        %v4341 = vmul.f32 %v4301, %v4337
        %v4342 = vmul.f32 %v4302, %v4337
        %v4343 = vmul.f32 %v4303, %v4337
        %v4344 = vmul.f32 %v4304, %v4337
        %v4345 = vmul.f32 %v4305, %v4337
        %v4346 = vmul.f32 %v4306, %v4337
        %v4347 = vmul.f32 %v4307, %v4337
        %v4348 = vmul.f32 %v4308, %v4337
        %v4349 = vmul.f32 %v4309, %v4337
        %v4350 = vmul.f32 %v4310, %v4337
        %v4351 = vmul.f32 %v4311, %v4337
        %v4352 = vmul.f32 %v4312, %v4337
        %v4353 = vmul.f32 %v4313, %v4337
        %v4354 = vmul.f32 %v4314, %v4337
        %v4355 = vmul.f32 %v4315, %v4337
        %v4356 = vmul.f32 %v4316, %v4337
        %v4357 = vmul.f32 %v4317, %v4337
        %v4358 = vmul.f32 %v4318, %v4337
        %v4359 = vmul.f32 %v4319, %v4337
        %v4360 = vmul.f32 %v4320, %v4337
        %v4361 = vmul.f32 %v4321, %v4337
        %v4362 = vmul.f32 %v4322, %v4337
        %v4363 = vmul.f32 %v4323, %v4337
        %v4364 = vmul.f32 %v4324, %v4337
        %v4365 = vmul.f32 %v4325, %v4337
        %v4366 = vmul.f32 %v4326, %v4337
        %v4367 = vmul.f32 %v4327, %v4337
        %v4368 = vmul.f32 %v4328, %v4337
        %v4369 = vmul.f32 %v4329, %v4337
        %v4370 = vmul.f32 %v4330, %v4337
        %v4371 = vmul.f32 %v4331, %v4337
        %v4372 = vmul.f32 %v4332, %v4337
        %v4373 = vmul.f32 %v4333, %v4337
        %v4374 = vld [vmem:[#allocation11] sm:$0x1]
        %v4376 = vlaneseq
        %v4377 = vshrl.u32 %v4376, 7
        %v4378 = vsub.s32 0, %v4377
        %v4379 = vrot.slane %v4374, %v4378
        %v4381 = vadd.f32 %v4338, %v4379
        %v4382 = vadd.f32 %v4339, %v4379
        %v4383 = vadd.f32 %v4340, %v4379
        %v4384 = vadd.f32 %v4341, %v4379
        %v4385 = vadd.f32 %v4342, %v4379
        %v4386 = vadd.f32 %v4343, %v4379
        %v4387 = vadd.f32 %v4344, %v4379
        %v4388 = vadd.f32 %v4345, %v4379
        %v4389 = vadd.f32 %v4346, %v4379
        %v4390 = vadd.f32 %v4347, %v4379
        %v4391 = vadd.f32 %v4348, %v4379
        %v4392 = vadd.f32 %v4349, %v4379
        %v4393 = vadd.f32 %v4350, %v4379
        %v4394 = vadd.f32 %v4351, %v4379
        %v4395 = vadd.f32 %v4352, %v4379
        %v4396 = vadd.f32 %v4353, %v4379
        %v4397 = vadd.f32 %v4354, %v4379
        %v4398 = vadd.f32 %v4355, %v4379
        %v4399 = vadd.f32 %v4356, %v4379
        %v4400 = vadd.f32 %v4357, %v4379
        %v4401 = vadd.f32 %v4358, %v4379
        %v4402 = vadd.f32 %v4359, %v4379
        %v4403 = vadd.f32 %v4360, %v4379
        %v4404 = vadd.f32 %v4361, %v4379
        %v4405 = vadd.f32 %v4362, %v4379
        %v4406 = vadd.f32 %v4363, %v4379
        %v4407 = vadd.f32 %v4364, %v4379
        %v4408 = vadd.f32 %v4365, %v4379
        %v4409 = vadd.f32 %v4366, %v4379
        %v4410 = vadd.f32 %v4367, %v4379
        %v4411 = vadd.f32 %v4368, %v4379
        %v4412 = vadd.f32 %v4369, %v4379
        %v4413 = vadd.f32 %v4370, %v4379
        %v4414 = vadd.f32 %v4371, %v4379
        %v4415 = vadd.f32 %v4372, %v4379
        %v4416 = vadd.f32 %v4373, %v4379
        %v4417 = vmax.f32 %v4381, 0.0
        %v4418 = vmax.f32 %v4382, 0.0
        %v4419 = vmax.f32 %v4383, 0.0
        %v4420 = vmax.f32 %v4384, 0.0
        %v4421 = vmax.f32 %v4385, 0.0
        %v4422 = vmax.f32 %v4386, 0.0
        %v4423 = vmax.f32 %v4387, 0.0
        %v4424 = vmax.f32 %v4388, 0.0
        %v4425 = vmax.f32 %v4389, 0.0
        %v4426 = vmax.f32 %v4390, 0.0
        %v4427 = vmax.f32 %v4391, 0.0
        %v4428 = vmax.f32 %v4392, 0.0
        %v4429 = vmax.f32 %v4393, 0.0
        %v4430 = vmax.f32 %v4394, 0.0
        %v4431 = vmax.f32 %v4395, 0.0
        %v4432 = vmax.f32 %v4396, 0.0
        %v4433 = vmax.f32 %v4397, 0.0
        %v4434 = vmax.f32 %v4398, 0.0
        %v4435 = vmax.f32 %v4399, 0.0
        %v4436 = vmax.f32 %v4400, 0.0
        %v4437 = vmax.f32 %v4401, 0.0
        %v4438 = vmax.f32 %v4402, 0.0
        %v4439 = vmax.f32 %v4403, 0.0
        %v4440 = vmax.f32 %v4404, 0.0
        %v4441 = vmax.f32 %v4405, 0.0
        %v4442 = vmax.f32 %v4406, 0.0
        %v4443 = vmax.f32 %v4407, 0.0
        %v4444 = vmax.f32 %v4408, 0.0
        %v4445 = vmax.f32 %v4409, 0.0
        %v4446 = vmax.f32 %v4410, 0.0
        %v4447 = vmax.f32 %v4411, 0.0
        %v4448 = vmax.f32 %v4412, 0.0
        %v4449 = vmax.f32 %v4413, 0.0
        %v4450 = vmax.f32 %v4414, 0.0
        %v4451 = vmax.f32 %v4415, 0.0
        %v4452 = vmax.f32 %v4416, 0.0
        %4453 = vst [vmem:[#allocation2 + $0x13] sm:$0xff] %v4417
        %4454 = vst [vmem:[#allocation2 + $0x1b] sm:$0xff] %v4418
        %4455 = vst [vmem:[#allocation2 + $0x23] sm:$0xff] %v4419
        %4456 = vst [vmem:[#allocation2 + $0x2b] sm:$0xff] %v4420
        %4457 = vst [vmem:[#allocation2 + $0x33] sm:$0xff] %v4421
        %4458 = vst [vmem:[#allocation2 + $0x3b] sm:$0xff] %v4422
        %4459 = vst [vmem:[#allocation2 + $0x43] sm:$0xff] %v4423
        %4460 = vst [vmem:[#allocation2 + $0x4b] sm:$0xff] %v4424
        %4461 = vst [vmem:[#allocation2 + $0x53] sm:$0xff] %v4425
        %4462 = vst [vmem:[#allocation2 + $0x5b] sm:$0xff] %v4426
        %4463 = vst [vmem:[#allocation2 + $0x63] sm:$0xff] %v4427
        %4464 = vst [vmem:[#allocation2 + $0x6b] sm:$0xff] %v4428
        %4465 = vst [vmem:[#allocation2 + $0x73] sm:$0xff] %v4429
        %4466 = vst [vmem:[#allocation2 + $0x7b] sm:$0xff] %v4430
        %4467 = vst [vmem:[#allocation2 + $0x83] sm:$0xff] %v4431
        %4468 = vst [vmem:[#allocation2 + $0x8b] sm:$0xff] %v4432
        %4469 = vst [vmem:[#allocation2 + $0x93] sm:$0xff] %v4433
        %4470 = vst [vmem:[#allocation2 + $0x9b] sm:$0xff] %v4434
        %4471 = vst [vmem:[#allocation2 + $0xa3] sm:$0xff] %v4435
        %4472 = vst [vmem:[#allocation2 + $0xab] sm:$0xff] %v4436
        %4473 = vst [vmem:[#allocation2 + $0xb3] sm:$0xff] %v4437
        %4474 = vst [vmem:[#allocation2 + $0xbb] sm:$0xff] %v4438
        %4475 = vst [vmem:[#allocation2 + $0xc3] sm:$0xff] %v4439
        %4476 = vst [vmem:[#allocation2 + $0xcb] sm:$0xff] %v4440
        %4477 = vst [vmem:[#allocation2 + $0xd3] sm:$0xff] %v4441
        %4478 = vst [vmem:[#allocation2 + $0xdb] sm:$0xff] %v4442
        %4479 = vst [vmem:[#allocation2 + $0xe3] sm:$0xff] %v4443
        %4480 = vst [vmem:[#allocation2 + $0xeb] sm:$0xff] %v4444
        %4481 = vst [vmem:[#allocation2 + $0xf3] sm:$0xff] %v4445
        %4482 = vst [vmem:[#allocation2 + $0xfb] sm:$0xff] %v4446
        %4483 = vst [vmem:[#allocation2 + $0x103] sm:$0xff] %v4447
        %4484 = vst [vmem:[#allocation2 + $0x10b] sm:$0xff] %v4448
        %4485 = vst [vmem:[#allocation2 + $0x113] sm:$0xff] %v4449
        %4486 = vst [vmem:[#allocation2 + $0x11b] sm:$0xff] %v4450
        %4487 = vst [vmem:[#allocation2 + $0x123] sm:$0xff] %v4451
        %4488 = vst [vmem:[#allocation2 + $0x12b] sm:$0xff] %v4452
        loop: start=1, step=1, limit=17
        $region93: #{tpu_custom_call.1} parent=55 // loop_pre_header
          _
        $region94: #{tpu_custom_call.1} parent=55 // loop_header
          %s4490 = sphi 1, %s4494
          %p4491 = scmp.ge.s32.totalorder %s4490, 17
        $region95: #{tpu_custom_call.1} parent=55 // loop_header_branch
          %4493 = sbr.rel (%p4491) target = $region99
        $region96: #{tpu_custom_call.1} parent=55 // loop_body
          %s4495 = smul.u32 %s4490, 18
          %s4496 = sadd.s32 %s4495, 2
          %s4497 = scalar_lea.vmem [#allocation2], %s4496
          %v4498 = vld [vmem:[%s4497] sm:$0x1]
          %s4499 = scalar_lea.vmem [#allocation2], %s4495
          %4500 = vst [vmem:[%s4499] sm:$0x1] %v4498
          %s4501 = sadd.s32 %s4495, 15
          %s4502 = scalar_lea.vmem [#allocation2], %s4501
          %v4503 = vld [vmem:[%s4502] sm:$0x1]
          %s4504 = sadd.s32 %s4495, 17
          %s4505 = scalar_lea.vmem [#allocation2], %s4504
          %4506 = vst [vmem:[%s4505] sm:$0x1] %v4503
        $region97: #{tpu_custom_call.1} parent=55 // loop_footer
          %s4494 = sadd.s32 1, %s4490
        $region98: #{tpu_custom_call.1} parent=55 // loop_footer_branch
          %4489 = sbr.rel target = $region94
        $region99: #{tpu_custom_call.1} parent=55 // loop_exit
          _
        %v4507 = vld [vmem:[#allocation2 + $0x24] sm:$0xff]
        %v4508 = vld [vmem:[#allocation2 + $0x2c] sm:$0xff]
        %v4509 = vld [vmem:[#allocation2 + $0x34] sm:$0x3]
        %4510 = vst [vmem:[#allocation2] sm:$0xff] %v4507
        %4511 = vst [vmem:[#allocation2 + $0x8] sm:$0xff] %v4508
        %4512 = vst [vmem:[#allocation2 + $0x10] sm:$0x3] %v4509
        %v4513 = vld [vmem:[#allocation2 + $0x10e] sm:$0xff]
        %v4514 = vld [vmem:[#allocation2 + $0x116] sm:$0xff]
        %v4515 = vld [vmem:[#allocation2 + $0x11e] sm:$0x3]
        %4516 = vst [vmem:[#allocation2 + $0x132] sm:$0xff] %v4513
        %4517 = vst [vmem:[#allocation2 + $0x13a] sm:$0xff] %v4514
        %4518 = vst [vmem:[#allocation2 + $0x142] sm:$0x3] %v4515
        %4519 = vst [vmem:[#allocation2 + $0x144] sm:$0xff] 0.0
        %4520 = vst [vmem:[#allocation2 + $0x14c] sm:$0xff] 0.0
        %4521 = vst [vmem:[#allocation2 + $0x154] sm:$0x3] 0.0
        %v4522 = vld [vmem:[#allocation2] sm:$0xff]
        %v4523 = vld [vmem:[#allocation2 + $0x8] sm:$0xff]
        %v4524 = vld [vmem:[#allocation2 + $0x10] sm:$0xff]
        %v4525 = vld [vmem:[#allocation2 + $0x18] sm:$0xff]
        %v4526 = vld [vmem:[#allocation2 + $0x20] sm:$0xff]
        %v4527 = vld [vmem:[#allocation2 + $0x28] sm:$0xff]
        %v4528 = vld [vmem:[#allocation2 + $0x30] sm:$0xff]
        %v4529 = vld [vmem:[#allocation2 + $0x38] sm:$0xff]
        %v4530 = vld [vmem:[#allocation2 + $0x40] sm:$0xff]
        %v4531 = vld [vmem:[#allocation2 + $0x48] sm:$0xff]
        %v4532 = vld [vmem:[#allocation2 + $0x50] sm:$0xff]
        %v4533 = vld [vmem:[#allocation2 + $0x58] sm:$0xff]
        %v4534 = vld [vmem:[#allocation2 + $0x60] sm:$0xff]
        %v4535 = vld [vmem:[#allocation2 + $0x68] sm:$0xff]
        %v4536 = vld [vmem:[#allocation2 + $0x70] sm:$0xff]
        %v4537 = vld [vmem:[#allocation2 + $0x78] sm:$0xff]
        %v4538 = vld [vmem:[#allocation2 + $0x80] sm:$0xff]
        %v4539 = vld [vmem:[#allocation2 + $0x88] sm:$0xff]
        %v4540 = vld [vmem:[#allocation2 + $0x90] sm:$0xff]
        %v4541 = vld [vmem:[#allocation2 + $0x98] sm:$0xff]
        %v4542 = vld [vmem:[#allocation2 + $0xa0] sm:$0xff]
        %v4543 = vld [vmem:[#allocation2 + $0xa8] sm:$0xff]
        %v4544 = vld [vmem:[#allocation2 + $0xb0] sm:$0xff]
        %v4545 = vld [vmem:[#allocation2 + $0xb8] sm:$0xff]
        %v4546 = vld [vmem:[#allocation2 + $0xc0] sm:$0xff]
        %v4547 = vld [vmem:[#allocation2 + $0xc8] sm:$0xff]
        %v4548 = vld [vmem:[#allocation2 + $0xd0] sm:$0xff]
        %v4549 = vld [vmem:[#allocation2 + $0xd8] sm:$0xff]
        %v4550 = vld [vmem:[#allocation2 + $0xe0] sm:$0xff]
        %v4551 = vld [vmem:[#allocation2 + $0xe8] sm:$0xff]
        %v4552 = vld [vmem:[#allocation2 + $0xf0] sm:$0xff]
        %v4553 = vld [vmem:[#allocation2 + $0xf8] sm:$0xff]
        %v4554 = vld [vmem:[#allocation2 + $0x100] sm:$0xff]
        %v4555 = vld [vmem:[#allocation2 + $0x108] sm:$0xff]
        %v4556 = vld [vmem:[#allocation2 + $0x110] sm:$0xff]
        %v4557 = vld [vmem:[#allocation2 + $0x118] sm:$0xff]
        %v4558 = vpack.c.bf16 %v4523, %v4522
        %v4559 = vpack.c.bf16 %v4525, %v4524
        %v4560 = vpack.c.bf16 %v4527, %v4526
        %v4561 = vpack.c.bf16 %v4529, %v4528
        %v4562 = vpack.c.bf16 %v4531, %v4530
        %v4563 = vpack.c.bf16 %v4533, %v4532
        %v4564 = vpack.c.bf16 %v4535, %v4534
        %v4565 = vpack.c.bf16 %v4537, %v4536
        %v4566 = vpack.c.bf16 %v4539, %v4538
        %v4567 = vpack.c.bf16 %v4541, %v4540
        %v4568 = vpack.c.bf16 %v4543, %v4542
        %v4569 = vpack.c.bf16 %v4545, %v4544
        %v4570 = vpack.c.bf16 %v4547, %v4546
        %v4571 = vpack.c.bf16 %v4549, %v4548
        %v4572 = vpack.c.bf16 %v4551, %v4550
        %v4573 = vpack.c.bf16 %v4553, %v4552
        %v4574 = vpack.c.bf16 %v4555, %v4554
        %v4575 = vpack.c.bf16 %v4557, %v4556
        %v4576 = vld [vmem:[#allocation12] sm:$0xf]
        %v4577 = vld [vmem:[#allocation12 + $0x4] sm:$0xf]
        %v4578 = vld [vmem:[#allocation12 + $0x8] sm:$0xf]
        %v4579 = vld [vmem:[#allocation12 + $0xc] sm:$0xf]
        %v4580 = vld [vmem:[#allocation12 + $0x10] sm:$0xf]
        %v4581 = vld [vmem:[#allocation12 + $0x14] sm:$0xf]
        %v4582 = vld [vmem:[#allocation12 + $0x18] sm:$0xf]
        %v4583 = vld [vmem:[#allocation12 + $0x1c] sm:$0xf]
        %v4584 = vld [vmem:[#allocation12 + $0x20] sm:$0xf]
        %v4585 = vld [vmem:[#allocation12 + $0x24] sm:$0xf]
        %v4586 = vld [vmem:[#allocation12 + $0x28] sm:$0xf]
        %v4587 = vld [vmem:[#allocation12 + $0x2c] sm:$0xf]
        %v4588 = vld [vmem:[#allocation12 + $0x30] sm:$0xf]
        %v4589 = vld [vmem:[#allocation12 + $0x34] sm:$0xf]
        %v4590 = vld [vmem:[#allocation12 + $0x38] sm:$0xf]
        %v4591 = vld [vmem:[#allocation12 + $0x3c] sm:$0xf]
        %v4592 = vld [vmem:[#allocation2 + $0x1] sm:$0xff]
        %v4593 = vld [vmem:[#allocation2 + $0x9] sm:$0xff]
        %v4594 = vld [vmem:[#allocation2 + $0x11] sm:$0xff]
        %v4595 = vld [vmem:[#allocation2 + $0x19] sm:$0xff]
        %v4596 = vld [vmem:[#allocation2 + $0x21] sm:$0xff]
        %v4597 = vld [vmem:[#allocation2 + $0x29] sm:$0xff]
        %v4598 = vld [vmem:[#allocation2 + $0x31] sm:$0xff]
        %v4599 = vld [vmem:[#allocation2 + $0x39] sm:$0xff]
        %v4600 = vld [vmem:[#allocation2 + $0x41] sm:$0xff]
        %v4601 = vld [vmem:[#allocation2 + $0x49] sm:$0xff]
        %v4602 = vld [vmem:[#allocation2 + $0x51] sm:$0xff]
        %v4603 = vld [vmem:[#allocation2 + $0x59] sm:$0xff]
        %v4604 = vld [vmem:[#allocation2 + $0x61] sm:$0xff]
        %v4605 = vld [vmem:[#allocation2 + $0x69] sm:$0xff]
        %v4606 = vld [vmem:[#allocation2 + $0x71] sm:$0xff]
        %v4607 = vld [vmem:[#allocation2 + $0x79] sm:$0xff]
        %v4608 = vld [vmem:[#allocation2 + $0x81] sm:$0xff]
        %v4609 = vld [vmem:[#allocation2 + $0x89] sm:$0xff]
        %v4610 = vld [vmem:[#allocation2 + $0x91] sm:$0xff]
        %v4611 = vld [vmem:[#allocation2 + $0x99] sm:$0xff]
        %v4612 = vld [vmem:[#allocation2 + $0xa1] sm:$0xff]
        %v4613 = vld [vmem:[#allocation2 + $0xa9] sm:$0xff]
        %v4614 = vld [vmem:[#allocation2 + $0xb1] sm:$0xff]
        %v4615 = vld [vmem:[#allocation2 + $0xb9] sm:$0xff]
        %v4616 = vld [vmem:[#allocation2 + $0xc1] sm:$0xff]
        %v4617 = vld [vmem:[#allocation2 + $0xc9] sm:$0xff]
        %v4618 = vld [vmem:[#allocation2 + $0xd1] sm:$0xff]
        %v4619 = vld [vmem:[#allocation2 + $0xd9] sm:$0xff]
        %v4620 = vld [vmem:[#allocation2 + $0xe1] sm:$0xff]
        %v4621 = vld [vmem:[#allocation2 + $0xe9] sm:$0xff]
        %v4622 = vld [vmem:[#allocation2 + $0xf1] sm:$0xff]
        %v4623 = vld [vmem:[#allocation2 + $0xf9] sm:$0xff]
        %v4624 = vld [vmem:[#allocation2 + $0x101] sm:$0xff]
        %v4625 = vld [vmem:[#allocation2 + $0x109] sm:$0xff]
        %v4626 = vld [vmem:[#allocation2 + $0x111] sm:$0xff]
        %v4627 = vld [vmem:[#allocation2 + $0x119] sm:$0xff]
        %v4628 = vpack.c.bf16 %v4593, %v4592
        %v4629 = vpack.c.bf16 %v4595, %v4594
        %v4630 = vpack.c.bf16 %v4597, %v4596
        %v4631 = vpack.c.bf16 %v4599, %v4598
        %v4632 = vpack.c.bf16 %v4601, %v4600
        %v4633 = vpack.c.bf16 %v4603, %v4602
        %v4634 = vpack.c.bf16 %v4605, %v4604
        %v4635 = vpack.c.bf16 %v4607, %v4606
        %v4636 = vpack.c.bf16 %v4609, %v4608
        %v4637 = vpack.c.bf16 %v4611, %v4610
        %v4638 = vpack.c.bf16 %v4613, %v4612
        %v4639 = vpack.c.bf16 %v4615, %v4614
        %v4640 = vpack.c.bf16 %v4617, %v4616
        %v4641 = vpack.c.bf16 %v4619, %v4618
        %v4642 = vpack.c.bf16 %v4621, %v4620
        %v4643 = vpack.c.bf16 %v4623, %v4622
        %v4644 = vpack.c.bf16 %v4625, %v4624
        %v4645 = vpack.c.bf16 %v4627, %v4626
        %s4646 = scalar_lea.vmem [#allocation12], 64
        %v4647 = vld [vmem:[%s4646] sm:$0xf]
        %v4648 = vld [vmem:[%s4646 + $0x4] sm:$0xf]
        %v4649 = vld [vmem:[%s4646 + $0x8] sm:$0xf]
        %v4650 = vld [vmem:[%s4646 + $0xc] sm:$0xf]
        %v4651 = vld [vmem:[%s4646 + $0x10] sm:$0xf]
        %v4652 = vld [vmem:[%s4646 + $0x14] sm:$0xf]
        %v4653 = vld [vmem:[%s4646 + $0x18] sm:$0xf]
        %v4654 = vld [vmem:[%s4646 + $0x1c] sm:$0xf]
        %v4655 = vld [vmem:[%s4646 + $0x20] sm:$0xf]
        %v4656 = vld [vmem:[%s4646 + $0x24] sm:$0xf]
        %v4657 = vld [vmem:[%s4646 + $0x28] sm:$0xf]
        %v4658 = vld [vmem:[%s4646 + $0x2c] sm:$0xf]
        %v4659 = vld [vmem:[%s4646 + $0x30] sm:$0xf]
        %v4660 = vld [vmem:[%s4646 + $0x34] sm:$0xf]
        %v4661 = vld [vmem:[%s4646 + $0x38] sm:$0xf]
        %v4662 = vld [vmem:[%s4646 + $0x3c] sm:$0xf]
        %v4679 = vunpack.c.l.b16 %v4647
        %v4680 = vunpack.c.l.b16 %v4648
        %v4681 = vunpack.c.l.b16 %v4649
        %v4682 = vunpack.c.l.b16 %v4650
        %v4683 = vunpack.c.l.b16 %v4651
        %v4684 = vunpack.c.l.b16 %v4652
        %v4685 = vunpack.c.l.b16 %v4653
        %v4686 = vunpack.c.l.b16 %v4654
        %v4687 = vunpack.c.l.b16 %v4655
        %v4688 = vunpack.c.l.b16 %v4656
        %v4689 = vunpack.c.l.b16 %v4657
        %v4690 = vunpack.c.l.b16 %v4658
        %v4691 = vunpack.c.l.b16 %v4659
        %v4692 = vunpack.c.l.b16 %v4660
        %v4693 = vunpack.c.l.b16 %v4661
        %v4694 = vunpack.c.l.b16 %v4662
        %v4695 = vpack.c.b16 %v4680, %v4679
        %v4696 = vpack.c.b16 %v4682, %v4681
        %v4697 = vpack.c.b16 %v4684, %v4683
        %v4698 = vpack.c.b16 %v4686, %v4685
        %v4699 = vpack.c.b16 %v4688, %v4687
        %v4700 = vpack.c.b16 %v4690, %v4689
        %v4701 = vpack.c.b16 %v4692, %v4691
        %v4702 = vpack.c.b16 %v4694, %v4693
        %4711 = vmatprep.subr.bf16.mxu0 0
        %4712 = vmatpush1.bf16.msra.mxu0 %v4695
        %4713 = vmatprep.subr.bf16.mxu0 0
        %4714 = vmatpush1.bf16.msra.mxu0 %v4696
        %4715 = vmatprep.subr.bf16.mxu0 0
        %4716 = vmatpush1.bf16.msra.mxu0 %v4697
        %4717 = vmatprep.subr.bf16.mxu0 0
        %4718 = vmatpush1.bf16.msra.mxu0 %v4698
        %4719 = vmatprep.subr.bf16.mxu0 0
        %4720 = vmatpush1.bf16.msra.mxu0 %v4699
        %4721 = vmatprep.subr.bf16.mxu0 0
        %4722 = vmatpush1.bf16.msra.mxu0 %v4700
        %4723 = vmatprep.subr.bf16.mxu0 0
        %4724 = vmatpush1.bf16.msra.mxu0 %v4701
        %4725 = vmatprep.subr.bf16.mxu0 0
        %4726 = vmatpush1.bf16.msra.mxu0 %v4702
        %4727 = vmatprep.subr.bf16.mxu0 0
        %4728 = vmatpush1.bf16.msra.mxu0 0
        %4729 = vmatprep.subr.bf16.mxu0 0
        %4730 = vmatpush1.bf16.msra.mxu0 0
        %4731 = vmatprep.subr.bf16.mxu0 0
        %4732 = vmatpush1.bf16.msra.mxu0 0
        %4733 = vmatprep.subr.bf16.mxu0 0
        %4734 = vmatpush1.bf16.msra.mxu0 0
        %4735 = vmatprep.subr.bf16.mxu0 0
        %4736 = vmatpush1.bf16.msra.mxu0 0
        %4737 = vmatprep.subr.bf16.mxu0 0
        %4738 = vmatpush1.bf16.msra.mxu0 0
        %4739 = vmatprep.subr.bf16.mxu0 0
        %4740 = vmatpush1.bf16.msra.mxu0 0
        %4741 = vmatprep.subr.bf16.mxu0 0
        %4742 = vmatpush1.bf16.msra.mxu0 0
        %4743 = vmatprep.mubr.bf16.mxu0 0
        %4744 = vmatmul.mubr.bf16.gmra.mrb[0].mxu0 %v4628
        %v4745 = vpop.f32.mrb[0].mxu0
        %v4746 = vadd.f32 0.0, %v4745
        %v4747 = vpop.f32.mrb[0].mxu0
        %v4748 = vpop.f32.mrb[0].mxu0
        %v4749 = vadd.f32 0.0, %v4748
        %v4750 = vpop.f32.mrb[0].mxu0
        %4751 = vmatprep.mubr.bf16.mxu0 0
        %4752 = vmatmul.mubr.bf16.gmra.mrb[0].mxu0 %v4629
        %v4753 = vpop.f32.mrb[0].mxu0
        %v4754 = vadd.f32 0.0, %v4753
        %v4755 = vpop.f32.mrb[0].mxu0
        %v4756 = vpop.f32.mrb[0].mxu0
        %v4757 = vadd.f32 0.0, %v4756
        %v4758 = vpop.f32.mrb[0].mxu0
        %4759 = vmatprep.mubr.bf16.mxu0 0
        %4760 = vmatmul.mubr.bf16.gmra.mrb[0].mxu0 %v4630
        %v4761 = vpop.f32.mrb[0].mxu0
        %v4762 = vadd.f32 0.0, %v4761
        %v4763 = vpop.f32.mrb[0].mxu0
        %v4764 = vpop.f32.mrb[0].mxu0
        %v4765 = vadd.f32 0.0, %v4764
        %v4766 = vpop.f32.mrb[0].mxu0
        %4767 = vmatprep.mubr.bf16.mxu0 0
        %4768 = vmatmul.mubr.bf16.gmra.mrb[0].mxu0 %v4631
        %v4769 = vpop.f32.mrb[0].mxu0
        %v4770 = vadd.f32 0.0, %v4769
        %v4771 = vpop.f32.mrb[0].mxu0
        %v4772 = vpop.f32.mrb[0].mxu0
        %v4773 = vadd.f32 0.0, %v4772
        %v4774 = vpop.f32.mrb[0].mxu0
        %4775 = vmatprep.mubr.bf16.mxu0 0
        %4776 = vmatmul.mubr.bf16.gmra.mrb[0].mxu0 %v4632
        %v4777 = vpop.f32.mrb[0].mxu0
        %v4778 = vadd.f32 0.0, %v4777
        %v4779 = vpop.f32.mrb[0].mxu0
        %v4780 = vpop.f32.mrb[0].mxu0
        %v4781 = vadd.f32 0.0, %v4780
        %v4782 = vpop.f32.mrb[0].mxu0
        %4783 = vmatprep.mubr.bf16.mxu0 0
        %4784 = vmatmul.mubr.bf16.gmra.mrb[0].mxu0 %v4633
        %v4785 = vpop.f32.mrb[0].mxu0
        %v4786 = vadd.f32 0.0, %v4785
        %v4787 = vpop.f32.mrb[0].mxu0
        %v4788 = vpop.f32.mrb[0].mxu0
        %v4789 = vadd.f32 0.0, %v4788
        %v4790 = vpop.f32.mrb[0].mxu0
        %4791 = vmatprep.mubr.bf16.mxu0 0
        %4792 = vmatmul.mubr.bf16.gmra.mrb[0].mxu0 %v4634
        %v4793 = vpop.f32.mrb[0].mxu0
        %v4794 = vadd.f32 0.0, %v4793
        %v4795 = vpop.f32.mrb[0].mxu0
        %v4796 = vpop.f32.mrb[0].mxu0
        %v4797 = vadd.f32 0.0, %v4796
        %v4798 = vpop.f32.mrb[0].mxu0
        %4799 = vmatprep.mubr.bf16.mxu0 0
        %4800 = vmatmul.mubr.bf16.gmra.mrb[0].mxu0 %v4635
        %v4801 = vpop.f32.mrb[0].mxu0
        %v4802 = vadd.f32 0.0, %v4801
        %v4803 = vpop.f32.mrb[0].mxu0
        %v4804 = vpop.f32.mrb[0].mxu0
        %v4805 = vadd.f32 0.0, %v4804
        %v4806 = vpop.f32.mrb[0].mxu0
        %4807 = vmatprep.mubr.bf16.mxu0 0
        %4808 = vmatmul.mubr.bf16.gmra.mrb[0].mxu0 %v4636
        %v4809 = vpop.f32.mrb[0].mxu0
        %v4810 = vadd.f32 0.0, %v4809
        %v4811 = vpop.f32.mrb[0].mxu0
        %v4812 = vpop.f32.mrb[0].mxu0
        %v4813 = vadd.f32 0.0, %v4812
        %v4814 = vpop.f32.mrb[0].mxu0
        %4815 = vmatprep.mubr.bf16.mxu0 0
        %4816 = vmatmul.mubr.bf16.gmra.mrb[0].mxu0 %v4637
        %v4817 = vpop.f32.mrb[0].mxu0
        %v4818 = vadd.f32 0.0, %v4817
        %v4819 = vpop.f32.mrb[0].mxu0
        %v4820 = vpop.f32.mrb[0].mxu0
        %v4821 = vadd.f32 0.0, %v4820
        %v4822 = vpop.f32.mrb[0].mxu0
        %4823 = vmatprep.mubr.bf16.mxu0 0
        %4824 = vmatmul.mubr.bf16.gmra.mrb[0].mxu0 %v4638
        %v4825 = vpop.f32.mrb[0].mxu0
        %v4826 = vadd.f32 0.0, %v4825
        %v4827 = vpop.f32.mrb[0].mxu0
        %v4828 = vpop.f32.mrb[0].mxu0
        %v4829 = vadd.f32 0.0, %v4828
        %v4830 = vpop.f32.mrb[0].mxu0
        %4831 = vmatprep.mubr.bf16.mxu0 0
        %4832 = vmatmul.mubr.bf16.gmra.mrb[0].mxu0 %v4639
        %v4833 = vpop.f32.mrb[0].mxu0
        %v4834 = vadd.f32 0.0, %v4833
        %v4835 = vpop.f32.mrb[0].mxu0
        %v4836 = vpop.f32.mrb[0].mxu0
        %v4837 = vadd.f32 0.0, %v4836
        %v4838 = vpop.f32.mrb[0].mxu0
        %4839 = vmatprep.mubr.bf16.mxu0 0
        %4840 = vmatmul.mubr.bf16.gmra.mrb[0].mxu0 %v4640
        %v4841 = vpop.f32.mrb[0].mxu0
        %v4842 = vadd.f32 0.0, %v4841
        %v4843 = vpop.f32.mrb[0].mxu0
        %v4844 = vpop.f32.mrb[0].mxu0
        %v4845 = vadd.f32 0.0, %v4844
        %v4846 = vpop.f32.mrb[0].mxu0
        %4847 = vmatprep.mubr.bf16.mxu0 0
        %4848 = vmatmul.mubr.bf16.gmra.mrb[0].mxu0 %v4641
        %v4849 = vpop.f32.mrb[0].mxu0
        %v4850 = vadd.f32 0.0, %v4849
        %v4851 = vpop.f32.mrb[0].mxu0
        %v4852 = vpop.f32.mrb[0].mxu0
        %v4853 = vadd.f32 0.0, %v4852
        %v4854 = vpop.f32.mrb[0].mxu0
        %4855 = vmatprep.mubr.bf16.mxu0 0
        %4856 = vmatmul.mubr.bf16.gmra.mrb[0].mxu0 %v4642
        %v4857 = vpop.f32.mrb[0].mxu0
        %v4858 = vadd.f32 0.0, %v4857
        %v4859 = vpop.f32.mrb[0].mxu0
        %v4860 = vpop.f32.mrb[0].mxu0
        %v4861 = vadd.f32 0.0, %v4860
        %v4862 = vpop.f32.mrb[0].mxu0
        %4863 = vmatprep.mubr.bf16.mxu0 0
        %4864 = vmatmul.mubr.bf16.gmra.mrb[0].mxu0 %v4643
        %v4865 = vpop.f32.mrb[0].mxu0
        %v4866 = vadd.f32 0.0, %v4865
        %v4867 = vpop.f32.mrb[0].mxu0
        %v4868 = vpop.f32.mrb[0].mxu0
        %v4869 = vadd.f32 0.0, %v4868
        %v4870 = vpop.f32.mrb[0].mxu0
        %4871 = vmatprep.mubr.bf16.mxu0 0
        %4872 = vmatmul.mubr.bf16.gmra.mrb[0].mxu0 %v4644
        %v4873 = vpop.f32.mrb[0].mxu0
        %v4874 = vadd.f32 0.0, %v4873
        %v4875 = vpop.f32.mrb[0].mxu0
        %v4876 = vpop.f32.mrb[0].mxu0
        %v4877 = vadd.f32 0.0, %v4876
        %v4878 = vpop.f32.mrb[0].mxu0
        %4879 = vmatprep.mubr.bf16.mxu0 0
        %4880 = vmatmul.mubr.bf16.gmra.mrb[0].mxu0 %v4645
        %v4881 = vpop.f32.mrb[0].mxu0
        %v4882 = vadd.f32 0.0, %v4881
        %v4883 = vpop.f32.mrb[0].mxu0
        %v4884 = vpop.f32.mrb[0].mxu0
        %v4885 = vadd.f32 0.0, %v4884
        %v4886 = vpop.f32.mrb[0].mxu0
        %4887 = vdwg.mxu0
        %v4904 = vunpack.c.l.b16 %v4576
        %v4905 = vunpack.c.l.b16 %v4577
        %v4906 = vunpack.c.l.b16 %v4578
        %v4907 = vunpack.c.l.b16 %v4579
        %v4908 = vunpack.c.l.b16 %v4580
        %v4909 = vunpack.c.l.b16 %v4581
        %v4910 = vunpack.c.l.b16 %v4582
        %v4911 = vunpack.c.l.b16 %v4583
        %v4912 = vunpack.c.l.b16 %v4584
        %v4913 = vunpack.c.l.b16 %v4585
        %v4914 = vunpack.c.l.b16 %v4586
        %v4915 = vunpack.c.l.b16 %v4587
        %v4916 = vunpack.c.l.b16 %v4588
        %v4917 = vunpack.c.l.b16 %v4589
        %v4918 = vunpack.c.l.b16 %v4590
        %v4919 = vunpack.c.l.b16 %v4591
        %v4920 = vpack.c.b16 %v4905, %v4904
        %v4921 = vpack.c.b16 %v4907, %v4906
        %v4922 = vpack.c.b16 %v4909, %v4908
        %v4923 = vpack.c.b16 %v4911, %v4910
        %v4924 = vpack.c.b16 %v4913, %v4912
        %v4925 = vpack.c.b16 %v4915, %v4914
        %v4926 = vpack.c.b16 %v4917, %v4916
        %v4927 = vpack.c.b16 %v4919, %v4918
        %4936 = vmatprep.subr.bf16.mxu0 0
        %4937 = vmatpush1.bf16.msra.mxu0 %v4920
        %4938 = vmatprep.subr.bf16.mxu0 0
        %4939 = vmatpush1.bf16.msra.mxu0 %v4921
        %4940 = vmatprep.subr.bf16.mxu0 0
        %4941 = vmatpush1.bf16.msra.mxu0 %v4922
        %4942 = vmatprep.subr.bf16.mxu0 0
        %4943 = vmatpush1.bf16.msra.mxu0 %v4923
        %4944 = vmatprep.subr.bf16.mxu0 0
        %4945 = vmatpush1.bf16.msra.mxu0 %v4924
        %4946 = vmatprep.subr.bf16.mxu0 0
        %4947 = vmatpush1.bf16.msra.mxu0 %v4925
        %4948 = vmatprep.subr.bf16.mxu0 0
        %4949 = vmatpush1.bf16.msra.mxu0 %v4926
        %4950 = vmatprep.subr.bf16.mxu0 0
        %4951 = vmatpush1.bf16.msra.mxu0 %v4927
        %4952 = vmatprep.subr.bf16.mxu0 0
        %4953 = vmatpush1.bf16.msra.mxu0 0
        %4954 = vmatprep.subr.bf16.mxu0 0
        %4955 = vmatpush1.bf16.msra.mxu0 0
        %4956 = vmatprep.subr.bf16.mxu0 0
        %4957 = vmatpush1.bf16.msra.mxu0 0
        %4958 = vmatprep.subr.bf16.mxu0 0
        %4959 = vmatpush1.bf16.msra.mxu0 0
        %4960 = vmatprep.subr.bf16.mxu0 0
        %4961 = vmatpush1.bf16.msra.mxu0 0
        %4962 = vmatprep.subr.bf16.mxu0 0
        %4963 = vmatpush1.bf16.msra.mxu0 0
        %4964 = vmatprep.subr.bf16.mxu0 0
        %4965 = vmatpush1.bf16.msra.mxu0 0
        %4966 = vmatprep.subr.bf16.mxu0 0
        %4967 = vmatpush1.bf16.msra.mxu0 0
        %4968 = vmatprep.mubr.bf16.mxu0 0
        %4969 = vmatmul.mubr.bf16.gmra.mrb[0].mxu0 %v4558
        %v4970 = vpop.f32.mrb[0].mxu0
        %v4971 = vadd.f32 %v4746, %v4970
        %v4972 = vpop.f32.mrb[0].mxu0
        %v4973 = vpop.f32.mrb[0].mxu0
        %v4974 = vadd.f32 %v4749, %v4973
        %v4975 = vpop.f32.mrb[0].mxu0
        %4976 = vmatprep.mubr.bf16.mxu0 0
        %4977 = vmatmul.mubr.bf16.gmra.mrb[0].mxu0 %v4559
        %v4978 = vpop.f32.mrb[0].mxu0
        %v4979 = vadd.f32 %v4754, %v4978
        %v4980 = vpop.f32.mrb[0].mxu0
        %v4981 = vpop.f32.mrb[0].mxu0
        %v4982 = vadd.f32 %v4757, %v4981
        %v4983 = vpop.f32.mrb[0].mxu0
        %4984 = vmatprep.mubr.bf16.mxu0 0
        %4985 = vmatmul.mubr.bf16.gmra.mrb[0].mxu0 %v4560
        %v4986 = vpop.f32.mrb[0].mxu0
        %v4987 = vadd.f32 %v4762, %v4986
        %v4988 = vpop.f32.mrb[0].mxu0
        %v4989 = vpop.f32.mrb[0].mxu0
        %v4990 = vadd.f32 %v4765, %v4989
        %v4991 = vpop.f32.mrb[0].mxu0
        %4992 = vmatprep.mubr.bf16.mxu0 0
        %4993 = vmatmul.mubr.bf16.gmra.mrb[0].mxu0 %v4561
        %v4994 = vpop.f32.mrb[0].mxu0
        %v4995 = vadd.f32 %v4770, %v4994
        %v4996 = vpop.f32.mrb[0].mxu0
        %v4997 = vpop.f32.mrb[0].mxu0
        %v4998 = vadd.f32 %v4773, %v4997
        %v4999 = vpop.f32.mrb[0].mxu0
        %5000 = vmatprep.mubr.bf16.mxu0 0
        %5001 = vmatmul.mubr.bf16.gmra.mrb[0].mxu0 %v4562
        %v5002 = vpop.f32.mrb[0].mxu0
        %v5003 = vadd.f32 %v4778, %v5002
        %v5004 = vpop.f32.mrb[0].mxu0
        %v5005 = vpop.f32.mrb[0].mxu0
        %v5006 = vadd.f32 %v4781, %v5005
        %v5007 = vpop.f32.mrb[0].mxu0
        %5008 = vmatprep.mubr.bf16.mxu0 0
        %5009 = vmatmul.mubr.bf16.gmra.mrb[0].mxu0 %v4563
        %v5010 = vpop.f32.mrb[0].mxu0
        %v5011 = vadd.f32 %v4786, %v5010
        %v5012 = vpop.f32.mrb[0].mxu0
        %v5013 = vpop.f32.mrb[0].mxu0
        %v5014 = vadd.f32 %v4789, %v5013
        %v5015 = vpop.f32.mrb[0].mxu0
        %5016 = vmatprep.mubr.bf16.mxu0 0
        %5017 = vmatmul.mubr.bf16.gmra.mrb[0].mxu0 %v4564
        %v5018 = vpop.f32.mrb[0].mxu0
        %v5019 = vadd.f32 %v4794, %v5018
        %v5020 = vpop.f32.mrb[0].mxu0
        %v5021 = vpop.f32.mrb[0].mxu0
        %v5022 = vadd.f32 %v4797, %v5021
        %v5023 = vpop.f32.mrb[0].mxu0
        %5024 = vmatprep.mubr.bf16.mxu0 0
        %5025 = vmatmul.mubr.bf16.gmra.mrb[0].mxu0 %v4565
        %v5026 = vpop.f32.mrb[0].mxu0
        %v5027 = vadd.f32 %v4802, %v5026
        %v5028 = vpop.f32.mrb[0].mxu0
        %v5029 = vpop.f32.mrb[0].mxu0
        %v5030 = vadd.f32 %v4805, %v5029
        %v5031 = vpop.f32.mrb[0].mxu0
        %5032 = vmatprep.mubr.bf16.mxu0 0
        %5033 = vmatmul.mubr.bf16.gmra.mrb[0].mxu0 %v4566
        %v5034 = vpop.f32.mrb[0].mxu0
        %v5035 = vadd.f32 %v4810, %v5034
        %v5036 = vpop.f32.mrb[0].mxu0
        %v5037 = vpop.f32.mrb[0].mxu0
        %v5038 = vadd.f32 %v4813, %v5037
        %v5039 = vpop.f32.mrb[0].mxu0
        %5040 = vmatprep.mubr.bf16.mxu0 0
        %5041 = vmatmul.mubr.bf16.gmra.mrb[0].mxu0 %v4567
        %v5042 = vpop.f32.mrb[0].mxu0
        %v5043 = vadd.f32 %v4818, %v5042
        %v5044 = vpop.f32.mrb[0].mxu0
        %v5045 = vpop.f32.mrb[0].mxu0
        %v5046 = vadd.f32 %v4821, %v5045
        %v5047 = vpop.f32.mrb[0].mxu0
        %5048 = vmatprep.mubr.bf16.mxu0 0
        %5049 = vmatmul.mubr.bf16.gmra.mrb[0].mxu0 %v4568
        %v5050 = vpop.f32.mrb[0].mxu0
        %v5051 = vadd.f32 %v4826, %v5050
        %v5052 = vpop.f32.mrb[0].mxu0
        %v5053 = vpop.f32.mrb[0].mxu0
        %v5054 = vadd.f32 %v4829, %v5053
        %v5055 = vpop.f32.mrb[0].mxu0
        %5056 = vmatprep.mubr.bf16.mxu0 0
        %5057 = vmatmul.mubr.bf16.gmra.mrb[0].mxu0 %v4569
        %v5058 = vpop.f32.mrb[0].mxu0
        %v5059 = vadd.f32 %v4834, %v5058
        %v5060 = vpop.f32.mrb[0].mxu0
        %v5061 = vpop.f32.mrb[0].mxu0
        %v5062 = vadd.f32 %v4837, %v5061
        %v5063 = vpop.f32.mrb[0].mxu0
        %5064 = vmatprep.mubr.bf16.mxu0 0
        %5065 = vmatmul.mubr.bf16.gmra.mrb[0].mxu0 %v4570
        %v5066 = vpop.f32.mrb[0].mxu0
        %v5067 = vadd.f32 %v4842, %v5066
        %v5068 = vpop.f32.mrb[0].mxu0
        %v5069 = vpop.f32.mrb[0].mxu0
        %v5070 = vadd.f32 %v4845, %v5069
        %v5071 = vpop.f32.mrb[0].mxu0
        %5072 = vmatprep.mubr.bf16.mxu0 0
        %5073 = vmatmul.mubr.bf16.gmra.mrb[0].mxu0 %v4571
        %v5074 = vpop.f32.mrb[0].mxu0
        %v5075 = vadd.f32 %v4850, %v5074
        %v5076 = vpop.f32.mrb[0].mxu0
        %v5077 = vpop.f32.mrb[0].mxu0
        %v5078 = vadd.f32 %v4853, %v5077
        %v5079 = vpop.f32.mrb[0].mxu0
        %5080 = vmatprep.mubr.bf16.mxu0 0
        %5081 = vmatmul.mubr.bf16.gmra.mrb[0].mxu0 %v4572
        %v5082 = vpop.f32.mrb[0].mxu0
        %v5083 = vadd.f32 %v4858, %v5082
        %v5084 = vpop.f32.mrb[0].mxu0
        %v5085 = vpop.f32.mrb[0].mxu0
        %v5086 = vadd.f32 %v4861, %v5085
        %v5087 = vpop.f32.mrb[0].mxu0
        %5088 = vmatprep.mubr.bf16.mxu0 0
        %5089 = vmatmul.mubr.bf16.gmra.mrb[0].mxu0 %v4573
        %v5090 = vpop.f32.mrb[0].mxu0
        %v5091 = vadd.f32 %v4866, %v5090
        %v5092 = vpop.f32.mrb[0].mxu0
        %v5093 = vpop.f32.mrb[0].mxu0
        %v5094 = vadd.f32 %v4869, %v5093
        %v5095 = vpop.f32.mrb[0].mxu0
        %5096 = vmatprep.mubr.bf16.mxu0 0
        %5097 = vmatmul.mubr.bf16.gmra.mrb[0].mxu0 %v4574
        %v5098 = vpop.f32.mrb[0].mxu0
        %v5099 = vadd.f32 %v4874, %v5098
        %v5100 = vpop.f32.mrb[0].mxu0
        %v5101 = vpop.f32.mrb[0].mxu0
        %v5102 = vadd.f32 %v4877, %v5101
        %v5103 = vpop.f32.mrb[0].mxu0
        %5104 = vmatprep.mubr.bf16.mxu0 0
        %5105 = vmatmul.mubr.bf16.gmra.mrb[0].mxu0 %v4575
        %v5106 = vpop.f32.mrb[0].mxu0
        %v5107 = vadd.f32 %v4882, %v5106
        %v5108 = vpop.f32.mrb[0].mxu0
        %v5109 = vpop.f32.mrb[0].mxu0
        %v5110 = vadd.f32 %v4885, %v5109
        %v5111 = vpop.f32.mrb[0].mxu0
        %5112 = vdwg.mxu0
        %v5113 = vld [vmem:[#allocation2 + $0x2] sm:$0xff]
        %v5114 = vld [vmem:[#allocation2 + $0xa] sm:$0xff]
        %v5115 = vld [vmem:[#allocation2 + $0x12] sm:$0xff]
        %v5116 = vld [vmem:[#allocation2 + $0x1a] sm:$0xff]
        %v5117 = vld [vmem:[#allocation2 + $0x22] sm:$0xff]
        %v5118 = vld [vmem:[#allocation2 + $0x2a] sm:$0xff]
        %v5119 = vld [vmem:[#allocation2 + $0x32] sm:$0xff]
        %v5120 = vld [vmem:[#allocation2 + $0x3a] sm:$0xff]
        %v5121 = vld [vmem:[#allocation2 + $0x42] sm:$0xff]
        %v5122 = vld [vmem:[#allocation2 + $0x4a] sm:$0xff]
        %v5123 = vld [vmem:[#allocation2 + $0x52] sm:$0xff]
        %v5124 = vld [vmem:[#allocation2 + $0x5a] sm:$0xff]
        %v5125 = vld [vmem:[#allocation2 + $0x62] sm:$0xff]
        %v5126 = vld [vmem:[#allocation2 + $0x6a] sm:$0xff]
        %v5127 = vld [vmem:[#allocation2 + $0x72] sm:$0xff]
        %v5128 = vld [vmem:[#allocation2 + $0x7a] sm:$0xff]
        %v5129 = vld [vmem:[#allocation2 + $0x82] sm:$0xff]
        %v5130 = vld [vmem:[#allocation2 + $0x8a] sm:$0xff]
        %v5131 = vld [vmem:[#allocation2 + $0x92] sm:$0xff]
        %v5132 = vld [vmem:[#allocation2 + $0x9a] sm:$0xff]
        %v5133 = vld [vmem:[#allocation2 + $0xa2] sm:$0xff]
        %v5134 = vld [vmem:[#allocation2 + $0xaa] sm:$0xff]
        %v5135 = vld [vmem:[#allocation2 + $0xb2] sm:$0xff]
        %v5136 = vld [vmem:[#allocation2 + $0xba] sm:$0xff]
        %v5137 = vld [vmem:[#allocation2 + $0xc2] sm:$0xff]
        %v5138 = vld [vmem:[#allocation2 + $0xca] sm:$0xff]
        %v5139 = vld [vmem:[#allocation2 + $0xd2] sm:$0xff]
        %v5140 = vld [vmem:[#allocation2 + $0xda] sm:$0xff]
        %v5141 = vld [vmem:[#allocation2 + $0xe2] sm:$0xff]
        %v5142 = vld [vmem:[#allocation2 + $0xea] sm:$0xff]
        %v5143 = vld [vmem:[#allocation2 + $0xf2] sm:$0xff]
        %v5144 = vld [vmem:[#allocation2 + $0xfa] sm:$0xff]
        %v5145 = vld [vmem:[#allocation2 + $0x102] sm:$0xff]
        %v5146 = vld [vmem:[#allocation2 + $0x10a] sm:$0xff]
        %v5147 = vld [vmem:[#allocation2 + $0x112] sm:$0xff]
        %v5148 = vld [vmem:[#allocation2 + $0x11a] sm:$0xff]
        %v5149 = vpack.c.bf16 %v5114, %v5113
        %v5150 = vpack.c.bf16 %v5116, %v5115
        %v5151 = vpack.c.bf16 %v5118, %v5117
        %v5152 = vpack.c.bf16 %v5120, %v5119
        %v5153 = vpack.c.bf16 %v5122, %v5121
        %v5154 = vpack.c.bf16 %v5124, %v5123
        %v5155 = vpack.c.bf16 %v5126, %v5125
        %v5156 = vpack.c.bf16 %v5128, %v5127
        %v5157 = vpack.c.bf16 %v5130, %v5129
        %v5158 = vpack.c.bf16 %v5132, %v5131
        %v5159 = vpack.c.bf16 %v5134, %v5133
        %v5160 = vpack.c.bf16 %v5136, %v5135
        %v5161 = vpack.c.bf16 %v5138, %v5137
        %v5162 = vpack.c.bf16 %v5140, %v5139
        %v5163 = vpack.c.bf16 %v5142, %v5141
        %v5164 = vpack.c.bf16 %v5144, %v5143
        %v5165 = vpack.c.bf16 %v5146, %v5145
        %v5166 = vpack.c.bf16 %v5148, %v5147
        %s5167 = scalar_lea.vmem [#allocation12], 128
        %v5168 = vld [vmem:[%s5167] sm:$0xf]
        %v5169 = vld [vmem:[%s5167 + $0x4] sm:$0xf]
        %v5170 = vld [vmem:[%s5167 + $0x8] sm:$0xf]
        %v5171 = vld [vmem:[%s5167 + $0xc] sm:$0xf]
        %v5172 = vld [vmem:[%s5167 + $0x10] sm:$0xf]
        %v5173 = vld [vmem:[%s5167 + $0x14] sm:$0xf]
        %v5174 = vld [vmem:[%s5167 + $0x18] sm:$0xf]
        %v5175 = vld [vmem:[%s5167 + $0x1c] sm:$0xf]
        %v5176 = vld [vmem:[%s5167 + $0x20] sm:$0xf]
        %v5177 = vld [vmem:[%s5167 + $0x24] sm:$0xf]
        %v5178 = vld [vmem:[%s5167 + $0x28] sm:$0xf]
        %v5179 = vld [vmem:[%s5167 + $0x2c] sm:$0xf]
        %v5180 = vld [vmem:[%s5167 + $0x30] sm:$0xf]
        %v5181 = vld [vmem:[%s5167 + $0x34] sm:$0xf]
        %v5182 = vld [vmem:[%s5167 + $0x38] sm:$0xf]
        %v5183 = vld [vmem:[%s5167 + $0x3c] sm:$0xf]
        %v5200 = vunpack.c.l.b16 %v5168
        %v5201 = vunpack.c.l.b16 %v5169
        %v5202 = vunpack.c.l.b16 %v5170
        %v5203 = vunpack.c.l.b16 %v5171
        %v5204 = vunpack.c.l.b16 %v5172
        %v5205 = vunpack.c.l.b16 %v5173
        %v5206 = vunpack.c.l.b16 %v5174
        %v5207 = vunpack.c.l.b16 %v5175
        %v5208 = vunpack.c.l.b16 %v5176
        %v5209 = vunpack.c.l.b16 %v5177
        %v5210 = vunpack.c.l.b16 %v5178
        %v5211 = vunpack.c.l.b16 %v5179
        %v5212 = vunpack.c.l.b16 %v5180
        %v5213 = vunpack.c.l.b16 %v5181
        %v5214 = vunpack.c.l.b16 %v5182
        %v5215 = vunpack.c.l.b16 %v5183
        %v5216 = vpack.c.b16 %v5201, %v5200
        %v5217 = vpack.c.b16 %v5203, %v5202
        %v5218 = vpack.c.b16 %v5205, %v5204
        %v5219 = vpack.c.b16 %v5207, %v5206
        %v5220 = vpack.c.b16 %v5209, %v5208
        %v5221 = vpack.c.b16 %v5211, %v5210
        %v5222 = vpack.c.b16 %v5213, %v5212
        %v5223 = vpack.c.b16 %v5215, %v5214
        %5232 = vmatprep.subr.bf16.mxu0 0
        %5233 = vmatpush1.bf16.msra.mxu0 %v5216
        %5234 = vmatprep.subr.bf16.mxu0 0
        %5235 = vmatpush1.bf16.msra.mxu0 %v5217
        %5236 = vmatprep.subr.bf16.mxu0 0
        %5237 = vmatpush1.bf16.msra.mxu0 %v5218
        %5238 = vmatprep.subr.bf16.mxu0 0
        %5239 = vmatpush1.bf16.msra.mxu0 %v5219
        %5240 = vmatprep.subr.bf16.mxu0 0
        %5241 = vmatpush1.bf16.msra.mxu0 %v5220
        %5242 = vmatprep.subr.bf16.mxu0 0
        %5243 = vmatpush1.bf16.msra.mxu0 %v5221
        %5244 = vmatprep.subr.bf16.mxu0 0
        %5245 = vmatpush1.bf16.msra.mxu0 %v5222
        %5246 = vmatprep.subr.bf16.mxu0 0
        %5247 = vmatpush1.bf16.msra.mxu0 %v5223
        %5248 = vmatprep.subr.bf16.mxu0 0
        %5249 = vmatpush1.bf16.msra.mxu0 0
        %5250 = vmatprep.subr.bf16.mxu0 0
        %5251 = vmatpush1.bf16.msra.mxu0 0
        %5252 = vmatprep.subr.bf16.mxu0 0
        %5253 = vmatpush1.bf16.msra.mxu0 0
        %5254 = vmatprep.subr.bf16.mxu0 0
        %5255 = vmatpush1.bf16.msra.mxu0 0
        %5256 = vmatprep.subr.bf16.mxu0 0
        %5257 = vmatpush1.bf16.msra.mxu0 0
        %5258 = vmatprep.subr.bf16.mxu0 0
        %5259 = vmatpush1.bf16.msra.mxu0 0
        %5260 = vmatprep.subr.bf16.mxu0 0
        %5261 = vmatpush1.bf16.msra.mxu0 0
        %5262 = vmatprep.subr.bf16.mxu0 0
        %5263 = vmatpush1.bf16.msra.mxu0 0
        %5264 = vmatprep.mubr.bf16.mxu0 0
        %5265 = vmatmul.mubr.bf16.gmra.mrb[0].mxu0 %v5149
        %v5266 = vpop.f32.mrb[0].mxu0
        %v5267 = vadd.f32 0.0, %v5266
        %v5268 = vpop.f32.mrb[0].mxu0
        %v5269 = vpop.f32.mrb[0].mxu0
        %v5270 = vadd.f32 0.0, %v5269
        %v5271 = vpop.f32.mrb[0].mxu0
        %5272 = vmatprep.mubr.bf16.mxu0 0
        %5273 = vmatmul.mubr.bf16.gmra.mrb[0].mxu0 %v5150
        %v5274 = vpop.f32.mrb[0].mxu0
        %v5275 = vadd.f32 0.0, %v5274
        %v5276 = vpop.f32.mrb[0].mxu0
        %v5277 = vpop.f32.mrb[0].mxu0
        %v5278 = vadd.f32 0.0, %v5277
        %v5279 = vpop.f32.mrb[0].mxu0
        %5280 = vmatprep.mubr.bf16.mxu0 0
        %5281 = vmatmul.mubr.bf16.gmra.mrb[0].mxu0 %v5151
        %v5282 = vpop.f32.mrb[0].mxu0
        %v5283 = vadd.f32 0.0, %v5282
        %v5284 = vpop.f32.mrb[0].mxu0
        %v5285 = vpop.f32.mrb[0].mxu0
        %v5286 = vadd.f32 0.0, %v5285
        %v5287 = vpop.f32.mrb[0].mxu0
        %5288 = vmatprep.mubr.bf16.mxu0 0
        %5289 = vmatmul.mubr.bf16.gmra.mrb[0].mxu0 %v5152
        %v5290 = vpop.f32.mrb[0].mxu0
        %v5291 = vadd.f32 0.0, %v5290
        %v5292 = vpop.f32.mrb[0].mxu0
        %v5293 = vpop.f32.mrb[0].mxu0
        %v5294 = vadd.f32 0.0, %v5293
        %v5295 = vpop.f32.mrb[0].mxu0
        %5296 = vmatprep.mubr.bf16.mxu0 0
        %5297 = vmatmul.mubr.bf16.gmra.mrb[0].mxu0 %v5153
        %v5298 = vpop.f32.mrb[0].mxu0
        %v5299 = vadd.f32 0.0, %v5298
        %v5300 = vpop.f32.mrb[0].mxu0
        %v5301 = vpop.f32.mrb[0].mxu0
        %v5302 = vadd.f32 0.0, %v5301
        %v5303 = vpop.f32.mrb[0].mxu0
        %5304 = vmatprep.mubr.bf16.mxu0 0
        %5305 = vmatmul.mubr.bf16.gmra.mrb[0].mxu0 %v5154
        %v5306 = vpop.f32.mrb[0].mxu0
        %v5307 = vadd.f32 0.0, %v5306
        %v5308 = vpop.f32.mrb[0].mxu0
        %v5309 = vpop.f32.mrb[0].mxu0
        %v5310 = vadd.f32 0.0, %v5309
        %v5311 = vpop.f32.mrb[0].mxu0
        %5312 = vmatprep.mubr.bf16.mxu0 0
        %5313 = vmatmul.mubr.bf16.gmra.mrb[0].mxu0 %v5155
        %v5314 = vpop.f32.mrb[0].mxu0
        %v5315 = vadd.f32 0.0, %v5314
        %v5316 = vpop.f32.mrb[0].mxu0
        %v5317 = vpop.f32.mrb[0].mxu0
        %v5318 = vadd.f32 0.0, %v5317
        %v5319 = vpop.f32.mrb[0].mxu0
        %5320 = vmatprep.mubr.bf16.mxu0 0
        %5321 = vmatmul.mubr.bf16.gmra.mrb[0].mxu0 %v5156
        %v5322 = vpop.f32.mrb[0].mxu0
        %v5323 = vadd.f32 0.0, %v5322
        %v5324 = vpop.f32.mrb[0].mxu0
        %v5325 = vpop.f32.mrb[0].mxu0
        %v5326 = vadd.f32 0.0, %v5325
        %v5327 = vpop.f32.mrb[0].mxu0
        %5328 = vmatprep.mubr.bf16.mxu0 0
        %5329 = vmatmul.mubr.bf16.gmra.mrb[0].mxu0 %v5157
        %v5330 = vpop.f32.mrb[0].mxu0
        %v5331 = vadd.f32 0.0, %v5330
        %v5332 = vpop.f32.mrb[0].mxu0
        %v5333 = vpop.f32.mrb[0].mxu0
        %v5334 = vadd.f32 0.0, %v5333
        %v5335 = vpop.f32.mrb[0].mxu0
        %5336 = vmatprep.mubr.bf16.mxu0 0
        %5337 = vmatmul.mubr.bf16.gmra.mrb[0].mxu0 %v5158
        %v5338 = vpop.f32.mrb[0].mxu0
        %v5339 = vadd.f32 0.0, %v5338
        %v5340 = vpop.f32.mrb[0].mxu0
        %v5341 = vpop.f32.mrb[0].mxu0
        %v5342 = vadd.f32 0.0, %v5341
        %v5343 = vpop.f32.mrb[0].mxu0
        %5344 = vmatprep.mubr.bf16.mxu0 0
        %5345 = vmatmul.mubr.bf16.gmra.mrb[0].mxu0 %v5159
        %v5346 = vpop.f32.mrb[0].mxu0
        %v5347 = vadd.f32 0.0, %v5346
        %v5348 = vpop.f32.mrb[0].mxu0
        %v5349 = vpop.f32.mrb[0].mxu0
        %v5350 = vadd.f32 0.0, %v5349
        %v5351 = vpop.f32.mrb[0].mxu0
        %5352 = vmatprep.mubr.bf16.mxu0 0
        %5353 = vmatmul.mubr.bf16.gmra.mrb[0].mxu0 %v5160
        %v5354 = vpop.f32.mrb[0].mxu0
        %v5355 = vadd.f32 0.0, %v5354
        %v5356 = vpop.f32.mrb[0].mxu0
        %v5357 = vpop.f32.mrb[0].mxu0
        %v5358 = vadd.f32 0.0, %v5357
        %v5359 = vpop.f32.mrb[0].mxu0
        %5360 = vmatprep.mubr.bf16.mxu0 0
        %5361 = vmatmul.mubr.bf16.gmra.mrb[0].mxu0 %v5161
        %v5362 = vpop.f32.mrb[0].mxu0
        %v5363 = vadd.f32 0.0, %v5362
        %v5364 = vpop.f32.mrb[0].mxu0
        %v5365 = vpop.f32.mrb[0].mxu0
        %v5366 = vadd.f32 0.0, %v5365
        %v5367 = vpop.f32.mrb[0].mxu0
        %5368 = vmatprep.mubr.bf16.mxu0 0
        %5369 = vmatmul.mubr.bf16.gmra.mrb[0].mxu0 %v5162
        %v5370 = vpop.f32.mrb[0].mxu0
        %v5371 = vadd.f32 0.0, %v5370
        %v5372 = vpop.f32.mrb[0].mxu0
        %v5373 = vpop.f32.mrb[0].mxu0
        %v5374 = vadd.f32 0.0, %v5373
        %v5375 = vpop.f32.mrb[0].mxu0
        %5376 = vmatprep.mubr.bf16.mxu0 0
        %5377 = vmatmul.mubr.bf16.gmra.mrb[0].mxu0 %v5163
        %v5378 = vpop.f32.mrb[0].mxu0
        %v5379 = vadd.f32 0.0, %v5378
        %v5380 = vpop.f32.mrb[0].mxu0
        %v5381 = vpop.f32.mrb[0].mxu0
        %v5382 = vadd.f32 0.0, %v5381
        %v5383 = vpop.f32.mrb[0].mxu0
        %5384 = vmatprep.mubr.bf16.mxu0 0
        %5385 = vmatmul.mubr.bf16.gmra.mrb[0].mxu0 %v5164
        %v5386 = vpop.f32.mrb[0].mxu0
        %v5387 = vadd.f32 0.0, %v5386
        %v5388 = vpop.f32.mrb[0].mxu0
        %v5389 = vpop.f32.mrb[0].mxu0
        %v5390 = vadd.f32 0.0, %v5389
        %v5391 = vpop.f32.mrb[0].mxu0
        %5392 = vmatprep.mubr.bf16.mxu0 0
        %5393 = vmatmul.mubr.bf16.gmra.mrb[0].mxu0 %v5165
        %v5394 = vpop.f32.mrb[0].mxu0
        %v5395 = vadd.f32 0.0, %v5394
        %v5396 = vpop.f32.mrb[0].mxu0
        %v5397 = vpop.f32.mrb[0].mxu0
        %v5398 = vadd.f32 0.0, %v5397
        %v5399 = vpop.f32.mrb[0].mxu0
        %5400 = vmatprep.mubr.bf16.mxu0 0
        %5401 = vmatmul.mubr.bf16.gmra.mrb[0].mxu0 %v5166
        %v5402 = vpop.f32.mrb[0].mxu0
        %v5403 = vadd.f32 0.0, %v5402
        %v5404 = vpop.f32.mrb[0].mxu0
        %v5405 = vpop.f32.mrb[0].mxu0
        %v5406 = vadd.f32 0.0, %v5405
        %v5407 = vpop.f32.mrb[0].mxu0
        %5408 = vdwg.mxu0
        %v5409 = vadd.f32 %v4971, %v5267
        %v5410 = vadd.f32 %v4974, %v5270
        %v5411 = vadd.f32 %v4979, %v5275
        %v5412 = vadd.f32 %v4982, %v5278
        %v5413 = vadd.f32 %v4987, %v5283
        %v5414 = vadd.f32 %v4990, %v5286
        %v5415 = vadd.f32 %v4995, %v5291
        %v5416 = vadd.f32 %v4998, %v5294
        %v5417 = vadd.f32 %v5003, %v5299
        %v5418 = vadd.f32 %v5006, %v5302
        %v5419 = vadd.f32 %v5011, %v5307
        %v5420 = vadd.f32 %v5014, %v5310
        %v5421 = vadd.f32 %v5019, %v5315
        %v5422 = vadd.f32 %v5022, %v5318
        %v5423 = vadd.f32 %v5027, %v5323
        %v5424 = vadd.f32 %v5030, %v5326
        %v5425 = vadd.f32 %v5035, %v5331
        %v5426 = vadd.f32 %v5038, %v5334
        %v5427 = vadd.f32 %v5043, %v5339
        %v5428 = vadd.f32 %v5046, %v5342
        %v5429 = vadd.f32 %v5051, %v5347
        %v5430 = vadd.f32 %v5054, %v5350
        %v5431 = vadd.f32 %v5059, %v5355
        %v5432 = vadd.f32 %v5062, %v5358
        %v5433 = vadd.f32 %v5067, %v5363
        %v5434 = vadd.f32 %v5070, %v5366
        %v5435 = vadd.f32 %v5075, %v5371
        %v5436 = vadd.f32 %v5078, %v5374
        %v5437 = vadd.f32 %v5083, %v5379
        %v5438 = vadd.f32 %v5086, %v5382
        %v5439 = vadd.f32 %v5091, %v5387
        %v5440 = vadd.f32 %v5094, %v5390
        %v5441 = vadd.f32 %v5099, %v5395
        %v5442 = vadd.f32 %v5102, %v5398
        %v5443 = vadd.f32 %v5107, %v5403
        %v5444 = vadd.f32 %v5110, %v5406
        %v5445 = vld [vmem:[#allocation2 + $0x12] sm:$0xff]
        %v5446 = vld [vmem:[#allocation2 + $0x1a] sm:$0xff]
        %v5447 = vld [vmem:[#allocation2 + $0x22] sm:$0xff]
        %v5448 = vld [vmem:[#allocation2 + $0x2a] sm:$0xff]
        %v5449 = vld [vmem:[#allocation2 + $0x32] sm:$0xff]
        %v5450 = vld [vmem:[#allocation2 + $0x3a] sm:$0xff]
        %v5451 = vld [vmem:[#allocation2 + $0x42] sm:$0xff]
        %v5452 = vld [vmem:[#allocation2 + $0x4a] sm:$0xff]
        %v5453 = vld [vmem:[#allocation2 + $0x52] sm:$0xff]
        %v5454 = vld [vmem:[#allocation2 + $0x5a] sm:$0xff]
        %v5455 = vld [vmem:[#allocation2 + $0x62] sm:$0xff]
        %v5456 = vld [vmem:[#allocation2 + $0x6a] sm:$0xff]
        %v5457 = vld [vmem:[#allocation2 + $0x72] sm:$0xff]
        %v5458 = vld [vmem:[#allocation2 + $0x7a] sm:$0xff]
        %v5459 = vld [vmem:[#allocation2 + $0x82] sm:$0xff]
        %v5460 = vld [vmem:[#allocation2 + $0x8a] sm:$0xff]
        %v5461 = vld [vmem:[#allocation2 + $0x92] sm:$0xff]
        %v5462 = vld [vmem:[#allocation2 + $0x9a] sm:$0xff]
        %v5463 = vld [vmem:[#allocation2 + $0xa2] sm:$0xff]
        %v5464 = vld [vmem:[#allocation2 + $0xaa] sm:$0xff]
        %v5465 = vld [vmem:[#allocation2 + $0xb2] sm:$0xff]
        %v5466 = vld [vmem:[#allocation2 + $0xba] sm:$0xff]
        %v5467 = vld [vmem:[#allocation2 + $0xc2] sm:$0xff]
        %v5468 = vld [vmem:[#allocation2 + $0xca] sm:$0xff]
        %v5469 = vld [vmem:[#allocation2 + $0xd2] sm:$0xff]
        %v5470 = vld [vmem:[#allocation2 + $0xda] sm:$0xff]
        %v5471 = vld [vmem:[#allocation2 + $0xe2] sm:$0xff]
        %v5472 = vld [vmem:[#allocation2 + $0xea] sm:$0xff]
        %v5473 = vld [vmem:[#allocation2 + $0xf2] sm:$0xff]
        %v5474 = vld [vmem:[#allocation2 + $0xfa] sm:$0xff]
        %v5475 = vld [vmem:[#allocation2 + $0x102] sm:$0xff]
        %v5476 = vld [vmem:[#allocation2 + $0x10a] sm:$0xff]
        %v5477 = vld [vmem:[#allocation2 + $0x112] sm:$0xff]
        %v5478 = vld [vmem:[#allocation2 + $0x11a] sm:$0xff]
        %v5479 = vld [vmem:[#allocation2 + $0x122] sm:$0xff]
        %v5480 = vld [vmem:[#allocation2 + $0x12a] sm:$0xff]
        %v5481 = vpack.c.bf16 %v5446, %v5445
        %v5482 = vpack.c.bf16 %v5448, %v5447
        %v5483 = vpack.c.bf16 %v5450, %v5449
        %v5484 = vpack.c.bf16 %v5452, %v5451
        %v5485 = vpack.c.bf16 %v5454, %v5453
        %v5486 = vpack.c.bf16 %v5456, %v5455
        %v5487 = vpack.c.bf16 %v5458, %v5457
        %v5488 = vpack.c.bf16 %v5460, %v5459
        %v5489 = vpack.c.bf16 %v5462, %v5461
        %v5490 = vpack.c.bf16 %v5464, %v5463
        %v5491 = vpack.c.bf16 %v5466, %v5465
        %v5492 = vpack.c.bf16 %v5468, %v5467
        %v5493 = vpack.c.bf16 %v5470, %v5469
        %v5494 = vpack.c.bf16 %v5472, %v5471
        %v5495 = vpack.c.bf16 %v5474, %v5473
        %v5496 = vpack.c.bf16 %v5476, %v5475
        %v5497 = vpack.c.bf16 %v5478, %v5477
        %v5498 = vpack.c.bf16 %v5480, %v5479
        %s5499 = scalar_lea.vmem [#allocation12], 192
        %v5500 = vld [vmem:[%s5499] sm:$0xf]
        %v5501 = vld [vmem:[%s5499 + $0x4] sm:$0xf]
        %v5502 = vld [vmem:[%s5499 + $0x8] sm:$0xf]
        %v5503 = vld [vmem:[%s5499 + $0xc] sm:$0xf]
        %v5504 = vld [vmem:[%s5499 + $0x10] sm:$0xf]
        %v5505 = vld [vmem:[%s5499 + $0x14] sm:$0xf]
        %v5506 = vld [vmem:[%s5499 + $0x18] sm:$0xf]
        %v5507 = vld [vmem:[%s5499 + $0x1c] sm:$0xf]
        %v5508 = vld [vmem:[%s5499 + $0x20] sm:$0xf]
        %v5509 = vld [vmem:[%s5499 + $0x24] sm:$0xf]
        %v5510 = vld [vmem:[%s5499 + $0x28] sm:$0xf]
        %v5511 = vld [vmem:[%s5499 + $0x2c] sm:$0xf]
        %v5512 = vld [vmem:[%s5499 + $0x30] sm:$0xf]
        %v5513 = vld [vmem:[%s5499 + $0x34] sm:$0xf]
        %v5514 = vld [vmem:[%s5499 + $0x38] sm:$0xf]
        %v5515 = vld [vmem:[%s5499 + $0x3c] sm:$0xf]
        %v5532 = vunpack.c.l.b16 %v5500
        %v5533 = vunpack.c.l.b16 %v5501
        %v5534 = vunpack.c.l.b16 %v5502
        %v5535 = vunpack.c.l.b16 %v5503
        %v5536 = vunpack.c.l.b16 %v5504
        %v5537 = vunpack.c.l.b16 %v5505
        %v5538 = vunpack.c.l.b16 %v5506
        %v5539 = vunpack.c.l.b16 %v5507
        %v5540 = vunpack.c.l.b16 %v5508
        %v5541 = vunpack.c.l.b16 %v5509
        %v5542 = vunpack.c.l.b16 %v5510
        %v5543 = vunpack.c.l.b16 %v5511
        %v5544 = vunpack.c.l.b16 %v5512
        %v5545 = vunpack.c.l.b16 %v5513
        %v5546 = vunpack.c.l.b16 %v5514
        %v5547 = vunpack.c.l.b16 %v5515
        %v5548 = vpack.c.b16 %v5533, %v5532
        %v5549 = vpack.c.b16 %v5535, %v5534
        %v5550 = vpack.c.b16 %v5537, %v5536
        %v5551 = vpack.c.b16 %v5539, %v5538
        %v5552 = vpack.c.b16 %v5541, %v5540
        %v5553 = vpack.c.b16 %v5543, %v5542
        %v5554 = vpack.c.b16 %v5545, %v5544
        %v5555 = vpack.c.b16 %v5547, %v5546
        %5564 = vmatprep.subr.bf16.mxu0 0
        %5565 = vmatpush1.bf16.msra.mxu0 %v5548
        %5566 = vmatprep.subr.bf16.mxu0 0
        %5567 = vmatpush1.bf16.msra.mxu0 %v5549
        %5568 = vmatprep.subr.bf16.mxu0 0
        %5569 = vmatpush1.bf16.msra.mxu0 %v5550
        %5570 = vmatprep.subr.bf16.mxu0 0
        %5571 = vmatpush1.bf16.msra.mxu0 %v5551
        %5572 = vmatprep.subr.bf16.mxu0 0
        %5573 = vmatpush1.bf16.msra.mxu0 %v5552
        %5574 = vmatprep.subr.bf16.mxu0 0
        %5575 = vmatpush1.bf16.msra.mxu0 %v5553
        %5576 = vmatprep.subr.bf16.mxu0 0
        %5577 = vmatpush1.bf16.msra.mxu0 %v5554
        %5578 = vmatprep.subr.bf16.mxu0 0
        %5579 = vmatpush1.bf16.msra.mxu0 %v5555
        %5580 = vmatprep.subr.bf16.mxu0 0
        %5581 = vmatpush1.bf16.msra.mxu0 0
        %5582 = vmatprep.subr.bf16.mxu0 0
        %5583 = vmatpush1.bf16.msra.mxu0 0
        %5584 = vmatprep.subr.bf16.mxu0 0
        %5585 = vmatpush1.bf16.msra.mxu0 0
        %5586 = vmatprep.subr.bf16.mxu0 0
        %5587 = vmatpush1.bf16.msra.mxu0 0
        %5588 = vmatprep.subr.bf16.mxu0 0
        %5589 = vmatpush1.bf16.msra.mxu0 0
        %5590 = vmatprep.subr.bf16.mxu0 0
        %5591 = vmatpush1.bf16.msra.mxu0 0
        %5592 = vmatprep.subr.bf16.mxu0 0
        %5593 = vmatpush1.bf16.msra.mxu0 0
        %5594 = vmatprep.subr.bf16.mxu0 0
        %5595 = vmatpush1.bf16.msra.mxu0 0
        %5596 = vmatprep.mubr.bf16.mxu0 0
        %5597 = vmatmul.mubr.bf16.gmra.mrb[0].mxu0 %v5481
        %v5598 = vpop.f32.mrb[0].mxu0
        %v5599 = vadd.f32 0.0, %v5598
        %v5600 = vpop.f32.mrb[0].mxu0
        %v5601 = vpop.f32.mrb[0].mxu0
        %v5602 = vadd.f32 0.0, %v5601
        %v5603 = vpop.f32.mrb[0].mxu0
        %5604 = vmatprep.mubr.bf16.mxu0 0
        %5605 = vmatmul.mubr.bf16.gmra.mrb[0].mxu0 %v5482
        %v5606 = vpop.f32.mrb[0].mxu0
        %v5607 = vadd.f32 0.0, %v5606
        %v5608 = vpop.f32.mrb[0].mxu0
        %v5609 = vpop.f32.mrb[0].mxu0
        %v5610 = vadd.f32 0.0, %v5609
        %v5611 = vpop.f32.mrb[0].mxu0
        %5612 = vmatprep.mubr.bf16.mxu0 0
        %5613 = vmatmul.mubr.bf16.gmra.mrb[0].mxu0 %v5483
        %v5614 = vpop.f32.mrb[0].mxu0
        %v5615 = vadd.f32 0.0, %v5614
        %v5616 = vpop.f32.mrb[0].mxu0
        %v5617 = vpop.f32.mrb[0].mxu0
        %v5618 = vadd.f32 0.0, %v5617
        %v5619 = vpop.f32.mrb[0].mxu0
        %5620 = vmatprep.mubr.bf16.mxu0 0
        %5621 = vmatmul.mubr.bf16.gmra.mrb[0].mxu0 %v5484
        %v5622 = vpop.f32.mrb[0].mxu0
        %v5623 = vadd.f32 0.0, %v5622
        %v5624 = vpop.f32.mrb[0].mxu0
        %v5625 = vpop.f32.mrb[0].mxu0
        %v5626 = vadd.f32 0.0, %v5625
        %v5627 = vpop.f32.mrb[0].mxu0
        %5628 = vmatprep.mubr.bf16.mxu0 0
        %5629 = vmatmul.mubr.bf16.gmra.mrb[0].mxu0 %v5485
        %v5630 = vpop.f32.mrb[0].mxu0
        %v5631 = vadd.f32 0.0, %v5630
        %v5632 = vpop.f32.mrb[0].mxu0
        %v5633 = vpop.f32.mrb[0].mxu0
        %v5634 = vadd.f32 0.0, %v5633
        %v5635 = vpop.f32.mrb[0].mxu0
        %5636 = vmatprep.mubr.bf16.mxu0 0
        %5637 = vmatmul.mubr.bf16.gmra.mrb[0].mxu0 %v5486
        %v5638 = vpop.f32.mrb[0].mxu0
        %v5639 = vadd.f32 0.0, %v5638
        %v5640 = vpop.f32.mrb[0].mxu0
        %v5641 = vpop.f32.mrb[0].mxu0
        %v5642 = vadd.f32 0.0, %v5641
        %v5643 = vpop.f32.mrb[0].mxu0
        %5644 = vmatprep.mubr.bf16.mxu0 0
        %5645 = vmatmul.mubr.bf16.gmra.mrb[0].mxu0 %v5487
        %v5646 = vpop.f32.mrb[0].mxu0
        %v5647 = vadd.f32 0.0, %v5646
        %v5648 = vpop.f32.mrb[0].mxu0
        %v5649 = vpop.f32.mrb[0].mxu0
        %v5650 = vadd.f32 0.0, %v5649
        %v5651 = vpop.f32.mrb[0].mxu0
        %5652 = vmatprep.mubr.bf16.mxu0 0
        %5653 = vmatmul.mubr.bf16.gmra.mrb[0].mxu0 %v5488
        %v5654 = vpop.f32.mrb[0].mxu0
        %v5655 = vadd.f32 0.0, %v5654
        %v5656 = vpop.f32.mrb[0].mxu0
        %v5657 = vpop.f32.mrb[0].mxu0
        %v5658 = vadd.f32 0.0, %v5657
        %v5659 = vpop.f32.mrb[0].mxu0
        %5660 = vmatprep.mubr.bf16.mxu0 0
        %5661 = vmatmul.mubr.bf16.gmra.mrb[0].mxu0 %v5489
        %v5662 = vpop.f32.mrb[0].mxu0
        %v5663 = vadd.f32 0.0, %v5662
        %v5664 = vpop.f32.mrb[0].mxu0
        %v5665 = vpop.f32.mrb[0].mxu0
        %v5666 = vadd.f32 0.0, %v5665
        %v5667 = vpop.f32.mrb[0].mxu0
        %5668 = vmatprep.mubr.bf16.mxu0 0
        %5669 = vmatmul.mubr.bf16.gmra.mrb[0].mxu0 %v5490
        %v5670 = vpop.f32.mrb[0].mxu0
        %v5671 = vadd.f32 0.0, %v5670
        %v5672 = vpop.f32.mrb[0].mxu0
        %v5673 = vpop.f32.mrb[0].mxu0
        %v5674 = vadd.f32 0.0, %v5673
        %v5675 = vpop.f32.mrb[0].mxu0
        %5676 = vmatprep.mubr.bf16.mxu0 0
        %5677 = vmatmul.mubr.bf16.gmra.mrb[0].mxu0 %v5491
        %v5678 = vpop.f32.mrb[0].mxu0
        %v5679 = vadd.f32 0.0, %v5678
        %v5680 = vpop.f32.mrb[0].mxu0
        %v5681 = vpop.f32.mrb[0].mxu0
        %v5682 = vadd.f32 0.0, %v5681
        %v5683 = vpop.f32.mrb[0].mxu0
        %5684 = vmatprep.mubr.bf16.mxu0 0
        %5685 = vmatmul.mubr.bf16.gmra.mrb[0].mxu0 %v5492
        %v5686 = vpop.f32.mrb[0].mxu0
        %v5687 = vadd.f32 0.0, %v5686
        %v5688 = vpop.f32.mrb[0].mxu0
        %v5689 = vpop.f32.mrb[0].mxu0
        %v5690 = vadd.f32 0.0, %v5689
        %v5691 = vpop.f32.mrb[0].mxu0
        %5692 = vmatprep.mubr.bf16.mxu0 0
        %5693 = vmatmul.mubr.bf16.gmra.mrb[0].mxu0 %v5493
        %v5694 = vpop.f32.mrb[0].mxu0
        %v5695 = vadd.f32 0.0, %v5694
        %v5696 = vpop.f32.mrb[0].mxu0
        %v5697 = vpop.f32.mrb[0].mxu0
        %v5698 = vadd.f32 0.0, %v5697
        %v5699 = vpop.f32.mrb[0].mxu0
        %5700 = vmatprep.mubr.bf16.mxu0 0
        %5701 = vmatmul.mubr.bf16.gmra.mrb[0].mxu0 %v5494
        %v5702 = vpop.f32.mrb[0].mxu0
        %v5703 = vadd.f32 0.0, %v5702
        %v5704 = vpop.f32.mrb[0].mxu0
        %v5705 = vpop.f32.mrb[0].mxu0
        %v5706 = vadd.f32 0.0, %v5705
        %v5707 = vpop.f32.mrb[0].mxu0
        %5708 = vmatprep.mubr.bf16.mxu0 0
        %5709 = vmatmul.mubr.bf16.gmra.mrb[0].mxu0 %v5495
        %v5710 = vpop.f32.mrb[0].mxu0
        %v5711 = vadd.f32 0.0, %v5710
        %v5712 = vpop.f32.mrb[0].mxu0
        %v5713 = vpop.f32.mrb[0].mxu0
        %v5714 = vadd.f32 0.0, %v5713
        %v5715 = vpop.f32.mrb[0].mxu0
        %5716 = vmatprep.mubr.bf16.mxu0 0
        %5717 = vmatmul.mubr.bf16.gmra.mrb[0].mxu0 %v5496
        %v5718 = vpop.f32.mrb[0].mxu0
        %v5719 = vadd.f32 0.0, %v5718
        %v5720 = vpop.f32.mrb[0].mxu0
        %v5721 = vpop.f32.mrb[0].mxu0
        %v5722 = vadd.f32 0.0, %v5721
        %v5723 = vpop.f32.mrb[0].mxu0
        %5724 = vmatprep.mubr.bf16.mxu0 0
        %5725 = vmatmul.mubr.bf16.gmra.mrb[0].mxu0 %v5497
        %v5726 = vpop.f32.mrb[0].mxu0
        %v5727 = vadd.f32 0.0, %v5726
        %v5728 = vpop.f32.mrb[0].mxu0
        %v5729 = vpop.f32.mrb[0].mxu0
        %v5730 = vadd.f32 0.0, %v5729
        %v5731 = vpop.f32.mrb[0].mxu0
        %5732 = vmatprep.mubr.bf16.mxu0 0
        %5733 = vmatmul.mubr.bf16.gmra.mrb[0].mxu0 %v5498
        %v5734 = vpop.f32.mrb[0].mxu0
        %v5735 = vadd.f32 0.0, %v5734
        %v5736 = vpop.f32.mrb[0].mxu0
        %v5737 = vpop.f32.mrb[0].mxu0
        %v5738 = vadd.f32 0.0, %v5737
        %v5739 = vpop.f32.mrb[0].mxu0
        %5740 = vdwg.mxu0
        %v5741 = vadd.f32 %v5409, %v5599
        %v5742 = vadd.f32 %v5410, %v5602
        %v5743 = vadd.f32 %v5411, %v5607
        %v5744 = vadd.f32 %v5412, %v5610
        %v5745 = vadd.f32 %v5413, %v5615
        %v5746 = vadd.f32 %v5414, %v5618
        %v5747 = vadd.f32 %v5415, %v5623
        %v5748 = vadd.f32 %v5416, %v5626
        %v5749 = vadd.f32 %v5417, %v5631
        %v5750 = vadd.f32 %v5418, %v5634
        %v5751 = vadd.f32 %v5419, %v5639
        %v5752 = vadd.f32 %v5420, %v5642
        %v5753 = vadd.f32 %v5421, %v5647
        %v5754 = vadd.f32 %v5422, %v5650
        %v5755 = vadd.f32 %v5423, %v5655
        %v5756 = vadd.f32 %v5424, %v5658
        %v5757 = vadd.f32 %v5425, %v5663
        %v5758 = vadd.f32 %v5426, %v5666
        %v5759 = vadd.f32 %v5427, %v5671
        %v5760 = vadd.f32 %v5428, %v5674
        %v5761 = vadd.f32 %v5429, %v5679
        %v5762 = vadd.f32 %v5430, %v5682
        %v5763 = vadd.f32 %v5431, %v5687
        %v5764 = vadd.f32 %v5432, %v5690
        %v5765 = vadd.f32 %v5433, %v5695
        %v5766 = vadd.f32 %v5434, %v5698
        %v5767 = vadd.f32 %v5435, %v5703
        %v5768 = vadd.f32 %v5436, %v5706
        %v5769 = vadd.f32 %v5437, %v5711
        %v5770 = vadd.f32 %v5438, %v5714
        %v5771 = vadd.f32 %v5439, %v5719
        %v5772 = vadd.f32 %v5440, %v5722
        %v5773 = vadd.f32 %v5441, %v5727
        %v5774 = vadd.f32 %v5442, %v5730
        %v5775 = vadd.f32 %v5443, %v5735
        %v5776 = vadd.f32 %v5444, %v5738
        %v5777 = vld [vmem:[#allocation2 + $0x13] sm:$0xff]
        %v5778 = vld [vmem:[#allocation2 + $0x1b] sm:$0xff]
        %v5779 = vld [vmem:[#allocation2 + $0x23] sm:$0xff]
        %v5780 = vld [vmem:[#allocation2 + $0x2b] sm:$0xff]
        %v5781 = vld [vmem:[#allocation2 + $0x33] sm:$0xff]
        %v5782 = vld [vmem:[#allocation2 + $0x3b] sm:$0xff]
        %v5783 = vld [vmem:[#allocation2 + $0x43] sm:$0xff]
        %v5784 = vld [vmem:[#allocation2 + $0x4b] sm:$0xff]
        %v5785 = vld [vmem:[#allocation2 + $0x53] sm:$0xff]
        %v5786 = vld [vmem:[#allocation2 + $0x5b] sm:$0xff]
        %v5787 = vld [vmem:[#allocation2 + $0x63] sm:$0xff]
        %v5788 = vld [vmem:[#allocation2 + $0x6b] sm:$0xff]
        %v5789 = vld [vmem:[#allocation2 + $0x73] sm:$0xff]
        %v5790 = vld [vmem:[#allocation2 + $0x7b] sm:$0xff]
        %v5791 = vld [vmem:[#allocation2 + $0x83] sm:$0xff]
        %v5792 = vld [vmem:[#allocation2 + $0x8b] sm:$0xff]
        %v5793 = vld [vmem:[#allocation2 + $0x93] sm:$0xff]
        %v5794 = vld [vmem:[#allocation2 + $0x9b] sm:$0xff]
        %v5795 = vld [vmem:[#allocation2 + $0xa3] sm:$0xff]
        %v5796 = vld [vmem:[#allocation2 + $0xab] sm:$0xff]
        %v5797 = vld [vmem:[#allocation2 + $0xb3] sm:$0xff]
        %v5798 = vld [vmem:[#allocation2 + $0xbb] sm:$0xff]
        %v5799 = vld [vmem:[#allocation2 + $0xc3] sm:$0xff]
        %v5800 = vld [vmem:[#allocation2 + $0xcb] sm:$0xff]
        %v5801 = vld [vmem:[#allocation2 + $0xd3] sm:$0xff]
        %v5802 = vld [vmem:[#allocation2 + $0xdb] sm:$0xff]
        %v5803 = vld [vmem:[#allocation2 + $0xe3] sm:$0xff]
        %v5804 = vld [vmem:[#allocation2 + $0xeb] sm:$0xff]
        %v5805 = vld [vmem:[#allocation2 + $0xf3] sm:$0xff]
        %v5806 = vld [vmem:[#allocation2 + $0xfb] sm:$0xff]
        %v5807 = vld [vmem:[#allocation2 + $0x103] sm:$0xff]
        %v5808 = vld [vmem:[#allocation2 + $0x10b] sm:$0xff]
        %v5809 = vld [vmem:[#allocation2 + $0x113] sm:$0xff]
        %v5810 = vld [vmem:[#allocation2 + $0x11b] sm:$0xff]
        %v5811 = vld [vmem:[#allocation2 + $0x123] sm:$0xff]
        %v5812 = vld [vmem:[#allocation2 + $0x12b] sm:$0xff]
        %v5813 = vpack.c.bf16 %v5778, %v5777
        %v5814 = vpack.c.bf16 %v5780, %v5779
        %v5815 = vpack.c.bf16 %v5782, %v5781
        %v5816 = vpack.c.bf16 %v5784, %v5783
        %v5817 = vpack.c.bf16 %v5786, %v5785
        %v5818 = vpack.c.bf16 %v5788, %v5787
        %v5819 = vpack.c.bf16 %v5790, %v5789
        %v5820 = vpack.c.bf16 %v5792, %v5791
        %v5821 = vpack.c.bf16 %v5794, %v5793
        %v5822 = vpack.c.bf16 %v5796, %v5795
        %v5823 = vpack.c.bf16 %v5798, %v5797
        %v5824 = vpack.c.bf16 %v5800, %v5799
        %v5825 = vpack.c.bf16 %v5802, %v5801
        %v5826 = vpack.c.bf16 %v5804, %v5803
        %v5827 = vpack.c.bf16 %v5806, %v5805
        %v5828 = vpack.c.bf16 %v5808, %v5807
        %v5829 = vpack.c.bf16 %v5810, %v5809
        %v5830 = vpack.c.bf16 %v5812, %v5811
        %s5831 = scalar_lea.vmem [#allocation12], 256
        %v5832 = vld [vmem:[%s5831] sm:$0xf]
        %v5833 = vld [vmem:[%s5831 + $0x4] sm:$0xf]
        %v5834 = vld [vmem:[%s5831 + $0x8] sm:$0xf]
        %v5835 = vld [vmem:[%s5831 + $0xc] sm:$0xf]
        %v5836 = vld [vmem:[%s5831 + $0x10] sm:$0xf]
        %v5837 = vld [vmem:[%s5831 + $0x14] sm:$0xf]
        %v5838 = vld [vmem:[%s5831 + $0x18] sm:$0xf]
        %v5839 = vld [vmem:[%s5831 + $0x1c] sm:$0xf]
        %v5840 = vld [vmem:[%s5831 + $0x20] sm:$0xf]
        %v5841 = vld [vmem:[%s5831 + $0x24] sm:$0xf]
        %v5842 = vld [vmem:[%s5831 + $0x28] sm:$0xf]
        %v5843 = vld [vmem:[%s5831 + $0x2c] sm:$0xf]
        %v5844 = vld [vmem:[%s5831 + $0x30] sm:$0xf]
        %v5845 = vld [vmem:[%s5831 + $0x34] sm:$0xf]
        %v5846 = vld [vmem:[%s5831 + $0x38] sm:$0xf]
        %v5847 = vld [vmem:[%s5831 + $0x3c] sm:$0xf]
        %v5864 = vunpack.c.l.b16 %v5832
        %v5865 = vunpack.c.l.b16 %v5833
        %v5866 = vunpack.c.l.b16 %v5834
        %v5867 = vunpack.c.l.b16 %v5835
        %v5868 = vunpack.c.l.b16 %v5836
        %v5869 = vunpack.c.l.b16 %v5837
        %v5870 = vunpack.c.l.b16 %v5838
        %v5871 = vunpack.c.l.b16 %v5839
        %v5872 = vunpack.c.l.b16 %v5840
        %v5873 = vunpack.c.l.b16 %v5841
        %v5874 = vunpack.c.l.b16 %v5842
        %v5875 = vunpack.c.l.b16 %v5843
        %v5876 = vunpack.c.l.b16 %v5844
        %v5877 = vunpack.c.l.b16 %v5845
        %v5878 = vunpack.c.l.b16 %v5846
        %v5879 = vunpack.c.l.b16 %v5847
        %v5880 = vpack.c.b16 %v5865, %v5864
        %v5881 = vpack.c.b16 %v5867, %v5866
        %v5882 = vpack.c.b16 %v5869, %v5868
        %v5883 = vpack.c.b16 %v5871, %v5870
        %v5884 = vpack.c.b16 %v5873, %v5872
        %v5885 = vpack.c.b16 %v5875, %v5874
        %v5886 = vpack.c.b16 %v5877, %v5876
        %v5887 = vpack.c.b16 %v5879, %v5878
        %5896 = vmatprep.subr.bf16.mxu0 0
        %5897 = vmatpush1.bf16.msra.mxu0 %v5880
        %5898 = vmatprep.subr.bf16.mxu0 0
        %5899 = vmatpush1.bf16.msra.mxu0 %v5881
        %5900 = vmatprep.subr.bf16.mxu0 0
        %5901 = vmatpush1.bf16.msra.mxu0 %v5882
        %5902 = vmatprep.subr.bf16.mxu0 0
        %5903 = vmatpush1.bf16.msra.mxu0 %v5883
        %5904 = vmatprep.subr.bf16.mxu0 0
        %5905 = vmatpush1.bf16.msra.mxu0 %v5884
        %5906 = vmatprep.subr.bf16.mxu0 0
        %5907 = vmatpush1.bf16.msra.mxu0 %v5885
        %5908 = vmatprep.subr.bf16.mxu0 0
        %5909 = vmatpush1.bf16.msra.mxu0 %v5886
        %5910 = vmatprep.subr.bf16.mxu0 0
        %5911 = vmatpush1.bf16.msra.mxu0 %v5887
        %5912 = vmatprep.subr.bf16.mxu0 0
        %5913 = vmatpush1.bf16.msra.mxu0 0
        %5914 = vmatprep.subr.bf16.mxu0 0
        %5915 = vmatpush1.bf16.msra.mxu0 0
        %5916 = vmatprep.subr.bf16.mxu0 0
        %5917 = vmatpush1.bf16.msra.mxu0 0
        %5918 = vmatprep.subr.bf16.mxu0 0
        %5919 = vmatpush1.bf16.msra.mxu0 0
        %5920 = vmatprep.subr.bf16.mxu0 0
        %5921 = vmatpush1.bf16.msra.mxu0 0
        %5922 = vmatprep.subr.bf16.mxu0 0
        %5923 = vmatpush1.bf16.msra.mxu0 0
        %5924 = vmatprep.subr.bf16.mxu0 0
        %5925 = vmatpush1.bf16.msra.mxu0 0
        %5926 = vmatprep.subr.bf16.mxu0 0
        %5927 = vmatpush1.bf16.msra.mxu0 0
        %5928 = vmatprep.mubr.bf16.mxu0 0
        %5929 = vmatmul.mubr.bf16.gmra.mrb[0].mxu0 %v5813
        %v5930 = vpop.f32.mrb[0].mxu0
        %v5931 = vadd.f32 0.0, %v5930
        %v5932 = vpop.f32.mrb[0].mxu0
        %v5933 = vpop.f32.mrb[0].mxu0
        %v5934 = vadd.f32 0.0, %v5933
        %v5935 = vpop.f32.mrb[0].mxu0
        %5936 = vmatprep.mubr.bf16.mxu0 0
        %5937 = vmatmul.mubr.bf16.gmra.mrb[0].mxu0 %v5814
        %v5938 = vpop.f32.mrb[0].mxu0
        %v5939 = vadd.f32 0.0, %v5938
        %v5940 = vpop.f32.mrb[0].mxu0
        %v5941 = vpop.f32.mrb[0].mxu0
        %v5942 = vadd.f32 0.0, %v5941
        %v5943 = vpop.f32.mrb[0].mxu0
        %5944 = vmatprep.mubr.bf16.mxu0 0
        %5945 = vmatmul.mubr.bf16.gmra.mrb[0].mxu0 %v5815
        %v5946 = vpop.f32.mrb[0].mxu0
        %v5947 = vadd.f32 0.0, %v5946
        %v5948 = vpop.f32.mrb[0].mxu0
        %v5949 = vpop.f32.mrb[0].mxu0
        %v5950 = vadd.f32 0.0, %v5949
        %v5951 = vpop.f32.mrb[0].mxu0
        %5952 = vmatprep.mubr.bf16.mxu0 0
        %5953 = vmatmul.mubr.bf16.gmra.mrb[0].mxu0 %v5816
        %v5954 = vpop.f32.mrb[0].mxu0
        %v5955 = vadd.f32 0.0, %v5954
        %v5956 = vpop.f32.mrb[0].mxu0
        %v5957 = vpop.f32.mrb[0].mxu0
        %v5958 = vadd.f32 0.0, %v5957
        %v5959 = vpop.f32.mrb[0].mxu0
        %5960 = vmatprep.mubr.bf16.mxu0 0
        %5961 = vmatmul.mubr.bf16.gmra.mrb[0].mxu0 %v5817
        %v5962 = vpop.f32.mrb[0].mxu0
        %v5963 = vadd.f32 0.0, %v5962
        %v5964 = vpop.f32.mrb[0].mxu0
        %v5965 = vpop.f32.mrb[0].mxu0
        %v5966 = vadd.f32 0.0, %v5965
        %v5967 = vpop.f32.mrb[0].mxu0
        %5968 = vmatprep.mubr.bf16.mxu0 0
        %5969 = vmatmul.mubr.bf16.gmra.mrb[0].mxu0 %v5818
        %v5970 = vpop.f32.mrb[0].mxu0
        %v5971 = vadd.f32 0.0, %v5970
        %v5972 = vpop.f32.mrb[0].mxu0
        %v5973 = vpop.f32.mrb[0].mxu0
        %v5974 = vadd.f32 0.0, %v5973
        %v5975 = vpop.f32.mrb[0].mxu0
        %5976 = vmatprep.mubr.bf16.mxu0 0
        %5977 = vmatmul.mubr.bf16.gmra.mrb[0].mxu0 %v5819
        %v5978 = vpop.f32.mrb[0].mxu0
        %v5979 = vadd.f32 0.0, %v5978
        %v5980 = vpop.f32.mrb[0].mxu0
        %v5981 = vpop.f32.mrb[0].mxu0
        %v5982 = vadd.f32 0.0, %v5981
        %v5983 = vpop.f32.mrb[0].mxu0
        %5984 = vmatprep.mubr.bf16.mxu0 0
        %5985 = vmatmul.mubr.bf16.gmra.mrb[0].mxu0 %v5820
        %v5986 = vpop.f32.mrb[0].mxu0
        %v5987 = vadd.f32 0.0, %v5986
        %v5988 = vpop.f32.mrb[0].mxu0
        %v5989 = vpop.f32.mrb[0].mxu0
        %v5990 = vadd.f32 0.0, %v5989
        %v5991 = vpop.f32.mrb[0].mxu0
        %5992 = vmatprep.mubr.bf16.mxu0 0
        %5993 = vmatmul.mubr.bf16.gmra.mrb[0].mxu0 %v5821
        %v5994 = vpop.f32.mrb[0].mxu0
        %v5995 = vadd.f32 0.0, %v5994
        %v5996 = vpop.f32.mrb[0].mxu0
        %v5997 = vpop.f32.mrb[0].mxu0
        %v5998 = vadd.f32 0.0, %v5997
        %v5999 = vpop.f32.mrb[0].mxu0
        %6000 = vmatprep.mubr.bf16.mxu0 0
        %6001 = vmatmul.mubr.bf16.gmra.mrb[0].mxu0 %v5822
        %v6002 = vpop.f32.mrb[0].mxu0
        %v6003 = vadd.f32 0.0, %v6002
        %v6004 = vpop.f32.mrb[0].mxu0
        %v6005 = vpop.f32.mrb[0].mxu0
        %v6006 = vadd.f32 0.0, %v6005
        %v6007 = vpop.f32.mrb[0].mxu0
        %6008 = vmatprep.mubr.bf16.mxu0 0
        %6009 = vmatmul.mubr.bf16.gmra.mrb[0].mxu0 %v5823
        %v6010 = vpop.f32.mrb[0].mxu0
        %v6011 = vadd.f32 0.0, %v6010
        %v6012 = vpop.f32.mrb[0].mxu0
        %v6013 = vpop.f32.mrb[0].mxu0
        %v6014 = vadd.f32 0.0, %v6013
        %v6015 = vpop.f32.mrb[0].mxu0
        %6016 = vmatprep.mubr.bf16.mxu0 0
        %6017 = vmatmul.mubr.bf16.gmra.mrb[0].mxu0 %v5824
        %v6018 = vpop.f32.mrb[0].mxu0
        %v6019 = vadd.f32 0.0, %v6018
        %v6020 = vpop.f32.mrb[0].mxu0
        %v6021 = vpop.f32.mrb[0].mxu0
        %v6022 = vadd.f32 0.0, %v6021
        %v6023 = vpop.f32.mrb[0].mxu0
        %6024 = vmatprep.mubr.bf16.mxu0 0
        %6025 = vmatmul.mubr.bf16.gmra.mrb[0].mxu0 %v5825
        %v6026 = vpop.f32.mrb[0].mxu0
        %v6027 = vadd.f32 0.0, %v6026
        %v6028 = vpop.f32.mrb[0].mxu0
        %v6029 = vpop.f32.mrb[0].mxu0
        %v6030 = vadd.f32 0.0, %v6029
        %v6031 = vpop.f32.mrb[0].mxu0
        %6032 = vmatprep.mubr.bf16.mxu0 0
        %6033 = vmatmul.mubr.bf16.gmra.mrb[0].mxu0 %v5826
        %v6034 = vpop.f32.mrb[0].mxu0
        %v6035 = vadd.f32 0.0, %v6034
        %v6036 = vpop.f32.mrb[0].mxu0
        %v6037 = vpop.f32.mrb[0].mxu0
        %v6038 = vadd.f32 0.0, %v6037
        %v6039 = vpop.f32.mrb[0].mxu0
        %6040 = vmatprep.mubr.bf16.mxu0 0
        %6041 = vmatmul.mubr.bf16.gmra.mrb[0].mxu0 %v5827
        %v6042 = vpop.f32.mrb[0].mxu0
        %v6043 = vadd.f32 0.0, %v6042
        %v6044 = vpop.f32.mrb[0].mxu0
        %v6045 = vpop.f32.mrb[0].mxu0
        %v6046 = vadd.f32 0.0, %v6045
        %v6047 = vpop.f32.mrb[0].mxu0
        %6048 = vmatprep.mubr.bf16.mxu0 0
        %6049 = vmatmul.mubr.bf16.gmra.mrb[0].mxu0 %v5828
        %v6050 = vpop.f32.mrb[0].mxu0
        %v6051 = vadd.f32 0.0, %v6050
        %v6052 = vpop.f32.mrb[0].mxu0
        %v6053 = vpop.f32.mrb[0].mxu0
        %v6054 = vadd.f32 0.0, %v6053
        %v6055 = vpop.f32.mrb[0].mxu0
        %6056 = vmatprep.mubr.bf16.mxu0 0
        %6057 = vmatmul.mubr.bf16.gmra.mrb[0].mxu0 %v5829
        %v6058 = vpop.f32.mrb[0].mxu0
        %v6059 = vadd.f32 0.0, %v6058
        %v6060 = vpop.f32.mrb[0].mxu0
        %v6061 = vpop.f32.mrb[0].mxu0
        %v6062 = vadd.f32 0.0, %v6061
        %v6063 = vpop.f32.mrb[0].mxu0
        %6064 = vmatprep.mubr.bf16.mxu0 0
        %6065 = vmatmul.mubr.bf16.gmra.mrb[0].mxu0 %v5830
        %v6066 = vpop.f32.mrb[0].mxu0
        %v6067 = vadd.f32 0.0, %v6066
        %v6068 = vpop.f32.mrb[0].mxu0
        %v6069 = vpop.f32.mrb[0].mxu0
        %v6070 = vadd.f32 0.0, %v6069
        %v6071 = vpop.f32.mrb[0].mxu0
        %6072 = vdwg.mxu0
        %v6073 = vadd.f32 %v5741, %v5931
        %v6074 = vadd.f32 %v5742, %v5934
        %v6075 = vadd.f32 %v5743, %v5939
        %v6076 = vadd.f32 %v5744, %v5942
        %v6077 = vadd.f32 %v5745, %v5947
        %v6078 = vadd.f32 %v5746, %v5950
        %v6079 = vadd.f32 %v5747, %v5955
        %v6080 = vadd.f32 %v5748, %v5958
        %v6081 = vadd.f32 %v5749, %v5963
        %v6082 = vadd.f32 %v5750, %v5966
        %v6083 = vadd.f32 %v5751, %v5971
        %v6084 = vadd.f32 %v5752, %v5974
        %v6085 = vadd.f32 %v5753, %v5979
        %v6086 = vadd.f32 %v5754, %v5982
        %v6087 = vadd.f32 %v5755, %v5987
        %v6088 = vadd.f32 %v5756, %v5990
        %v6089 = vadd.f32 %v5757, %v5995
        %v6090 = vadd.f32 %v5758, %v5998
        %v6091 = vadd.f32 %v5759, %v6003
        %v6092 = vadd.f32 %v5760, %v6006
        %v6093 = vadd.f32 %v5761, %v6011
        %v6094 = vadd.f32 %v5762, %v6014
        %v6095 = vadd.f32 %v5763, %v6019
        %v6096 = vadd.f32 %v5764, %v6022
        %v6097 = vadd.f32 %v5765, %v6027
        %v6098 = vadd.f32 %v5766, %v6030
        %v6099 = vadd.f32 %v5767, %v6035
        %v6100 = vadd.f32 %v5768, %v6038
        %v6101 = vadd.f32 %v5769, %v6043
        %v6102 = vadd.f32 %v5770, %v6046
        %v6103 = vadd.f32 %v5771, %v6051
        %v6104 = vadd.f32 %v5772, %v6054
        %v6105 = vadd.f32 %v5773, %v6059
        %v6106 = vadd.f32 %v5774, %v6062
        %v6107 = vadd.f32 %v5775, %v6067
        %v6108 = vadd.f32 %v5776, %v6070
        %v6109 = vld [vmem:[#allocation2 + $0x14] sm:$0xff]
        %v6110 = vld [vmem:[#allocation2 + $0x1c] sm:$0xff]
        %v6111 = vld [vmem:[#allocation2 + $0x24] sm:$0xff]
        %v6112 = vld [vmem:[#allocation2 + $0x2c] sm:$0xff]
        %v6113 = vld [vmem:[#allocation2 + $0x34] sm:$0xff]
        %v6114 = vld [vmem:[#allocation2 + $0x3c] sm:$0xff]
        %v6115 = vld [vmem:[#allocation2 + $0x44] sm:$0xff]
        %v6116 = vld [vmem:[#allocation2 + $0x4c] sm:$0xff]
        %v6117 = vld [vmem:[#allocation2 + $0x54] sm:$0xff]
        %v6118 = vld [vmem:[#allocation2 + $0x5c] sm:$0xff]
        %v6119 = vld [vmem:[#allocation2 + $0x64] sm:$0xff]
        %v6120 = vld [vmem:[#allocation2 + $0x6c] sm:$0xff]
        %v6121 = vld [vmem:[#allocation2 + $0x74] sm:$0xff]
        %v6122 = vld [vmem:[#allocation2 + $0x7c] sm:$0xff]
        %v6123 = vld [vmem:[#allocation2 + $0x84] sm:$0xff]
        %v6124 = vld [vmem:[#allocation2 + $0x8c] sm:$0xff]
        %v6125 = vld [vmem:[#allocation2 + $0x94] sm:$0xff]
        %v6126 = vld [vmem:[#allocation2 + $0x9c] sm:$0xff]
        %v6127 = vld [vmem:[#allocation2 + $0xa4] sm:$0xff]
        %v6128 = vld [vmem:[#allocation2 + $0xac] sm:$0xff]
        %v6129 = vld [vmem:[#allocation2 + $0xb4] sm:$0xff]
        %v6130 = vld [vmem:[#allocation2 + $0xbc] sm:$0xff]
        %v6131 = vld [vmem:[#allocation2 + $0xc4] sm:$0xff]
        %v6132 = vld [vmem:[#allocation2 + $0xcc] sm:$0xff]
        %v6133 = vld [vmem:[#allocation2 + $0xd4] sm:$0xff]
        %v6134 = vld [vmem:[#allocation2 + $0xdc] sm:$0xff]
        %v6135 = vld [vmem:[#allocation2 + $0xe4] sm:$0xff]
        %v6136 = vld [vmem:[#allocation2 + $0xec] sm:$0xff]
        %v6137 = vld [vmem:[#allocation2 + $0xf4] sm:$0xff]
        %v6138 = vld [vmem:[#allocation2 + $0xfc] sm:$0xff]
        %v6139 = vld [vmem:[#allocation2 + $0x104] sm:$0xff]
        %v6140 = vld [vmem:[#allocation2 + $0x10c] sm:$0xff]
        %v6141 = vld [vmem:[#allocation2 + $0x114] sm:$0xff]
        %v6142 = vld [vmem:[#allocation2 + $0x11c] sm:$0xff]
        %v6143 = vld [vmem:[#allocation2 + $0x124] sm:$0xff]
        %v6144 = vld [vmem:[#allocation2 + $0x12c] sm:$0xff]
        %v6145 = vpack.c.bf16 %v6110, %v6109
        %v6146 = vpack.c.bf16 %v6112, %v6111
        %v6147 = vpack.c.bf16 %v6114, %v6113
        %v6148 = vpack.c.bf16 %v6116, %v6115
        %v6149 = vpack.c.bf16 %v6118, %v6117
        %v6150 = vpack.c.bf16 %v6120, %v6119
        %v6151 = vpack.c.bf16 %v6122, %v6121
        %v6152 = vpack.c.bf16 %v6124, %v6123
        %v6153 = vpack.c.bf16 %v6126, %v6125
        %v6154 = vpack.c.bf16 %v6128, %v6127
        %v6155 = vpack.c.bf16 %v6130, %v6129
        %v6156 = vpack.c.bf16 %v6132, %v6131
        %v6157 = vpack.c.bf16 %v6134, %v6133
        %v6158 = vpack.c.bf16 %v6136, %v6135
        %v6159 = vpack.c.bf16 %v6138, %v6137
        %v6160 = vpack.c.bf16 %v6140, %v6139
        %v6161 = vpack.c.bf16 %v6142, %v6141
        %v6162 = vpack.c.bf16 %v6144, %v6143
        %s6163 = scalar_lea.vmem [#allocation12], 320
        %v6164 = vld [vmem:[%s6163] sm:$0xf]
        %v6165 = vld [vmem:[%s6163 + $0x4] sm:$0xf]
        %v6166 = vld [vmem:[%s6163 + $0x8] sm:$0xf]
        %v6167 = vld [vmem:[%s6163 + $0xc] sm:$0xf]
        %v6168 = vld [vmem:[%s6163 + $0x10] sm:$0xf]
        %v6169 = vld [vmem:[%s6163 + $0x14] sm:$0xf]
        %v6170 = vld [vmem:[%s6163 + $0x18] sm:$0xf]
        %v6171 = vld [vmem:[%s6163 + $0x1c] sm:$0xf]
        %v6172 = vld [vmem:[%s6163 + $0x20] sm:$0xf]
        %v6173 = vld [vmem:[%s6163 + $0x24] sm:$0xf]
        %v6174 = vld [vmem:[%s6163 + $0x28] sm:$0xf]
        %v6175 = vld [vmem:[%s6163 + $0x2c] sm:$0xf]
        %v6176 = vld [vmem:[%s6163 + $0x30] sm:$0xf]
        %v6177 = vld [vmem:[%s6163 + $0x34] sm:$0xf]
        %v6178 = vld [vmem:[%s6163 + $0x38] sm:$0xf]
        %v6179 = vld [vmem:[%s6163 + $0x3c] sm:$0xf]
        %v6196 = vunpack.c.l.b16 %v6164
        %v6197 = vunpack.c.l.b16 %v6165
        %v6198 = vunpack.c.l.b16 %v6166
        %v6199 = vunpack.c.l.b16 %v6167
        %v6200 = vunpack.c.l.b16 %v6168
        %v6201 = vunpack.c.l.b16 %v6169
        %v6202 = vunpack.c.l.b16 %v6170
        %v6203 = vunpack.c.l.b16 %v6171
        %v6204 = vunpack.c.l.b16 %v6172
        %v6205 = vunpack.c.l.b16 %v6173
        %v6206 = vunpack.c.l.b16 %v6174
        %v6207 = vunpack.c.l.b16 %v6175
        %v6208 = vunpack.c.l.b16 %v6176
        %v6209 = vunpack.c.l.b16 %v6177
        %v6210 = vunpack.c.l.b16 %v6178
        %v6211 = vunpack.c.l.b16 %v6179
        %v6212 = vpack.c.b16 %v6197, %v6196
        %v6213 = vpack.c.b16 %v6199, %v6198
        %v6214 = vpack.c.b16 %v6201, %v6200
        %v6215 = vpack.c.b16 %v6203, %v6202
        %v6216 = vpack.c.b16 %v6205, %v6204
        %v6217 = vpack.c.b16 %v6207, %v6206
        %v6218 = vpack.c.b16 %v6209, %v6208
        %v6219 = vpack.c.b16 %v6211, %v6210
        %6228 = vmatprep.subr.bf16.mxu0 0
        %6229 = vmatpush1.bf16.msra.mxu0 %v6212
        %6230 = vmatprep.subr.bf16.mxu0 0
        %6231 = vmatpush1.bf16.msra.mxu0 %v6213
        %6232 = vmatprep.subr.bf16.mxu0 0
        %6233 = vmatpush1.bf16.msra.mxu0 %v6214
        %6234 = vmatprep.subr.bf16.mxu0 0
        %6235 = vmatpush1.bf16.msra.mxu0 %v6215
        %6236 = vmatprep.subr.bf16.mxu0 0
        %6237 = vmatpush1.bf16.msra.mxu0 %v6216
        %6238 = vmatprep.subr.bf16.mxu0 0
        %6239 = vmatpush1.bf16.msra.mxu0 %v6217
        %6240 = vmatprep.subr.bf16.mxu0 0
        %6241 = vmatpush1.bf16.msra.mxu0 %v6218
        %6242 = vmatprep.subr.bf16.mxu0 0
        %6243 = vmatpush1.bf16.msra.mxu0 %v6219
        %6244 = vmatprep.subr.bf16.mxu0 0
        %6245 = vmatpush1.bf16.msra.mxu0 0
        %6246 = vmatprep.subr.bf16.mxu0 0
        %6247 = vmatpush1.bf16.msra.mxu0 0
        %6248 = vmatprep.subr.bf16.mxu0 0
        %6249 = vmatpush1.bf16.msra.mxu0 0
        %6250 = vmatprep.subr.bf16.mxu0 0
        %6251 = vmatpush1.bf16.msra.mxu0 0
        %6252 = vmatprep.subr.bf16.mxu0 0
        %6253 = vmatpush1.bf16.msra.mxu0 0
        %6254 = vmatprep.subr.bf16.mxu0 0
        %6255 = vmatpush1.bf16.msra.mxu0 0
        %6256 = vmatprep.subr.bf16.mxu0 0
        %6257 = vmatpush1.bf16.msra.mxu0 0
        %6258 = vmatprep.subr.bf16.mxu0 0
        %6259 = vmatpush1.bf16.msra.mxu0 0
        %6260 = vmatprep.mubr.bf16.mxu0 0
        %6261 = vmatmul.mubr.bf16.gmra.mrb[0].mxu0 %v6145
        %v6262 = vpop.f32.mrb[0].mxu0
        %v6263 = vadd.f32 0.0, %v6262
        %v6264 = vpop.f32.mrb[0].mxu0
        %v6265 = vpop.f32.mrb[0].mxu0
        %v6266 = vadd.f32 0.0, %v6265
        %v6267 = vpop.f32.mrb[0].mxu0
        %6268 = vmatprep.mubr.bf16.mxu0 0
        %6269 = vmatmul.mubr.bf16.gmra.mrb[0].mxu0 %v6146
        %v6270 = vpop.f32.mrb[0].mxu0
        %v6271 = vadd.f32 0.0, %v6270
        %v6272 = vpop.f32.mrb[0].mxu0
        %v6273 = vpop.f32.mrb[0].mxu0
        %v6274 = vadd.f32 0.0, %v6273
        %v6275 = vpop.f32.mrb[0].mxu0
        %6276 = vmatprep.mubr.bf16.mxu0 0
        %6277 = vmatmul.mubr.bf16.gmra.mrb[0].mxu0 %v6147
        %v6278 = vpop.f32.mrb[0].mxu0
        %v6279 = vadd.f32 0.0, %v6278
        %v6280 = vpop.f32.mrb[0].mxu0
        %v6281 = vpop.f32.mrb[0].mxu0
        %v6282 = vadd.f32 0.0, %v6281
        %v6283 = vpop.f32.mrb[0].mxu0
        %6284 = vmatprep.mubr.bf16.mxu0 0
        %6285 = vmatmul.mubr.bf16.gmra.mrb[0].mxu0 %v6148
        %v6286 = vpop.f32.mrb[0].mxu0
        %v6287 = vadd.f32 0.0, %v6286
        %v6288 = vpop.f32.mrb[0].mxu0
        %v6289 = vpop.f32.mrb[0].mxu0
        %v6290 = vadd.f32 0.0, %v6289
        %v6291 = vpop.f32.mrb[0].mxu0
        %6292 = vmatprep.mubr.bf16.mxu0 0
        %6293 = vmatmul.mubr.bf16.gmra.mrb[0].mxu0 %v6149
        %v6294 = vpop.f32.mrb[0].mxu0
        %v6295 = vadd.f32 0.0, %v6294
        %v6296 = vpop.f32.mrb[0].mxu0
        %v6297 = vpop.f32.mrb[0].mxu0
        %v6298 = vadd.f32 0.0, %v6297
        %v6299 = vpop.f32.mrb[0].mxu0
        %6300 = vmatprep.mubr.bf16.mxu0 0
        %6301 = vmatmul.mubr.bf16.gmra.mrb[0].mxu0 %v6150
        %v6302 = vpop.f32.mrb[0].mxu0
        %v6303 = vadd.f32 0.0, %v6302
        %v6304 = vpop.f32.mrb[0].mxu0
        %v6305 = vpop.f32.mrb[0].mxu0
        %v6306 = vadd.f32 0.0, %v6305
        %v6307 = vpop.f32.mrb[0].mxu0
        %6308 = vmatprep.mubr.bf16.mxu0 0
        %6309 = vmatmul.mubr.bf16.gmra.mrb[0].mxu0 %v6151
        %v6310 = vpop.f32.mrb[0].mxu0
        %v6311 = vadd.f32 0.0, %v6310
        %v6312 = vpop.f32.mrb[0].mxu0
        %v6313 = vpop.f32.mrb[0].mxu0
        %v6314 = vadd.f32 0.0, %v6313
        %v6315 = vpop.f32.mrb[0].mxu0
        %6316 = vmatprep.mubr.bf16.mxu0 0
        %6317 = vmatmul.mubr.bf16.gmra.mrb[0].mxu0 %v6152
        %v6318 = vpop.f32.mrb[0].mxu0
        %v6319 = vadd.f32 0.0, %v6318
        %v6320 = vpop.f32.mrb[0].mxu0
        %v6321 = vpop.f32.mrb[0].mxu0
        %v6322 = vadd.f32 0.0, %v6321
        %v6323 = vpop.f32.mrb[0].mxu0
        %6324 = vmatprep.mubr.bf16.mxu0 0
        %6325 = vmatmul.mubr.bf16.gmra.mrb[0].mxu0 %v6153
        %v6326 = vpop.f32.mrb[0].mxu0
        %v6327 = vadd.f32 0.0, %v6326
        %v6328 = vpop.f32.mrb[0].mxu0
        %v6329 = vpop.f32.mrb[0].mxu0
        %v6330 = vadd.f32 0.0, %v6329
        %v6331 = vpop.f32.mrb[0].mxu0
        %6332 = vmatprep.mubr.bf16.mxu0 0
        %6333 = vmatmul.mubr.bf16.gmra.mrb[0].mxu0 %v6154
        %v6334 = vpop.f32.mrb[0].mxu0
        %v6335 = vadd.f32 0.0, %v6334
        %v6336 = vpop.f32.mrb[0].mxu0
        %v6337 = vpop.f32.mrb[0].mxu0
        %v6338 = vadd.f32 0.0, %v6337
        %v6339 = vpop.f32.mrb[0].mxu0
        %6340 = vmatprep.mubr.bf16.mxu0 0
        %6341 = vmatmul.mubr.bf16.gmra.mrb[0].mxu0 %v6155
        %v6342 = vpop.f32.mrb[0].mxu0
        %v6343 = vadd.f32 0.0, %v6342
        %v6344 = vpop.f32.mrb[0].mxu0
        %v6345 = vpop.f32.mrb[0].mxu0
        %v6346 = vadd.f32 0.0, %v6345
        %v6347 = vpop.f32.mrb[0].mxu0
        %6348 = vmatprep.mubr.bf16.mxu0 0
        %6349 = vmatmul.mubr.bf16.gmra.mrb[0].mxu0 %v6156
        %v6350 = vpop.f32.mrb[0].mxu0
        %v6351 = vadd.f32 0.0, %v6350
        %v6352 = vpop.f32.mrb[0].mxu0
        %v6353 = vpop.f32.mrb[0].mxu0
        %v6354 = vadd.f32 0.0, %v6353
        %v6355 = vpop.f32.mrb[0].mxu0
        %6356 = vmatprep.mubr.bf16.mxu0 0
        %6357 = vmatmul.mubr.bf16.gmra.mrb[0].mxu0 %v6157
        %v6358 = vpop.f32.mrb[0].mxu0
        %v6359 = vadd.f32 0.0, %v6358
        %v6360 = vpop.f32.mrb[0].mxu0
        %v6361 = vpop.f32.mrb[0].mxu0
        %v6362 = vadd.f32 0.0, %v6361
        %v6363 = vpop.f32.mrb[0].mxu0
        %6364 = vmatprep.mubr.bf16.mxu0 0
        %6365 = vmatmul.mubr.bf16.gmra.mrb[0].mxu0 %v6158
        %v6366 = vpop.f32.mrb[0].mxu0
        %v6367 = vadd.f32 0.0, %v6366
        %v6368 = vpop.f32.mrb[0].mxu0
        %v6369 = vpop.f32.mrb[0].mxu0
        %v6370 = vadd.f32 0.0, %v6369
        %v6371 = vpop.f32.mrb[0].mxu0
        %6372 = vmatprep.mubr.bf16.mxu0 0
        %6373 = vmatmul.mubr.bf16.gmra.mrb[0].mxu0 %v6159
        %v6374 = vpop.f32.mrb[0].mxu0
        %v6375 = vadd.f32 0.0, %v6374
        %v6376 = vpop.f32.mrb[0].mxu0
        %v6377 = vpop.f32.mrb[0].mxu0
        %v6378 = vadd.f32 0.0, %v6377
        %v6379 = vpop.f32.mrb[0].mxu0
        %6380 = vmatprep.mubr.bf16.mxu0 0
        %6381 = vmatmul.mubr.bf16.gmra.mrb[0].mxu0 %v6160
        %v6382 = vpop.f32.mrb[0].mxu0
        %v6383 = vadd.f32 0.0, %v6382
        %v6384 = vpop.f32.mrb[0].mxu0
        %v6385 = vpop.f32.mrb[0].mxu0
        %v6386 = vadd.f32 0.0, %v6385
        %v6387 = vpop.f32.mrb[0].mxu0
        %6388 = vmatprep.mubr.bf16.mxu0 0
        %6389 = vmatmul.mubr.bf16.gmra.mrb[0].mxu0 %v6161
        %v6390 = vpop.f32.mrb[0].mxu0
        %v6391 = vadd.f32 0.0, %v6390
        %v6392 = vpop.f32.mrb[0].mxu0
        %v6393 = vpop.f32.mrb[0].mxu0
        %v6394 = vadd.f32 0.0, %v6393
        %v6395 = vpop.f32.mrb[0].mxu0
        %6396 = vmatprep.mubr.bf16.mxu0 0
        %6397 = vmatmul.mubr.bf16.gmra.mrb[0].mxu0 %v6162
        %v6398 = vpop.f32.mrb[0].mxu0
        %v6399 = vadd.f32 0.0, %v6398
        %v6400 = vpop.f32.mrb[0].mxu0
        %v6401 = vpop.f32.mrb[0].mxu0
        %v6402 = vadd.f32 0.0, %v6401
        %v6403 = vpop.f32.mrb[0].mxu0
        %6404 = vdwg.mxu0
        %v6405 = vadd.f32 %v6073, %v6263
        %v6406 = vadd.f32 %v6074, %v6266
        %v6407 = vadd.f32 %v6075, %v6271
        %v6408 = vadd.f32 %v6076, %v6274
        %v6409 = vadd.f32 %v6077, %v6279
        %v6410 = vadd.f32 %v6078, %v6282
        %v6411 = vadd.f32 %v6079, %v6287
        %v6412 = vadd.f32 %v6080, %v6290
        %v6413 = vadd.f32 %v6081, %v6295
        %v6414 = vadd.f32 %v6082, %v6298
        %v6415 = vadd.f32 %v6083, %v6303
        %v6416 = vadd.f32 %v6084, %v6306
        %v6417 = vadd.f32 %v6085, %v6311
        %v6418 = vadd.f32 %v6086, %v6314
        %v6419 = vadd.f32 %v6087, %v6319
        %v6420 = vadd.f32 %v6088, %v6322
        %v6421 = vadd.f32 %v6089, %v6327
        %v6422 = vadd.f32 %v6090, %v6330
        %v6423 = vadd.f32 %v6091, %v6335
        %v6424 = vadd.f32 %v6092, %v6338
        %v6425 = vadd.f32 %v6093, %v6343
        %v6426 = vadd.f32 %v6094, %v6346
        %v6427 = vadd.f32 %v6095, %v6351
        %v6428 = vadd.f32 %v6096, %v6354
        %v6429 = vadd.f32 %v6097, %v6359
        %v6430 = vadd.f32 %v6098, %v6362
        %v6431 = vadd.f32 %v6099, %v6367
        %v6432 = vadd.f32 %v6100, %v6370
        %v6433 = vadd.f32 %v6101, %v6375
        %v6434 = vadd.f32 %v6102, %v6378
        %v6435 = vadd.f32 %v6103, %v6383
        %v6436 = vadd.f32 %v6104, %v6386
        %v6437 = vadd.f32 %v6105, %v6391
        %v6438 = vadd.f32 %v6106, %v6394
        %v6439 = vadd.f32 %v6107, %v6399
        %v6440 = vadd.f32 %v6108, %v6402
        %v6441 = vld [vmem:[#allocation2 + $0x24] sm:$0xff]
        %v6442 = vld [vmem:[#allocation2 + $0x2c] sm:$0xff]
        %v6443 = vld [vmem:[#allocation2 + $0x34] sm:$0xff]
        %v6444 = vld [vmem:[#allocation2 + $0x3c] sm:$0xff]
        %v6445 = vld [vmem:[#allocation2 + $0x44] sm:$0xff]
        %v6446 = vld [vmem:[#allocation2 + $0x4c] sm:$0xff]
        %v6447 = vld [vmem:[#allocation2 + $0x54] sm:$0xff]
        %v6448 = vld [vmem:[#allocation2 + $0x5c] sm:$0xff]
        %v6449 = vld [vmem:[#allocation2 + $0x64] sm:$0xff]
        %v6450 = vld [vmem:[#allocation2 + $0x6c] sm:$0xff]
        %v6451 = vld [vmem:[#allocation2 + $0x74] sm:$0xff]
        %v6452 = vld [vmem:[#allocation2 + $0x7c] sm:$0xff]
        %v6453 = vld [vmem:[#allocation2 + $0x84] sm:$0xff]
        %v6454 = vld [vmem:[#allocation2 + $0x8c] sm:$0xff]
        %v6455 = vld [vmem:[#allocation2 + $0x94] sm:$0xff]
        %v6456 = vld [vmem:[#allocation2 + $0x9c] sm:$0xff]
        %v6457 = vld [vmem:[#allocation2 + $0xa4] sm:$0xff]
        %v6458 = vld [vmem:[#allocation2 + $0xac] sm:$0xff]
        %v6459 = vld [vmem:[#allocation2 + $0xb4] sm:$0xff]
        %v6460 = vld [vmem:[#allocation2 + $0xbc] sm:$0xff]
        %v6461 = vld [vmem:[#allocation2 + $0xc4] sm:$0xff]
        %v6462 = vld [vmem:[#allocation2 + $0xcc] sm:$0xff]
        %v6463 = vld [vmem:[#allocation2 + $0xd4] sm:$0xff]
        %v6464 = vld [vmem:[#allocation2 + $0xdc] sm:$0xff]
        %v6465 = vld [vmem:[#allocation2 + $0xe4] sm:$0xff]
        %v6466 = vld [vmem:[#allocation2 + $0xec] sm:$0xff]
        %v6467 = vld [vmem:[#allocation2 + $0xf4] sm:$0xff]
        %v6468 = vld [vmem:[#allocation2 + $0xfc] sm:$0xff]
        %v6469 = vld [vmem:[#allocation2 + $0x104] sm:$0xff]
        %v6470 = vld [vmem:[#allocation2 + $0x10c] sm:$0xff]
        %v6471 = vld [vmem:[#allocation2 + $0x114] sm:$0xff]
        %v6472 = vld [vmem:[#allocation2 + $0x11c] sm:$0xff]
        %v6473 = vld [vmem:[#allocation2 + $0x124] sm:$0xff]
        %v6474 = vld [vmem:[#allocation2 + $0x12c] sm:$0xff]
        %v6475 = vld [vmem:[#allocation2 + $0x134] sm:$0xff]
        %v6476 = vld [vmem:[#allocation2 + $0x13c] sm:$0xff]
        %v6477 = vpack.c.bf16 %v6442, %v6441
        %v6478 = vpack.c.bf16 %v6444, %v6443
        %v6479 = vpack.c.bf16 %v6446, %v6445
        %v6480 = vpack.c.bf16 %v6448, %v6447
        %v6481 = vpack.c.bf16 %v6450, %v6449
        %v6482 = vpack.c.bf16 %v6452, %v6451
        %v6483 = vpack.c.bf16 %v6454, %v6453
        %v6484 = vpack.c.bf16 %v6456, %v6455
        %v6485 = vpack.c.bf16 %v6458, %v6457
        %v6486 = vpack.c.bf16 %v6460, %v6459
        %v6487 = vpack.c.bf16 %v6462, %v6461
        %v6488 = vpack.c.bf16 %v6464, %v6463
        %v6489 = vpack.c.bf16 %v6466, %v6465
        %v6490 = vpack.c.bf16 %v6468, %v6467
        %v6491 = vpack.c.bf16 %v6470, %v6469
        %v6492 = vpack.c.bf16 %v6472, %v6471
        %v6493 = vpack.c.bf16 %v6474, %v6473
        %v6494 = vpack.c.bf16 %v6476, %v6475
        %s6495 = scalar_lea.vmem [#allocation12], 384
        %v6496 = vld [vmem:[%s6495] sm:$0xf]
        %v6497 = vld [vmem:[%s6495 + $0x4] sm:$0xf]
        %v6498 = vld [vmem:[%s6495 + $0x8] sm:$0xf]
        %v6499 = vld [vmem:[%s6495 + $0xc] sm:$0xf]
        %v6500 = vld [vmem:[%s6495 + $0x10] sm:$0xf]
        %v6501 = vld [vmem:[%s6495 + $0x14] sm:$0xf]
        %v6502 = vld [vmem:[%s6495 + $0x18] sm:$0xf]
        %v6503 = vld [vmem:[%s6495 + $0x1c] sm:$0xf]
        %v6504 = vld [vmem:[%s6495 + $0x20] sm:$0xf]
        %v6505 = vld [vmem:[%s6495 + $0x24] sm:$0xf]
        %v6506 = vld [vmem:[%s6495 + $0x28] sm:$0xf]
        %v6507 = vld [vmem:[%s6495 + $0x2c] sm:$0xf]
        %v6508 = vld [vmem:[%s6495 + $0x30] sm:$0xf]
        %v6509 = vld [vmem:[%s6495 + $0x34] sm:$0xf]
        %v6510 = vld [vmem:[%s6495 + $0x38] sm:$0xf]
        %v6511 = vld [vmem:[%s6495 + $0x3c] sm:$0xf]
        %v6528 = vunpack.c.l.b16 %v6496
        %v6529 = vunpack.c.l.b16 %v6497
        %v6530 = vunpack.c.l.b16 %v6498
        %v6531 = vunpack.c.l.b16 %v6499
        %v6532 = vunpack.c.l.b16 %v6500
        %v6533 = vunpack.c.l.b16 %v6501
        %v6534 = vunpack.c.l.b16 %v6502
        %v6535 = vunpack.c.l.b16 %v6503
        %v6536 = vunpack.c.l.b16 %v6504
        %v6537 = vunpack.c.l.b16 %v6505
        %v6538 = vunpack.c.l.b16 %v6506
        %v6539 = vunpack.c.l.b16 %v6507
        %v6540 = vunpack.c.l.b16 %v6508
        %v6541 = vunpack.c.l.b16 %v6509
        %v6542 = vunpack.c.l.b16 %v6510
        %v6543 = vunpack.c.l.b16 %v6511
        %v6544 = vpack.c.b16 %v6529, %v6528
        %v6545 = vpack.c.b16 %v6531, %v6530
        %v6546 = vpack.c.b16 %v6533, %v6532
        %v6547 = vpack.c.b16 %v6535, %v6534
        %v6548 = vpack.c.b16 %v6537, %v6536
        %v6549 = vpack.c.b16 %v6539, %v6538
        %v6550 = vpack.c.b16 %v6541, %v6540
        %v6551 = vpack.c.b16 %v6543, %v6542
        %6560 = vmatprep.subr.bf16.mxu0 0
        %6561 = vmatpush1.bf16.msra.mxu0 %v6544
        %6562 = vmatprep.subr.bf16.mxu0 0
        %6563 = vmatpush1.bf16.msra.mxu0 %v6545
        %6564 = vmatprep.subr.bf16.mxu0 0
        %6565 = vmatpush1.bf16.msra.mxu0 %v6546
        %6566 = vmatprep.subr.bf16.mxu0 0
        %6567 = vmatpush1.bf16.msra.mxu0 %v6547
        %6568 = vmatprep.subr.bf16.mxu0 0
        %6569 = vmatpush1.bf16.msra.mxu0 %v6548
        %6570 = vmatprep.subr.bf16.mxu0 0
        %6571 = vmatpush1.bf16.msra.mxu0 %v6549
        %6572 = vmatprep.subr.bf16.mxu0 0
        %6573 = vmatpush1.bf16.msra.mxu0 %v6550
        %6574 = vmatprep.subr.bf16.mxu0 0
        %6575 = vmatpush1.bf16.msra.mxu0 %v6551
        %6576 = vmatprep.subr.bf16.mxu0 0
        %6577 = vmatpush1.bf16.msra.mxu0 0
        %6578 = vmatprep.subr.bf16.mxu0 0
        %6579 = vmatpush1.bf16.msra.mxu0 0
        %6580 = vmatprep.subr.bf16.mxu0 0
        %6581 = vmatpush1.bf16.msra.mxu0 0
        %6582 = vmatprep.subr.bf16.mxu0 0
        %6583 = vmatpush1.bf16.msra.mxu0 0
        %6584 = vmatprep.subr.bf16.mxu0 0
        %6585 = vmatpush1.bf16.msra.mxu0 0
        %6586 = vmatprep.subr.bf16.mxu0 0
        %6587 = vmatpush1.bf16.msra.mxu0 0
        %6588 = vmatprep.subr.bf16.mxu0 0
        %6589 = vmatpush1.bf16.msra.mxu0 0
        %6590 = vmatprep.subr.bf16.mxu0 0
        %6591 = vmatpush1.bf16.msra.mxu0 0
        %6592 = vmatprep.mubr.bf16.mxu0 0
        %6593 = vmatmul.mubr.bf16.gmra.mrb[0].mxu0 %v6477
        %v6594 = vpop.f32.mrb[0].mxu0
        %v6595 = vadd.f32 0.0, %v6594
        %v6596 = vpop.f32.mrb[0].mxu0
        %v6597 = vpop.f32.mrb[0].mxu0
        %v6598 = vadd.f32 0.0, %v6597
        %v6599 = vpop.f32.mrb[0].mxu0
        %6600 = vmatprep.mubr.bf16.mxu0 0
        %6601 = vmatmul.mubr.bf16.gmra.mrb[0].mxu0 %v6478
        %v6602 = vpop.f32.mrb[0].mxu0
        %v6603 = vadd.f32 0.0, %v6602
        %v6604 = vpop.f32.mrb[0].mxu0
        %v6605 = vpop.f32.mrb[0].mxu0
        %v6606 = vadd.f32 0.0, %v6605
        %v6607 = vpop.f32.mrb[0].mxu0
        %6608 = vmatprep.mubr.bf16.mxu0 0
        %6609 = vmatmul.mubr.bf16.gmra.mrb[0].mxu0 %v6479
        %v6610 = vpop.f32.mrb[0].mxu0
        %v6611 = vadd.f32 0.0, %v6610
        %v6612 = vpop.f32.mrb[0].mxu0
        %v6613 = vpop.f32.mrb[0].mxu0
        %v6614 = vadd.f32 0.0, %v6613
        %v6615 = vpop.f32.mrb[0].mxu0
        %6616 = vmatprep.mubr.bf16.mxu0 0
        %6617 = vmatmul.mubr.bf16.gmra.mrb[0].mxu0 %v6480
        %v6618 = vpop.f32.mrb[0].mxu0
        %v6619 = vadd.f32 0.0, %v6618
        %v6620 = vpop.f32.mrb[0].mxu0
        %v6621 = vpop.f32.mrb[0].mxu0
        %v6622 = vadd.f32 0.0, %v6621
        %v6623 = vpop.f32.mrb[0].mxu0
        %6624 = vmatprep.mubr.bf16.mxu0 0
        %6625 = vmatmul.mubr.bf16.gmra.mrb[0].mxu0 %v6481
        %v6626 = vpop.f32.mrb[0].mxu0
        %v6627 = vadd.f32 0.0, %v6626
        %v6628 = vpop.f32.mrb[0].mxu0
        %v6629 = vpop.f32.mrb[0].mxu0
        %v6630 = vadd.f32 0.0, %v6629
        %v6631 = vpop.f32.mrb[0].mxu0
        %6632 = vmatprep.mubr.bf16.mxu0 0
        %6633 = vmatmul.mubr.bf16.gmra.mrb[0].mxu0 %v6482
        %v6634 = vpop.f32.mrb[0].mxu0
        %v6635 = vadd.f32 0.0, %v6634
        %v6636 = vpop.f32.mrb[0].mxu0
        %v6637 = vpop.f32.mrb[0].mxu0
        %v6638 = vadd.f32 0.0, %v6637
        %v6639 = vpop.f32.mrb[0].mxu0
        %6640 = vmatprep.mubr.bf16.mxu0 0
        %6641 = vmatmul.mubr.bf16.gmra.mrb[0].mxu0 %v6483
        %v6642 = vpop.f32.mrb[0].mxu0
        %v6643 = vadd.f32 0.0, %v6642
        %v6644 = vpop.f32.mrb[0].mxu0
        %v6645 = vpop.f32.mrb[0].mxu0
        %v6646 = vadd.f32 0.0, %v6645
        %v6647 = vpop.f32.mrb[0].mxu0
        %6648 = vmatprep.mubr.bf16.mxu0 0
        %6649 = vmatmul.mubr.bf16.gmra.mrb[0].mxu0 %v6484
        %v6650 = vpop.f32.mrb[0].mxu0
        %v6651 = vadd.f32 0.0, %v6650
        %v6652 = vpop.f32.mrb[0].mxu0
        %v6653 = vpop.f32.mrb[0].mxu0
        %v6654 = vadd.f32 0.0, %v6653
        %v6655 = vpop.f32.mrb[0].mxu0
        %6656 = vmatprep.mubr.bf16.mxu0 0
        %6657 = vmatmul.mubr.bf16.gmra.mrb[0].mxu0 %v6485
        %v6658 = vpop.f32.mrb[0].mxu0
        %v6659 = vadd.f32 0.0, %v6658
        %v6660 = vpop.f32.mrb[0].mxu0
        %v6661 = vpop.f32.mrb[0].mxu0
        %v6662 = vadd.f32 0.0, %v6661
        %v6663 = vpop.f32.mrb[0].mxu0
        %6664 = vmatprep.mubr.bf16.mxu0 0
        %6665 = vmatmul.mubr.bf16.gmra.mrb[0].mxu0 %v6486
        %v6666 = vpop.f32.mrb[0].mxu0
        %v6667 = vadd.f32 0.0, %v6666
        %v6668 = vpop.f32.mrb[0].mxu0
        %v6669 = vpop.f32.mrb[0].mxu0
        %v6670 = vadd.f32 0.0, %v6669
        %v6671 = vpop.f32.mrb[0].mxu0
        %6672 = vmatprep.mubr.bf16.mxu0 0
        %6673 = vmatmul.mubr.bf16.gmra.mrb[0].mxu0 %v6487
        %v6674 = vpop.f32.mrb[0].mxu0
        %v6675 = vadd.f32 0.0, %v6674
        %v6676 = vpop.f32.mrb[0].mxu0
        %v6677 = vpop.f32.mrb[0].mxu0
        %v6678 = vadd.f32 0.0, %v6677
        %v6679 = vpop.f32.mrb[0].mxu0
        %6680 = vmatprep.mubr.bf16.mxu0 0
        %6681 = vmatmul.mubr.bf16.gmra.mrb[0].mxu0 %v6488
        %v6682 = vpop.f32.mrb[0].mxu0
        %v6683 = vadd.f32 0.0, %v6682
        %v6684 = vpop.f32.mrb[0].mxu0
        %v6685 = vpop.f32.mrb[0].mxu0
        %v6686 = vadd.f32 0.0, %v6685
        %v6687 = vpop.f32.mrb[0].mxu0
        %6688 = vmatprep.mubr.bf16.mxu0 0
        %6689 = vmatmul.mubr.bf16.gmra.mrb[0].mxu0 %v6489
        %v6690 = vpop.f32.mrb[0].mxu0
        %v6691 = vadd.f32 0.0, %v6690
        %v6692 = vpop.f32.mrb[0].mxu0
        %v6693 = vpop.f32.mrb[0].mxu0
        %v6694 = vadd.f32 0.0, %v6693
        %v6695 = vpop.f32.mrb[0].mxu0
        %6696 = vmatprep.mubr.bf16.mxu0 0
        %6697 = vmatmul.mubr.bf16.gmra.mrb[0].mxu0 %v6490
        %v6698 = vpop.f32.mrb[0].mxu0
        %v6699 = vadd.f32 0.0, %v6698
        %v6700 = vpop.f32.mrb[0].mxu0
        %v6701 = vpop.f32.mrb[0].mxu0
        %v6702 = vadd.f32 0.0, %v6701
        %v6703 = vpop.f32.mrb[0].mxu0
        %6704 = vmatprep.mubr.bf16.mxu0 0
        %6705 = vmatmul.mubr.bf16.gmra.mrb[0].mxu0 %v6491
        %v6706 = vpop.f32.mrb[0].mxu0
        %v6707 = vadd.f32 0.0, %v6706
        %v6708 = vpop.f32.mrb[0].mxu0
        %v6709 = vpop.f32.mrb[0].mxu0
        %v6710 = vadd.f32 0.0, %v6709
        %v6711 = vpop.f32.mrb[0].mxu0
        %6712 = vmatprep.mubr.bf16.mxu0 0
        %6713 = vmatmul.mubr.bf16.gmra.mrb[0].mxu0 %v6492
        %v6714 = vpop.f32.mrb[0].mxu0
        %v6715 = vadd.f32 0.0, %v6714
        %v6716 = vpop.f32.mrb[0].mxu0
        %v6717 = vpop.f32.mrb[0].mxu0
        %v6718 = vadd.f32 0.0, %v6717
        %v6719 = vpop.f32.mrb[0].mxu0
        %6720 = vmatprep.mubr.bf16.mxu0 0
        %6721 = vmatmul.mubr.bf16.gmra.mrb[0].mxu0 %v6493
        %v6722 = vpop.f32.mrb[0].mxu0
        %v6723 = vadd.f32 0.0, %v6722
        %v6724 = vpop.f32.mrb[0].mxu0
        %v6725 = vpop.f32.mrb[0].mxu0
        %v6726 = vadd.f32 0.0, %v6725
        %v6727 = vpop.f32.mrb[0].mxu0
        %6728 = vmatprep.mubr.bf16.mxu0 0
        %6729 = vmatmul.mubr.bf16.gmra.mrb[0].mxu0 %v6494
        %v6730 = vpop.f32.mrb[0].mxu0
        %v6731 = vadd.f32 0.0, %v6730
        %v6732 = vpop.f32.mrb[0].mxu0
        %v6733 = vpop.f32.mrb[0].mxu0
        %v6734 = vadd.f32 0.0, %v6733
        %v6735 = vpop.f32.mrb[0].mxu0
        %6736 = vdwg.mxu0
        %v6737 = vadd.f32 %v6405, %v6595
        %v6738 = vadd.f32 %v6406, %v6598
        %v6739 = vadd.f32 %v6407, %v6603
        %v6740 = vadd.f32 %v6408, %v6606
        %v6741 = vadd.f32 %v6409, %v6611
        %v6742 = vadd.f32 %v6410, %v6614
        %v6743 = vadd.f32 %v6411, %v6619
        %v6744 = vadd.f32 %v6412, %v6622
        %v6745 = vadd.f32 %v6413, %v6627
        %v6746 = vadd.f32 %v6414, %v6630
        %v6747 = vadd.f32 %v6415, %v6635
        %v6748 = vadd.f32 %v6416, %v6638
        %v6749 = vadd.f32 %v6417, %v6643
        %v6750 = vadd.f32 %v6418, %v6646
        %v6751 = vadd.f32 %v6419, %v6651
        %v6752 = vadd.f32 %v6420, %v6654
        %v6753 = vadd.f32 %v6421, %v6659
        %v6754 = vadd.f32 %v6422, %v6662
        %v6755 = vadd.f32 %v6423, %v6667
        %v6756 = vadd.f32 %v6424, %v6670
        %v6757 = vadd.f32 %v6425, %v6675
        %v6758 = vadd.f32 %v6426, %v6678
        %v6759 = vadd.f32 %v6427, %v6683
        %v6760 = vadd.f32 %v6428, %v6686
        %v6761 = vadd.f32 %v6429, %v6691
        %v6762 = vadd.f32 %v6430, %v6694
        %v6763 = vadd.f32 %v6431, %v6699
        %v6764 = vadd.f32 %v6432, %v6702
        %v6765 = vadd.f32 %v6433, %v6707
        %v6766 = vadd.f32 %v6434, %v6710
        %v6767 = vadd.f32 %v6435, %v6715
        %v6768 = vadd.f32 %v6436, %v6718
        %v6769 = vadd.f32 %v6437, %v6723
        %v6770 = vadd.f32 %v6438, %v6726
        %v6771 = vadd.f32 %v6439, %v6731
        %v6772 = vadd.f32 %v6440, %v6734
        %v6773 = vld [vmem:[#allocation2 + $0x25] sm:$0xff]
        %v6774 = vld [vmem:[#allocation2 + $0x2d] sm:$0xff]
        %v6775 = vld [vmem:[#allocation2 + $0x35] sm:$0xff]
        %v6776 = vld [vmem:[#allocation2 + $0x3d] sm:$0xff]
        %v6777 = vld [vmem:[#allocation2 + $0x45] sm:$0xff]
        %v6778 = vld [vmem:[#allocation2 + $0x4d] sm:$0xff]
        %v6779 = vld [vmem:[#allocation2 + $0x55] sm:$0xff]
        %v6780 = vld [vmem:[#allocation2 + $0x5d] sm:$0xff]
        %v6781 = vld [vmem:[#allocation2 + $0x65] sm:$0xff]
        %v6782 = vld [vmem:[#allocation2 + $0x6d] sm:$0xff]
        %v6783 = vld [vmem:[#allocation2 + $0x75] sm:$0xff]
        %v6784 = vld [vmem:[#allocation2 + $0x7d] sm:$0xff]
        %v6785 = vld [vmem:[#allocation2 + $0x85] sm:$0xff]
        %v6786 = vld [vmem:[#allocation2 + $0x8d] sm:$0xff]
        %v6787 = vld [vmem:[#allocation2 + $0x95] sm:$0xff]
        %v6788 = vld [vmem:[#allocation2 + $0x9d] sm:$0xff]
        %v6789 = vld [vmem:[#allocation2 + $0xa5] sm:$0xff]
        %v6790 = vld [vmem:[#allocation2 + $0xad] sm:$0xff]
        %v6791 = vld [vmem:[#allocation2 + $0xb5] sm:$0xff]
        %v6792 = vld [vmem:[#allocation2 + $0xbd] sm:$0xff]
        %v6793 = vld [vmem:[#allocation2 + $0xc5] sm:$0xff]
        %v6794 = vld [vmem:[#allocation2 + $0xcd] sm:$0xff]
        %v6795 = vld [vmem:[#allocation2 + $0xd5] sm:$0xff]
        %v6796 = vld [vmem:[#allocation2 + $0xdd] sm:$0xff]
        %v6797 = vld [vmem:[#allocation2 + $0xe5] sm:$0xff]
        %v6798 = vld [vmem:[#allocation2 + $0xed] sm:$0xff]
        %v6799 = vld [vmem:[#allocation2 + $0xf5] sm:$0xff]
        %v6800 = vld [vmem:[#allocation2 + $0xfd] sm:$0xff]
        %v6801 = vld [vmem:[#allocation2 + $0x105] sm:$0xff]
        %v6802 = vld [vmem:[#allocation2 + $0x10d] sm:$0xff]
        %v6803 = vld [vmem:[#allocation2 + $0x115] sm:$0xff]
        %v6804 = vld [vmem:[#allocation2 + $0x11d] sm:$0xff]
        %v6805 = vld [vmem:[#allocation2 + $0x125] sm:$0xff]
        %v6806 = vld [vmem:[#allocation2 + $0x12d] sm:$0xff]
        %v6807 = vld [vmem:[#allocation2 + $0x135] sm:$0xff]
        %v6808 = vld [vmem:[#allocation2 + $0x13d] sm:$0xff]
        %v6809 = vpack.c.bf16 %v6774, %v6773
        %v6810 = vpack.c.bf16 %v6776, %v6775
        %v6811 = vpack.c.bf16 %v6778, %v6777
        %v6812 = vpack.c.bf16 %v6780, %v6779
        %v6813 = vpack.c.bf16 %v6782, %v6781
        %v6814 = vpack.c.bf16 %v6784, %v6783
        %v6815 = vpack.c.bf16 %v6786, %v6785
        %v6816 = vpack.c.bf16 %v6788, %v6787
        %v6817 = vpack.c.bf16 %v6790, %v6789
        %v6818 = vpack.c.bf16 %v6792, %v6791
        %v6819 = vpack.c.bf16 %v6794, %v6793
        %v6820 = vpack.c.bf16 %v6796, %v6795
        %v6821 = vpack.c.bf16 %v6798, %v6797
        %v6822 = vpack.c.bf16 %v6800, %v6799
        %v6823 = vpack.c.bf16 %v6802, %v6801
        %v6824 = vpack.c.bf16 %v6804, %v6803
        %v6825 = vpack.c.bf16 %v6806, %v6805
        %v6826 = vpack.c.bf16 %v6808, %v6807
        %s6827 = scalar_lea.vmem [#allocation12], 448
        %v6828 = vld [vmem:[%s6827] sm:$0xf]
        %v6829 = vld [vmem:[%s6827 + $0x4] sm:$0xf]
        %v6830 = vld [vmem:[%s6827 + $0x8] sm:$0xf]
        %v6831 = vld [vmem:[%s6827 + $0xc] sm:$0xf]
        %v6832 = vld [vmem:[%s6827 + $0x10] sm:$0xf]
        %v6833 = vld [vmem:[%s6827 + $0x14] sm:$0xf]
        %v6834 = vld [vmem:[%s6827 + $0x18] sm:$0xf]
        %v6835 = vld [vmem:[%s6827 + $0x1c] sm:$0xf]
        %v6836 = vld [vmem:[%s6827 + $0x20] sm:$0xf]
        %v6837 = vld [vmem:[%s6827 + $0x24] sm:$0xf]
        %v6838 = vld [vmem:[%s6827 + $0x28] sm:$0xf]
        %v6839 = vld [vmem:[%s6827 + $0x2c] sm:$0xf]
        %v6840 = vld [vmem:[%s6827 + $0x30] sm:$0xf]
        %v6841 = vld [vmem:[%s6827 + $0x34] sm:$0xf]
        %v6842 = vld [vmem:[%s6827 + $0x38] sm:$0xf]
        %v6843 = vld [vmem:[%s6827 + $0x3c] sm:$0xf]
        %v6860 = vunpack.c.l.b16 %v6828
        %v6861 = vunpack.c.l.b16 %v6829
        %v6862 = vunpack.c.l.b16 %v6830
        %v6863 = vunpack.c.l.b16 %v6831
        %v6864 = vunpack.c.l.b16 %v6832
        %v6865 = vunpack.c.l.b16 %v6833
        %v6866 = vunpack.c.l.b16 %v6834
        %v6867 = vunpack.c.l.b16 %v6835
        %v6868 = vunpack.c.l.b16 %v6836
        %v6869 = vunpack.c.l.b16 %v6837
        %v6870 = vunpack.c.l.b16 %v6838
        %v6871 = vunpack.c.l.b16 %v6839
        %v6872 = vunpack.c.l.b16 %v6840
        %v6873 = vunpack.c.l.b16 %v6841
        %v6874 = vunpack.c.l.b16 %v6842
        %v6875 = vunpack.c.l.b16 %v6843
        %v6876 = vpack.c.b16 %v6861, %v6860
        %v6877 = vpack.c.b16 %v6863, %v6862
        %v6878 = vpack.c.b16 %v6865, %v6864
        %v6879 = vpack.c.b16 %v6867, %v6866
        %v6880 = vpack.c.b16 %v6869, %v6868
        %v6881 = vpack.c.b16 %v6871, %v6870
        %v6882 = vpack.c.b16 %v6873, %v6872
        %v6883 = vpack.c.b16 %v6875, %v6874
        %6892 = vmatprep.subr.bf16.mxu0 0
        %6893 = vmatpush1.bf16.msra.mxu0 %v6876
        %6894 = vmatprep.subr.bf16.mxu0 0
        %6895 = vmatpush1.bf16.msra.mxu0 %v6877
        %6896 = vmatprep.subr.bf16.mxu0 0
        %6897 = vmatpush1.bf16.msra.mxu0 %v6878
        %6898 = vmatprep.subr.bf16.mxu0 0
        %6899 = vmatpush1.bf16.msra.mxu0 %v6879
        %6900 = vmatprep.subr.bf16.mxu0 0
        %6901 = vmatpush1.bf16.msra.mxu0 %v6880
        %6902 = vmatprep.subr.bf16.mxu0 0
        %6903 = vmatpush1.bf16.msra.mxu0 %v6881
        %6904 = vmatprep.subr.bf16.mxu0 0
        %6905 = vmatpush1.bf16.msra.mxu0 %v6882
        %6906 = vmatprep.subr.bf16.mxu0 0
        %6907 = vmatpush1.bf16.msra.mxu0 %v6883
        %6908 = vmatprep.subr.bf16.mxu0 0
        %6909 = vmatpush1.bf16.msra.mxu0 0
        %6910 = vmatprep.subr.bf16.mxu0 0
        %6911 = vmatpush1.bf16.msra.mxu0 0
        %6912 = vmatprep.subr.bf16.mxu0 0
        %6913 = vmatpush1.bf16.msra.mxu0 0
        %6914 = vmatprep.subr.bf16.mxu0 0
        %6915 = vmatpush1.bf16.msra.mxu0 0
        %6916 = vmatprep.subr.bf16.mxu0 0
        %6917 = vmatpush1.bf16.msra.mxu0 0
        %6918 = vmatprep.subr.bf16.mxu0 0
        %6919 = vmatpush1.bf16.msra.mxu0 0
        %6920 = vmatprep.subr.bf16.mxu0 0
        %6921 = vmatpush1.bf16.msra.mxu0 0
        %6922 = vmatprep.subr.bf16.mxu0 0
        %6923 = vmatpush1.bf16.msra.mxu0 0
        %6924 = vmatprep.mubr.bf16.mxu0 0
        %6925 = vmatmul.mubr.bf16.gmra.mrb[0].mxu0 %v6809
        %v6926 = vpop.f32.mrb[0].mxu0
        %v6927 = vadd.f32 0.0, %v6926
        %v6928 = vpop.f32.mrb[0].mxu0
        %v6929 = vpop.f32.mrb[0].mxu0
        %v6930 = vadd.f32 0.0, %v6929
        %v6931 = vpop.f32.mrb[0].mxu0
        %6932 = vmatprep.mubr.bf16.mxu0 0
        %6933 = vmatmul.mubr.bf16.gmra.mrb[0].mxu0 %v6810
        %v6934 = vpop.f32.mrb[0].mxu0
        %v6935 = vadd.f32 0.0, %v6934
        %v6936 = vpop.f32.mrb[0].mxu0
        %v6937 = vpop.f32.mrb[0].mxu0
        %v6938 = vadd.f32 0.0, %v6937
        %v6939 = vpop.f32.mrb[0].mxu0
        %6940 = vmatprep.mubr.bf16.mxu0 0
        %6941 = vmatmul.mubr.bf16.gmra.mrb[0].mxu0 %v6811
        %v6942 = vpop.f32.mrb[0].mxu0
        %v6943 = vadd.f32 0.0, %v6942
        %v6944 = vpop.f32.mrb[0].mxu0
        %v6945 = vpop.f32.mrb[0].mxu0
        %v6946 = vadd.f32 0.0, %v6945
        %v6947 = vpop.f32.mrb[0].mxu0
        %6948 = vmatprep.mubr.bf16.mxu0 0
        %6949 = vmatmul.mubr.bf16.gmra.mrb[0].mxu0 %v6812
        %v6950 = vpop.f32.mrb[0].mxu0
        %v6951 = vadd.f32 0.0, %v6950
        %v6952 = vpop.f32.mrb[0].mxu0
        %v6953 = vpop.f32.mrb[0].mxu0
        %v6954 = vadd.f32 0.0, %v6953
        %v6955 = vpop.f32.mrb[0].mxu0
        %6956 = vmatprep.mubr.bf16.mxu0 0
        %6957 = vmatmul.mubr.bf16.gmra.mrb[0].mxu0 %v6813
        %v6958 = vpop.f32.mrb[0].mxu0
        %v6959 = vadd.f32 0.0, %v6958
        %v6960 = vpop.f32.mrb[0].mxu0
        %v6961 = vpop.f32.mrb[0].mxu0
        %v6962 = vadd.f32 0.0, %v6961
        %v6963 = vpop.f32.mrb[0].mxu0
        %6964 = vmatprep.mubr.bf16.mxu0 0
        %6965 = vmatmul.mubr.bf16.gmra.mrb[0].mxu0 %v6814
        %v6966 = vpop.f32.mrb[0].mxu0
        %v6967 = vadd.f32 0.0, %v6966
        %v6968 = vpop.f32.mrb[0].mxu0
        %v6969 = vpop.f32.mrb[0].mxu0
        %v6970 = vadd.f32 0.0, %v6969
        %v6971 = vpop.f32.mrb[0].mxu0
        %6972 = vmatprep.mubr.bf16.mxu0 0
        %6973 = vmatmul.mubr.bf16.gmra.mrb[0].mxu0 %v6815
        %v6974 = vpop.f32.mrb[0].mxu0
        %v6975 = vadd.f32 0.0, %v6974
        %v6976 = vpop.f32.mrb[0].mxu0
        %v6977 = vpop.f32.mrb[0].mxu0
        %v6978 = vadd.f32 0.0, %v6977
        %v6979 = vpop.f32.mrb[0].mxu0
        %6980 = vmatprep.mubr.bf16.mxu0 0
        %6981 = vmatmul.mubr.bf16.gmra.mrb[0].mxu0 %v6816
        %v6982 = vpop.f32.mrb[0].mxu0
        %v6983 = vadd.f32 0.0, %v6982
        %v6984 = vpop.f32.mrb[0].mxu0
        %v6985 = vpop.f32.mrb[0].mxu0
        %v6986 = vadd.f32 0.0, %v6985
        %v6987 = vpop.f32.mrb[0].mxu0
        %6988 = vmatprep.mubr.bf16.mxu0 0
        %6989 = vmatmul.mubr.bf16.gmra.mrb[0].mxu0 %v6817
        %v6990 = vpop.f32.mrb[0].mxu0
        %v6991 = vadd.f32 0.0, %v6990
        %v6992 = vpop.f32.mrb[0].mxu0
        %v6993 = vpop.f32.mrb[0].mxu0
        %v6994 = vadd.f32 0.0, %v6993
        %v6995 = vpop.f32.mrb[0].mxu0
        %6996 = vmatprep.mubr.bf16.mxu0 0
        %6997 = vmatmul.mubr.bf16.gmra.mrb[0].mxu0 %v6818
        %v6998 = vpop.f32.mrb[0].mxu0
        %v6999 = vadd.f32 0.0, %v6998
        %v7000 = vpop.f32.mrb[0].mxu0
        %v7001 = vpop.f32.mrb[0].mxu0
        %v7002 = vadd.f32 0.0, %v7001
        %v7003 = vpop.f32.mrb[0].mxu0
        %7004 = vmatprep.mubr.bf16.mxu0 0
        %7005 = vmatmul.mubr.bf16.gmra.mrb[0].mxu0 %v6819
        %v7006 = vpop.f32.mrb[0].mxu0
        %v7007 = vadd.f32 0.0, %v7006
        %v7008 = vpop.f32.mrb[0].mxu0
        %v7009 = vpop.f32.mrb[0].mxu0
        %v7010 = vadd.f32 0.0, %v7009
        %v7011 = vpop.f32.mrb[0].mxu0
        %7012 = vmatprep.mubr.bf16.mxu0 0
        %7013 = vmatmul.mubr.bf16.gmra.mrb[0].mxu0 %v6820
        %v7014 = vpop.f32.mrb[0].mxu0
        %v7015 = vadd.f32 0.0, %v7014
        %v7016 = vpop.f32.mrb[0].mxu0
        %v7017 = vpop.f32.mrb[0].mxu0
        %v7018 = vadd.f32 0.0, %v7017
        %v7019 = vpop.f32.mrb[0].mxu0
        %7020 = vmatprep.mubr.bf16.mxu0 0
        %7021 = vmatmul.mubr.bf16.gmra.mrb[0].mxu0 %v6821
        %v7022 = vpop.f32.mrb[0].mxu0
        %v7023 = vadd.f32 0.0, %v7022
        %v7024 = vpop.f32.mrb[0].mxu0
        %v7025 = vpop.f32.mrb[0].mxu0
        %v7026 = vadd.f32 0.0, %v7025
        %v7027 = vpop.f32.mrb[0].mxu0
        %7028 = vmatprep.mubr.bf16.mxu0 0
        %7029 = vmatmul.mubr.bf16.gmra.mrb[0].mxu0 %v6822
        %v7030 = vpop.f32.mrb[0].mxu0
        %v7031 = vadd.f32 0.0, %v7030
        %v7032 = vpop.f32.mrb[0].mxu0
        %v7033 = vpop.f32.mrb[0].mxu0
        %v7034 = vadd.f32 0.0, %v7033
        %v7035 = vpop.f32.mrb[0].mxu0
        %7036 = vmatprep.mubr.bf16.mxu0 0
        %7037 = vmatmul.mubr.bf16.gmra.mrb[0].mxu0 %v6823
        %v7038 = vpop.f32.mrb[0].mxu0
        %v7039 = vadd.f32 0.0, %v7038
        %v7040 = vpop.f32.mrb[0].mxu0
        %v7041 = vpop.f32.mrb[0].mxu0
        %v7042 = vadd.f32 0.0, %v7041
        %v7043 = vpop.f32.mrb[0].mxu0
        %7044 = vmatprep.mubr.bf16.mxu0 0
        %7045 = vmatmul.mubr.bf16.gmra.mrb[0].mxu0 %v6824
        %v7046 = vpop.f32.mrb[0].mxu0
        %v7047 = vadd.f32 0.0, %v7046
        %v7048 = vpop.f32.mrb[0].mxu0
        %v7049 = vpop.f32.mrb[0].mxu0
        %v7050 = vadd.f32 0.0, %v7049
        %v7051 = vpop.f32.mrb[0].mxu0
        %7052 = vmatprep.mubr.bf16.mxu0 0
        %7053 = vmatmul.mubr.bf16.gmra.mrb[0].mxu0 %v6825
        %v7054 = vpop.f32.mrb[0].mxu0
        %v7055 = vadd.f32 0.0, %v7054
        %v7056 = vpop.f32.mrb[0].mxu0
        %v7057 = vpop.f32.mrb[0].mxu0
        %v7058 = vadd.f32 0.0, %v7057
        %v7059 = vpop.f32.mrb[0].mxu0
        %7060 = vmatprep.mubr.bf16.mxu0 0
        %7061 = vmatmul.mubr.bf16.gmra.mrb[0].mxu0 %v6826
        %v7062 = vpop.f32.mrb[0].mxu0
        %v7063 = vadd.f32 0.0, %v7062
        %v7064 = vpop.f32.mrb[0].mxu0
        %v7065 = vpop.f32.mrb[0].mxu0
        %v7066 = vadd.f32 0.0, %v7065
        %v7067 = vpop.f32.mrb[0].mxu0
        %7068 = vdwg.mxu0
        %v7069 = vadd.f32 %v6737, %v6927
        %v7070 = vadd.f32 %v6738, %v6930
        %v7071 = vadd.f32 %v6739, %v6935
        %v7072 = vadd.f32 %v6740, %v6938
        %v7073 = vadd.f32 %v6741, %v6943
        %v7074 = vadd.f32 %v6742, %v6946
        %v7075 = vadd.f32 %v6743, %v6951
        %v7076 = vadd.f32 %v6744, %v6954
        %v7077 = vadd.f32 %v6745, %v6959
        %v7078 = vadd.f32 %v6746, %v6962
        %v7079 = vadd.f32 %v6747, %v6967
        %v7080 = vadd.f32 %v6748, %v6970
        %v7081 = vadd.f32 %v6749, %v6975
        %v7082 = vadd.f32 %v6750, %v6978
        %v7083 = vadd.f32 %v6751, %v6983
        %v7084 = vadd.f32 %v6752, %v6986
        %v7085 = vadd.f32 %v6753, %v6991
        %v7086 = vadd.f32 %v6754, %v6994
        %v7087 = vadd.f32 %v6755, %v6999
        %v7088 = vadd.f32 %v6756, %v7002
        %v7089 = vadd.f32 %v6757, %v7007
        %v7090 = vadd.f32 %v6758, %v7010
        %v7091 = vadd.f32 %v6759, %v7015
        %v7092 = vadd.f32 %v6760, %v7018
        %v7093 = vadd.f32 %v6761, %v7023
        %v7094 = vadd.f32 %v6762, %v7026
        %v7095 = vadd.f32 %v6763, %v7031
        %v7096 = vadd.f32 %v6764, %v7034
        %v7097 = vadd.f32 %v6765, %v7039
        %v7098 = vadd.f32 %v6766, %v7042
        %v7099 = vadd.f32 %v6767, %v7047
        %v7100 = vadd.f32 %v6768, %v7050
        %v7101 = vadd.f32 %v6769, %v7055
        %v7102 = vadd.f32 %v6770, %v7058
        %v7103 = vadd.f32 %v6771, %v7063
        %v7104 = vadd.f32 %v6772, %v7066
        %v7105 = vld [vmem:[#allocation2 + $0x26] sm:$0xff]
        %v7106 = vld [vmem:[#allocation2 + $0x2e] sm:$0xff]
        %v7107 = vld [vmem:[#allocation2 + $0x36] sm:$0xff]
        %v7108 = vld [vmem:[#allocation2 + $0x3e] sm:$0xff]
        %v7109 = vld [vmem:[#allocation2 + $0x46] sm:$0xff]
        %v7110 = vld [vmem:[#allocation2 + $0x4e] sm:$0xff]
        %v7111 = vld [vmem:[#allocation2 + $0x56] sm:$0xff]
        %v7112 = vld [vmem:[#allocation2 + $0x5e] sm:$0xff]
        %v7113 = vld [vmem:[#allocation2 + $0x66] sm:$0xff]
        %v7114 = vld [vmem:[#allocation2 + $0x6e] sm:$0xff]
        %v7115 = vld [vmem:[#allocation2 + $0x76] sm:$0xff]
        %v7116 = vld [vmem:[#allocation2 + $0x7e] sm:$0xff]
        %v7117 = vld [vmem:[#allocation2 + $0x86] sm:$0xff]
        %v7118 = vld [vmem:[#allocation2 + $0x8e] sm:$0xff]
        %v7119 = vld [vmem:[#allocation2 + $0x96] sm:$0xff]
        %v7120 = vld [vmem:[#allocation2 + $0x9e] sm:$0xff]
        %v7121 = vld [vmem:[#allocation2 + $0xa6] sm:$0xff]
        %v7122 = vld [vmem:[#allocation2 + $0xae] sm:$0xff]
        %v7123 = vld [vmem:[#allocation2 + $0xb6] sm:$0xff]
        %v7124 = vld [vmem:[#allocation2 + $0xbe] sm:$0xff]
        %v7125 = vld [vmem:[#allocation2 + $0xc6] sm:$0xff]
        %v7126 = vld [vmem:[#allocation2 + $0xce] sm:$0xff]
        %v7127 = vld [vmem:[#allocation2 + $0xd6] sm:$0xff]
        %v7128 = vld [vmem:[#allocation2 + $0xde] sm:$0xff]
        %v7129 = vld [vmem:[#allocation2 + $0xe6] sm:$0xff]
        %v7130 = vld [vmem:[#allocation2 + $0xee] sm:$0xff]
        %v7131 = vld [vmem:[#allocation2 + $0xf6] sm:$0xff]
        %v7132 = vld [vmem:[#allocation2 + $0xfe] sm:$0xff]
        %v7133 = vld [vmem:[#allocation2 + $0x106] sm:$0xff]
        %v7134 = vld [vmem:[#allocation2 + $0x10e] sm:$0xff]
        %v7135 = vld [vmem:[#allocation2 + $0x116] sm:$0xff]
        %v7136 = vld [vmem:[#allocation2 + $0x11e] sm:$0xff]
        %v7137 = vld [vmem:[#allocation2 + $0x126] sm:$0xff]
        %v7138 = vld [vmem:[#allocation2 + $0x12e] sm:$0xff]
        %v7139 = vld [vmem:[#allocation2 + $0x136] sm:$0xff]
        %v7140 = vld [vmem:[#allocation2 + $0x13e] sm:$0xff]
        %v7141 = vpack.c.bf16 %v7106, %v7105
        %v7142 = vpack.c.bf16 %v7108, %v7107
        %v7143 = vpack.c.bf16 %v7110, %v7109
        %v7144 = vpack.c.bf16 %v7112, %v7111
        %v7145 = vpack.c.bf16 %v7114, %v7113
        %v7146 = vpack.c.bf16 %v7116, %v7115
        %v7147 = vpack.c.bf16 %v7118, %v7117
        %v7148 = vpack.c.bf16 %v7120, %v7119
        %v7149 = vpack.c.bf16 %v7122, %v7121
        %v7150 = vpack.c.bf16 %v7124, %v7123
        %v7151 = vpack.c.bf16 %v7126, %v7125
        %v7152 = vpack.c.bf16 %v7128, %v7127
        %v7153 = vpack.c.bf16 %v7130, %v7129
        %v7154 = vpack.c.bf16 %v7132, %v7131
        %v7155 = vpack.c.bf16 %v7134, %v7133
        %v7156 = vpack.c.bf16 %v7136, %v7135
        %v7157 = vpack.c.bf16 %v7138, %v7137
        %v7158 = vpack.c.bf16 %v7140, %v7139
        %s7159 = scalar_lea.vmem [#allocation12], 512
        %v7160 = vld [vmem:[%s7159] sm:$0xf]
        %v7161 = vld [vmem:[%s7159 + $0x4] sm:$0xf]
        %v7162 = vld [vmem:[%s7159 + $0x8] sm:$0xf]
        %v7163 = vld [vmem:[%s7159 + $0xc] sm:$0xf]
        %v7164 = vld [vmem:[%s7159 + $0x10] sm:$0xf]
        %v7165 = vld [vmem:[%s7159 + $0x14] sm:$0xf]
        %v7166 = vld [vmem:[%s7159 + $0x18] sm:$0xf]
        %v7167 = vld [vmem:[%s7159 + $0x1c] sm:$0xf]
        %v7168 = vld [vmem:[%s7159 + $0x20] sm:$0xf]
        %v7169 = vld [vmem:[%s7159 + $0x24] sm:$0xf]
        %v7170 = vld [vmem:[%s7159 + $0x28] sm:$0xf]
        %v7171 = vld [vmem:[%s7159 + $0x2c] sm:$0xf]
        %v7172 = vld [vmem:[%s7159 + $0x30] sm:$0xf]
        %v7173 = vld [vmem:[%s7159 + $0x34] sm:$0xf]
        %v7174 = vld [vmem:[%s7159 + $0x38] sm:$0xf]
        %v7175 = vld [vmem:[%s7159 + $0x3c] sm:$0xf]
        %v7192 = vunpack.c.l.b16 %v7160
        %v7193 = vunpack.c.l.b16 %v7161
        %v7194 = vunpack.c.l.b16 %v7162
        %v7195 = vunpack.c.l.b16 %v7163
        %v7196 = vunpack.c.l.b16 %v7164
        %v7197 = vunpack.c.l.b16 %v7165
        %v7198 = vunpack.c.l.b16 %v7166
        %v7199 = vunpack.c.l.b16 %v7167
        %v7200 = vunpack.c.l.b16 %v7168
        %v7201 = vunpack.c.l.b16 %v7169
        %v7202 = vunpack.c.l.b16 %v7170
        %v7203 = vunpack.c.l.b16 %v7171
        %v7204 = vunpack.c.l.b16 %v7172
        %v7205 = vunpack.c.l.b16 %v7173
        %v7206 = vunpack.c.l.b16 %v7174
        %v7207 = vunpack.c.l.b16 %v7175
        %v7208 = vpack.c.b16 %v7193, %v7192
        %v7209 = vpack.c.b16 %v7195, %v7194
        %v7210 = vpack.c.b16 %v7197, %v7196
        %v7211 = vpack.c.b16 %v7199, %v7198
        %v7212 = vpack.c.b16 %v7201, %v7200
        %v7213 = vpack.c.b16 %v7203, %v7202
        %v7214 = vpack.c.b16 %v7205, %v7204
        %v7215 = vpack.c.b16 %v7207, %v7206
        %7224 = vmatprep.subr.bf16.mxu0 0
        %7225 = vmatpush1.bf16.msra.mxu0 %v7208
        %7226 = vmatprep.subr.bf16.mxu0 0
        %7227 = vmatpush1.bf16.msra.mxu0 %v7209
        %7228 = vmatprep.subr.bf16.mxu0 0
        %7229 = vmatpush1.bf16.msra.mxu0 %v7210
        %7230 = vmatprep.subr.bf16.mxu0 0
        %7231 = vmatpush1.bf16.msra.mxu0 %v7211
        %7232 = vmatprep.subr.bf16.mxu0 0
        %7233 = vmatpush1.bf16.msra.mxu0 %v7212
        %7234 = vmatprep.subr.bf16.mxu0 0
        %7235 = vmatpush1.bf16.msra.mxu0 %v7213
        %7236 = vmatprep.subr.bf16.mxu0 0
        %7237 = vmatpush1.bf16.msra.mxu0 %v7214
        %7238 = vmatprep.subr.bf16.mxu0 0
        %7239 = vmatpush1.bf16.msra.mxu0 %v7215
        %7240 = vmatprep.subr.bf16.mxu0 0
        %7241 = vmatpush1.bf16.msra.mxu0 0
        %7242 = vmatprep.subr.bf16.mxu0 0
        %7243 = vmatpush1.bf16.msra.mxu0 0
        %7244 = vmatprep.subr.bf16.mxu0 0
        %7245 = vmatpush1.bf16.msra.mxu0 0
        %7246 = vmatprep.subr.bf16.mxu0 0
        %7247 = vmatpush1.bf16.msra.mxu0 0
        %7248 = vmatprep.subr.bf16.mxu0 0
        %7249 = vmatpush1.bf16.msra.mxu0 0
        %7250 = vmatprep.subr.bf16.mxu0 0
        %7251 = vmatpush1.bf16.msra.mxu0 0
        %7252 = vmatprep.subr.bf16.mxu0 0
        %7253 = vmatpush1.bf16.msra.mxu0 0
        %7254 = vmatprep.subr.bf16.mxu0 0
        %7255 = vmatpush1.bf16.msra.mxu0 0
        %7256 = vmatprep.mubr.bf16.mxu0 0
        %7257 = vmatmul.mubr.bf16.gmra.mrb[0].mxu0 %v7141
        %v7258 = vpop.f32.mrb[0].mxu0
        %v7259 = vadd.f32 0.0, %v7258
        %v7260 = vpop.f32.mrb[0].mxu0
        %v7261 = vpop.f32.mrb[0].mxu0
        %v7262 = vadd.f32 0.0, %v7261
        %v7263 = vpop.f32.mrb[0].mxu0
        %7264 = vmatprep.mubr.bf16.mxu0 0
        %7265 = vmatmul.mubr.bf16.gmra.mrb[0].mxu0 %v7142
        %v7266 = vpop.f32.mrb[0].mxu0
        %v7267 = vadd.f32 0.0, %v7266
        %v7268 = vpop.f32.mrb[0].mxu0
        %v7269 = vpop.f32.mrb[0].mxu0
        %v7270 = vadd.f32 0.0, %v7269
        %v7271 = vpop.f32.mrb[0].mxu0
        %7272 = vmatprep.mubr.bf16.mxu0 0
        %7273 = vmatmul.mubr.bf16.gmra.mrb[0].mxu0 %v7143
        %v7274 = vpop.f32.mrb[0].mxu0
        %v7275 = vadd.f32 0.0, %v7274
        %v7276 = vpop.f32.mrb[0].mxu0
        %v7277 = vpop.f32.mrb[0].mxu0
        %v7278 = vadd.f32 0.0, %v7277
        %v7279 = vpop.f32.mrb[0].mxu0
        %7280 = vmatprep.mubr.bf16.mxu0 0
        %7281 = vmatmul.mubr.bf16.gmra.mrb[0].mxu0 %v7144
        %v7282 = vpop.f32.mrb[0].mxu0
        %v7283 = vadd.f32 0.0, %v7282
        %v7284 = vpop.f32.mrb[0].mxu0
        %v7285 = vpop.f32.mrb[0].mxu0
        %v7286 = vadd.f32 0.0, %v7285
        %v7287 = vpop.f32.mrb[0].mxu0
        %7288 = vmatprep.mubr.bf16.mxu0 0
        %7289 = vmatmul.mubr.bf16.gmra.mrb[0].mxu0 %v7145
        %v7290 = vpop.f32.mrb[0].mxu0
        %v7291 = vadd.f32 0.0, %v7290
        %v7292 = vpop.f32.mrb[0].mxu0
        %v7293 = vpop.f32.mrb[0].mxu0
        %v7294 = vadd.f32 0.0, %v7293
        %v7295 = vpop.f32.mrb[0].mxu0
        %7296 = vmatprep.mubr.bf16.mxu0 0
        %7297 = vmatmul.mubr.bf16.gmra.mrb[0].mxu0 %v7146
        %v7298 = vpop.f32.mrb[0].mxu0
        %v7299 = vadd.f32 0.0, %v7298
        %v7300 = vpop.f32.mrb[0].mxu0
        %v7301 = vpop.f32.mrb[0].mxu0
        %v7302 = vadd.f32 0.0, %v7301
        %v7303 = vpop.f32.mrb[0].mxu0
        %7304 = vmatprep.mubr.bf16.mxu0 0
        %7305 = vmatmul.mubr.bf16.gmra.mrb[0].mxu0 %v7147
        %v7306 = vpop.f32.mrb[0].mxu0
        %v7307 = vadd.f32 0.0, %v7306
        %v7308 = vpop.f32.mrb[0].mxu0
        %v7309 = vpop.f32.mrb[0].mxu0
        %v7310 = vadd.f32 0.0, %v7309
        %v7311 = vpop.f32.mrb[0].mxu0
        %7312 = vmatprep.mubr.bf16.mxu0 0
        %7313 = vmatmul.mubr.bf16.gmra.mrb[0].mxu0 %v7148
        %v7314 = vpop.f32.mrb[0].mxu0
        %v7315 = vadd.f32 0.0, %v7314
        %v7316 = vpop.f32.mrb[0].mxu0
        %v7317 = vpop.f32.mrb[0].mxu0
        %v7318 = vadd.f32 0.0, %v7317
        %v7319 = vpop.f32.mrb[0].mxu0
        %7320 = vmatprep.mubr.bf16.mxu0 0
        %7321 = vmatmul.mubr.bf16.gmra.mrb[0].mxu0 %v7149
        %v7322 = vpop.f32.mrb[0].mxu0
        %v7323 = vadd.f32 0.0, %v7322
        %v7324 = vpop.f32.mrb[0].mxu0
        %v7325 = vpop.f32.mrb[0].mxu0
        %v7326 = vadd.f32 0.0, %v7325
        %v7327 = vpop.f32.mrb[0].mxu0
        %7328 = vmatprep.mubr.bf16.mxu0 0
        %7329 = vmatmul.mubr.bf16.gmra.mrb[0].mxu0 %v7150
        %v7330 = vpop.f32.mrb[0].mxu0
        %v7331 = vadd.f32 0.0, %v7330
        %v7332 = vpop.f32.mrb[0].mxu0
        %v7333 = vpop.f32.mrb[0].mxu0
        %v7334 = vadd.f32 0.0, %v7333
        %v7335 = vpop.f32.mrb[0].mxu0
        %7336 = vmatprep.mubr.bf16.mxu0 0
        %7337 = vmatmul.mubr.bf16.gmra.mrb[0].mxu0 %v7151
        %v7338 = vpop.f32.mrb[0].mxu0
        %v7339 = vadd.f32 0.0, %v7338
        %v7340 = vpop.f32.mrb[0].mxu0
        %v7341 = vpop.f32.mrb[0].mxu0
        %v7342 = vadd.f32 0.0, %v7341
        %v7343 = vpop.f32.mrb[0].mxu0
        %7344 = vmatprep.mubr.bf16.mxu0 0
        %7345 = vmatmul.mubr.bf16.gmra.mrb[0].mxu0 %v7152
        %v7346 = vpop.f32.mrb[0].mxu0
        %v7347 = vadd.f32 0.0, %v7346
        %v7348 = vpop.f32.mrb[0].mxu0
        %v7349 = vpop.f32.mrb[0].mxu0
        %v7350 = vadd.f32 0.0, %v7349
        %v7351 = vpop.f32.mrb[0].mxu0
        %7352 = vmatprep.mubr.bf16.mxu0 0
        %7353 = vmatmul.mubr.bf16.gmra.mrb[0].mxu0 %v7153
        %v7354 = vpop.f32.mrb[0].mxu0
        %v7355 = vadd.f32 0.0, %v7354
        %v7356 = vpop.f32.mrb[0].mxu0
        %v7357 = vpop.f32.mrb[0].mxu0
        %v7358 = vadd.f32 0.0, %v7357
        %v7359 = vpop.f32.mrb[0].mxu0
        %7360 = vmatprep.mubr.bf16.mxu0 0
        %7361 = vmatmul.mubr.bf16.gmra.mrb[0].mxu0 %v7154
        %v7362 = vpop.f32.mrb[0].mxu0
        %v7363 = vadd.f32 0.0, %v7362
        %v7364 = vpop.f32.mrb[0].mxu0
        %v7365 = vpop.f32.mrb[0].mxu0
        %v7366 = vadd.f32 0.0, %v7365
        %v7367 = vpop.f32.mrb[0].mxu0
        %7368 = vmatprep.mubr.bf16.mxu0 0
        %7369 = vmatmul.mubr.bf16.gmra.mrb[0].mxu0 %v7155
        %v7370 = vpop.f32.mrb[0].mxu0
        %v7371 = vadd.f32 0.0, %v7370
        %v7372 = vpop.f32.mrb[0].mxu0
        %v7373 = vpop.f32.mrb[0].mxu0
        %v7374 = vadd.f32 0.0, %v7373
        %v7375 = vpop.f32.mrb[0].mxu0
        %7376 = vmatprep.mubr.bf16.mxu0 0
        %7377 = vmatmul.mubr.bf16.gmra.mrb[0].mxu0 %v7156
        %v7378 = vpop.f32.mrb[0].mxu0
        %v7379 = vadd.f32 0.0, %v7378
        %v7380 = vpop.f32.mrb[0].mxu0
        %v7381 = vpop.f32.mrb[0].mxu0
        %v7382 = vadd.f32 0.0, %v7381
        %v7383 = vpop.f32.mrb[0].mxu0
        %7384 = vmatprep.mubr.bf16.mxu0 0
        %7385 = vmatmul.mubr.bf16.gmra.mrb[0].mxu0 %v7157
        %v7386 = vpop.f32.mrb[0].mxu0
        %v7387 = vadd.f32 0.0, %v7386
        %v7388 = vpop.f32.mrb[0].mxu0
        %v7389 = vpop.f32.mrb[0].mxu0
        %v7390 = vadd.f32 0.0, %v7389
        %v7391 = vpop.f32.mrb[0].mxu0
        %7392 = vmatprep.mubr.bf16.mxu0 0
        %7393 = vmatmul.mubr.bf16.gmra.mrb[0].mxu0 %v7158
        %v7394 = vpop.f32.mrb[0].mxu0
        %v7395 = vadd.f32 0.0, %v7394
        %v7396 = vpop.f32.mrb[0].mxu0
        %v7397 = vpop.f32.mrb[0].mxu0
        %v7398 = vadd.f32 0.0, %v7397
        %v7399 = vpop.f32.mrb[0].mxu0
        %7400 = vdwg.mxu0
        %v7401 = vadd.f32 %v7069, %v7259
        %v7402 = vadd.f32 %v7070, %v7262
        %v7403 = vadd.f32 %v7071, %v7267
        %v7404 = vadd.f32 %v7072, %v7270
        %v7405 = vadd.f32 %v7073, %v7275
        %v7406 = vadd.f32 %v7074, %v7278
        %v7407 = vadd.f32 %v7075, %v7283
        %v7408 = vadd.f32 %v7076, %v7286
        %v7409 = vadd.f32 %v7077, %v7291
        %v7410 = vadd.f32 %v7078, %v7294
        %v7411 = vadd.f32 %v7079, %v7299
        %v7412 = vadd.f32 %v7080, %v7302
        %v7413 = vadd.f32 %v7081, %v7307
        %v7414 = vadd.f32 %v7082, %v7310
        %v7415 = vadd.f32 %v7083, %v7315
        %v7416 = vadd.f32 %v7084, %v7318
        %v7417 = vadd.f32 %v7085, %v7323
        %v7418 = vadd.f32 %v7086, %v7326
        %v7419 = vadd.f32 %v7087, %v7331
        %v7420 = vadd.f32 %v7088, %v7334
        %v7421 = vadd.f32 %v7089, %v7339
        %v7422 = vadd.f32 %v7090, %v7342
        %v7423 = vadd.f32 %v7091, %v7347
        %v7424 = vadd.f32 %v7092, %v7350
        %v7425 = vadd.f32 %v7093, %v7355
        %v7426 = vadd.f32 %v7094, %v7358
        %v7427 = vadd.f32 %v7095, %v7363
        %v7428 = vadd.f32 %v7096, %v7366
        %v7429 = vadd.f32 %v7097, %v7371
        %v7430 = vadd.f32 %v7098, %v7374
        %v7431 = vadd.f32 %v7099, %v7379
        %v7432 = vadd.f32 %v7100, %v7382
        %v7433 = vadd.f32 %v7101, %v7387
        %v7434 = vadd.f32 %v7102, %v7390
        %v7435 = vadd.f32 %v7103, %v7395
        %v7436 = vadd.f32 %v7104, %v7398
        %v7437 = vld [vmem:[#allocation14] sm:$0x1]
        %v7439 = vlaneseq
        %v7440 = vshrl.u32 %v7439, 7
        %v7441 = vsub.s32 0, %v7440
        %v7442 = vrot.slane %v7437, %v7441
        %v7444 = vadd.f32 %v7401, %v7442
        %v7445 = vadd.f32 %v7402, %v7442
        %v7446 = vadd.f32 %v7403, %v7442
        %v7447 = vadd.f32 %v7404, %v7442
        %v7448 = vadd.f32 %v7405, %v7442
        %v7449 = vadd.f32 %v7406, %v7442
        %v7450 = vadd.f32 %v7407, %v7442
        %v7451 = vadd.f32 %v7408, %v7442
        %v7452 = vadd.f32 %v7409, %v7442
        %v7453 = vadd.f32 %v7410, %v7442
        %v7454 = vadd.f32 %v7411, %v7442
        %v7455 = vadd.f32 %v7412, %v7442
        %v7456 = vadd.f32 %v7413, %v7442
        %v7457 = vadd.f32 %v7414, %v7442
        %v7458 = vadd.f32 %v7415, %v7442
        %v7459 = vadd.f32 %v7416, %v7442
        %v7460 = vadd.f32 %v7417, %v7442
        %v7461 = vadd.f32 %v7418, %v7442
        %v7462 = vadd.f32 %v7419, %v7442
        %v7463 = vadd.f32 %v7420, %v7442
        %v7464 = vadd.f32 %v7421, %v7442
        %v7465 = vadd.f32 %v7422, %v7442
        %v7466 = vadd.f32 %v7423, %v7442
        %v7467 = vadd.f32 %v7424, %v7442
        %v7468 = vadd.f32 %v7425, %v7442
        %v7469 = vadd.f32 %v7426, %v7442
        %v7470 = vadd.f32 %v7427, %v7442
        %v7471 = vadd.f32 %v7428, %v7442
        %v7472 = vadd.f32 %v7429, %v7442
        %v7473 = vadd.f32 %v7430, %v7442
        %v7474 = vadd.f32 %v7431, %v7442
        %v7475 = vadd.f32 %v7432, %v7442
        %v7476 = vadd.f32 %v7433, %v7442
        %v7477 = vadd.f32 %v7434, %v7442
        %v7478 = vadd.f32 %v7435, %v7442
        %v7479 = vadd.f32 %v7436, %v7442
        %v7480 = vsel %vm4099, %v7444, 0.0
        %v7481 = vsel %vm4100, %v7445, 0.0
        %v7482 = vsel %vm4101, %v7446, 0.0
        %v7483 = vsel %vm4102, %v7447, 0.0
        %v7484 = vsel %vm4103, %v7448, 0.0
        %v7485 = vsel %vm4104, %v7449, 0.0
        %v7486 = vsel %vm4105, %v7450, 0.0
        %v7487 = vsel %vm4106, %v7451, 0.0
        %v7488 = vsel %vm4107, %v7452, 0.0
        %v7489 = vsel %vm4108, %v7453, 0.0
        %v7490 = vsel %vm4109, %v7454, 0.0
        %v7491 = vsel %vm4110, %v7455, 0.0
        %v7492 = vsel %vm4111, %v7456, 0.0
        %v7493 = vsel %vm4112, %v7457, 0.0
        %v7494 = vsel %vm4113, %v7458, 0.0
        %v7495 = vsel %vm4114, %v7459, 0.0
        %v7496 = vsel %vm4115, %v7460, 0.0
        %v7497 = vsel %vm4116, %v7461, 0.0
        %v7498 = vsel %vm4117, %v7462, 0.0
        %v7499 = vsel %vm4118, %v7463, 0.0
        %v7500 = vsel %vm4119, %v7464, 0.0
        %v7501 = vsel %vm4120, %v7465, 0.0
        %v7502 = vsel %vm4121, %v7466, 0.0
        %v7503 = vsel %vm4122, %v7467, 0.0
        %v7504 = vsel %vm4123, %v7468, 0.0
        %v7505 = vsel %vm4124, %v7469, 0.0
        %v7506 = vsel %vm4125, %v7470, 0.0
        %v7507 = vsel %vm4126, %v7471, 0.0
        %v7508 = vsel %vm4127, %v7472, 0.0
        %v7509 = vsel %vm4128, %v7473, 0.0
        %v7510 = vsel %vm4129, %v7474, 0.0
        %v7511 = vsel %vm4130, %v7475, 0.0
        %v7512 = vsel %vm4131, %v7476, 0.0
        %v7513 = vsel %vm4132, %v7477, 0.0
        %v7514 = vsel %vm4133, %v7478, 0.0
        %v7515 = vsel %vm4134, %v7479, 0.0
        %v7516 = vadd.f32 %v7480, %v7481
        %v7517 = vadd.f32 %v7516, %v7482
        %v7518 = vadd.f32 %v7517, %v7483
        %v7519 = vadd.f32 %v7518, %v7484
        %v7520 = vadd.f32 %v7519, %v7485
        %v7521 = vadd.f32 %v7520, %v7486
        %v7522 = vadd.f32 %v7521, %v7487
        %v7523 = vadd.f32 %v7522, %v7488
        %v7524 = vadd.f32 %v7523, %v7489
        %v7525 = vadd.f32 %v7524, %v7490
        %v7526 = vadd.f32 %v7525, %v7491
        %v7527 = vadd.f32 %v7526, %v7492
        %v7528 = vadd.f32 %v7527, %v7493
        %v7529 = vadd.f32 %v7528, %v7494
        %v7530 = vadd.f32 %v7529, %v7495
        %v7531 = vadd.f32 %v7530, %v7496
        %v7532 = vadd.f32 %v7531, %v7497
        %v7533 = vadd.f32 %v7532, %v7498
        %v7534 = vadd.f32 %v7533, %v7499
        %v7535 = vadd.f32 %v7534, %v7500
        %v7536 = vadd.f32 %v7535, %v7501
        %v7537 = vadd.f32 %v7536, %v7502
        %v7538 = vadd.f32 %v7537, %v7503
        %v7539 = vadd.f32 %v7538, %v7504
        %v7540 = vadd.f32 %v7539, %v7505
        %v7541 = vadd.f32 %v7540, %v7506
        %v7542 = vadd.f32 %v7541, %v7507
        %v7543 = vadd.f32 %v7542, %v7508
        %v7544 = vadd.f32 %v7543, %v7509
        %v7545 = vadd.f32 %v7544, %v7510
        %v7546 = vadd.f32 %v7545, %v7511
        %v7547 = vadd.f32 %v7546, %v7512
        %v7548 = vadd.f32 %v7547, %v7513
        %v7549 = vadd.f32 %v7548, %v7514
        %v7550 = vadd.f32 %v7549, %v7515
        %v7551 = vrot.slane %v7550, 4
        %v7552 = vadd.f32 %v7550, %v7551
        %v7553 = vrot.slane %v7552, 2
        %v7554 = vadd.f32 %v7552, %v7553
        %v7555 = vrot.slane %v7554, 1
        %v7556 = vadd.f32 %v7554, %v7555
        %v7557 = vmul.f32 %v7480, %v7480
        %v7558 = vmul.f32 %v7481, %v7481
        %v7559 = vmul.f32 %v7482, %v7482
        %v7560 = vmul.f32 %v7483, %v7483
        %v7561 = vmul.f32 %v7484, %v7484
        %v7562 = vmul.f32 %v7485, %v7485
        %v7563 = vmul.f32 %v7486, %v7486
        %v7564 = vmul.f32 %v7487, %v7487
        %v7565 = vmul.f32 %v7488, %v7488
        %v7566 = vmul.f32 %v7489, %v7489
        %v7567 = vmul.f32 %v7490, %v7490
        %v7568 = vmul.f32 %v7491, %v7491
        %v7569 = vmul.f32 %v7492, %v7492
        %v7570 = vmul.f32 %v7493, %v7493
        %v7571 = vmul.f32 %v7494, %v7494
        %v7572 = vmul.f32 %v7495, %v7495
        %v7573 = vmul.f32 %v7496, %v7496
        %v7574 = vmul.f32 %v7497, %v7497
        %v7575 = vmul.f32 %v7498, %v7498
        %v7576 = vmul.f32 %v7499, %v7499
        %v7577 = vmul.f32 %v7500, %v7500
        %v7578 = vmul.f32 %v7501, %v7501
        %v7579 = vmul.f32 %v7502, %v7502
        %v7580 = vmul.f32 %v7503, %v7503
        %v7581 = vmul.f32 %v7504, %v7504
        %v7582 = vmul.f32 %v7505, %v7505
        %v7583 = vmul.f32 %v7506, %v7506
        %v7584 = vmul.f32 %v7507, %v7507
        %v7585 = vmul.f32 %v7508, %v7508
        %v7586 = vmul.f32 %v7509, %v7509
        %v7587 = vmul.f32 %v7510, %v7510
        %v7588 = vmul.f32 %v7511, %v7511
        %v7589 = vmul.f32 %v7512, %v7512
        %v7590 = vmul.f32 %v7513, %v7513
        %v7591 = vmul.f32 %v7514, %v7514
        %v7592 = vmul.f32 %v7515, %v7515
        %v7593 = vadd.f32 %v7557, %v7558
        %v7594 = vadd.f32 %v7593, %v7559
        %v7595 = vadd.f32 %v7594, %v7560
        %v7596 = vadd.f32 %v7595, %v7561
        %v7597 = vadd.f32 %v7596, %v7562
        %v7598 = vadd.f32 %v7597, %v7563
        %v7599 = vadd.f32 %v7598, %v7564
        %v7600 = vadd.f32 %v7599, %v7565
        %v7601 = vadd.f32 %v7600, %v7566
        %v7602 = vadd.f32 %v7601, %v7567
        %v7603 = vadd.f32 %v7602, %v7568
        %v7604 = vadd.f32 %v7603, %v7569
        %v7605 = vadd.f32 %v7604, %v7570
        %v7606 = vadd.f32 %v7605, %v7571
        %v7607 = vadd.f32 %v7606, %v7572
        %v7608 = vadd.f32 %v7607, %v7573
        %v7609 = vadd.f32 %v7608, %v7574
        %v7610 = vadd.f32 %v7609, %v7575
        %v7611 = vadd.f32 %v7610, %v7576
        %v7612 = vadd.f32 %v7611, %v7577
        %v7613 = vadd.f32 %v7612, %v7578
        %v7614 = vadd.f32 %v7613, %v7579
        %v7615 = vadd.f32 %v7614, %v7580
        %v7616 = vadd.f32 %v7615, %v7581
        %v7617 = vadd.f32 %v7616, %v7582
        %v7618 = vadd.f32 %v7617, %v7583
        %v7619 = vadd.f32 %v7618, %v7584
        %v7620 = vadd.f32 %v7619, %v7585
        %v7621 = vadd.f32 %v7620, %v7586
        %v7622 = vadd.f32 %v7621, %v7587
        %v7623 = vadd.f32 %v7622, %v7588
        %v7624 = vadd.f32 %v7623, %v7589
        %v7625 = vadd.f32 %v7624, %v7590
        %v7626 = vadd.f32 %v7625, %v7591
        %v7627 = vadd.f32 %v7626, %v7592
        %v7628 = vrot.slane %v7627, 4
        %v7629 = vadd.f32 %v7627, %v7628
        %v7630 = vrot.slane %v7629, 2
        %v7631 = vadd.f32 %v7629, %v7630
        %v7632 = vrot.slane %v7631, 1
        %v7633 = vadd.f32 %v7631, %v7632
        %v7634 = vmul.f32 %v7556, 0.00390625
        %v7635 = vmul.f32 %v7633, 0.00390625
        %v7636 = vmul.f32 %v7634, %v7634
        %v7637 = vsub.f32 %v7635, %v7636
        %v7638 = vmax.f32 %v7637, 0.0
        %v7639 = vadd.f32 %v7638, 1e-05
        %v7640 = vrsqrt.pop %v7639
        %v7641 = vld [vmem:[#allocation15] sm:$0x1]
        %v7642 = vmul.f32 %v7640, %v7641
        %v7643 = vsub.f32 %v7444, %v7634
        %v7644 = vsub.f32 %v7445, %v7634
        %v7645 = vsub.f32 %v7446, %v7634
        %v7646 = vsub.f32 %v7447, %v7634
        %v7647 = vsub.f32 %v7448, %v7634
        %v7648 = vsub.f32 %v7449, %v7634
        %v7649 = vsub.f32 %v7450, %v7634
        %v7650 = vsub.f32 %v7451, %v7634
        %v7651 = vsub.f32 %v7452, %v7634
        %v7652 = vsub.f32 %v7453, %v7634
        %v7653 = vsub.f32 %v7454, %v7634
        %v7654 = vsub.f32 %v7455, %v7634
        %v7655 = vsub.f32 %v7456, %v7634
        %v7656 = vsub.f32 %v7457, %v7634
        %v7657 = vsub.f32 %v7458, %v7634
        %v7658 = vsub.f32 %v7459, %v7634
        %v7659 = vsub.f32 %v7460, %v7634
        %v7660 = vsub.f32 %v7461, %v7634
        %v7661 = vsub.f32 %v7462, %v7634
        %v7662 = vsub.f32 %v7463, %v7634
        %v7663 = vsub.f32 %v7464, %v7634
        %v7664 = vsub.f32 %v7465, %v7634
        %v7665 = vsub.f32 %v7466, %v7634
        %v7666 = vsub.f32 %v7467, %v7634
        %v7667 = vsub.f32 %v7468, %v7634
        %v7668 = vsub.f32 %v7469, %v7634
        %v7669 = vsub.f32 %v7470, %v7634
        %v7670 = vsub.f32 %v7471, %v7634
        %v7671 = vsub.f32 %v7472, %v7634
        %v7672 = vsub.f32 %v7473, %v7634
        %v7673 = vsub.f32 %v7474, %v7634
        %v7674 = vsub.f32 %v7475, %v7634
        %v7675 = vsub.f32 %v7476, %v7634
        %v7676 = vsub.f32 %v7477, %v7634
        %v7677 = vsub.f32 %v7478, %v7634
        %v7678 = vsub.f32 %v7479, %v7634
        %v7679 = vlaneseq
        %v7680 = vshrl.u32 %v7679, 7
        %v7681 = vsub.s32 0, %v7680
        %v7682 = vrot.slane %v7642, %v7681
        %v7683 = vmul.f32 %v7643, %v7682
        %v7684 = vmul.f32 %v7644, %v7682
        %v7685 = vmul.f32 %v7645, %v7682
        %v7686 = vmul.f32 %v7646, %v7682
        %v7687 = vmul.f32 %v7647, %v7682
        %v7688 = vmul.f32 %v7648, %v7682
        %v7689 = vmul.f32 %v7649, %v7682
        %v7690 = vmul.f32 %v7650, %v7682
        %v7691 = vmul.f32 %v7651, %v7682
        %v7692 = vmul.f32 %v7652, %v7682
        %v7693 = vmul.f32 %v7653, %v7682
        %v7694 = vmul.f32 %v7654, %v7682
        %v7695 = vmul.f32 %v7655, %v7682
        %v7696 = vmul.f32 %v7656, %v7682
        %v7697 = vmul.f32 %v7657, %v7682
        %v7698 = vmul.f32 %v7658, %v7682
        %v7699 = vmul.f32 %v7659, %v7682
        %v7700 = vmul.f32 %v7660, %v7682
        %v7701 = vmul.f32 %v7661, %v7682
        %v7702 = vmul.f32 %v7662, %v7682
        %v7703 = vmul.f32 %v7663, %v7682
        %v7704 = vmul.f32 %v7664, %v7682
        %v7705 = vmul.f32 %v7665, %v7682
        %v7706 = vmul.f32 %v7666, %v7682
        %v7707 = vmul.f32 %v7667, %v7682
        %v7708 = vmul.f32 %v7668, %v7682
        %v7709 = vmul.f32 %v7669, %v7682
        %v7710 = vmul.f32 %v7670, %v7682
        %v7711 = vmul.f32 %v7671, %v7682
        %v7712 = vmul.f32 %v7672, %v7682
        %v7713 = vmul.f32 %v7673, %v7682
        %v7714 = vmul.f32 %v7674, %v7682
        %v7715 = vmul.f32 %v7675, %v7682
        %v7716 = vmul.f32 %v7676, %v7682
        %v7717 = vmul.f32 %v7677, %v7682
        %v7718 = vmul.f32 %v7678, %v7682
        %v7719 = vld [vmem:[#allocation17] sm:$0x1]
        %v7721 = vlaneseq
        %v7722 = vshrl.u32 %v7721, 7
        %v7723 = vsub.s32 0, %v7722
        %v7724 = vrot.slane %v7719, %v7723
        %v7726 = vadd.f32 %v7683, %v7724
        %v7727 = vadd.f32 %v7684, %v7724
        %v7728 = vadd.f32 %v7685, %v7724
        %v7729 = vadd.f32 %v7686, %v7724
        %v7730 = vadd.f32 %v7687, %v7724
        %v7731 = vadd.f32 %v7688, %v7724
        %v7732 = vadd.f32 %v7689, %v7724
        %v7733 = vadd.f32 %v7690, %v7724
        %v7734 = vadd.f32 %v7691, %v7724
        %v7735 = vadd.f32 %v7692, %v7724
        %v7736 = vadd.f32 %v7693, %v7724
        %v7737 = vadd.f32 %v7694, %v7724
        %v7738 = vadd.f32 %v7695, %v7724
        %v7739 = vadd.f32 %v7696, %v7724
        %v7740 = vadd.f32 %v7697, %v7724
        %v7741 = vadd.f32 %v7698, %v7724
        %v7742 = vadd.f32 %v7699, %v7724
        %v7743 = vadd.f32 %v7700, %v7724
        %v7744 = vadd.f32 %v7701, %v7724
        %v7745 = vadd.f32 %v7702, %v7724
        %v7746 = vadd.f32 %v7703, %v7724
        %v7747 = vadd.f32 %v7704, %v7724
        %v7748 = vadd.f32 %v7705, %v7724
        %v7749 = vadd.f32 %v7706, %v7724
        %v7750 = vadd.f32 %v7707, %v7724
        %v7751 = vadd.f32 %v7708, %v7724
        %v7752 = vadd.f32 %v7709, %v7724
        %v7753 = vadd.f32 %v7710, %v7724
        %v7754 = vadd.f32 %v7711, %v7724
        %v7755 = vadd.f32 %v7712, %v7724
        %v7756 = vadd.f32 %v7713, %v7724
        %v7757 = vadd.f32 %v7714, %v7724
        %v7758 = vadd.f32 %v7715, %v7724
        %v7759 = vadd.f32 %v7716, %v7724
        %v7760 = vadd.f32 %v7717, %v7724
        %v7761 = vadd.f32 %v7718, %v7724
        %v7762 = vld [vmem:[%s388 + $0x13] sm:$0xff]
        %v7763 = vld [vmem:[%s388 + $0x1b] sm:$0xff]
        %v7764 = vld [vmem:[%s388 + $0x23] sm:$0xff]
        %v7765 = vld [vmem:[%s388 + $0x2b] sm:$0xff]
        %v7766 = vld [vmem:[%s388 + $0x33] sm:$0xff]
        %v7767 = vld [vmem:[%s388 + $0x3b] sm:$0xff]
        %v7768 = vld [vmem:[%s388 + $0x43] sm:$0xff]
        %v7769 = vld [vmem:[%s388 + $0x4b] sm:$0xff]
        %v7770 = vld [vmem:[%s388 + $0x53] sm:$0xff]
        %v7771 = vld [vmem:[%s388 + $0x5b] sm:$0xff]
        %v7772 = vld [vmem:[%s388 + $0x63] sm:$0xff]
        %v7773 = vld [vmem:[%s388 + $0x6b] sm:$0xff]
        %v7774 = vld [vmem:[%s388 + $0x73] sm:$0xff]
        %v7775 = vld [vmem:[%s388 + $0x7b] sm:$0xff]
        %v7776 = vld [vmem:[%s388 + $0x83] sm:$0xff]
        %v7777 = vld [vmem:[%s388 + $0x8b] sm:$0xff]
        %v7778 = vld [vmem:[%s388 + $0x93] sm:$0xff]
        %v7779 = vld [vmem:[%s388 + $0x9b] sm:$0xff]
        %v7780 = vld [vmem:[%s388 + $0xa3] sm:$0xff]
        %v7781 = vld [vmem:[%s388 + $0xab] sm:$0xff]
        %v7782 = vld [vmem:[%s388 + $0xb3] sm:$0xff]
        %v7783 = vld [vmem:[%s388 + $0xbb] sm:$0xff]
        %v7784 = vld [vmem:[%s388 + $0xc3] sm:$0xff]
        %v7785 = vld [vmem:[%s388 + $0xcb] sm:$0xff]
        %v7786 = vld [vmem:[%s388 + $0xd3] sm:$0xff]
        %v7787 = vld [vmem:[%s388 + $0xdb] sm:$0xff]
        %v7788 = vld [vmem:[%s388 + $0xe3] sm:$0xff]
        %v7789 = vld [vmem:[%s388 + $0xeb] sm:$0xff]
        %v7790 = vld [vmem:[%s388 + $0xf3] sm:$0xff]
        %v7791 = vld [vmem:[%s388 + $0xfb] sm:$0xff]
        %v7792 = vld [vmem:[%s388 + $0x103] sm:$0xff]
        %v7793 = vld [vmem:[%s388 + $0x10b] sm:$0xff]
        %v7794 = vld [vmem:[%s388 + $0x113] sm:$0xff]
        %v7795 = vld [vmem:[%s388 + $0x11b] sm:$0xff]
        %v7796 = vld [vmem:[%s388 + $0x123] sm:$0xff]
        %v7797 = vld [vmem:[%s388 + $0x12b] sm:$0xff]
        %v7798 = vadd.f32 %v7726, %v7762
        %v7799 = vadd.f32 %v7727, %v7763
        %v7800 = vadd.f32 %v7728, %v7764
        %v7801 = vadd.f32 %v7729, %v7765
        %v7802 = vadd.f32 %v7730, %v7766
        %v7803 = vadd.f32 %v7731, %v7767
        %v7804 = vadd.f32 %v7732, %v7768
        %v7805 = vadd.f32 %v7733, %v7769
        %v7806 = vadd.f32 %v7734, %v7770
        %v7807 = vadd.f32 %v7735, %v7771
        %v7808 = vadd.f32 %v7736, %v7772
        %v7809 = vadd.f32 %v7737, %v7773
        %v7810 = vadd.f32 %v7738, %v7774
        %v7811 = vadd.f32 %v7739, %v7775
        %v7812 = vadd.f32 %v7740, %v7776
        %v7813 = vadd.f32 %v7741, %v7777
        %v7814 = vadd.f32 %v7742, %v7778
        %v7815 = vadd.f32 %v7743, %v7779
        %v7816 = vadd.f32 %v7744, %v7780
        %v7817 = vadd.f32 %v7745, %v7781
        %v7818 = vadd.f32 %v7746, %v7782
        %v7819 = vadd.f32 %v7747, %v7783
        %v7820 = vadd.f32 %v7748, %v7784
        %v7821 = vadd.f32 %v7749, %v7785
        %v7822 = vadd.f32 %v7750, %v7786
        %v7823 = vadd.f32 %v7751, %v7787
        %v7824 = vadd.f32 %v7752, %v7788
        %v7825 = vadd.f32 %v7753, %v7789
        %v7826 = vadd.f32 %v7754, %v7790
        %v7827 = vadd.f32 %v7755, %v7791
        %v7828 = vadd.f32 %v7756, %v7792
        %v7829 = vadd.f32 %v7757, %v7793
        %v7830 = vadd.f32 %v7758, %v7794
        %v7831 = vadd.f32 %v7759, %v7795
        %v7832 = vadd.f32 %v7760, %v7796
        %v7833 = vadd.f32 %v7761, %v7797
        %7834 = vst [vmem:[%s454] sm:$0xff] %v7798
        %7835 = vst [vmem:[%s454 + $0x8] sm:$0xff] %v7799
        %7836 = vst [vmem:[%s454 + $0x10] sm:$0xff] %v7800
        %7837 = vst [vmem:[%s454 + $0x18] sm:$0xff] %v7801
        %7838 = vst [vmem:[%s454 + $0x20] sm:$0xff] %v7802
        %7839 = vst [vmem:[%s454 + $0x28] sm:$0xff] %v7803
        %7840 = vst [vmem:[%s454 + $0x30] sm:$0xff] %v7804
        %7841 = vst [vmem:[%s454 + $0x38] sm:$0xff] %v7805
        %7842 = vst [vmem:[%s454 + $0x40] sm:$0xff] %v7806
        %7843 = vst [vmem:[%s454 + $0x48] sm:$0xff] %v7807
        %7844 = vst [vmem:[%s454 + $0x50] sm:$0xff] %v7808
        %7845 = vst [vmem:[%s454 + $0x58] sm:$0xff] %v7809
        %7846 = vst [vmem:[%s454 + $0x60] sm:$0xff] %v7810
        %7847 = vst [vmem:[%s454 + $0x68] sm:$0xff] %v7811
        %7848 = vst [vmem:[%s454 + $0x70] sm:$0xff] %v7812
        %7849 = vst [vmem:[%s454 + $0x78] sm:$0xff] %v7813
        %7850 = vst [vmem:[%s454 + $0x80] sm:$0xff] %v7814
        %7851 = vst [vmem:[%s454 + $0x88] sm:$0xff] %v7815
        %7852 = vst [vmem:[%s454 + $0x90] sm:$0xff] %v7816
        %7853 = vst [vmem:[%s454 + $0x98] sm:$0xff] %v7817
        %7854 = vst [vmem:[%s454 + $0xa0] sm:$0xff] %v7818
        %7855 = vst [vmem:[%s454 + $0xa8] sm:$0xff] %v7819
        %7856 = vst [vmem:[%s454 + $0xb0] sm:$0xff] %v7820
        %7857 = vst [vmem:[%s454 + $0xb8] sm:$0xff] %v7821
        %7858 = vst [vmem:[%s454 + $0xc0] sm:$0xff] %v7822
        %7859 = vst [vmem:[%s454 + $0xc8] sm:$0xff] %v7823
        %7860 = vst [vmem:[%s454 + $0xd0] sm:$0xff] %v7824
        %7861 = vst [vmem:[%s454 + $0xd8] sm:$0xff] %v7825
        %7862 = vst [vmem:[%s454 + $0xe0] sm:$0xff] %v7826
        %7863 = vst [vmem:[%s454 + $0xe8] sm:$0xff] %v7827
        %7864 = vst [vmem:[%s454 + $0xf0] sm:$0xff] %v7828
        %7865 = vst [vmem:[%s454 + $0xf8] sm:$0xff] %v7829
        %7866 = vst [vmem:[%s454 + $0x100] sm:$0xff] %v7830
        %7867 = vst [vmem:[%s454 + $0x108] sm:$0xff] %v7831
        %7868 = vst [vmem:[%s454 + $0x110] sm:$0xff] %v7832
        %7869 = vst [vmem:[%s454 + $0x118] sm:$0xff] %v7833
        %s7870 = sand.u32 %s232, 1
        %s7871 = scalar_lea.sflag [#allocation5], %s7870
        %s7872 = sand.u32 %s232, 1
        %s7873 = smul.addr %s7872, 288
        %s7874 = scalar_lea.vmem [#allocation18], %s7873
        // Predicated region
        $region100: #{tpu_custom_call.1} parent=55 // pred_check
          %p7875 = pneg %p242
        $region101: #{tpu_custom_call.1} parent=55 // pred_check_branch
          %7877 = sbr.rel (%p7875) target = $region103
        $region102: #{tpu_custom_call.1} parent=55 // pred_region
          %s7879 = ssub.s32 4608, 4608
          %7880 = vsyncadd %s7871, %s7879
          %s7881 = smul.addr %s30, 36
          %s7882 = smul.addr %s7881, 128
          %s7883 = scalar_lea.hbm %s9, %s7882
          %s7884 = sshll.u32 %s7874, 4
          %s7885 = int_to_ptr.vmem [resolvable:$true] %s7884
          %7890 = dma.vmem_to_hbm [thread:$0]  %s7885, 4608, %s7883, %s7871, 128, 128, 8
        $region103: #{tpu_custom_call.1} parent=55 // pred_fallthru
          _
      $region56: #{tpu_custom_call.1} parent=5 // pred_fallthru
        _
      %p7891 = scmp.le.s32.totalorder 2, %s25
      // Predicated region
      $region104: #{tpu_custom_call.1} parent=5 // pred_check
        %p7892 = pneg %p7891
      $region105: #{tpu_custom_call.1} parent=5 // pred_check_branch
        %7894 = sbr.rel (%p7892) target = $region107
      $region106: #{tpu_custom_call.1} parent=5 // pred_region
        %s7895 = ssub.s32 %s25, 2
        // Predicated region
        $region108: #{tpu_custom_call.1} parent=106 // pred_check
          %p7896 = pneg %p248
        $region109: #{tpu_custom_call.1} parent=106 // pred_check_branch
          %7898 = sbr.rel (%p7896) target = $region111
        $region110: #{tpu_custom_call.1} parent=106 // pred_region
          %s7899 = sand.u32 %s233, 1
          %s7900 = scalar_lea.sflag [#allocation5], %s7899
          %s7901 = sand.u32 %s233, 1
          %s7902 = smul.addr %s7901, 288
          %s7903 = scalar_lea.vmem [#allocation18], %s7902
          %7904 = dma.done %s7900, 4608
        $region111: #{tpu_custom_call.1} parent=106 // pred_fallthru
          _
      $region107: #{tpu_custom_call.1} parent=5 // pred_fallthru
        _
    $region6: #{tpu_custom_call.1} parent=1 // loop_footer
      %s29 = sadd.s32 1, %s25
    $region7: #{tpu_custom_call.1} parent=1 // loop_footer_branch
      %24 = sbr.rel target = $region3
    $region8: #{tpu_custom_call.1} parent=1 // loop_exit
      _
    %7905 = vsyncpa [#allocation4], 1
    %s7906 = scalar_lea.sflag [#allocation4], 1
    %7907 = vsyncpa %s7906, 1
    %7908 = vsyncpa [#allocation7], 1
    %7909 = vsyncpa [#allocation10], 1
    %7910 = vsyncpa [#allocation13], 1
    %7911 = vsyncpa [#allocation16], 1
    %7912 = vsyncpa [#allocation5], 1
    %s7913 = scalar_lea.sflag [#allocation5], 1
    %7914 = vsyncpa %s7913, 1

</llo_original>
